<compile_context>
chip_gen: v7x
topology: tpu7x:2x2x1
jax: 0.10.0
libtpu: 0.0.40
codegen_flags: <defaults>
</compile_context>

<pallas_src>
import functools

import jax
import jax.numpy as jnp
from jax.experimental import pallas as pl
from jax.experimental.pallas import tpu as pltpu

# ----------------------------- model config ---------------------------------
CONV_LAYERS = ((128, 10, 5), (128, 3, 2), (128, 3, 2))  # (out_ch, kernel, stride)
HIDDEN = 128          # lane-dense hidden size
HEADS = 4             # dh = 32
FFN = 256
NUM_LAYERS = 2
OUT_DIM = 16          # fc output kept at its true (unpadded) width


def _conv_out_len(length):
    for (_, k, s) in CONV_LAYERS:
        length = (length - k) // s + 1
    return length


# ------------------------------ in-kernel math -------------------------------
def _gelu(x):
    # TODO(synk): HF Hubert uses exact erf GELU; tanh approximation used here.
    c = jnp.float32(0.7978845608028654)  # sqrt(2/pi)
    return 0.5 * x * (1.0 + jnp.tanh(c * (x + 0.044715 * x * x * x)))


def _layernorm(x, g, b, eps):
    mu = jnp.mean(x, axis=-1, keepdims=True)
    var = jnp.mean((x - mu) ** 2, axis=-1, keepdims=True)
    return (x - mu) * jax.lax.rsqrt(var + eps) * g + b


def _mean_all(x):
    # (R, C) -> (1, 1); two-step reduction (all rows have equal width).
    return jnp.mean(jnp.mean(x, axis=-1, keepdims=True), axis=0, keepdims=True)


def _strided_conv_gelu(x, w_ref, t_out, kernel, stride):
    """Conv1d(kernel, stride) + GELU on a VMEM-resident (t_in, C) activation.

    Patch construction happens fully in-kernel: the stride decimation is
    expressed as tiny 0/1 selection matmuls built from a 2-D iota, so no
    im2col buffer ever round-trips through HBM."""
    t_in = x.shape[0]
    rows = jax.lax.broadcasted_iota(jnp.int32, (t_out, t_in), 0)
    cols = jax.lax.broadcasted_iota(jnp.int32, (t_out, t_in), 1)
    xb = x.astype(jnp.bfloat16)
    y = None
    for j in range(kernel):
        sel = (cols == stride * rows + j).astype(jnp.bfloat16)   # (t_out, t_in)
        xj = jnp.dot(sel, xb, preferred_element_type=jnp.float32)
        yj = jnp.dot(xj.astype(jnp.bfloat16), w_ref[j],
                     preferred_element_type=jnp.float32)
        y = yj if y is None else y + yj
    return _gelu(y)


# ------------------------- fused trunk kernel --------------------------------
def _trunk_kernel(wave_ref,
                  c1w_ref, gng_ref, gnb_ref, c2w_ref, c3w_ref,
                  fplng_ref, fplnb_ref, fpw_ref, fpb_ref, elng_ref, elnb_ref,
                  qkvw_ref, qkvb_ref, wo_ref, bo_ref,
                  ln1g_ref, ln1b_ref, w1_ref, b1_ref, w2_ref, b2_ref,
                  ln2g_ref, ln2b_ref,
                  o_ref,
                  attn_ref,
                  *, t1, t2, t3, heads, k1, k23, s23,
                  eps_wav, eps_gn, eps_ln):
    # ---- processor: per-utterance zero-mean / unit-variance ----
    w = wave_ref[0].astype(jnp.float32)                      # (S/s1, s1)
    mu = _mean_all(w)
    var = _mean_all((w - mu) ** 2)
    wn = (w - mu) * jax.lax.rsqrt(var + eps_wav)

    # ---- conv1 (kernel == 2*stride): window t = frame rows t and t+1 ----
    half = k1 // 2
    c1w = c1w_ref[...]
    y = (jnp.dot(wn[0:t1, :].astype(jnp.bfloat16), c1w[:half, :],
                 preferred_element_type=jnp.float32)
         + jnp.dot(wn[1:t1 + 1, :].astype(jnp.bfloat16), c1w[half:, :],
                   preferred_element_type=jnp.float32))      # (t1, C)

    # GroupNorm(num_groups=C): per-channel stats over time, affine, GELU.
    mu_t = jnp.mean(y, axis=0, keepdims=True)
    var_t = jnp.mean((y - mu_t) ** 2, axis=0, keepdims=True)
    y = (y - mu_t) * jax.lax.rsqrt(var_t + eps_gn) * gng_ref[...] + gnb_ref[...]
    x = _gelu(y)

    # ---- conv2 / conv3 (+GELU), patches built in-kernel ----
    x = _strided_conv_gelu(x, c2w_ref, t2, k23, s23)          # (t2, C)
    x = _strided_conv_gelu(x, c3w_ref, t3, k23, s23)          # (t3, C)

    # ---- feature projection: LN -> Linear -> LN ----
    # TODO(synk): HF positional conv embedding (Conv1d k=128, groups=16) omitted.
    h = _layernorm(x, fplng_ref[...], fplnb_ref[...], eps_ln)
    h = jnp.dot(h.astype(jnp.bfloat16), fpw_ref[...],
                preferred_element_type=jnp.float32) + fpb_ref[...]
    h = _layernorm(h, elng_ref[...], elnb_ref[...], eps_ln)   # (t3, H)

    # ---- transformer encoder layers (post-LN), fully VMEM resident ----
    num_layers = qkvw_ref.shape[0]
    hdim = qkvw_ref.shape[1]
    dh = hdim // heads
    for l in range(num_layers):
        qkv = jnp.dot(h.astype(jnp.bfloat16), qkvw_ref[l],
                      preferred_element_type=jnp.float32) + qkvb_ref[l]
        # Per-head attention; head outputs land in a (T, H) VMEM scratch at
        # lane offset hd*dh -> ONE (T,H)@(H,H) Wo matmul finishes attention.
        # TODO(synk): at real scale (12 heads, T~1214) tile the query axis with
        # an online softmax instead of whole-sequence scores (v7x 64 MiB VMEM).
        for hd in range(heads):
            lo = hd * dh
            qh = qkv[:, lo:lo + dh].astype(jnp.bfloat16)
            kh = qkv[:, hdim + lo:hdim + lo + dh].astype(jnp.bfloat16)
            vh = qkv[:, 2 * hdim + lo:2 * hdim + lo + dh].astype(jnp.bfloat16)
            s = jax.lax.dot_general(qh, kh, (((1,), (1,)), ((), ())),
                                    preferred_element_type=jnp.float32)  # (T,T)
            m = jnp.max(s, axis=-1, keepdims=True)
            p = jnp.exp(s - m)
            p = p / jnp.sum(p, axis=-1, keepdims=True)        # exact softmax
            attn_ref[:, lo:lo + dh] = jnp.dot(
                p.astype(jnp.bfloat16), vh, preferred_element_type=jnp.float32)
        a = jnp.dot(attn_ref[...].astype(jnp.bfloat16), wo_ref[l],
                    preferred_element_type=jnp.float32) + bo_ref[l]
        h = _layernorm(h + a, ln1g_ref[l], ln1b_ref[l], eps_ln)

        f = jnp.dot(h.astype(jnp.bfloat16), w1_ref[l],
                    preferred_element_type=jnp.float32) + b1_ref[l]
        f = _gelu(f)
        f = jnp.dot(f.astype(jnp.bfloat16), w2_ref[l],
                    preferred_element_type=jnp.float32) + b2_ref[l]
        h = _layernorm(h + f, ln2g_ref[l], ln2b_ref[l], eps_ln)

    o_ref[0] = h.astype(o_ref.dtype)


def trunk_forward(wave_frames, p, *, t1, t2, t3):
    B = wave_frames.shape[0]
    weights = (p["conv1_w"], p["gn_g"], p["gn_b"], p["conv2_w"], p["conv3_w"],
               p["fp_ln_g"], p["fp_ln_b"], p["fp_w"], p["fp_b"],
               p["enc_ln_g"], p["enc_ln_b"],
               p["qkv_w"], p["qkv_b"], p["wo"], p["bo"],
               p["ln1_g"], p["ln1_b"], p["w1"], p["b1"], p["w2"], p["b2"],
               p["ln2_g"], p["ln2_b"])

    # Grid-invariant weights: full-array block, constant index_map (the
    # pipeline does not re-DMA them across grid steps).
    # TODO(synk): at real scale add pipeline_mode=pl.Buffered(1) so the large
    # weights are single- rather than double-buffered in VMEM.
    def full_spec(a):
        return pl.BlockSpec(a.shape, lambda i: (0,) * a.ndim)

    k1 = CONV_LAYERS[0][1]
    k23, s23 = CONV_LAYERS[1][1], CONV_LAYERS[1][2]
    return pl.pallas_call(
        functools.partial(_trunk_kernel, t1=t1, t2=t2, t3=t3, heads=HEADS,
                          k1=k1, k23=k23, s23=s23,
                          eps_wav=1e-7, eps_gn=1e-5, eps_ln=1e-5),
        out_shape=jax.ShapeDtypeStruct((B, t3, HIDDEN), jnp.bfloat16),
        grid=(B,),
        in_specs=[pl.BlockSpec((1,) + wave_frames.shape[1:],
                               lambda i: (i, 0, 0))]
                 + [full_spec(w) for w in weights],
        out_specs=pl.BlockSpec((1, t3, HIDDEN), lambda i: (i, 0, 0)),
        scratch_shapes=[pltpu.VMEM((t3, HIDDEN), jnp.float32)],
        compiler_params=pltpu.CompilerParams(
            dimension_semantics=("parallel",),
            vmem_limit_bytes=32 * 1024 * 1024),
    )(wave_frames, *weights)


# ------------------------- final fc (K-tiled matmul) -------------------------
def _fc_kernel(x_ref, w_ref, b_ref, o_ref, acc_ref):
    @pl.when(pl.program_id(0) == 0)
    def _():
        acc_ref[...] = jnp.zeros_like(acc_ref)

    acc_ref[...] += jnp.dot(x_ref[...], w_ref[...],
                            preferred_element_type=jnp.float32)

    @pl.when(pl.program_id(0) == pl.num_programs(0) - 1)
    def _():
        o_ref[...] = (acc_ref[...] + b_ref[...]).astype(o_ref.dtype)


def _pick_k_tile(K, cap=8192):
    best = K
    for tk in range(128, min(cap, K) + 1, 128):
        if K % tk == 0:
            best = tk
    return best


def fc_tiled(flat, w, b):
    B, K = flat.shape
    N = w.shape[1]                      # true OUT_DIM, no lane padding
    tk = _pick_k_tile(K)
    nsteps = K // tk
    # Deeper weight pipeline only when there is actually something to stream.
    if nsteps >= 3:
        w_spec = pl.BlockSpec((tk, N), lambda k: (k, 0),
                              pipeline_mode=pl.Buffered(3))
    else:
        w_spec = pl.BlockSpec((tk, N), lambda k: (k, 0))
    return pl.pallas_call(
        _fc_kernel,
        out_shape=jax.ShapeDtypeStruct((B, N), jnp.float32),
        grid=(nsteps,),
        in_specs=[pl.BlockSpec((B, tk), lambda k: (0, k)),
                  w_spec,
                  pl.BlockSpec((1, N), lambda k: (0, 0))],
        out_specs=pl.BlockSpec((B, N), lambda k: (0, 0)),
        scratch_shapes=[pltpu.VMEM((B, N), jnp.float32)],
        compiler_params=pltpu.CompilerParams(
            dimension_semantics=("arbitrary",),
            vmem_limit_bytes=32 * 1024 * 1024),
    )(flat, w, b)


# -------------------------------- params -------------------------------------
def init_params(key, samples):
    keys = iter(jax.random.split(key, 32))
    p = {}
    C, k1, s1 = CONV_LAYERS[0]
    assert k1 == 2 * s1 and samples % s1 == 0
    assert CONV_LAYERS[1][1:] == CONV_LAYERS[2][1:]

    # conv feature encoder (bias-free, matching HF conv_bias=False)
    p["conv1_w"] = (0.1 * jax.random.normal(next(keys), (k1, C),
                                            jnp.float32)).astype(jnp.bfloat16)
    p["gn_g"] = jnp.ones((1, C), jnp.float32)
    p["gn_b"] = jnp.zeros((1, C), jnp.float32)
    p["conv2_w"] = (0.1 * jax.random.normal(
        next(keys), (CONV_LAYERS[1][1], C, C), jnp.float32)).astype(jnp.bfloat16)
    p["conv3_w"] = (0.1 * jax.random.normal(
        next(keys), (CONV_LAYERS[2][1], C, C), jnp.float32)).astype(jnp.bfloat16)

    # feature projection
    p["fp_ln_g"] = jnp.ones((1, C), jnp.float32)
    p["fp_ln_b"] = jnp.zeros((1, C), jnp.float32)
    p["fp_w"] = (0.1 * jax.random.normal(next(keys), (C, HIDDEN),
                                         jnp.float32)).astype(jnp.bfloat16)
    p["fp_b"] = jnp.zeros((1, HIDDEN), jnp.float32)
    p["enc_ln_g"] = jnp.ones((1, HIDDEN), jnp.float32)
    p["enc_ln_b"] = jnp.zeros((1, HIDDEN), jnp.float32)

    # transformer layers, stacked along a leading layer axis
    dh = HIDDEN // HEADS
    scale = 1.0 / (dh ** 0.5)
    wq = 0.1 * jax.random.normal(next(keys), (NUM_LAYERS, HIDDEN, HIDDEN), jnp.float32)
    wk = 0.1 * jax.random.normal(next(keys), (NUM_LAYERS, HIDDEN, HIDDEN), jnp.float32)
    wv = 0.1 * jax.random.normal(next(keys), (NUM_LAYERS, HIDDEN, HIDDEN), jnp.float32)
    p["qkv_w"] = jnp.concatenate([wq * scale, wk, wv], axis=2).astype(jnp.bfloat16)
    p["qkv_b"] = jnp.zeros((NUM_LAYERS, 1, 3 * HIDDEN), jnp.float32)
    p["wo"] = (0.1 * jax.random.normal(next(keys), (NUM_LAYERS, HIDDEN, HIDDEN),
                                       jnp.float32)).astype(jnp.bfloat16)
    p["bo"] = jnp.zeros((NUM_LAYERS, 1, HIDDEN), jnp.float32)
    p["ln1_g"] = jnp.ones((NUM_LAYERS, 1, HIDDEN), jnp.float32)
    p["ln1_b"] = jnp.zeros((NUM_LAYERS, 1, HIDDEN), jnp.float32)
    p["w1"] = (0.1 * jax.random.normal(next(keys), (NUM_LAYERS, HIDDEN, FFN),
                                       jnp.float32)).astype(jnp.bfloat16)
    p["b1"] = jnp.zeros((NUM_LAYERS, 1, FFN), jnp.float32)
    p["w2"] = (0.1 * jax.random.normal(next(keys), (NUM_LAYERS, FFN, HIDDEN),
                                       jnp.float32)).astype(jnp.bfloat16)
    p["b2"] = jnp.zeros((NUM_LAYERS, 1, HIDDEN), jnp.float32)
    p["ln2_g"] = jnp.ones((NUM_LAYERS, 1, HIDDEN), jnp.float32)
    p["ln2_b"] = jnp.zeros((NUM_LAYERS, 1, HIDDEN), jnp.float32)

    # final fc: Linear(T*hidden, out_dim) at its true (unpadded) width
    T = _conv_out_len(samples)
    p["fc_w"] = (0.05 * jax.random.normal(next(keys), (T * HIDDEN, OUT_DIM),
                                          jnp.float32)).astype(jnp.bfloat16)
    p["fc_b"] = jnp.zeros((1, OUT_DIM), jnp.float32)
    return p


# -------------------------------- forward ------------------------------------
def hubert_encoder_forward(params, audio):
    B, _, S = audio.shape
    s1 = CONV_LAYERS[0][2]
    t = S
    ts = []
    for (_, k, s) in CONV_LAYERS:
        t = (t - k) // s + 1
        ts.append(t)
    t1, t2, t3 = ts

    # processor squeeze(1) + frame view (B, S/5, 5); contiguous reshape of the
    # raw input (the only JAX-side data movement besides the final flatten).
    wave_frames = audio[:, 0, :].reshape(B, S // s1, s1)

    h = trunk_forward(wave_frames, params, t1=t1, t2=t2, t3=t3)  # (B,t3,H) bf16
    flat = h.reshape(B, t3 * HIDDEN)                             # flatten(1)
    return fc_tiled(flat, params["fc_w"], params["fc_b"])        # (B, OUT_DIM)


if __name__ == "__main__":
    # S chosen so the transformer sequence length is 16 (sublane aligned) and
    # the flattened fc contraction is 16*128 = 2048 (lane aligned).
    B, S = 2, 340
    key = jax.random.PRNGKey(0)
    k_audio, k_params = jax.random.split(key)
    audio = jax.random.normal(k_audio, (B, 1, S), jnp.float32)
    params = init_params(k_params, S)

    fwd = jax.jit(hubert_encoder_forward)
    out = fwd(params, audio)
    out = jax.block_until_ready(out)
    assert out.shape == (B, OUT_DIM) and out.dtype == jnp.float32
    assert bool(jnp.all(jnp.isfinite(out)))
    print("KERNEL_OK")
</pallas_src>

<mosaic_0001>
module attributes {stable_mosaic.version = 11 : i64} {
  func.func @_trunk_kernel(%arg0: i32, %arg1: memref<1x68x5xf32, #tpu.memory_space<vmem>>, %arg2: memref<10x128xbf16, #tpu.memory_space<vmem>>, %arg3: memref<1x128xf32, #tpu.memory_space<vmem>>, %arg4: memref<1x128xf32, #tpu.memory_space<vmem>>, %arg5: memref<3x128x128xbf16, #tpu.memory_space<vmem>>, %arg6: memref<3x128x128xbf16, #tpu.memory_space<vmem>>, %arg7: memref<1x128xf32, #tpu.memory_space<vmem>>, %arg8: memref<1x128xf32, #tpu.memory_space<vmem>>, %arg9: memref<128x128xbf16, #tpu.memory_space<vmem>>, %arg10: memref<1x128xf32, #tpu.memory_space<vmem>>, %arg11: memref<1x128xf32, #tpu.memory_space<vmem>>, %arg12: memref<1x128xf32, #tpu.memory_space<vmem>>, %arg13: memref<2x128x384xbf16, #tpu.memory_space<vmem>>, %arg14: memref<2x1x384xf32, #tpu.memory_space<vmem>>, %arg15: memref<2x128x128xbf16, #tpu.memory_space<vmem>>, %arg16: memref<2x1x128xf32, #tpu.memory_space<vmem>>, %arg17: memref<2x1x128xf32, #tpu.memory_space<vmem>>, %arg18: memref<2x1x128xf32, #tpu.memory_space<vmem>>, %arg19: memref<2x128x256xbf16, #tpu.memory_space<vmem>>, %arg20: memref<2x1x256xf32, #tpu.memory_space<vmem>>, %arg21: memref<2x256x128xbf16, #tpu.memory_space<vmem>>, %arg22: memref<2x1x128xf32, #tpu.memory_space<vmem>>, %arg23: memref<2x1x128xf32, #tpu.memory_space<vmem>>, %arg24: memref<2x1x128xf32, #tpu.memory_space<vmem>>, %arg25: memref<1x16x128xbf16, #tpu.memory_space<vmem>>, %arg26: memref<16x128xf32, #tpu.memory_space<vmem>>) attributes {dimension_semantics = [#tpu.dimension_semantics<parallel>], iteration_bounds = array<i64: 2>, scalar_prefetch = 0 : i64, scratch_operands = 1 : i64, tpu.core_type = #tpu.core_type<tc>, window_params = [{transform_indices = @transform_0, window_bounds = array<i64: 1, 68, 5>}, {pipeline_mode = #tpu.pipeline_mode<synchronous>, transform_indices = @transform_1, window_bounds = array<i64: 10, 128>}, {pipeline_mode = #tpu.pipeline_mode<synchronous>, transform_indices = @transform_2, window_bounds = array<i64: 1, 128>}, {pipeline_mode = #tpu.pipeline_mode<synchronous>, transform_indices = @transform_3, window_bounds = array<i64: 1, 128>}, {pipeline_mode = #tpu.pipeline_mode<synchronous>, transform_indices = @transform_4, window_bounds = array<i64: 3, 128, 128>}, {pipeline_mode = #tpu.pipeline_mode<synchronous>, transform_indices = @transform_5, window_bounds = array<i64: 3, 128, 128>}, {pipeline_mode = #tpu.pipeline_mode<synchronous>, transform_indices = @transform_6, window_bounds = array<i64: 1, 128>}, {pipeline_mode = #tpu.pipeline_mode<synchronous>, transform_indices = @transform_7, window_bounds = array<i64: 1, 128>}, {pipeline_mode = #tpu.pipeline_mode<synchronous>, transform_indices = @transform_8, window_bounds = array<i64: 128, 128>}, {pipeline_mode = #tpu.pipeline_mode<synchronous>, transform_indices = @transform_9, window_bounds = array<i64: 1, 128>}, {pipeline_mode = #tpu.pipeline_mode<synchronous>, transform_indices = @transform_10, window_bounds = array<i64: 1, 128>}, {pipeline_mode = #tpu.pipeline_mode<synchronous>, transform_indices = @transform_11, window_bounds = array<i64: 1, 128>}, {pipeline_mode = #tpu.pipeline_mode<synchronous>, transform_indices = @transform_12, window_bounds = array<i64: 2, 128, 384>}, {pipeline_mode = #tpu.pipeline_mode<synchronous>, transform_indices = @transform_13, window_bounds = array<i64: 2, 1, 384>}, {pipeline_mode = #tpu.pipeline_mode<synchronous>, transform_indices = @transform_14, window_bounds = array<i64: 2, 128, 128>}, {pipeline_mode = #tpu.pipeline_mode<synchronous>, transform_indices = @transform_15, window_bounds = array<i64: 2, 1, 128>}, {pipeline_mode = #tpu.pipeline_mode<synchronous>, transform_indices = @transform_16, window_bounds = array<i64: 2, 1, 128>}, {pipeline_mode = #tpu.pipeline_mode<synchronous>, transform_indices = @transform_17, window_bounds = array<i64: 2, 1, 128>}, {pipeline_mode = #tpu.pipeline_mode<synchronous>, transform_indices = @transform_18, window_bounds = array<i64: 2, 128, 256>}, {pipeline_mode = #tpu.pipeline_mode<synchronous>, transform_indices = @transform_19, window_bounds = array<i64: 2, 1, 256>}, {pipeline_mode = #tpu.pipeline_mode<synchronous>, transform_indices = @transform_20, window_bounds = array<i64: 2, 256, 128>}, {pipeline_mode = #tpu.pipeline_mode<synchronous>, transform_indices = @transform_21, window_bounds = array<i64: 2, 1, 128>}, {pipeline_mode = #tpu.pipeline_mode<synchronous>, transform_indices = @transform_22, window_bounds = array<i64: 2, 1, 128>}, {pipeline_mode = #tpu.pipeline_mode<synchronous>, transform_indices = @transform_23, window_bounds = array<i64: 2, 1, 128>}, {transform_indices = @transform_24, window_bounds = array<i64: 1, 16, 128>}]} {
    %c0 = arith.constant 0 : index
    %c0_0 = arith.constant 0 : index
    %c0_1 = arith.constant 0 : index
    %0 = vector.load %arg1[%c0, %c0_0, %c0_1] : memref<1x68x5xf32, #tpu.memory_space<vmem>>, vector<1x68x5xf32>
    %1 = vector.shape_cast %0 : vector<1x68x5xf32> to vector<68x5xf32>
    %cst = arith.constant dense<0.000000e+00> : vector<68xf32>
    %2 = vector.multi_reduction <add>, %1, %cst [1] : vector<68x5xf32> to vector<68xf32>
    %3 = vector.shape_cast %2 : vector<68xf32> to vector<68x1xf32>
    %cst_2 = arith.constant 5.000000e+00 : f32
    %4 = vector.broadcast %cst_2 : f32 to vector<68x1xf32>
    %5 = arith.divf %3, %4 : vector<68x1xf32>
    %cst_3 = arith.constant dense<0.000000e+00> : vector<1xf32>
    %6 = vector.multi_reduction <add>, %5, %cst_3 [0] : vector<68x1xf32> to vector<1xf32>
    %7 = vector.shape_cast %6 : vector<1xf32> to vector<1x1xf32>
    %cst_4 = arith.constant 6.800000e+01 : f32
    %8 = vector.broadcast %cst_4 : f32 to vector<1x1xf32>
    %9 = arith.divf %7, %8 : vector<1x1xf32>
    %10 = vector.broadcast %9 : vector<1x1xf32> to vector<68x5xf32>
    %11 = arith.subf %1, %10 : vector<68x5xf32>
    %12 = arith.mulf %11, %11 : vector<68x5xf32>
    %cst_5 = arith.constant dense<0.000000e+00> : vector<68xf32>
    %13 = vector.multi_reduction <add>, %12, %cst_5 [1] : vector<68x5xf32> to vector<68xf32>
    %14 = vector.shape_cast %13 : vector<68xf32> to vector<68x1xf32>
    %cst_6 = arith.constant 5.000000e+00 : f32
    %15 = vector.broadcast %cst_6 : f32 to vector<68x1xf32>
    %16 = arith.divf %14, %15 : vector<68x1xf32>
    %cst_7 = arith.constant dense<0.000000e+00> : vector<1xf32>
    %17 = vector.multi_reduction <add>, %16, %cst_7 [0] : vector<68x1xf32> to vector<1xf32>
    %18 = vector.shape_cast %17 : vector<1xf32> to vector<1x1xf32>
    %cst_8 = arith.constant 6.800000e+01 : f32
    %19 = vector.broadcast %cst_8 : f32 to vector<1x1xf32>
    %20 = arith.divf %18, %19 : vector<1x1xf32>
    %21 = vector.broadcast %9 : vector<1x1xf32> to vector<68x5xf32>
    %22 = arith.subf %1, %21 : vector<68x5xf32>
    %cst_9 = arith.constant 1.000000e-07 : f32
    %23 = vector.broadcast %cst_9 : f32 to vector<1x1xf32>
    %24 = arith.addf %20, %23 : vector<1x1xf32>
    %25 = math.rsqrt %24 : vector<1x1xf32>
    %26 = vector.broadcast %25 : vector<1x1xf32> to vector<68x5xf32>
    %27 = arith.mulf %22, %26 : vector<68x5xf32>
    %c0_10 = arith.constant 0 : index
    %c0_11 = arith.constant 0 : index
    %28 = vector.load %arg2[%c0_10, %c0_11] : memref<10x128xbf16, #tpu.memory_space<vmem>>, vector<10x128xbf16>
    %29 = vector.extract_strided_slice %27 {offsets = [0, 0], sizes = [67, 5], strides = [1, 1]} : vector<68x5xf32> to vector<67x5xf32>
    %30 = arith.truncf %29 : vector<67x5xf32> to vector<67x5xbf16>
    %31 = vector.extract_strided_slice %28 {offsets = [0, 0], sizes = [5, 128], strides = [1, 1]} : vector<10x128xbf16> to vector<5x128xbf16>
    %cst_12 = arith.constant dense<0.000000e+00> : vector<67x128xf32>
    %32 = tpu.matmul %30, %31, %cst_12 {dimension_numbers = #tpu.dot_dimension_numbers<[1], [0], [0], [1], [0, 0, 1, 1], [], []>} : vector<67x5xbf16>, vector<5x128xbf16>, vector<67x128xf32> -> vector<67x128xf32>
    %33 = vector.extract_strided_slice %27 {offsets = [1, 0], sizes = [67, 5], strides = [1, 1]} : vector<68x5xf32> to vector<67x5xf32>
    %34 = arith.truncf %33 : vector<67x5xf32> to vector<67x5xbf16>
    %35 = vector.extract_strided_slice %28 {offsets = [5, 0], sizes = [5, 128], strides = [1, 1]} : vector<10x128xbf16> to vector<5x128xbf16>
    %cst_13 = arith.constant dense<0.000000e+00> : vector<67x128xf32>
    %36 = tpu.matmul %34, %35, %cst_13 {dimension_numbers = #tpu.dot_dimension_numbers<[1], [0], [0], [1], [0, 0, 1, 1], [], []>} : vector<67x5xbf16>, vector<5x128xbf16>, vector<67x128xf32> -> vector<67x128xf32>
    %37 = arith.addf %32, %36 : vector<67x128xf32>
    %cst_14 = arith.constant dense<0.000000e+00> : vector<128xf32>
    %38 = vector.multi_reduction <add>, %37, %cst_14 [0] : vector<67x128xf32> to vector<128xf32>
    %39 = vector.shape_cast %38 : vector<128xf32> to vector<1x128xf32>
    %cst_15 = arith.constant 6.700000e+01 : f32
    %40 = vector.broadcast %cst_15 : f32 to vector<1x128xf32>
    %41 = arith.divf %39, %40 : vector<1x128xf32>
    %42 = vector.broadcast %41 : vector<1x128xf32> to vector<67x128xf32>
    %43 = arith.subf %37, %42 : vector<67x128xf32>
    %44 = arith.mulf %43, %43 : vector<67x128xf32>
    %cst_16 = arith.constant dense<0.000000e+00> : vector<128xf32>
    %45 = vector.multi_reduction <add>, %44, %cst_16 [0] : vector<67x128xf32> to vector<128xf32>
    %46 = vector.shape_cast %45 : vector<128xf32> to vector<1x128xf32>
    %cst_17 = arith.constant 6.700000e+01 : f32
    %47 = vector.broadcast %cst_17 : f32 to vector<1x128xf32>
    %48 = arith.divf %46, %47 : vector<1x128xf32>
    %49 = vector.broadcast %41 : vector<1x128xf32> to vector<67x128xf32>
    %50 = arith.subf %37, %49 : vector<67x128xf32>
    %cst_18 = arith.constant 9.99999974E-6 : f32
    %51 = vector.broadcast %cst_18 : f32 to vector<1x128xf32>
    %52 = arith.addf %48, %51 : vector<1x128xf32>
    %53 = math.rsqrt %52 : vector<1x128xf32>
    %54 = vector.broadcast %53 : vector<1x128xf32> to vector<67x128xf32>
    %55 = arith.mulf %50, %54 : vector<67x128xf32>
    %c0_19 = arith.constant 0 : index
    %c0_20 = arith.constant 0 : index
    %56 = vector.load %arg3[%c0_19, %c0_20] : memref<1x128xf32, #tpu.memory_space<vmem>>, vector<1x128xf32>
    %57 = vector.broadcast %56 : vector<1x128xf32> to vector<67x128xf32>
    %58 = arith.mulf %55, %57 : vector<67x128xf32>
    %c0_21 = arith.constant 0 : index
    %c0_22 = arith.constant 0 : index
    %59 = vector.load %arg4[%c0_21, %c0_22] : memref<1x128xf32, #tpu.memory_space<vmem>>, vector<1x128xf32>
    %60 = vector.broadcast %59 : vector<1x128xf32> to vector<67x128xf32>
    %61 = arith.addf %58, %60 : vector<67x128xf32>
    %cst_23 = arith.constant 5.000000e-01 : f32
    %62 = vector.broadcast %cst_23 : f32 to vector<67x128xf32>
    %63 = arith.mulf %62, %61 : vector<67x128xf32>
    %cst_24 = arith.constant 4.471500e-02 : f32
    %64 = vector.broadcast %cst_24 : f32 to vector<67x128xf32>
    %65 = arith.mulf %64, %61 : vector<67x128xf32>
    %66 = arith.mulf %65, %61 : vector<67x128xf32>
    %67 = arith.mulf %66, %61 : vector<67x128xf32>
    %68 = arith.addf %61, %67 : vector<67x128xf32>
    %cst_25 = arith.constant 0.797884583 : f32
    %69 = vector.broadcast %cst_25 : f32 to vector<67x128xf32>
    %70 = arith.mulf %69, %68 : vector<67x128xf32>
    %71 = math.tanh %70 : vector<67x128xf32>
    %cst_26 = arith.constant 1.000000e+00 : f32
    %72 = vector.broadcast %cst_26 : f32 to vector<67x128xf32>
    %73 = arith.addf %72, %71 : vector<67x128xf32>
    %74 = arith.mulf %63, %73 : vector<67x128xf32>
    %75 = tpu.iota {dimensions = array<i32: 0>} : vector<33x67xi32>
    %76 = tpu.iota {dimensions = array<i32: 1>} : vector<33x67xi32>
    %77 = arith.truncf %74 : vector<67x128xf32> to vector<67x128xbf16>
    %c2_i32 = arith.constant 2 : i32
    %78 = vector.broadcast %c2_i32 : i32 to vector<33x67xi32>
    %79 = arith.muli %78, %75 : vector<33x67xi32>
    %c0_i32 = arith.constant 0 : i32
    %80 = vector.broadcast %c0_i32 : i32 to vector<33x67xi32>
    %81 = arith.addi %79, %80 : vector<33x67xi32>
    %82 = arith.cmpi eq, %76, %81 : vector<33x67xi32>
    %83 = arith.extui %82 : vector<33x67xi1> to vector<33x67xi32>
    %84 = arith.sitofp %83 : vector<33x67xi32> to vector<33x67xf32>
    %85 = arith.truncf %84 : vector<33x67xf32> to vector<33x67xbf16>
    %cst_27 = arith.constant dense<0.000000e+00> : vector<33x128xf32>
    %86 = tpu.matmul %85, %77, %cst_27 {dimension_numbers = #tpu.dot_dimension_numbers<[1], [0], [0], [1], [0, 0, 1, 1], [], []>} : vector<33x67xbf16>, vector<67x128xbf16>, vector<33x128xf32> -> vector<33x128xf32>
    %87 = arith.truncf %86 : vector<33x128xf32> to vector<33x128xbf16>
    %c0_28 = arith.constant 0 : index
    %c0_29 = arith.constant 0 : index
    %c0_30 = arith.constant 0 : index
    %88 = vector.load %arg5[%c0_28, %c0_29, %c0_30] : memref<3x128x128xbf16, #tpu.memory_space<vmem>>, vector<1x128x128xbf16>
    %89 = vector.shape_cast %88 : vector<1x128x128xbf16> to vector<128x128xbf16>
    %cst_31 = arith.constant dense<0.000000e+00> : vector<33x128xf32>
    %90 = tpu.matmul %87, %89, %cst_31 {dimension_numbers = #tpu.dot_dimension_numbers<[1], [0], [0], [1], [0, 0, 1, 1], [], []>} : vector<33x128xbf16>, vector<128x128xbf16>, vector<33x128xf32> -> vector<33x128xf32>
    %c2_i32_32 = arith.constant 2 : i32
    %91 = vector.broadcast %c2_i32_32 : i32 to vector<33x67xi32>
    %92 = arith.muli %91, %75 : vector<33x67xi32>
    %c1_i32 = arith.constant 1 : i32
    %93 = vector.broadcast %c1_i32 : i32 to vector<33x67xi32>
    %94 = arith.addi %92, %93 : vector<33x67xi32>
    %95 = arith.cmpi eq, %76, %94 : vector<33x67xi32>
    %96 = arith.extui %95 : vector<33x67xi1> to vector<33x67xi32>
    %97 = arith.sitofp %96 : vector<33x67xi32> to vector<33x67xf32>
    %98 = arith.truncf %97 : vector<33x67xf32> to vector<33x67xbf16>
    %cst_33 = arith.constant dense<0.000000e+00> : vector<33x128xf32>
    %99 = tpu.matmul %98, %77, %cst_33 {dimension_numbers = #tpu.dot_dimension_numbers<[1], [0], [0], [1], [0, 0, 1, 1], [], []>} : vector<33x67xbf16>, vector<67x128xbf16>, vector<33x128xf32> -> vector<33x128xf32>
    %100 = arith.truncf %99 : vector<33x128xf32> to vector<33x128xbf16>
    %c1 = arith.constant 1 : index
    %c0_34 = arith.constant 0 : index
    %c0_35 = arith.constant 0 : index
    %101 = vector.load %arg5[%c1, %c0_34, %c0_35] : memref<3x128x128xbf16, #tpu.memory_space<vmem>>, vector<1x128x128xbf16>
    %102 = vector.shape_cast %101 : vector<1x128x128xbf16> to vector<128x128xbf16>
    %cst_36 = arith.constant dense<0.000000e+00> : vector<33x128xf32>
    %103 = tpu.matmul %100, %102, %cst_36 {dimension_numbers = #tpu.dot_dimension_numbers<[1], [0], [0], [1], [0, 0, 1, 1], [], []>} : vector<33x128xbf16>, vector<128x128xbf16>, vector<33x128xf32> -> vector<33x128xf32>
    %104 = arith.addf %90, %103 : vector<33x128xf32>
    %c2_i32_37 = arith.constant 2 : i32
    %105 = vector.broadcast %c2_i32_37 : i32 to vector<33x67xi32>
    %106 = arith.muli %105, %75 : vector<33x67xi32>
    %c2_i32_38 = arith.constant 2 : i32
    %107 = vector.broadcast %c2_i32_38 : i32 to vector<33x67xi32>
    %108 = arith.addi %106, %107 : vector<33x67xi32>
    %109 = arith.cmpi eq, %76, %108 : vector<33x67xi32>
    %110 = arith.extui %109 : vector<33x67xi1> to vector<33x67xi32>
    %111 = arith.sitofp %110 : vector<33x67xi32> to vector<33x67xf32>
    %112 = arith.truncf %111 : vector<33x67xf32> to vector<33x67xbf16>
    %cst_39 = arith.constant dense<0.000000e+00> : vector<33x128xf32>
    %113 = tpu.matmul %112, %77, %cst_39 {dimension_numbers = #tpu.dot_dimension_numbers<[1], [0], [0], [1], [0, 0, 1, 1], [], []>} : vector<33x67xbf16>, vector<67x128xbf16>, vector<33x128xf32> -> vector<33x128xf32>
    %114 = arith.truncf %113 : vector<33x128xf32> to vector<33x128xbf16>
    %c2 = arith.constant 2 : index
    %c0_40 = arith.constant 0 : index
    %c0_41 = arith.constant 0 : index
    %115 = vector.load %arg5[%c2, %c0_40, %c0_41] : memref<3x128x128xbf16, #tpu.memory_space<vmem>>, vector<1x128x128xbf16>
    %116 = vector.shape_cast %115 : vector<1x128x128xbf16> to vector<128x128xbf16>
    %cst_42 = arith.constant dense<0.000000e+00> : vector<33x128xf32>
    %117 = tpu.matmul %114, %116, %cst_42 {dimension_numbers = #tpu.dot_dimension_numbers<[1], [0], [0], [1], [0, 0, 1, 1], [], []>} : vector<33x128xbf16>, vector<128x128xbf16>, vector<33x128xf32> -> vector<33x128xf32>
    %118 = arith.addf %104, %117 : vector<33x128xf32>
    %cst_43 = arith.constant 5.000000e-01 : f32
    %119 = vector.broadcast %cst_43 : f32 to vector<33x128xf32>
    %120 = arith.mulf %119, %118 : vector<33x128xf32>
    %cst_44 = arith.constant 4.471500e-02 : f32
    %121 = vector.broadcast %cst_44 : f32 to vector<33x128xf32>
    %122 = arith.mulf %121, %118 : vector<33x128xf32>
    %123 = arith.mulf %122, %118 : vector<33x128xf32>
    %124 = arith.mulf %123, %118 : vector<33x128xf32>
    %125 = arith.addf %118, %124 : vector<33x128xf32>
    %cst_45 = arith.constant 0.797884583 : f32
    %126 = vector.broadcast %cst_45 : f32 to vector<33x128xf32>
    %127 = arith.mulf %126, %125 : vector<33x128xf32>
    %128 = math.tanh %127 : vector<33x128xf32>
    %cst_46 = arith.constant 1.000000e+00 : f32
    %129 = vector.broadcast %cst_46 : f32 to vector<33x128xf32>
    %130 = arith.addf %129, %128 : vector<33x128xf32>
    %131 = arith.mulf %120, %130 : vector<33x128xf32>
    %132 = tpu.iota {dimensions = array<i32: 0>} : vector<16x33xi32>
    %133 = tpu.iota {dimensions = array<i32: 1>} : vector<16x33xi32>
    %134 = arith.truncf %131 : vector<33x128xf32> to vector<33x128xbf16>
    %c2_i32_47 = arith.constant 2 : i32
    %135 = vector.broadcast %c2_i32_47 : i32 to vector<16x33xi32>
    %136 = arith.muli %135, %132 : vector<16x33xi32>
    %c0_i32_48 = arith.constant 0 : i32
    %137 = vector.broadcast %c0_i32_48 : i32 to vector<16x33xi32>
    %138 = arith.addi %136, %137 : vector<16x33xi32>
    %139 = arith.cmpi eq, %133, %138 : vector<16x33xi32>
    %140 = arith.extui %139 : vector<16x33xi1> to vector<16x33xi32>
    %141 = arith.sitofp %140 : vector<16x33xi32> to vector<16x33xf32>
    %142 = arith.truncf %141 : vector<16x33xf32> to vector<16x33xbf16>
    %cst_49 = arith.constant dense<0.000000e+00> : vector<16x128xf32>
    %143 = tpu.matmul %142, %134, %cst_49 {dimension_numbers = #tpu.dot_dimension_numbers<[1], [0], [0], [1], [0, 0, 1, 1], [], []>} : vector<16x33xbf16>, vector<33x128xbf16>, vector<16x128xf32> -> vector<16x128xf32>
    %144 = arith.truncf %143 : vector<16x128xf32> to vector<16x128xbf16>
    %c0_50 = arith.constant 0 : index
    %c0_51 = arith.constant 0 : index
    %c0_52 = arith.constant 0 : index
    %145 = vector.load %arg6[%c0_50, %c0_51, %c0_52] : memref<3x128x128xbf16, #tpu.memory_space<vmem>>, vector<1x128x128xbf16>
    %146 = vector.shape_cast %145 : vector<1x128x128xbf16> to vector<128x128xbf16>
    %cst_53 = arith.constant dense<0.000000e+00> : vector<16x128xf32>
    %147 = tpu.matmul %144, %146, %cst_53 {dimension_numbers = #tpu.dot_dimension_numbers<[1], [0], [0], [1], [0, 0, 1, 1], [], []>} : vector<16x128xbf16>, vector<128x128xbf16>, vector<16x128xf32> -> vector<16x128xf32>
    %c2_i32_54 = arith.constant 2 : i32
    %148 = vector.broadcast %c2_i32_54 : i32 to vector<16x33xi32>
    %149 = arith.muli %148, %132 : vector<16x33xi32>
    %c1_i32_55 = arith.constant 1 : i32
    %150 = vector.broadcast %c1_i32_55 : i32 to vector<16x33xi32>
    %151 = arith.addi %149, %150 : vector<16x33xi32>
    %152 = arith.cmpi eq, %133, %151 : vector<16x33xi32>
    %153 = arith.extui %152 : vector<16x33xi1> to vector<16x33xi32>
    %154 = arith.sitofp %153 : vector<16x33xi32> to vector<16x33xf32>
    %155 = arith.truncf %154 : vector<16x33xf32> to vector<16x33xbf16>
    %cst_56 = arith.constant dense<0.000000e+00> : vector<16x128xf32>
    %156 = tpu.matmul %155, %134, %cst_56 {dimension_numbers = #tpu.dot_dimension_numbers<[1], [0], [0], [1], [0, 0, 1, 1], [], []>} : vector<16x33xbf16>, vector<33x128xbf16>, vector<16x128xf32> -> vector<16x128xf32>
    %157 = arith.truncf %156 : vector<16x128xf32> to vector<16x128xbf16>
    %c1_57 = arith.constant 1 : index
    %c0_58 = arith.constant 0 : index
    %c0_59 = arith.constant 0 : index
    %158 = vector.load %arg6[%c1_57, %c0_58, %c0_59] : memref<3x128x128xbf16, #tpu.memory_space<vmem>>, vector<1x128x128xbf16>
    %159 = vector.shape_cast %158 : vector<1x128x128xbf16> to vector<128x128xbf16>
    %cst_60 = arith.constant dense<0.000000e+00> : vector<16x128xf32>
    %160 = tpu.matmul %157, %159, %cst_60 {dimension_numbers = #tpu.dot_dimension_numbers<[1], [0], [0], [1], [0, 0, 1, 1], [], []>} : vector<16x128xbf16>, vector<128x128xbf16>, vector<16x128xf32> -> vector<16x128xf32>
    %161 = arith.addf %147, %160 : vector<16x128xf32>
    %c2_i32_61 = arith.constant 2 : i32
    %162 = vector.broadcast %c2_i32_61 : i32 to vector<16x33xi32>
    %163 = arith.muli %162, %132 : vector<16x33xi32>
    %c2_i32_62 = arith.constant 2 : i32
    %164 = vector.broadcast %c2_i32_62 : i32 to vector<16x33xi32>
    %165 = arith.addi %163, %164 : vector<16x33xi32>
    %166 = arith.cmpi eq, %133, %165 : vector<16x33xi32>
    %167 = arith.extui %166 : vector<16x33xi1> to vector<16x33xi32>
    %168 = arith.sitofp %167 : vector<16x33xi32> to vector<16x33xf32>
    %169 = arith.truncf %168 : vector<16x33xf32> to vector<16x33xbf16>
    %cst_63 = arith.constant dense<0.000000e+00> : vector<16x128xf32>
    %170 = tpu.matmul %169, %134, %cst_63 {dimension_numbers = #tpu.dot_dimension_numbers<[1], [0], [0], [1], [0, 0, 1, 1], [], []>} : vector<16x33xbf16>, vector<33x128xbf16>, vector<16x128xf32> -> vector<16x128xf32>
    %171 = arith.truncf %170 : vector<16x128xf32> to vector<16x128xbf16>
    %c2_64 = arith.constant 2 : index
    %c0_65 = arith.constant 0 : index
    %c0_66 = arith.constant 0 : index
    %172 = vector.load %arg6[%c2_64, %c0_65, %c0_66] : memref<3x128x128xbf16, #tpu.memory_space<vmem>>, vector<1x128x128xbf16>
    %173 = vector.shape_cast %172 : vector<1x128x128xbf16> to vector<128x128xbf16>
    %cst_67 = arith.constant dense<0.000000e+00> : vector<16x128xf32>
    %174 = tpu.matmul %171, %173, %cst_67 {dimension_numbers = #tpu.dot_dimension_numbers<[1], [0], [0], [1], [0, 0, 1, 1], [], []>} : vector<16x128xbf16>, vector<128x128xbf16>, vector<16x128xf32> -> vector<16x128xf32>
    %175 = arith.addf %161, %174 : vector<16x128xf32>
    %cst_68 = arith.constant 5.000000e-01 : f32
    %176 = vector.broadcast %cst_68 : f32 to vector<16x128xf32>
    %177 = arith.mulf %176, %175 : vector<16x128xf32>
    %cst_69 = arith.constant 4.471500e-02 : f32
    %178 = vector.broadcast %cst_69 : f32 to vector<16x128xf32>
    %179 = arith.mulf %178, %175 : vector<16x128xf32>
    %180 = arith.mulf %179, %175 : vector<16x128xf32>
    %181 = arith.mulf %180, %175 : vector<16x128xf32>
    %182 = arith.addf %175, %181 : vector<16x128xf32>
    %cst_70 = arith.constant 0.797884583 : f32
    %183 = vector.broadcast %cst_70 : f32 to vector<16x128xf32>
    %184 = arith.mulf %183, %182 : vector<16x128xf32>
    %185 = math.tanh %184 : vector<16x128xf32>
    %cst_71 = arith.constant 1.000000e+00 : f32
    %186 = vector.broadcast %cst_71 : f32 to vector<16x128xf32>
    %187 = arith.addf %186, %185 : vector<16x128xf32>
    %188 = arith.mulf %177, %187 : vector<16x128xf32>
    %c0_72 = arith.constant 0 : index
    %c0_73 = arith.constant 0 : index
    %189 = vector.load %arg7[%c0_72, %c0_73] : memref<1x128xf32, #tpu.memory_space<vmem>>, vector<1x128xf32>
    %c0_74 = arith.constant 0 : index
    %c0_75 = arith.constant 0 : index
    %190 = vector.load %arg8[%c0_74, %c0_75] : memref<1x128xf32, #tpu.memory_space<vmem>>, vector<1x128xf32>
    %cst_76 = arith.constant dense<0.000000e+00> : vector<16xf32>
    %191 = vector.multi_reduction <add>, %188, %cst_76 [1] : vector<16x128xf32> to vector<16xf32>
    %192 = vector.shape_cast %191 : vector<16xf32> to vector<16x1xf32>
    %cst_77 = arith.constant 1.280000e+02 : f32
    %193 = vector.broadcast %cst_77 : f32 to vector<16x1xf32>
    %194 = arith.divf %192, %193 : vector<16x1xf32>
    %195 = vector.broadcast %194 : vector<16x1xf32> to vector<16x128xf32>
    %196 = arith.subf %188, %195 : vector<16x128xf32>
    %197 = arith.mulf %196, %196 : vector<16x128xf32>
    %cst_78 = arith.constant dense<0.000000e+00> : vector<16xf32>
    %198 = vector.multi_reduction <add>, %197, %cst_78 [1] : vector<16x128xf32> to vector<16xf32>
    %199 = vector.shape_cast %198 : vector<16xf32> to vector<16x1xf32>
    %cst_79 = arith.constant 1.280000e+02 : f32
    %200 = vector.broadcast %cst_79 : f32 to vector<16x1xf32>
    %201 = arith.divf %199, %200 : vector<16x1xf32>
    %202 = vector.broadcast %194 : vector<16x1xf32> to vector<16x128xf32>
    %203 = arith.subf %188, %202 : vector<16x128xf32>
    %cst_80 = arith.constant 9.99999974E-6 : f32
    %204 = vector.broadcast %cst_80 : f32 to vector<16x1xf32>
    %205 = arith.addf %201, %204 : vector<16x1xf32>
    %206 = math.rsqrt %205 : vector<16x1xf32>
    %207 = vector.broadcast %206 : vector<16x1xf32> to vector<16x128xf32>
    %208 = arith.mulf %203, %207 : vector<16x128xf32>
    %209 = vector.broadcast %189 : vector<1x128xf32> to vector<16x128xf32>
    %210 = arith.mulf %208, %209 : vector<16x128xf32>
    %211 = vector.broadcast %190 : vector<1x128xf32> to vector<16x128xf32>
    %212 = arith.addf %210, %211 : vector<16x128xf32>
    %213 = arith.truncf %212 : vector<16x128xf32> to vector<16x128xbf16>
    %c0_81 = arith.constant 0 : index
    %c0_82 = arith.constant 0 : index
    %214 = vector.load %arg9[%c0_81, %c0_82] : memref<128x128xbf16, #tpu.memory_space<vmem>>, vector<128x128xbf16>
    %cst_83 = arith.constant dense<0.000000e+00> : vector<16x128xf32>
    %215 = tpu.matmul %213, %214, %cst_83 {dimension_numbers = #tpu.dot_dimension_numbers<[1], [0], [0], [1], [0, 0, 1, 1], [], []>} : vector<16x128xbf16>, vector<128x128xbf16>, vector<16x128xf32> -> vector<16x128xf32>
    %c0_84 = arith.constant 0 : index
    %c0_85 = arith.constant 0 : index
    %216 = vector.load %arg10[%c0_84, %c0_85] : memref<1x128xf32, #tpu.memory_space<vmem>>, vector<1x128xf32>
    %217 = vector.broadcast %216 : vector<1x128xf32> to vector<16x128xf32>
    %218 = arith.addf %215, %217 : vector<16x128xf32>
    %c0_86 = arith.constant 0 : index
    %c0_87 = arith.constant 0 : index
    %219 = vector.load %arg11[%c0_86, %c0_87] : memref<1x128xf32, #tpu.memory_space<vmem>>, vector<1x128xf32>
    %c0_88 = arith.constant 0 : index
    %c0_89 = arith.constant 0 : index
    %220 = vector.load %arg12[%c0_88, %c0_89] : memref<1x128xf32, #tpu.memory_space<vmem>>, vector<1x128xf32>
    %cst_90 = arith.constant dense<0.000000e+00> : vector<16xf32>
    %221 = vector.multi_reduction <add>, %218, %cst_90 [1] : vector<16x128xf32> to vector<16xf32>
    %222 = vector.shape_cast %221 : vector<16xf32> to vector<16x1xf32>
    %cst_91 = arith.constant 1.280000e+02 : f32
    %223 = vector.broadcast %cst_91 : f32 to vector<16x1xf32>
    %224 = arith.divf %222, %223 : vector<16x1xf32>
    %225 = vector.broadcast %224 : vector<16x1xf32> to vector<16x128xf32>
    %226 = arith.subf %218, %225 : vector<16x128xf32>
    %227 = arith.mulf %226, %226 : vector<16x128xf32>
    %cst_92 = arith.constant dense<0.000000e+00> : vector<16xf32>
    %228 = vector.multi_reduction <add>, %227, %cst_92 [1] : vector<16x128xf32> to vector<16xf32>
    %229 = vector.shape_cast %228 : vector<16xf32> to vector<16x1xf32>
    %cst_93 = arith.constant 1.280000e+02 : f32
    %230 = vector.broadcast %cst_93 : f32 to vector<16x1xf32>
    %231 = arith.divf %229, %230 : vector<16x1xf32>
    %232 = vector.broadcast %224 : vector<16x1xf32> to vector<16x128xf32>
    %233 = arith.subf %218, %232 : vector<16x128xf32>
    %cst_94 = arith.constant 9.99999974E-6 : f32
    %234 = vector.broadcast %cst_94 : f32 to vector<16x1xf32>
    %235 = arith.addf %231, %234 : vector<16x1xf32>
    %236 = math.rsqrt %235 : vector<16x1xf32>
    %237 = vector.broadcast %236 : vector<16x1xf32> to vector<16x128xf32>
    %238 = arith.mulf %233, %237 : vector<16x128xf32>
    %239 = vector.broadcast %219 : vector<1x128xf32> to vector<16x128xf32>
    %240 = arith.mulf %238, %239 : vector<16x128xf32>
    %241 = vector.broadcast %220 : vector<1x128xf32> to vector<16x128xf32>
    %242 = arith.addf %240, %241 : vector<16x128xf32>
    %243 = arith.truncf %242 : vector<16x128xf32> to vector<16x128xbf16>
    %c0_95 = arith.constant 0 : index
    %c0_96 = arith.constant 0 : index
    %c0_97 = arith.constant 0 : index
    %244 = vector.load %arg13[%c0_95, %c0_96, %c0_97] : memref<2x128x384xbf16, #tpu.memory_space<vmem>>, vector<1x128x384xbf16>
    %245 = vector.shape_cast %244 : vector<1x128x384xbf16> to vector<128x384xbf16>
    %cst_98 = arith.constant dense<0.000000e+00> : vector<16x384xf32>
    %246 = tpu.matmul %243, %245, %cst_98 {dimension_numbers = #tpu.dot_dimension_numbers<[1], [0], [0], [1], [0, 0, 1, 1], [], []>} : vector<16x128xbf16>, vector<128x384xbf16>, vector<16x384xf32> -> vector<16x384xf32>
    %c0_99 = arith.constant 0 : index
    %c0_100 = arith.constant 0 : index
    %c0_101 = arith.constant 0 : index
    %247 = vector.load %arg14[%c0_99, %c0_100, %c0_101] : memref<2x1x384xf32, #tpu.memory_space<vmem>>, vector<1x1x384xf32>
    %248 = vector.shape_cast %247 : vector<1x1x384xf32> to vector<1x384xf32>
    %249 = vector.broadcast %248 : vector<1x384xf32> to vector<16x384xf32>
    %250 = arith.addf %246, %249 : vector<16x384xf32>
    %251 = vector.extract_strided_slice %250 {offsets = [0, 0], sizes = [16, 32], strides = [1, 1]} : vector<16x384xf32> to vector<16x32xf32>
    %252 = arith.truncf %251 : vector<16x32xf32> to vector<16x32xbf16>
    %253 = vector.extract_strided_slice %250 {offsets = [0, 128], sizes = [16, 32], strides = [1, 1]} : vector<16x384xf32> to vector<16x32xf32>
    %254 = arith.truncf %253 : vector<16x32xf32> to vector<16x32xbf16>
    %255 = vector.extract_strided_slice %250 {offsets = [0, 256], sizes = [16, 32], strides = [1, 1]} : vector<16x384xf32> to vector<16x32xf32>
    %256 = arith.truncf %255 : vector<16x32xf32> to vector<16x32xbf16>
    %cst_102 = arith.constant dense<0.000000e+00> : vector<16x16xf32>
    %257 = tpu.matmul %252, %254, %cst_102 {dimension_numbers = #tpu.dot_dimension_numbers<[1], [1], [0], [0], [0, 0, 1, 0], [], []>} : vector<16x32xbf16>, vector<16x32xbf16>, vector<16x16xf32> -> vector<16x16xf32>
    %cst_103 = arith.constant dense<0xFF800000> : vector<16xf32>
    %258 = vector.multi_reduction <maximumf>, %257, %cst_103 [1] : vector<16x16xf32> to vector<16xf32>
    %259 = vector.shape_cast %258 : vector<16xf32> to vector<16x1xf32>
    %260 = vector.broadcast %259 : vector<16x1xf32> to vector<16x16xf32>
    %261 = arith.subf %257, %260 : vector<16x16xf32>
    %262 = math.exp %261 : vector<16x16xf32>
    %cst_104 = arith.constant dense<0.000000e+00> : vector<16xf32>
    %263 = vector.multi_reduction <add>, %262, %cst_104 [1] : vector<16x16xf32> to vector<16xf32>
    %264 = vector.shape_cast %263 : vector<16xf32> to vector<16x1xf32>
    %265 = vector.broadcast %264 : vector<16x1xf32> to vector<16x16xf32>
    %266 = arith.divf %262, %265 : vector<16x16xf32>
    %267 = arith.truncf %266 : vector<16x16xf32> to vector<16x16xbf16>
    %cst_105 = arith.constant dense<0.000000e+00> : vector<16x32xf32>
    %268 = tpu.matmul %267, %256, %cst_105 {dimension_numbers = #tpu.dot_dimension_numbers<[1], [0], [0], [1], [0, 0, 1, 1], [], []>} : vector<16x16xbf16>, vector<16x32xbf16>, vector<16x32xf32> -> vector<16x32xf32>
    %c0_106 = arith.constant 0 : index
    %c0_107 = arith.constant 0 : index
    %269 = vector.load %arg26[%c0_106, %c0_107] : memref<16x128xf32, #tpu.memory_space<vmem>>, vector<16x32xf32>
    tpu.vector_store %arg26[%c0_106, %c0_107], %268 {strides = array<i32>} : memref<16x128xf32, #tpu.memory_space<vmem>>, vector<16x32xf32>,
    %270 = vector.extract_strided_slice %250 {offsets = [0, 32], sizes = [16, 32], strides = [1, 1]} : vector<16x384xf32> to vector<16x32xf32>
    %271 = arith.truncf %270 : vector<16x32xf32> to vector<16x32xbf16>
    %272 = vector.extract_strided_slice %250 {offsets = [0, 160], sizes = [16, 32], strides = [1, 1]} : vector<16x384xf32> to vector<16x32xf32>
    %273 = arith.truncf %272 : vector<16x32xf32> to vector<16x32xbf16>
    %274 = vector.extract_strided_slice %250 {offsets = [0, 288], sizes = [16, 32], strides = [1, 1]} : vector<16x384xf32> to vector<16x32xf32>
    %275 = arith.truncf %274 : vector<16x32xf32> to vector<16x32xbf16>
    %cst_108 = arith.constant dense<0.000000e+00> : vector<16x16xf32>
    %276 = tpu.matmul %271, %273, %cst_108 {dimension_numbers = #tpu.dot_dimension_numbers<[1], [1], [0], [0], [0, 0, 1, 0], [], []>} : vector<16x32xbf16>, vector<16x32xbf16>, vector<16x16xf32> -> vector<16x16xf32>
    %cst_109 = arith.constant dense<0xFF800000> : vector<16xf32>
    %277 = vector.multi_reduction <maximumf>, %276, %cst_109 [1] : vector<16x16xf32> to vector<16xf32>
    %278 = vector.shape_cast %277 : vector<16xf32> to vector<16x1xf32>
    %279 = vector.broadcast %278 : vector<16x1xf32> to vector<16x16xf32>
    %280 = arith.subf %276, %279 : vector<16x16xf32>
    %281 = math.exp %280 : vector<16x16xf32>
    %cst_110 = arith.constant dense<0.000000e+00> : vector<16xf32>
    %282 = vector.multi_reduction <add>, %281, %cst_110 [1] : vector<16x16xf32> to vector<16xf32>
    %283 = vector.shape_cast %282 : vector<16xf32> to vector<16x1xf32>
    %284 = vector.broadcast %283 : vector<16x1xf32> to vector<16x16xf32>
    %285 = arith.divf %281, %284 : vector<16x16xf32>
    %286 = arith.truncf %285 : vector<16x16xf32> to vector<16x16xbf16>
    %cst_111 = arith.constant dense<0.000000e+00> : vector<16x32xf32>
    %287 = tpu.matmul %286, %275, %cst_111 {dimension_numbers = #tpu.dot_dimension_numbers<[1], [0], [0], [1], [0, 0, 1, 1], [], []>} : vector<16x16xbf16>, vector<16x32xbf16>, vector<16x32xf32> -> vector<16x32xf32>
    %c0_112 = arith.constant 0 : index
    %c32 = arith.constant 32 : index
    %288 = vector.load %arg26[%c0_112, %c32] : memref<16x128xf32, #tpu.memory_space<vmem>>, vector<16x32xf32>
    tpu.vector_store %arg26[%c0_112, %c32], %287 {strides = array<i32>} : memref<16x128xf32, #tpu.memory_space<vmem>>, vector<16x32xf32>,
    %289 = vector.extract_strided_slice %250 {offsets = [0, 64], sizes = [16, 32], strides = [1, 1]} : vector<16x384xf32> to vector<16x32xf32>
    %290 = arith.truncf %289 : vector<16x32xf32> to vector<16x32xbf16>
    %291 = vector.extract_strided_slice %250 {offsets = [0, 192], sizes = [16, 32], strides = [1, 1]} : vector<16x384xf32> to vector<16x32xf32>
    %292 = arith.truncf %291 : vector<16x32xf32> to vector<16x32xbf16>
    %293 = vector.extract_strided_slice %250 {offsets = [0, 320], sizes = [16, 32], strides = [1, 1]} : vector<16x384xf32> to vector<16x32xf32>
    %294 = arith.truncf %293 : vector<16x32xf32> to vector<16x32xbf16>
    %cst_113 = arith.constant dense<0.000000e+00> : vector<16x16xf32>
    %295 = tpu.matmul %290, %292, %cst_113 {dimension_numbers = #tpu.dot_dimension_numbers<[1], [1], [0], [0], [0, 0, 1, 0], [], []>} : vector<16x32xbf16>, vector<16x32xbf16>, vector<16x16xf32> -> vector<16x16xf32>
    %cst_114 = arith.constant dense<0xFF800000> : vector<16xf32>
    %296 = vector.multi_reduction <maximumf>, %295, %cst_114 [1] : vector<16x16xf32> to vector<16xf32>
    %297 = vector.shape_cast %296 : vector<16xf32> to vector<16x1xf32>
    %298 = vector.broadcast %297 : vector<16x1xf32> to vector<16x16xf32>
    %299 = arith.subf %295, %298 : vector<16x16xf32>
    %300 = math.exp %299 : vector<16x16xf32>
    %cst_115 = arith.constant dense<0.000000e+00> : vector<16xf32>
    %301 = vector.multi_reduction <add>, %300, %cst_115 [1] : vector<16x16xf32> to vector<16xf32>
    %302 = vector.shape_cast %301 : vector<16xf32> to vector<16x1xf32>
    %303 = vector.broadcast %302 : vector<16x1xf32> to vector<16x16xf32>
    %304 = arith.divf %300, %303 : vector<16x16xf32>
    %305 = arith.truncf %304 : vector<16x16xf32> to vector<16x16xbf16>
    %cst_116 = arith.constant dense<0.000000e+00> : vector<16x32xf32>
    %306 = tpu.matmul %305, %294, %cst_116 {dimension_numbers = #tpu.dot_dimension_numbers<[1], [0], [0], [1], [0, 0, 1, 1], [], []>} : vector<16x16xbf16>, vector<16x32xbf16>, vector<16x32xf32> -> vector<16x32xf32>
    %c0_117 = arith.constant 0 : index
    %c64 = arith.constant 64 : index
    %307 = vector.load %arg26[%c0_117, %c64] : memref<16x128xf32, #tpu.memory_space<vmem>>, vector<16x32xf32>
    tpu.vector_store %arg26[%c0_117, %c64], %306 {strides = array<i32>} : memref<16x128xf32, #tpu.memory_space<vmem>>, vector<16x32xf32>,
    %308 = vector.extract_strided_slice %250 {offsets = [0, 96], sizes = [16, 32], strides = [1, 1]} : vector<16x384xf32> to vector<16x32xf32>
    %309 = arith.truncf %308 : vector<16x32xf32> to vector<16x32xbf16>
    %310 = vector.extract_strided_slice %250 {offsets = [0, 224], sizes = [16, 32], strides = [1, 1]} : vector<16x384xf32> to vector<16x32xf32>
    %311 = arith.truncf %310 : vector<16x32xf32> to vector<16x32xbf16>
    %312 = vector.extract_strided_slice %250 {offsets = [0, 352], sizes = [16, 32], strides = [1, 1]} : vector<16x384xf32> to vector<16x32xf32>
    %313 = arith.truncf %312 : vector<16x32xf32> to vector<16x32xbf16>
    %cst_118 = arith.constant dense<0.000000e+00> : vector<16x16xf32>
    %314 = tpu.matmul %309, %311, %cst_118 {dimension_numbers = #tpu.dot_dimension_numbers<[1], [1], [0], [0], [0, 0, 1, 0], [], []>} : vector<16x32xbf16>, vector<16x32xbf16>, vector<16x16xf32> -> vector<16x16xf32>
    %cst_119 = arith.constant dense<0xFF800000> : vector<16xf32>
    %315 = vector.multi_reduction <maximumf>, %314, %cst_119 [1] : vector<16x16xf32> to vector<16xf32>
    %316 = vector.shape_cast %315 : vector<16xf32> to vector<16x1xf32>
    %317 = vector.broadcast %316 : vector<16x1xf32> to vector<16x16xf32>
    %318 = arith.subf %314, %317 : vector<16x16xf32>
    %319 = math.exp %318 : vector<16x16xf32>
    %cst_120 = arith.constant dense<0.000000e+00> : vector<16xf32>
    %320 = vector.multi_reduction <add>, %319, %cst_120 [1] : vector<16x16xf32> to vector<16xf32>
    %321 = vector.shape_cast %320 : vector<16xf32> to vector<16x1xf32>
    %322 = vector.broadcast %321 : vector<16x1xf32> to vector<16x16xf32>
    %323 = arith.divf %319, %322 : vector<16x16xf32>
    %324 = arith.truncf %323 : vector<16x16xf32> to vector<16x16xbf16>
    %cst_121 = arith.constant dense<0.000000e+00> : vector<16x32xf32>
    %325 = tpu.matmul %324, %313, %cst_121 {dimension_numbers = #tpu.dot_dimension_numbers<[1], [0], [0], [1], [0, 0, 1, 1], [], []>} : vector<16x16xbf16>, vector<16x32xbf16>, vector<16x32xf32> -> vector<16x32xf32>
    %c0_122 = arith.constant 0 : index
    %c96 = arith.constant 96 : index
    %326 = vector.load %arg26[%c0_122, %c96] : memref<16x128xf32, #tpu.memory_space<vmem>>, vector<16x32xf32>
    tpu.vector_store %arg26[%c0_122, %c96], %325 {strides = array<i32>} : memref<16x128xf32, #tpu.memory_space<vmem>>, vector<16x32xf32>,
    %c0_123 = arith.constant 0 : index
    %c0_124 = arith.constant 0 : index
    %327 = vector.load %arg26[%c0_123, %c0_124] : memref<16x128xf32, #tpu.memory_space<vmem>>, vector<16x128xf32>
    %328 = arith.truncf %327 : vector<16x128xf32> to vector<16x128xbf16>
    %c0_125 = arith.constant 0 : index
    %c0_126 = arith.constant 0 : index
    %c0_127 = arith.constant 0 : index
    %329 = vector.load %arg15[%c0_125, %c0_126, %c0_127] : memref<2x128x128xbf16, #tpu.memory_space<vmem>>, vector<1x128x128xbf16>
    %330 = vector.shape_cast %329 : vector<1x128x128xbf16> to vector<128x128xbf16>
    %cst_128 = arith.constant dense<0.000000e+00> : vector<16x128xf32>
    %331 = tpu.matmul %328, %330, %cst_128 {dimension_numbers = #tpu.dot_dimension_numbers<[1], [0], [0], [1], [0, 0, 1, 1], [], []>} : vector<16x128xbf16>, vector<128x128xbf16>, vector<16x128xf32> -> vector<16x128xf32>
    %c0_129 = arith.constant 0 : index
    %c0_130 = arith.constant 0 : index
    %c0_131 = arith.constant 0 : index
    %332 = vector.load %arg16[%c0_129, %c0_130, %c0_131] : memref<2x1x128xf32, #tpu.memory_space<vmem>>, vector<1x1x128xf32>
    %333 = vector.shape_cast %332 : vector<1x1x128xf32> to vector<1x128xf32>
    %334 = vector.broadcast %333 : vector<1x128xf32> to vector<16x128xf32>
    %335 = arith.addf %331, %334 : vector<16x128xf32>
    %336 = arith.addf %242, %335 : vector<16x128xf32>
    %c0_132 = arith.constant 0 : index
    %c0_133 = arith.constant 0 : index
    %c0_134 = arith.constant 0 : index
    %337 = vector.load %arg17[%c0_132, %c0_133, %c0_134] : memref<2x1x128xf32, #tpu.memory_space<vmem>>, vector<1x1x128xf32>
    %338 = vector.shape_cast %337 : vector<1x1x128xf32> to vector<1x128xf32>
    %c0_135 = arith.constant 0 : index
    %c0_136 = arith.constant 0 : index
    %c0_137 = arith.constant 0 : index
    %339 = vector.load %arg18[%c0_135, %c0_136, %c0_137] : memref<2x1x128xf32, #tpu.memory_space<vmem>>, vector<1x1x128xf32>
    %340 = vector.shape_cast %339 : vector<1x1x128xf32> to vector<1x128xf32>
    %cst_138 = arith.constant dense<0.000000e+00> : vector<16xf32>
    %341 = vector.multi_reduction <add>, %336, %cst_138 [1] : vector<16x128xf32> to vector<16xf32>
    %342 = vector.shape_cast %341 : vector<16xf32> to vector<16x1xf32>
    %cst_139 = arith.constant 1.280000e+02 : f32
    %343 = vector.broadcast %cst_139 : f32 to vector<16x1xf32>
    %344 = arith.divf %342, %343 : vector<16x1xf32>
    %345 = vector.broadcast %344 : vector<16x1xf32> to vector<16x128xf32>
    %346 = arith.subf %336, %345 : vector<16x128xf32>
    %347 = arith.mulf %346, %346 : vector<16x128xf32>
    %cst_140 = arith.constant dense<0.000000e+00> : vector<16xf32>
    %348 = vector.multi_reduction <add>, %347, %cst_140 [1] : vector<16x128xf32> to vector<16xf32>
    %349 = vector.shape_cast %348 : vector<16xf32> to vector<16x1xf32>
    %cst_141 = arith.constant 1.280000e+02 : f32
    %350 = vector.broadcast %cst_141 : f32 to vector<16x1xf32>
    %351 = arith.divf %349, %350 : vector<16x1xf32>
    %352 = vector.broadcast %344 : vector<16x1xf32> to vector<16x128xf32>
    %353 = arith.subf %336, %352 : vector<16x128xf32>
    %cst_142 = arith.constant 9.99999974E-6 : f32
    %354 = vector.broadcast %cst_142 : f32 to vector<16x1xf32>
    %355 = arith.addf %351, %354 : vector<16x1xf32>
    %356 = math.rsqrt %355 : vector<16x1xf32>
    %357 = vector.broadcast %356 : vector<16x1xf32> to vector<16x128xf32>
    %358 = arith.mulf %353, %357 : vector<16x128xf32>
    %359 = vector.broadcast %338 : vector<1x128xf32> to vector<16x128xf32>
    %360 = arith.mulf %358, %359 : vector<16x128xf32>
    %361 = vector.broadcast %340 : vector<1x128xf32> to vector<16x128xf32>
    %362 = arith.addf %360, %361 : vector<16x128xf32>
    %363 = arith.truncf %362 : vector<16x128xf32> to vector<16x128xbf16>
    %c0_143 = arith.constant 0 : index
    %c0_144 = arith.constant 0 : index
    %c0_145 = arith.constant 0 : index
    %364 = vector.load %arg19[%c0_143, %c0_144, %c0_145] : memref<2x128x256xbf16, #tpu.memory_space<vmem>>, vector<1x128x256xbf16>
    %365 = vector.shape_cast %364 : vector<1x128x256xbf16> to vector<128x256xbf16>
    %cst_146 = arith.constant dense<0.000000e+00> : vector<16x256xf32>
    %366 = tpu.matmul %363, %365, %cst_146 {dimension_numbers = #tpu.dot_dimension_numbers<[1], [0], [0], [1], [0, 0, 1, 1], [], []>} : vector<16x128xbf16>, vector<128x256xbf16>, vector<16x256xf32> -> vector<16x256xf32>
    %c0_147 = arith.constant 0 : index
    %c0_148 = arith.constant 0 : index
    %c0_149 = arith.constant 0 : index
    %367 = vector.load %arg20[%c0_147, %c0_148, %c0_149] : memref<2x1x256xf32, #tpu.memory_space<vmem>>, vector<1x1x256xf32>
    %368 = vector.shape_cast %367 : vector<1x1x256xf32> to vector<1x256xf32>
    %369 = vector.broadcast %368 : vector<1x256xf32> to vector<16x256xf32>
    %370 = arith.addf %366, %369 : vector<16x256xf32>
    %cst_150 = arith.constant 5.000000e-01 : f32
    %371 = vector.broadcast %cst_150 : f32 to vector<16x256xf32>
    %372 = arith.mulf %371, %370 : vector<16x256xf32>
    %cst_151 = arith.constant 4.471500e-02 : f32
    %373 = vector.broadcast %cst_151 : f32 to vector<16x256xf32>
    %374 = arith.mulf %373, %370 : vector<16x256xf32>
    %375 = arith.mulf %374, %370 : vector<16x256xf32>
    %376 = arith.mulf %375, %370 : vector<16x256xf32>
    %377 = arith.addf %370, %376 : vector<16x256xf32>
    %cst_152 = arith.constant 0.797884583 : f32
    %378 = vector.broadcast %cst_152 : f32 to vector<16x256xf32>
    %379 = arith.mulf %378, %377 : vector<16x256xf32>
    %380 = math.tanh %379 : vector<16x256xf32>
    %cst_153 = arith.constant 1.000000e+00 : f32
    %381 = vector.broadcast %cst_153 : f32 to vector<16x256xf32>
    %382 = arith.addf %381, %380 : vector<16x256xf32>
    %383 = arith.mulf %372, %382 : vector<16x256xf32>
    %384 = arith.truncf %383 : vector<16x256xf32> to vector<16x256xbf16>
    %c0_154 = arith.constant 0 : index
    %c0_155 = arith.constant 0 : index
    %c0_156 = arith.constant 0 : index
    %385 = vector.load %arg21[%c0_154, %c0_155, %c0_156] : memref<2x256x128xbf16, #tpu.memory_space<vmem>>, vector<1x256x128xbf16>
    %386 = vector.shape_cast %385 : vector<1x256x128xbf16> to vector<256x128xbf16>
    %cst_157 = arith.constant dense<0.000000e+00> : vector<16x128xf32>
    %387 = tpu.matmul %384, %386, %cst_157 {dimension_numbers = #tpu.dot_dimension_numbers<[1], [0], [0], [1], [0, 0, 1, 1], [], []>} : vector<16x256xbf16>, vector<256x128xbf16>, vector<16x128xf32> -> vector<16x128xf32>
    %c0_158 = arith.constant 0 : index
    %c0_159 = arith.constant 0 : index
    %c0_160 = arith.constant 0 : index
    %388 = vector.load %arg22[%c0_158, %c0_159, %c0_160] : memref<2x1x128xf32, #tpu.memory_space<vmem>>, vector<1x1x128xf32>
    %389 = vector.shape_cast %388 : vector<1x1x128xf32> to vector<1x128xf32>
    %390 = vector.broadcast %389 : vector<1x128xf32> to vector<16x128xf32>
    %391 = arith.addf %387, %390 : vector<16x128xf32>
    %392 = arith.addf %362, %391 : vector<16x128xf32>
    %c0_161 = arith.constant 0 : index
    %c0_162 = arith.constant 0 : index
    %c0_163 = arith.constant 0 : index
    %393 = vector.load %arg23[%c0_161, %c0_162, %c0_163] : memref<2x1x128xf32, #tpu.memory_space<vmem>>, vector<1x1x128xf32>
    %394 = vector.shape_cast %393 : vector<1x1x128xf32> to vector<1x128xf32>
    %c0_164 = arith.constant 0 : index
    %c0_165 = arith.constant 0 : index
    %c0_166 = arith.constant 0 : index
    %395 = vector.load %arg24[%c0_164, %c0_165, %c0_166] : memref<2x1x128xf32, #tpu.memory_space<vmem>>, vector<1x1x128xf32>
    %396 = vector.shape_cast %395 : vector<1x1x128xf32> to vector<1x128xf32>
    %cst_167 = arith.constant dense<0.000000e+00> : vector<16xf32>
    %397 = vector.multi_reduction <add>, %392, %cst_167 [1] : vector<16x128xf32> to vector<16xf32>
    %398 = vector.shape_cast %397 : vector<16xf32> to vector<16x1xf32>
    %cst_168 = arith.constant 1.280000e+02 : f32
    %399 = vector.broadcast %cst_168 : f32 to vector<16x1xf32>
    %400 = arith.divf %398, %399 : vector<16x1xf32>
    %401 = vector.broadcast %400 : vector<16x1xf32> to vector<16x128xf32>
    %402 = arith.subf %392, %401 : vector<16x128xf32>
    %403 = arith.mulf %402, %402 : vector<16x128xf32>
    %cst_169 = arith.constant dense<0.000000e+00> : vector<16xf32>
    %404 = vector.multi_reduction <add>, %403, %cst_169 [1] : vector<16x128xf32> to vector<16xf32>
    %405 = vector.shape_cast %404 : vector<16xf32> to vector<16x1xf32>
    %cst_170 = arith.constant 1.280000e+02 : f32
    %406 = vector.broadcast %cst_170 : f32 to vector<16x1xf32>
    %407 = arith.divf %405, %406 : vector<16x1xf32>
    %408 = vector.broadcast %400 : vector<16x1xf32> to vector<16x128xf32>
    %409 = arith.subf %392, %408 : vector<16x128xf32>
    %cst_171 = arith.constant 9.99999974E-6 : f32
    %410 = vector.broadcast %cst_171 : f32 to vector<16x1xf32>
    %411 = arith.addf %407, %410 : vector<16x1xf32>
    %412 = math.rsqrt %411 : vector<16x1xf32>
    %413 = vector.broadcast %412 : vector<16x1xf32> to vector<16x128xf32>
    %414 = arith.mulf %409, %413 : vector<16x128xf32>
    %415 = vector.broadcast %394 : vector<1x128xf32> to vector<16x128xf32>
    %416 = arith.mulf %414, %415 : vector<16x128xf32>
    %417 = vector.broadcast %396 : vector<1x128xf32> to vector<16x128xf32>
    %418 = arith.addf %416, %417 : vector<16x128xf32>
    %419 = arith.truncf %418 : vector<16x128xf32> to vector<16x128xbf16>
    %c1_172 = arith.constant 1 : index
    %c0_173 = arith.constant 0 : index
    %c0_174 = arith.constant 0 : index
    %420 = vector.load %arg13[%c1_172, %c0_173, %c0_174] : memref<2x128x384xbf16, #tpu.memory_space<vmem>>, vector<1x128x384xbf16>
    %421 = vector.shape_cast %420 : vector<1x128x384xbf16> to vector<128x384xbf16>
    %cst_175 = arith.constant dense<0.000000e+00> : vector<16x384xf32>
    %422 = tpu.matmul %419, %421, %cst_175 {dimension_numbers = #tpu.dot_dimension_numbers<[1], [0], [0], [1], [0, 0, 1, 1], [], []>} : vector<16x128xbf16>, vector<128x384xbf16>, vector<16x384xf32> -> vector<16x384xf32>
    %c1_176 = arith.constant 1 : index
    %c0_177 = arith.constant 0 : index
    %c0_178 = arith.constant 0 : index
    %423 = vector.load %arg14[%c1_176, %c0_177, %c0_178] : memref<2x1x384xf32, #tpu.memory_space<vmem>>, vector<1x1x384xf32>
    %424 = vector.shape_cast %423 : vector<1x1x384xf32> to vector<1x384xf32>
    %425 = vector.broadcast %424 : vector<1x384xf32> to vector<16x384xf32>
    %426 = arith.addf %422, %425 : vector<16x384xf32>
    %427 = vector.extract_strided_slice %426 {offsets = [0, 0], sizes = [16, 32], strides = [1, 1]} : vector<16x384xf32> to vector<16x32xf32>
    %428 = arith.truncf %427 : vector<16x32xf32> to vector<16x32xbf16>
    %429 = vector.extract_strided_slice %426 {offsets = [0, 128], sizes = [16, 32], strides = [1, 1]} : vector<16x384xf32> to vector<16x32xf32>
    %430 = arith.truncf %429 : vector<16x32xf32> to vector<16x32xbf16>
    %431 = vector.extract_strided_slice %426 {offsets = [0, 256], sizes = [16, 32], strides = [1, 1]} : vector<16x384xf32> to vector<16x32xf32>
    %432 = arith.truncf %431 : vector<16x32xf32> to vector<16x32xbf16>
    %cst_179 = arith.constant dense<0.000000e+00> : vector<16x16xf32>
    %433 = tpu.matmul %428, %430, %cst_179 {dimension_numbers = #tpu.dot_dimension_numbers<[1], [1], [0], [0], [0, 0, 1, 0], [], []>} : vector<16x32xbf16>, vector<16x32xbf16>, vector<16x16xf32> -> vector<16x16xf32>
    %cst_180 = arith.constant dense<0xFF800000> : vector<16xf32>
    %434 = vector.multi_reduction <maximumf>, %433, %cst_180 [1] : vector<16x16xf32> to vector<16xf32>
    %435 = vector.shape_cast %434 : vector<16xf32> to vector<16x1xf32>
    %436 = vector.broadcast %435 : vector<16x1xf32> to vector<16x16xf32>
    %437 = arith.subf %433, %436 : vector<16x16xf32>
    %438 = math.exp %437 : vector<16x16xf32>
    %cst_181 = arith.constant dense<0.000000e+00> : vector<16xf32>
    %439 = vector.multi_reduction <add>, %438, %cst_181 [1] : vector<16x16xf32> to vector<16xf32>
    %440 = vector.shape_cast %439 : vector<16xf32> to vector<16x1xf32>
    %441 = vector.broadcast %440 : vector<16x1xf32> to vector<16x16xf32>
    %442 = arith.divf %438, %441 : vector<16x16xf32>
    %443 = arith.truncf %442 : vector<16x16xf32> to vector<16x16xbf16>
    %cst_182 = arith.constant dense<0.000000e+00> : vector<16x32xf32>
    %444 = tpu.matmul %443, %432, %cst_182 {dimension_numbers = #tpu.dot_dimension_numbers<[1], [0], [0], [1], [0, 0, 1, 1], [], []>} : vector<16x16xbf16>, vector<16x32xbf16>, vector<16x32xf32> -> vector<16x32xf32>
    %c0_183 = arith.constant 0 : index
    %c0_184 = arith.constant 0 : index
    %445 = vector.load %arg26[%c0_183, %c0_184] : memref<16x128xf32, #tpu.memory_space<vmem>>, vector<16x32xf32>
    tpu.vector_store %arg26[%c0_183, %c0_184], %444 {strides = array<i32>} : memref<16x128xf32, #tpu.memory_space<vmem>>, vector<16x32xf32>,
    %446 = vector.extract_strided_slice %426 {offsets = [0, 32], sizes = [16, 32], strides = [1, 1]} : vector<16x384xf32> to vector<16x32xf32>
    %447 = arith.truncf %446 : vector<16x32xf32> to vector<16x32xbf16>
    %448 = vector.extract_strided_slice %426 {offsets = [0, 160], sizes = [16, 32], strides = [1, 1]} : vector<16x384xf32> to vector<16x32xf32>
    %449 = arith.truncf %448 : vector<16x32xf32> to vector<16x32xbf16>
    %450 = vector.extract_strided_slice %426 {offsets = [0, 288], sizes = [16, 32], strides = [1, 1]} : vector<16x384xf32> to vector<16x32xf32>
    %451 = arith.truncf %450 : vector<16x32xf32> to vector<16x32xbf16>
    %cst_185 = arith.constant dense<0.000000e+00> : vector<16x16xf32>
    %452 = tpu.matmul %447, %449, %cst_185 {dimension_numbers = #tpu.dot_dimension_numbers<[1], [1], [0], [0], [0, 0, 1, 0], [], []>} : vector<16x32xbf16>, vector<16x32xbf16>, vector<16x16xf32> -> vector<16x16xf32>
    %cst_186 = arith.constant dense<0xFF800000> : vector<16xf32>
    %453 = vector.multi_reduction <maximumf>, %452, %cst_186 [1] : vector<16x16xf32> to vector<16xf32>
    %454 = vector.shape_cast %453 : vector<16xf32> to vector<16x1xf32>
    %455 = vector.broadcast %454 : vector<16x1xf32> to vector<16x16xf32>
    %456 = arith.subf %452, %455 : vector<16x16xf32>
    %457 = math.exp %456 : vector<16x16xf32>
    %cst_187 = arith.constant dense<0.000000e+00> : vector<16xf32>
    %458 = vector.multi_reduction <add>, %457, %cst_187 [1] : vector<16x16xf32> to vector<16xf32>
    %459 = vector.shape_cast %458 : vector<16xf32> to vector<16x1xf32>
    %460 = vector.broadcast %459 : vector<16x1xf32> to vector<16x16xf32>
    %461 = arith.divf %457, %460 : vector<16x16xf32>
    %462 = arith.truncf %461 : vector<16x16xf32> to vector<16x16xbf16>
    %cst_188 = arith.constant dense<0.000000e+00> : vector<16x32xf32>
    %463 = tpu.matmul %462, %451, %cst_188 {dimension_numbers = #tpu.dot_dimension_numbers<[1], [0], [0], [1], [0, 0, 1, 1], [], []>} : vector<16x16xbf16>, vector<16x32xbf16>, vector<16x32xf32> -> vector<16x32xf32>
    %c0_189 = arith.constant 0 : index
    %c32_190 = arith.constant 32 : index
    %464 = vector.load %arg26[%c0_189, %c32_190] : memref<16x128xf32, #tpu.memory_space<vmem>>, vector<16x32xf32>
    tpu.vector_store %arg26[%c0_189, %c32_190], %463 {strides = array<i32>} : memref<16x128xf32, #tpu.memory_space<vmem>>, vector<16x32xf32>,
    %465 = vector.extract_strided_slice %426 {offsets = [0, 64], sizes = [16, 32], strides = [1, 1]} : vector<16x384xf32> to vector<16x32xf32>
    %466 = arith.truncf %465 : vector<16x32xf32> to vector<16x32xbf16>
    %467 = vector.extract_strided_slice %426 {offsets = [0, 192], sizes = [16, 32], strides = [1, 1]} : vector<16x384xf32> to vector<16x32xf32>
    %468 = arith.truncf %467 : vector<16x32xf32> to vector<16x32xbf16>
    %469 = vector.extract_strided_slice %426 {offsets = [0, 320], sizes = [16, 32], strides = [1, 1]} : vector<16x384xf32> to vector<16x32xf32>
    %470 = arith.truncf %469 : vector<16x32xf32> to vector<16x32xbf16>
    %cst_191 = arith.constant dense<0.000000e+00> : vector<16x16xf32>
    %471 = tpu.matmul %466, %468, %cst_191 {dimension_numbers = #tpu.dot_dimension_numbers<[1], [1], [0], [0], [0, 0, 1, 0], [], []>} : vector<16x32xbf16>, vector<16x32xbf16>, vector<16x16xf32> -> vector<16x16xf32>
    %cst_192 = arith.constant dense<0xFF800000> : vector<16xf32>
    %472 = vector.multi_reduction <maximumf>, %471, %cst_192 [1] : vector<16x16xf32> to vector<16xf32>
    %473 = vector.shape_cast %472 : vector<16xf32> to vector<16x1xf32>
    %474 = vector.broadcast %473 : vector<16x1xf32> to vector<16x16xf32>
    %475 = arith.subf %471, %474 : vector<16x16xf32>
    %476 = math.exp %475 : vector<16x16xf32>
    %cst_193 = arith.constant dense<0.000000e+00> : vector<16xf32>
    %477 = vector.multi_reduction <add>, %476, %cst_193 [1] : vector<16x16xf32> to vector<16xf32>
    %478 = vector.shape_cast %477 : vector<16xf32> to vector<16x1xf32>
    %479 = vector.broadcast %478 : vector<16x1xf32> to vector<16x16xf32>
    %480 = arith.divf %476, %479 : vector<16x16xf32>
    %481 = arith.truncf %480 : vector<16x16xf32> to vector<16x16xbf16>
    %cst_194 = arith.constant dense<0.000000e+00> : vector<16x32xf32>
    %482 = tpu.matmul %481, %470, %cst_194 {dimension_numbers = #tpu.dot_dimension_numbers<[1], [0], [0], [1], [0, 0, 1, 1], [], []>} : vector<16x16xbf16>, vector<16x32xbf16>, vector<16x32xf32> -> vector<16x32xf32>
    %c0_195 = arith.constant 0 : index
    %c64_196 = arith.constant 64 : index
    %483 = vector.load %arg26[%c0_195, %c64_196] : memref<16x128xf32, #tpu.memory_space<vmem>>, vector<16x32xf32>
    tpu.vector_store %arg26[%c0_195, %c64_196], %482 {strides = array<i32>} : memref<16x128xf32, #tpu.memory_space<vmem>>, vector<16x32xf32>,
    %484 = vector.extract_strided_slice %426 {offsets = [0, 96], sizes = [16, 32], strides = [1, 1]} : vector<16x384xf32> to vector<16x32xf32>
    %485 = arith.truncf %484 : vector<16x32xf32> to vector<16x32xbf16>
    %486 = vector.extract_strided_slice %426 {offsets = [0, 224], sizes = [16, 32], strides = [1, 1]} : vector<16x384xf32> to vector<16x32xf32>
    %487 = arith.truncf %486 : vector<16x32xf32> to vector<16x32xbf16>
    %488 = vector.extract_strided_slice %426 {offsets = [0, 352], sizes = [16, 32], strides = [1, 1]} : vector<16x384xf32> to vector<16x32xf32>
    %489 = arith.truncf %488 : vector<16x32xf32> to vector<16x32xbf16>
    %cst_197 = arith.constant dense<0.000000e+00> : vector<16x16xf32>
    %490 = tpu.matmul %485, %487, %cst_197 {dimension_numbers = #tpu.dot_dimension_numbers<[1], [1], [0], [0], [0, 0, 1, 0], [], []>} : vector<16x32xbf16>, vector<16x32xbf16>, vector<16x16xf32> -> vector<16x16xf32>
    %cst_198 = arith.constant dense<0xFF800000> : vector<16xf32>
    %491 = vector.multi_reduction <maximumf>, %490, %cst_198 [1] : vector<16x16xf32> to vector<16xf32>
    %492 = vector.shape_cast %491 : vector<16xf32> to vector<16x1xf32>
    %493 = vector.broadcast %492 : vector<16x1xf32> to vector<16x16xf32>
    %494 = arith.subf %490, %493 : vector<16x16xf32>
    %495 = math.exp %494 : vector<16x16xf32>
    %cst_199 = arith.constant dense<0.000000e+00> : vector<16xf32>
    %496 = vector.multi_reduction <add>, %495, %cst_199 [1] : vector<16x16xf32> to vector<16xf32>
    %497 = vector.shape_cast %496 : vector<16xf32> to vector<16x1xf32>
    %498 = vector.broadcast %497 : vector<16x1xf32> to vector<16x16xf32>
    %499 = arith.divf %495, %498 : vector<16x16xf32>
    %500 = arith.truncf %499 : vector<16x16xf32> to vector<16x16xbf16>
    %cst_200 = arith.constant dense<0.000000e+00> : vector<16x32xf32>
    %501 = tpu.matmul %500, %489, %cst_200 {dimension_numbers = #tpu.dot_dimension_numbers<[1], [0], [0], [1], [0, 0, 1, 1], [], []>} : vector<16x16xbf16>, vector<16x32xbf16>, vector<16x32xf32> -> vector<16x32xf32>
    %c0_201 = arith.constant 0 : index
    %c96_202 = arith.constant 96 : index
    %502 = vector.load %arg26[%c0_201, %c96_202] : memref<16x128xf32, #tpu.memory_space<vmem>>, vector<16x32xf32>
    tpu.vector_store %arg26[%c0_201, %c96_202], %501 {strides = array<i32>} : memref<16x128xf32, #tpu.memory_space<vmem>>, vector<16x32xf32>,
    %c0_203 = arith.constant 0 : index
    %c0_204 = arith.constant 0 : index
    %503 = vector.load %arg26[%c0_203, %c0_204] : memref<16x128xf32, #tpu.memory_space<vmem>>, vector<16x128xf32>
    %504 = arith.truncf %503 : vector<16x128xf32> to vector<16x128xbf16>
    %c1_205 = arith.constant 1 : index
    %c0_206 = arith.constant 0 : index
    %c0_207 = arith.constant 0 : index
    %505 = vector.load %arg15[%c1_205, %c0_206, %c0_207] : memref<2x128x128xbf16, #tpu.memory_space<vmem>>, vector<1x128x128xbf16>
    %506 = vector.shape_cast %505 : vector<1x128x128xbf16> to vector<128x128xbf16>
    %cst_208 = arith.constant dense<0.000000e+00> : vector<16x128xf32>
    %507 = tpu.matmul %504, %506, %cst_208 {dimension_numbers = #tpu.dot_dimension_numbers<[1], [0], [0], [1], [0, 0, 1, 1], [], []>} : vector<16x128xbf16>, vector<128x128xbf16>, vector<16x128xf32> -> vector<16x128xf32>
    %c1_209 = arith.constant 1 : index
    %c0_210 = arith.constant 0 : index
    %c0_211 = arith.constant 0 : index
    %508 = vector.load %arg16[%c1_209, %c0_210, %c0_211] : memref<2x1x128xf32, #tpu.memory_space<vmem>>, vector<1x1x128xf32>
    %509 = vector.shape_cast %508 : vector<1x1x128xf32> to vector<1x128xf32>
    %510 = vector.broadcast %509 : vector<1x128xf32> to vector<16x128xf32>
    %511 = arith.addf %507, %510 : vector<16x128xf32>
    %512 = arith.addf %418, %511 : vector<16x128xf32>
    %c1_212 = arith.constant 1 : index
    %c0_213 = arith.constant 0 : index
    %c0_214 = arith.constant 0 : index
    %513 = vector.load %arg17[%c1_212, %c0_213, %c0_214] : memref<2x1x128xf32, #tpu.memory_space<vmem>>, vector<1x1x128xf32>
    %514 = vector.shape_cast %513 : vector<1x1x128xf32> to vector<1x128xf32>
    %c1_215 = arith.constant 1 : index
    %c0_216 = arith.constant 0 : index
    %c0_217 = arith.constant 0 : index
    %515 = vector.load %arg18[%c1_215, %c0_216, %c0_217] : memref<2x1x128xf32, #tpu.memory_space<vmem>>, vector<1x1x128xf32>
    %516 = vector.shape_cast %515 : vector<1x1x128xf32> to vector<1x128xf32>
    %cst_218 = arith.constant dense<0.000000e+00> : vector<16xf32>
    %517 = vector.multi_reduction <add>, %512, %cst_218 [1] : vector<16x128xf32> to vector<16xf32>
    %518 = vector.shape_cast %517 : vector<16xf32> to vector<16x1xf32>
    %cst_219 = arith.constant 1.280000e+02 : f32
    %519 = vector.broadcast %cst_219 : f32 to vector<16x1xf32>
    %520 = arith.divf %518, %519 : vector<16x1xf32>
    %521 = vector.broadcast %520 : vector<16x1xf32> to vector<16x128xf32>
    %522 = arith.subf %512, %521 : vector<16x128xf32>
    %523 = arith.mulf %522, %522 : vector<16x128xf32>
    %cst_220 = arith.constant dense<0.000000e+00> : vector<16xf32>
    %524 = vector.multi_reduction <add>, %523, %cst_220 [1] : vector<16x128xf32> to vector<16xf32>
    %525 = vector.shape_cast %524 : vector<16xf32> to vector<16x1xf32>
    %cst_221 = arith.constant 1.280000e+02 : f32
    %526 = vector.broadcast %cst_221 : f32 to vector<16x1xf32>
    %527 = arith.divf %525, %526 : vector<16x1xf32>
    %528 = vector.broadcast %520 : vector<16x1xf32> to vector<16x128xf32>
    %529 = arith.subf %512, %528 : vector<16x128xf32>
    %cst_222 = arith.constant 9.99999974E-6 : f32
    %530 = vector.broadcast %cst_222 : f32 to vector<16x1xf32>
    %531 = arith.addf %527, %530 : vector<16x1xf32>
    %532 = math.rsqrt %531 : vector<16x1xf32>
    %533 = vector.broadcast %532 : vector<16x1xf32> to vector<16x128xf32>
    %534 = arith.mulf %529, %533 : vector<16x128xf32>
    %535 = vector.broadcast %514 : vector<1x128xf32> to vector<16x128xf32>
    %536 = arith.mulf %534, %535 : vector<16x128xf32>
    %537 = vector.broadcast %516 : vector<1x128xf32> to vector<16x128xf32>
    %538 = arith.addf %536, %537 : vector<16x128xf32>
    %539 = arith.truncf %538 : vector<16x128xf32> to vector<16x128xbf16>
    %c1_223 = arith.constant 1 : index
    %c0_224 = arith.constant 0 : index
    %c0_225 = arith.constant 0 : index
    %540 = vector.load %arg19[%c1_223, %c0_224, %c0_225] : memref<2x128x256xbf16, #tpu.memory_space<vmem>>, vector<1x128x256xbf16>
    %541 = vector.shape_cast %540 : vector<1x128x256xbf16> to vector<128x256xbf16>
    %cst_226 = arith.constant dense<0.000000e+00> : vector<16x256xf32>
    %542 = tpu.matmul %539, %541, %cst_226 {dimension_numbers = #tpu.dot_dimension_numbers<[1], [0], [0], [1], [0, 0, 1, 1], [], []>} : vector<16x128xbf16>, vector<128x256xbf16>, vector<16x256xf32> -> vector<16x256xf32>
    %c1_227 = arith.constant 1 : index
    %c0_228 = arith.constant 0 : index
    %c0_229 = arith.constant 0 : index
    %543 = vector.load %arg20[%c1_227, %c0_228, %c0_229] : memref<2x1x256xf32, #tpu.memory_space<vmem>>, vector<1x1x256xf32>
    %544 = vector.shape_cast %543 : vector<1x1x256xf32> to vector<1x256xf32>
    %545 = vector.broadcast %544 : vector<1x256xf32> to vector<16x256xf32>
    %546 = arith.addf %542, %545 : vector<16x256xf32>
    %cst_230 = arith.constant 5.000000e-01 : f32
    %547 = vector.broadcast %cst_230 : f32 to vector<16x256xf32>
    %548 = arith.mulf %547, %546 : vector<16x256xf32>
    %cst_231 = arith.constant 4.471500e-02 : f32
    %549 = vector.broadcast %cst_231 : f32 to vector<16x256xf32>
    %550 = arith.mulf %549, %546 : vector<16x256xf32>
    %551 = arith.mulf %550, %546 : vector<16x256xf32>
    %552 = arith.mulf %551, %546 : vector<16x256xf32>
    %553 = arith.addf %546, %552 : vector<16x256xf32>
    %cst_232 = arith.constant 0.797884583 : f32
    %554 = vector.broadcast %cst_232 : f32 to vector<16x256xf32>
    %555 = arith.mulf %554, %553 : vector<16x256xf32>
    %556 = math.tanh %555 : vector<16x256xf32>
    %cst_233 = arith.constant 1.000000e+00 : f32
    %557 = vector.broadcast %cst_233 : f32 to vector<16x256xf32>
    %558 = arith.addf %557, %556 : vector<16x256xf32>
    %559 = arith.mulf %548, %558 : vector<16x256xf32>
    %560 = arith.truncf %559 : vector<16x256xf32> to vector<16x256xbf16>
    %c1_234 = arith.constant 1 : index
    %c0_235 = arith.constant 0 : index
    %c0_236 = arith.constant 0 : index
    %561 = vector.load %arg21[%c1_234, %c0_235, %c0_236] : memref<2x256x128xbf16, #tpu.memory_space<vmem>>, vector<1x256x128xbf16>
    %562 = vector.shape_cast %561 : vector<1x256x128xbf16> to vector<256x128xbf16>
    %cst_237 = arith.constant dense<0.000000e+00> : vector<16x128xf32>
    %563 = tpu.matmul %560, %562, %cst_237 {dimension_numbers = #tpu.dot_dimension_numbers<[1], [0], [0], [1], [0, 0, 1, 1], [], []>} : vector<16x256xbf16>, vector<256x128xbf16>, vector<16x128xf32> -> vector<16x128xf32>
    %c1_238 = arith.constant 1 : index
    %c0_239 = arith.constant 0 : index
    %c0_240 = arith.constant 0 : index
    %564 = vector.load %arg22[%c1_238, %c0_239, %c0_240] : memref<2x1x128xf32, #tpu.memory_space<vmem>>, vector<1x1x128xf32>
    %565 = vector.shape_cast %564 : vector<1x1x128xf32> to vector<1x128xf32>
    %566 = vector.broadcast %565 : vector<1x128xf32> to vector<16x128xf32>
    %567 = arith.addf %563, %566 : vector<16x128xf32>
    %568 = arith.addf %538, %567 : vector<16x128xf32>
    %c1_241 = arith.constant 1 : index
    %c0_242 = arith.constant 0 : index
    %c0_243 = arith.constant 0 : index
    %569 = vector.load %arg23[%c1_241, %c0_242, %c0_243] : memref<2x1x128xf32, #tpu.memory_space<vmem>>, vector<1x1x128xf32>
    %570 = vector.shape_cast %569 : vector<1x1x128xf32> to vector<1x128xf32>
    %c1_244 = arith.constant 1 : index
    %c0_245 = arith.constant 0 : index
    %c0_246 = arith.constant 0 : index
    %571 = vector.load %arg24[%c1_244, %c0_245, %c0_246] : memref<2x1x128xf32, #tpu.memory_space<vmem>>, vector<1x1x128xf32>
    %572 = vector.shape_cast %571 : vector<1x1x128xf32> to vector<1x128xf32>
    %cst_247 = arith.constant dense<0.000000e+00> : vector<16xf32>
    %573 = vector.multi_reduction <add>, %568, %cst_247 [1] : vector<16x128xf32> to vector<16xf32>
    %574 = vector.shape_cast %573 : vector<16xf32> to vector<16x1xf32>
    %cst_248 = arith.constant 1.280000e+02 : f32
    %575 = vector.broadcast %cst_248 : f32 to vector<16x1xf32>
    %576 = arith.divf %574, %575 : vector<16x1xf32>
    %577 = vector.broadcast %576 : vector<16x1xf32> to vector<16x128xf32>
    %578 = arith.subf %568, %577 : vector<16x128xf32>
    %579 = arith.mulf %578, %578 : vector<16x128xf32>
    %cst_249 = arith.constant dense<0.000000e+00> : vector<16xf32>
    %580 = vector.multi_reduction <add>, %579, %cst_249 [1] : vector<16x128xf32> to vector<16xf32>
    %581 = vector.shape_cast %580 : vector<16xf32> to vector<16x1xf32>
    %cst_250 = arith.constant 1.280000e+02 : f32
    %582 = vector.broadcast %cst_250 : f32 to vector<16x1xf32>
    %583 = arith.divf %581, %582 : vector<16x1xf32>
    %584 = vector.broadcast %576 : vector<16x1xf32> to vector<16x128xf32>
    %585 = arith.subf %568, %584 : vector<16x128xf32>
    %cst_251 = arith.constant 9.99999974E-6 : f32
    %586 = vector.broadcast %cst_251 : f32 to vector<16x1xf32>
    %587 = arith.addf %583, %586 : vector<16x1xf32>
    %588 = math.rsqrt %587 : vector<16x1xf32>
    %589 = vector.broadcast %588 : vector<16x1xf32> to vector<16x128xf32>
    %590 = arith.mulf %585, %589 : vector<16x128xf32>
    %591 = vector.broadcast %570 : vector<1x128xf32> to vector<16x128xf32>
    %592 = arith.mulf %590, %591 : vector<16x128xf32>
    %593 = vector.broadcast %572 : vector<1x128xf32> to vector<16x128xf32>
    %594 = arith.addf %592, %593 : vector<16x128xf32>
    %595 = arith.truncf %594 : vector<16x128xf32> to vector<16x128xbf16>
    %c0_252 = arith.constant 0 : index
    %c0_253 = arith.constant 0 : index
    %c0_254 = arith.constant 0 : index
    %596 = vector.load %arg25[%c0_252, %c0_253, %c0_254] : memref<1x16x128xbf16, #tpu.memory_space<vmem>>, vector<1x16x128xbf16>
    %597 = vector.shape_cast %596 : vector<1x16x128xbf16> to vector<16x128xbf16>
    %598 = vector.shape_cast %595 : vector<16x128xbf16> to vector<1x16x128xbf16>
    tpu.vector_store %arg25[%c0_252, %c0_253, %c0_254], %598 {strides = array<i32>} : memref<1x16x128xbf16, #tpu.memory_space<vmem>>, vector<1x16x128xbf16>,
    return
  }
  func.func @transform_0(%arg0: i32) -> (i32, i32, i32) {
    %c0_i32 = arith.constant 0 : i32
    %c0_i32_0 = arith.constant 0 : i32
    %c0_i32_1 = arith.constant 0 : i32
    return %arg0, %c0_i32, %c0_i32_0 : i32, i32, i32
  }
  func.func @transform_1(%arg0: i32) -> (i32, i32) {
    %c0_i32 = arith.constant 0 : i32
    %c0_i32_0 = arith.constant 0 : i32
    %c0_i32_1 = arith.constant 0 : i32
    return %c0_i32, %c0_i32_0 : i32, i32
  }
  func.func @transform_2(%arg0: i32) -> (i32, i32) {
    %c0_i32 = arith.constant 0 : i32
    %c0_i32_0 = arith.constant 0 : i32
    %c0_i32_1 = arith.constant 0 : i32
    return %c0_i32, %c0_i32_0 : i32, i32
  }
  func.func @transform_3(%arg0: i32) -> (i32, i32) {
    %c0_i32 = arith.constant 0 : i32
    %c0_i32_0 = arith.constant 0 : i32
    %c0_i32_1 = arith.constant 0 : i32
    return %c0_i32, %c0_i32_0 : i32, i32
  }
  func.func @transform_4(%arg0: i32) -> (i32, i32, i32) {
    %c0_i32 = arith.constant 0 : i32
    %c0_i32_0 = arith.constant 0 : i32
    %c0_i32_1 = arith.constant 0 : i32
    %c0_i32_2 = arith.constant 0 : i32
    return %c0_i32, %c0_i32_0, %c0_i32_1 : i32, i32, i32
  }
  func.func @transform_5(%arg0: i32) -> (i32, i32, i32) {
    %c0_i32 = arith.constant 0 : i32
    %c0_i32_0 = arith.constant 0 : i32
    %c0_i32_1 = arith.constant 0 : i32
    %c0_i32_2 = arith.constant 0 : i32
    return %c0_i32, %c0_i32_0, %c0_i32_1 : i32, i32, i32
  }
  func.func @transform_6(%arg0: i32) -> (i32, i32) {
    %c0_i32 = arith.constant 0 : i32
    %c0_i32_0 = arith.constant 0 : i32
    %c0_i32_1 = arith.constant 0 : i32
    return %c0_i32, %c0_i32_0 : i32, i32
  }
  func.func @transform_7(%arg0: i32) -> (i32, i32) {
    %c0_i32 = arith.constant 0 : i32
    %c0_i32_0 = arith.constant 0 : i32
    %c0_i32_1 = arith.constant 0 : i32
    return %c0_i32, %c0_i32_0 : i32, i32
  }
  func.func @transform_8(%arg0: i32) -> (i32, i32) {
    %c0_i32 = arith.constant 0 : i32
    %c0_i32_0 = arith.constant 0 : i32
    %c0_i32_1 = arith.constant 0 : i32
    return %c0_i32, %c0_i32_0 : i32, i32
  }
  func.func @transform_9(%arg0: i32) -> (i32, i32) {
    %c0_i32 = arith.constant 0 : i32
    %c0_i32_0 = arith.constant 0 : i32
    %c0_i32_1 = arith.constant 0 : i32
    return %c0_i32, %c0_i32_0 : i32, i32
  }
  func.func @transform_10(%arg0: i32) -> (i32, i32) {
    %c0_i32 = arith.constant 0 : i32
    %c0_i32_0 = arith.constant 0 : i32
    %c0_i32_1 = arith.constant 0 : i32
    return %c0_i32, %c0_i32_0 : i32, i32
  }
  func.func @transform_11(%arg0: i32) -> (i32, i32) {
    %c0_i32 = arith.constant 0 : i32
    %c0_i32_0 = arith.constant 0 : i32
    %c0_i32_1 = arith.constant 0 : i32
    return %c0_i32, %c0_i32_0 : i32, i32
  }
  func.func @transform_12(%arg0: i32) -> (i32, i32, i32) {
    %c0_i32 = arith.constant 0 : i32
    %c0_i32_0 = arith.constant 0 : i32
    %c0_i32_1 = arith.constant 0 : i32
    %c0_i32_2 = arith.constant 0 : i32
    return %c0_i32, %c0_i32_0, %c0_i32_1 : i32, i32, i32
  }
  func.func @transform_13(%arg0: i32) -> (i32, i32, i32) {
    %c0_i32 = arith.constant 0 : i32
    %c0_i32_0 = arith.constant 0 : i32
    %c0_i32_1 = arith.constant 0 : i32
    %c0_i32_2 = arith.constant 0 : i32
    return %c0_i32, %c0_i32_0, %c0_i32_1 : i32, i32, i32
  }
  func.func @transform_14(%arg0: i32) -> (i32, i32, i32) {
    %c0_i32 = arith.constant 0 : i32
    %c0_i32_0 = arith.constant 0 : i32
    %c0_i32_1 = arith.constant 0 : i32
    %c0_i32_2 = arith.constant 0 : i32
    return %c0_i32, %c0_i32_0, %c0_i32_1 : i32, i32, i32
  }
  func.func @transform_15(%arg0: i32) -> (i32, i32, i32) {
    %c0_i32 = arith.constant 0 : i32
    %c0_i32_0 = arith.constant 0 : i32
    %c0_i32_1 = arith.constant 0 : i32
    %c0_i32_2 = arith.constant 0 : i32
    return %c0_i32, %c0_i32_0, %c0_i32_1 : i32, i32, i32
  }
  func.func @transform_16(%arg0: i32) -> (i32, i32, i32) {
    %c0_i32 = arith.constant 0 : i32
    %c0_i32_0 = arith.constant 0 : i32
    %c0_i32_1 = arith.constant 0 : i32
    %c0_i32_2 = arith.constant 0 : i32
    return %c0_i32, %c0_i32_0, %c0_i32_1 : i32, i32, i32
  }
  func.func @transform_17(%arg0: i32) -> (i32, i32, i32) {
    %c0_i32 = arith.constant 0 : i32
    %c0_i32_0 = arith.constant 0 : i32
    %c0_i32_1 = arith.constant 0 : i32
    %c0_i32_2 = arith.constant 0 : i32
    return %c0_i32, %c0_i32_0, %c0_i32_1 : i32, i32, i32
  }
  func.func @transform_18(%arg0: i32) -> (i32, i32, i32) {
    %c0_i32 = arith.constant 0 : i32
    %c0_i32_0 = arith.constant 0 : i32
    %c0_i32_1 = arith.constant 0 : i32
    %c0_i32_2 = arith.constant 0 : i32
    return %c0_i32, %c0_i32_0, %c0_i32_1 : i32, i32, i32
  }
  func.func @transform_19(%arg0: i32) -> (i32, i32, i32) {
    %c0_i32 = arith.constant 0 : i32
    %c0_i32_0 = arith.constant 0 : i32
    %c0_i32_1 = arith.constant 0 : i32
    %c0_i32_2 = arith.constant 0 : i32
    return %c0_i32, %c0_i32_0, %c0_i32_1 : i32, i32, i32
  }
  func.func @transform_20(%arg0: i32) -> (i32, i32, i32) {
    %c0_i32 = arith.constant 0 : i32
    %c0_i32_0 = arith.constant 0 : i32
    %c0_i32_1 = arith.constant 0 : i32
    %c0_i32_2 = arith.constant 0 : i32
    return %c0_i32, %c0_i32_0, %c0_i32_1 : i32, i32, i32
  }
  func.func @transform_21(%arg0: i32) -> (i32, i32, i32) {
    %c0_i32 = arith.constant 0 : i32
    %c0_i32_0 = arith.constant 0 : i32
    %c0_i32_1 = arith.constant 0 : i32
    %c0_i32_2 = arith.constant 0 : i32
    return %c0_i32, %c0_i32_0, %c0_i32_1 : i32, i32, i32
  }
  func.func @transform_22(%arg0: i32) -> (i32, i32, i32) {
    %c0_i32 = arith.constant 0 : i32
    %c0_i32_0 = arith.constant 0 : i32
    %c0_i32_1 = arith.constant 0 : i32
    %c0_i32_2 = arith.constant 0 : i32
    return %c0_i32, %c0_i32_0, %c0_i32_1 : i32, i32, i32
  }
  func.func @transform_23(%arg0: i32) -> (i32, i32, i32) {
    %c0_i32 = arith.constant 0 : i32
    %c0_i32_0 = arith.constant 0 : i32
    %c0_i32_1 = arith.constant 0 : i32
    %c0_i32_2 = arith.constant 0 : i32
    return %c0_i32, %c0_i32_0, %c0_i32_1 : i32, i32, i32
  }
  func.func @transform_24(%arg0: i32) -> (i32, i32, i32) {
    %c0_i32 = arith.constant 0 : i32
    %c0_i32_0 = arith.constant 0 : i32
    %c0_i32_1 = arith.constant 0 : i32
    return %arg0, %c0_i32, %c0_i32_0 : i32, i32, i32
  }
}

module attributes {stable_mosaic.version = 11 : i64} {
  func.func @_fc_kernel(%arg0: i32, %arg1: memref<2x2048xbf16, #tpu.memory_space<vmem>>, %arg2: memref<2048x16xbf16, #tpu.memory_space<vmem>>, %arg3: memref<1x16xf32, #tpu.memory_space<vmem>>, %arg4: memref<2x16xf32, #tpu.memory_space<vmem>>, %arg5: memref<2x16xf32, #tpu.memory_space<vmem>>) attributes {dimension_semantics = [#tpu.dimension_semantics<arbitrary>], iteration_bounds = array<i64: 1>, scalar_prefetch = 0 : i64, scratch_operands = 1 : i64, tpu.core_type = #tpu.core_type<tc>, window_params = [{transform_indices = @transform_0, window_bounds = array<i64: 2, 2048>}, {transform_indices = @transform_1, window_bounds = array<i64: 2048, 16>}, {pipeline_mode = #tpu.pipeline_mode<synchronous>, transform_indices = @transform_2, window_bounds = array<i64: 1, 16>}, {pipeline_mode = #tpu.pipeline_mode<synchronous>, transform_indices = @transform_3, window_bounds = array<i64: 2, 16>}]} {
    %c0_i32 = arith.constant 0 : i32
    %0 = arith.cmpi eq, %arg0, %c0_i32 : i32
    %1 = arith.extui %0 : i1 to i32
    %c0_i32_0 = arith.constant 0 : i32
    %2 = arith.cmpi ne, %1, %c0_i32_0 : i32
    scf.if %2 {
      %cst_10 = arith.constant 0.000000e+00 : f32
      %12 = vector.broadcast %cst_10 : f32 to vector<2x16xf32>
      %c0_11 = arith.constant 0 : index
      %c0_12 = arith.constant 0 : index
      %13 = vector.load %arg5[%c0_11, %c0_12] : memref<2x16xf32, #tpu.memory_space<vmem>>, vector<2x16xf32>
      tpu.vector_store %arg5[%c0_11, %c0_12], %12 {strides = array<i32>} : memref<2x16xf32, #tpu.memory_space<vmem>>, vector<2x16xf32>,
    } else {
    }
    %c0 = arith.constant 0 : index
    %c0_1 = arith.constant 0 : index
    %3 = vector.load %arg5[%c0, %c0_1] : memref<2x16xf32, #tpu.memory_space<vmem>>, vector<2x16xf32>
    %c0_2 = arith.constant 0 : index
    %c0_3 = arith.constant 0 : index
    %4 = vector.load %arg1[%c0_2, %c0_3] : memref<2x2048xbf16, #tpu.memory_space<vmem>>, vector<2x2048xbf16>
    %c0_4 = arith.constant 0 : index
    %c0_5 = arith.constant 0 : index
    %5 = vector.load %arg2[%c0_4, %c0_5] : memref<2048x16xbf16, #tpu.memory_space<vmem>>, vector<2048x16xbf16>
    %cst = arith.constant dense<0.000000e+00> : vector<2x16xf32>
    %6 = tpu.matmul %4, %5, %cst {dimension_numbers = #tpu.dot_dimension_numbers<[1], [0], [0], [1], [0, 0, 1, 1], [], []>} : vector<2x2048xbf16>, vector<2048x16xbf16>, vector<2x16xf32> -> vector<2x16xf32>
    %7 = arith.addf %3, %6 : vector<2x16xf32>
    %c0_6 = arith.constant 0 : index
    %c0_7 = arith.constant 0 : index
    %8 = vector.load %arg5[%c0_6, %c0_7] : memref<2x16xf32, #tpu.memory_space<vmem>>, vector<2x16xf32>
    tpu.vector_store %arg5[%c0_6, %c0_7], %7 {strides = array<i32>} : memref<2x16xf32, #tpu.memory_space<vmem>>, vector<2x16xf32>,
    %c0_i32_8 = arith.constant 0 : i32
    %9 = arith.cmpi eq, %arg0, %c0_i32_8 : i32
    %10 = arith.extui %9 : i1 to i32
    %c0_i32_9 = arith.constant 0 : i32
    %11 = arith.cmpi ne, %10, %c0_i32_9 : i32
    scf.if %11 {
      %c0_10 = arith.constant 0 : index
      %c0_11 = arith.constant 0 : index
      %12 = vector.load %arg5[%c0_10, %c0_11] : memref<2x16xf32, #tpu.memory_space<vmem>>, vector<2x16xf32>
      %c0_12 = arith.constant 0 : index
      %c0_13 = arith.constant 0 : index
      %13 = vector.load %arg3[%c0_12, %c0_13] : memref<1x16xf32, #tpu.memory_space<vmem>>, vector<1x16xf32>
      %14 = vector.broadcast %13 : vector<1x16xf32> to vector<2x16xf32>
      %15 = arith.addf %12, %14 : vector<2x16xf32>
      %c0_14 = arith.constant 0 : index
      %c0_15 = arith.constant 0 : index
      %16 = vector.load %arg4[%c0_14, %c0_15] : memref<2x16xf32, #tpu.memory_space<vmem>>, vector<2x16xf32>
      tpu.vector_store %arg4[%c0_14, %c0_15], %15 {strides = array<i32>} : memref<2x16xf32, #tpu.memory_space<vmem>>, vector<2x16xf32>,
    } else {
    }
    return
  }
  func.func @transform_0(%arg0: i32) -> (i32, i32) {
    %c0_i32 = arith.constant 0 : i32
    %c0_i32_0 = arith.constant 0 : i32
    return %c0_i32, %arg0 : i32, i32
  }
  func.func @transform_1(%arg0: i32) -> (i32, i32) {
    %c0_i32 = arith.constant 0 : i32
    %c0_i32_0 = arith.constant 0 : i32
    return %arg0, %c0_i32 : i32, i32
  }
  func.func @transform_2(%arg0: i32) -> (i32, i32) {
    %c0_i32 = arith.constant 0 : i32
    %c0_i32_0 = arith.constant 0 : i32
    %c0_i32_1 = arith.constant 0 : i32
    return %c0_i32, %c0_i32_0 : i32, i32
  }
  func.func @transform_3(%arg0: i32) -> (i32, i32) {
    %c0_i32 = arith.constant 0 : i32
    %c0_i32_0 = arith.constant 0 : i32
    %c0_i32_1 = arith.constant 0 : i32
    return %c0_i32, %c0_i32_0 : i32, i32
  }
}

</mosaic_0001>

<llo_original>
// kernel: squeeze.1
$region0: #{squeeze.1}
  %s0 = inlined_call_operand.vmem [shape: f32[2,340], index: 0, kind: input, shape index: {}]
  %s1 = inlined_call_operand.vmem [shape: f32[2,68,5], index: 1, kind: output, shape index: {}]
  $region1: #{squeeze.1} parent=0
    #allocation0 [shape = 'u8[12288]{0}', space=vmem, size = 0x3000, scoped, tag = 'scoped mem for input reshape']
    %s3 = sshllo.u32 0, 2
    %s4 = smul.addr 2, 2
    %s5 = scalar_lea.vmem %s0, %s4
    %v6 = vld [vmem:[%s5] sm:%s3]
    %s7 = scalar_lea.vmem [#allocation0], 16
    %8 = vst [vmem:[%s7] sm:%s3] %v6
    %s9 = scalar_lea.vmem %s0, 2
    %v10 = vld [vmem:[%s9] sm:%s3]
    %s11 = scalar_lea.vmem [#allocation0], 8
    %12 = vst [vmem:[%s11] sm:%s3] %v10
    %v13 = vld [vmem:[%s0] sm:%s3]
    %14 = vst [vmem:[#allocation0] sm:%s3] %v13
    %v15 = vld [vmem:[#allocation0] sm:$0x3]
    %vm16 = vcmask 39936
    %17 = vst.msk [vmem:[%s1] ss:$72 sm:$0x3] %vm16, %v15
    %s18 = scalar_lea.vmem [#allocation0], 9
    %s19 = smov 3
    %v20 = vld [vmem:[%s18] ss:$-1 sm:%s19]
    %21 = vrot.lane.b32.xlu0 %v20, 126
    %v22 = vpop.permute.xlu0 %21
    %vm23 = vcmask 39936
    %s24 = scalar_lea.vmem %s1, 98
    %25 = vst.msk [vmem:[%s24] ss:$-72 sm:$0x3] %vm23, %v22
    %s26 = scalar_lea.vmem [#allocation0], 16
    %v27 = vld [vmem:[%s26] sm:$0x3]
    %28 = vrot.lane.b32.xlu0 %v27, 124
    %v29 = vpop.permute.xlu0 %28
    %vm30 = vcmask 39936
    %s31 = scalar_lea.vmem %s1, 52
    %32 = vst.msk [vmem:[%s31] ss:$72 sm:$0x3] %vm30, %v29
    %v33 = vld [vmem:[#allocation0] sm:$0x3]
    %34 = vrot.lane.b32.xlu0 %v33, 123
    %v35 = vpop.permute.xlu0 %34
    %vm36 = vcmask 39936
    %s37 = scalar_lea.vmem %s1, 1
    %38 = vst.msk [vmem:[%s37] ss:$72 sm:$0x3] %vm36, %v35
    %s39 = scalar_lea.vmem [#allocation0], 9
    %s40 = smov 3
    %v41 = vld [vmem:[%s39] ss:$-1 sm:%s40]
    %42 = vrot.lane.b32.xlu0 %v41, 121
    %v43 = vpop.permute.xlu0 %42
    %vm44 = vcmask 39936
    %s45 = scalar_lea.vmem %s1, 99
    %46 = vst.msk [vmem:[%s45] ss:$-72 sm:$0x3] %vm44, %v43
    %s47 = scalar_lea.vmem [#allocation0], 16
    %v48 = vld [vmem:[%s47] sm:$0x3]
    %49 = vrot.lane.b32.xlu0 %v48, 119
    %v50 = vpop.permute.xlu0 %49
    %vm51 = vcmask 39936
    %s52 = scalar_lea.vmem %s1, 53
    %53 = vst.msk [vmem:[%s52] ss:$72 sm:$0x3] %vm51, %v50
    %v54 = vld [vmem:[#allocation0] sm:$0x3]
    %55 = vrot.lane.b32.xlu0 %v54, 118
    %v56 = vpop.permute.xlu0 %55
    %vm57 = vcmask 39936
    %s58 = scalar_lea.vmem %s1, 2
    %59 = vst.msk [vmem:[%s58] ss:$72 sm:$0x3] %vm57, %v56
    %s60 = scalar_lea.vmem [#allocation0], 9
    %s61 = smov 3
    %v62 = vld [vmem:[%s60] ss:$-1 sm:%s61]
    %63 = vrot.lane.b32.xlu0 %v62, 116
    %v64 = vpop.permute.xlu0 %63
    %vm65 = vcmask 39936
    %s66 = scalar_lea.vmem %s1, 100
    %67 = vst.msk [vmem:[%s66] ss:$-72 sm:$0x3] %vm65, %v64
    %s68 = scalar_lea.vmem [#allocation0], 16
    %v69 = vld [vmem:[%s68] sm:$0x3]
    %70 = vrot.lane.b32.xlu0 %v69, 114
    %v71 = vpop.permute.xlu0 %70
    %vm72 = vcmask 39936
    %s73 = scalar_lea.vmem %s1, 54
    %74 = vst.msk [vmem:[%s73] ss:$72 sm:$0x3] %vm72, %v71
    %v75 = vld [vmem:[#allocation0] sm:$0x3]
    %76 = vrot.lane.b32.xlu0 %v75, 113
    %v77 = vpop.permute.xlu0 %76
    %vm78 = vcmask 39936
    %s79 = scalar_lea.vmem %s1, 3
    %80 = vst.msk [vmem:[%s79] ss:$72 sm:$0x3] %vm78, %v77
    %s81 = scalar_lea.vmem [#allocation0], 9
    %s82 = smov 3
    %v83 = vld [vmem:[%s81] ss:$-1 sm:%s82]
    %84 = vrot.lane.b32.xlu0 %v83, 111
    %v85 = vpop.permute.xlu0 %84
    %vm86 = vcmask 39936
    %s87 = scalar_lea.vmem %s1, 101
    %88 = vst.msk [vmem:[%s87] ss:$-72 sm:$0x3] %vm86, %v85
    %s89 = scalar_lea.vmem [#allocation0], 16
    %v90 = vld [vmem:[%s89] sm:$0x3]
    %91 = vrot.lane.b32.xlu0 %v90, 109
    %v92 = vpop.permute.xlu0 %91
    %vm93 = vcmask 39936
    %s94 = scalar_lea.vmem %s1, 55
    %95 = vst.msk [vmem:[%s94] ss:$72 sm:$0x3] %vm93, %v92
    %v96 = vld [vmem:[#allocation0] sm:$0x3]
    %97 = vrot.lane.b32.xlu0 %v96, 108
    %v98 = vpop.permute.xlu0 %97
    %vm99 = vcmask 39936
    %s100 = scalar_lea.vmem %s1, 4
    %101 = vst.msk [vmem:[%s100] ss:$72 sm:$0x3] %vm99, %v98
    %s102 = scalar_lea.vmem [#allocation0], 9
    %s103 = smov 3
    %v104 = vld [vmem:[%s102] ss:$-1 sm:%s103]
    %105 = vrot.lane.b32.xlu0 %v104, 106
    %v106 = vpop.permute.xlu0 %105
    %vm107 = vcmask 39936
    %s108 = scalar_lea.vmem %s1, 102
    %109 = vst.msk [vmem:[%s108] ss:$-72 sm:$0x3] %vm107, %v106
    %s110 = scalar_lea.vmem [#allocation0], 17
    %s111 = smov 3
    %v112 = vld [vmem:[%s110] ss:$-1 sm:%s111]
    %113 = vrot.lane.b32.xlu0 %v112, 104
    %v114 = vpop.permute.xlu0 %113
    %vm115 = vcmask 39936
    %s116 = scalar_lea.vmem %s1, 128
    %117 = vst.msk [vmem:[%s116] ss:$-72 sm:$0x3] %vm115, %v114
    %v118 = vld [vmem:[#allocation0] sm:$0x3]
    %119 = vrot.lane.b32.xlu0 %v118, 103
    %v120 = vpop.permute.xlu0 %119
    %vm121 = vcmask 39936
    %s122 = scalar_lea.vmem %s1, 5
    %123 = vst.msk [vmem:[%s122] ss:$72 sm:$0x3] %vm121, %v120
    %s124 = scalar_lea.vmem [#allocation0], 9
    %s125 = smov 3
    %v126 = vld [vmem:[%s124] ss:$-1 sm:%s125]
    %127 = vrot.lane.b32.xlu0 %v126, 101
    %v128 = vpop.permute.xlu0 %127
    %vm129 = vcmask 39936
    %s130 = scalar_lea.vmem %s1, 103
    %131 = vst.msk [vmem:[%s130] ss:$-72 sm:$0x3] %vm129, %v128
    %s132 = scalar_lea.vmem [#allocation0], 17
    %s133 = smov 3
    %v134 = vld [vmem:[%s132] ss:$-1 sm:%s133]
    %135 = vrot.lane.b32.xlu0 %v134, 99
    %v136 = vpop.permute.xlu0 %135
    %vm137 = vcmask 39936
    %s138 = scalar_lea.vmem %s1, 129
    %139 = vst.msk [vmem:[%s138] ss:$-72 sm:$0x3] %vm137, %v136
    %v140 = vld [vmem:[#allocation0] sm:$0x3]
    %141 = vrot.lane.b32.xlu0 %v140, 98
    %v142 = vpop.permute.xlu0 %141
    %vm143 = vcmask 39936
    %s144 = scalar_lea.vmem %s1, 6
    %145 = vst.msk [vmem:[%s144] ss:$72 sm:$0x3] %vm143, %v142
    %s146 = scalar_lea.vmem [#allocation0], 8
    %v147 = vld [vmem:[%s146] sm:$0x3]
    %148 = vrot.lane.b32.xlu0 %v147, 96
    %v149 = vpop.permute.xlu0 %148
    %vm150 = vcmask 39936
    %s151 = scalar_lea.vmem %s1, 32
    %152 = vst.msk [vmem:[%s151] ss:$72 sm:$0x3] %vm150, %v149
    %s153 = scalar_lea.vmem [#allocation0], 17
    %s154 = smov 3
    %v155 = vld [vmem:[%s153] ss:$-1 sm:%s154]
    %156 = vrot.lane.b32.xlu0 %v155, 94
    %v157 = vpop.permute.xlu0 %156
    %vm158 = vcmask 39936
    %s159 = scalar_lea.vmem %s1, 130
    %160 = vst.msk [vmem:[%s159] ss:$-72 sm:$0x3] %vm158, %v157
    %v161 = vld [vmem:[#allocation0] sm:$0x3]
    %162 = vrot.lane.b32.xlu0 %v161, 93
    %v163 = vpop.permute.xlu0 %162
    %vm164 = vcmask 39936
    %s165 = scalar_lea.vmem %s1, 7
    %166 = vst.msk [vmem:[%s165] ss:$72 sm:$0x3] %vm164, %v163
    %s167 = scalar_lea.vmem [#allocation0], 8
    %v168 = vld [vmem:[%s167] sm:$0x3]
    %169 = vrot.lane.b32.xlu0 %v168, 91
    %v170 = vpop.permute.xlu0 %169
    %vm171 = vcmask 39936
    %s172 = scalar_lea.vmem %s1, 33
    %173 = vst.msk [vmem:[%s172] ss:$72 sm:$0x3] %vm171, %v170
    %s174 = scalar_lea.vmem [#allocation0], 17
    %s175 = smov 3
    %v176 = vld [vmem:[%s174] ss:$-1 sm:%s175]
    %177 = vrot.lane.b32.xlu0 %v176, 89
    %v178 = vpop.permute.xlu0 %177
    %vm179 = vcmask 39936
    %s180 = scalar_lea.vmem %s1, 131
    %181 = vst.msk [vmem:[%s180] ss:$-72 sm:$0x3] %vm179, %v178
    %v182 = vld [vmem:[#allocation0] sm:$0x3]
    %183 = vrot.lane.b32.xlu0 %v182, 88
    %v184 = vpop.permute.xlu0 %183
    %vm185 = vcmask 39936
    %s186 = scalar_lea.vmem %s1, 8
    %187 = vst.msk [vmem:[%s186] ss:$72 sm:$0x3] %vm185, %v184
    %s188 = scalar_lea.vmem [#allocation0], 8
    %v189 = vld [vmem:[%s188] sm:$0x3]
    %190 = vrot.lane.b32.xlu0 %v189, 86
    %v191 = vpop.permute.xlu0 %190
    %vm192 = vcmask 39936
    %s193 = scalar_lea.vmem %s1, 34
    %194 = vst.msk [vmem:[%s193] ss:$72 sm:$0x3] %vm192, %v191
    %s195 = scalar_lea.vmem [#allocation0], 17
    %s196 = smov 3
    %v197 = vld [vmem:[%s195] ss:$-1 sm:%s196]
    %198 = vrot.lane.b32.xlu0 %v197, 84
    %v199 = vpop.permute.xlu0 %198
    %vm200 = vcmask 39936
    %s201 = scalar_lea.vmem %s1, 132
    %202 = vst.msk [vmem:[%s201] ss:$-72 sm:$0x3] %vm200, %v199
    %v203 = vld [vmem:[#allocation0] sm:$0x3]
    %204 = vrot.lane.b32.xlu0 %v203, 83
    %v205 = vpop.permute.xlu0 %204
    %vm206 = vcmask 39936
    %s207 = scalar_lea.vmem %s1, 9
    %208 = vst.msk [vmem:[%s207] ss:$72 sm:$0x3] %vm206, %v205
    %s209 = scalar_lea.vmem [#allocation0], 8
    %v210 = vld [vmem:[%s209] sm:$0x3]
    %211 = vrot.lane.b32.xlu0 %v210, 81
    %v212 = vpop.permute.xlu0 %211
    %vm213 = vcmask 39936
    %s214 = scalar_lea.vmem %s1, 35
    %215 = vst.msk [vmem:[%s214] ss:$72 sm:$0x3] %vm213, %v212
    %s216 = scalar_lea.vmem [#allocation0], 17
    %s217 = smov 3
    %v218 = vld [vmem:[%s216] ss:$-1 sm:%s217]
    %219 = vrot.lane.b32.xlu0 %v218, 79
    %v220 = vpop.permute.xlu0 %219
    %vm221 = vcmask 39936
    %s222 = scalar_lea.vmem %s1, 133
    %223 = vst.msk [vmem:[%s222] ss:$-72 sm:$0x3] %vm221, %v220
    %v224 = vld [vmem:[#allocation0] sm:$0x3]
    %225 = vrot.lane.b32.xlu0 %v224, 78
    %v226 = vpop.permute.xlu0 %225
    %vm227 = vcmask 39936
    %s228 = scalar_lea.vmem %s1, 10
    %229 = vst.msk [vmem:[%s228] ss:$72 sm:$0x3] %vm227, %v226
    %s230 = scalar_lea.vmem [#allocation0], 8
    %v231 = vld [vmem:[%s230] sm:$0x3]
    %232 = vrot.lane.b32.xlu0 %v231, 76
    %v233 = vpop.permute.xlu0 %232
    %vm234 = vcmask 39936
    %s235 = scalar_lea.vmem %s1, 36
    %236 = vst.msk [vmem:[%s235] ss:$72 sm:$0x3] %vm234, %v233
    %s237 = scalar_lea.vmem [#allocation0], 17
    %s238 = smov 3
    %v239 = vld [vmem:[%s237] ss:$-1 sm:%s238]
    %240 = vrot.lane.b32.xlu0 %v239, 74
    %v241 = vpop.permute.xlu0 %240
    %vm242 = vcmask 39936
    %s243 = scalar_lea.vmem %s1, 134
    %244 = vst.msk [vmem:[%s243] ss:$-72 sm:$0x3] %vm242, %v241
    %v245 = vld [vmem:[#allocation0] sm:$0x3]
    %246 = vrot.lane.b32.xlu0 %v245, 73
    %v247 = vpop.permute.xlu0 %246
    %vm248 = vcmask 39936
    %s249 = scalar_lea.vmem %s1, 11
    %250 = vst.msk [vmem:[%s249] ss:$72 sm:$0x3] %vm248, %v247
    %s251 = scalar_lea.vmem [#allocation0], 8
    %v252 = vld [vmem:[%s251] sm:$0x3]
    %253 = vrot.lane.b32.xlu0 %v252, 71
    %v254 = vpop.permute.xlu0 %253
    %vm255 = vcmask 39936
    %s256 = scalar_lea.vmem %s1, 37
    %257 = vst.msk [vmem:[%s256] ss:$72 sm:$0x3] %vm255, %v254
    %s258 = scalar_lea.vmem [#allocation0], 17
    %s259 = smov 3
    %v260 = vld [vmem:[%s258] ss:$-1 sm:%s259]
    %261 = vrot.lane.b32.xlu0 %v260, 69
    %v262 = vpop.permute.xlu0 %261
    %vm263 = vcmask 39936
    %s264 = scalar_lea.vmem %s1, 135
    %265 = vst.msk [vmem:[%s264] ss:$-72 sm:$0x3] %vm263, %v262
    %v266 = vld [vmem:[#allocation0] sm:$0x3]
    %267 = vrot.lane.b32.xlu0 %v266, 68
    %v268 = vpop.permute.xlu0 %267
    %vm269 = vcmask 39936
    %s270 = scalar_lea.vmem %s1, 12
    %271 = vst.msk [vmem:[%s270] ss:$72 sm:$0x3] %vm269, %v268
    %s272 = scalar_lea.vmem [#allocation0], 8
    %v273 = vld [vmem:[%s272] sm:$0x3]
    %274 = vrot.lane.b32.xlu0 %v273, 66
    %v275 = vpop.permute.xlu0 %274
    %vm276 = vcmask 39936
    %s277 = scalar_lea.vmem %s1, 38
    %278 = vst.msk [vmem:[%s277] ss:$72 sm:$0x3] %vm276, %v275
    %s279 = scalar_lea.vmem [#allocation0], 16
    %v280 = vld [vmem:[%s279] sm:$0x3]
    %281 = vrot.lane.b32.xlu0 %v280, 64
    %v282 = vpop.permute.xlu0 %281
    %vm283 = vcmask 39936
    %s284 = scalar_lea.vmem %s1, 64
    %285 = vst.msk [vmem:[%s284] ss:$72 sm:$0x3] %vm283, %v282
    %v286 = vld [vmem:[#allocation0] sm:$0x3]
    %287 = vrot.lane.b32.xlu0 %v286, 63
    %v288 = vpop.permute.xlu0 %287
    %vm289 = vcmask 39936
    %s290 = scalar_lea.vmem %s1, 13
    %291 = vst.msk [vmem:[%s290] ss:$72 sm:$0x3] %vm289, %v288
    %s292 = scalar_lea.vmem [#allocation0], 8
    %v293 = vld [vmem:[%s292] sm:$0x3]
    %294 = vrot.lane.b32.xlu0 %v293, 61
    %v295 = vpop.permute.xlu0 %294
    %vm296 = vcmask 39936
    %s297 = scalar_lea.vmem %s1, 39
    %298 = vst.msk [vmem:[%s297] ss:$72 sm:$0x3] %vm296, %v295
    %s299 = scalar_lea.vmem [#allocation0], 16
    %v300 = vld [vmem:[%s299] sm:$0x3]
    %301 = vrot.lane.b32.xlu0 %v300, 59
    %v302 = vpop.permute.xlu0 %301
    %vm303 = vcmask 39936
    %s304 = scalar_lea.vmem %s1, 65
    %305 = vst.msk [vmem:[%s304] ss:$72 sm:$0x3] %vm303, %v302
    %v306 = vld [vmem:[#allocation0] sm:$0x3]
    %307 = vrot.lane.b32.xlu0 %v306, 58
    %v308 = vpop.permute.xlu0 %307
    %vm309 = vcmask 39936
    %s310 = scalar_lea.vmem %s1, 14
    %311 = vst.msk [vmem:[%s310] ss:$72 sm:$0x3] %vm309, %v308
    %s312 = scalar_lea.vmem [#allocation0], 8
    %v313 = vld [vmem:[%s312] sm:$0x3]
    %314 = vrot.lane.b32.xlu0 %v313, 56
    %v315 = vpop.permute.xlu0 %314
    %vm316 = vcmask 39936
    %s317 = scalar_lea.vmem %s1, 40
    %318 = vst.msk [vmem:[%s317] ss:$72 sm:$0x3] %vm316, %v315
    %s319 = scalar_lea.vmem [#allocation0], 16
    %v320 = vld [vmem:[%s319] sm:$0x3]
    %321 = vrot.lane.b32.xlu0 %v320, 54
    %v322 = vpop.permute.xlu0 %321
    %vm323 = vcmask 39936
    %s324 = scalar_lea.vmem %s1, 66
    %325 = vst.msk [vmem:[%s324] ss:$72 sm:$0x3] %vm323, %v322
    %v326 = vld [vmem:[#allocation0] sm:$0x3]
    %327 = vrot.lane.b32.xlu0 %v326, 53
    %v328 = vpop.permute.xlu0 %327
    %vm329 = vcmask 39936
    %s330 = scalar_lea.vmem %s1, 15
    %331 = vst.msk [vmem:[%s330] ss:$72 sm:$0x3] %vm329, %v328
    %s332 = scalar_lea.vmem [#allocation0], 8
    %v333 = vld [vmem:[%s332] sm:$0x3]
    %334 = vrot.lane.b32.xlu0 %v333, 51
    %v335 = vpop.permute.xlu0 %334
    %vm336 = vcmask 39936
    %s337 = scalar_lea.vmem %s1, 41
    %338 = vst.msk [vmem:[%s337] ss:$72 sm:$0x3] %vm336, %v335
    %s339 = scalar_lea.vmem [#allocation0], 16
    %v340 = vld [vmem:[%s339] sm:$0x3]
    %341 = vrot.lane.b32.xlu0 %v340, 49
    %v342 = vpop.permute.xlu0 %341
    %vm343 = vcmask 39936
    %s344 = scalar_lea.vmem %s1, 67
    %345 = vst.msk [vmem:[%s344] ss:$72 sm:$0x3] %vm343, %v342
    %v346 = vld [vmem:[#allocation0] sm:$0x3]
    %347 = vrot.lane.b32.xlu0 %v346, 48
    %v348 = vpop.permute.xlu0 %347
    %vm349 = vcmask 39936
    %s350 = scalar_lea.vmem %s1, 16
    %351 = vst.msk [vmem:[%s350] ss:$72 sm:$0x3] %vm349, %v348
    %s352 = scalar_lea.vmem [#allocation0], 8
    %v353 = vld [vmem:[%s352] sm:$0x3]
    %354 = vrot.lane.b32.xlu0 %v353, 46
    %v355 = vpop.permute.xlu0 %354
    %vm356 = vcmask 39936
    %s357 = scalar_lea.vmem %s1, 42
    %358 = vst.msk [vmem:[%s357] ss:$72 sm:$0x3] %vm356, %v355
    %v359 = vld [vmem:[#allocation0] sm:$0x3]
    %360 = vrot.lane.b32.xlu0 %v359, 43
    %v361 = vpop.permute.xlu0 %360
    %vm362 = vcmask 39936
    %s363 = scalar_lea.vmem %s1, 17
    %364 = vst.msk [vmem:[%s363] ss:$72 sm:$0x3] %vm362, %v361
    %s365 = scalar_lea.vmem [#allocation0], 8
    %v366 = vld [vmem:[%s365] sm:$0x3]
    %367 = vrot.lane.b32.xlu0 %v366, 41
    %v368 = vpop.permute.xlu0 %367
    %vm369 = vcmask 39936
    %s370 = scalar_lea.vmem %s1, 43
    %371 = vst.msk [vmem:[%s370] ss:$72 sm:$0x3] %vm369, %v368
    %v372 = vld [vmem:[#allocation0] sm:$0x3]
    %373 = vrot.lane.b32.xlu0 %v372, 38
    %v374 = vpop.permute.xlu0 %373
    %vm375 = vcmask 39936
    %s376 = scalar_lea.vmem %s1, 18
    %377 = vst.msk [vmem:[%s376] ss:$72 sm:$0x3] %vm375, %v374
    %s378 = scalar_lea.vmem [#allocation0], 8
    %v379 = vld [vmem:[%s378] sm:$0x3]
    %380 = vrot.lane.b32.xlu0 %v379, 36
    %v381 = vpop.permute.xlu0 %380
    %vm382 = vcmask 39936
    %s383 = scalar_lea.vmem %s1, 44
    %384 = vst.msk [vmem:[%s383] ss:$72 sm:$0x3] %vm382, %v381
    %v385 = vld [vmem:[#allocation0] sm:$0x3]
    %386 = vrot.lane.b32.xlu0 %v385, 33
    %v387 = vpop.permute.xlu0 %386
    %vm388 = vcmask 39936
    %s389 = scalar_lea.vmem %s1, 19
    %390 = vst.msk [vmem:[%s389] ss:$72 sm:$0x3] %vm388, %v387
    %s391 = scalar_lea.vmem [#allocation0], 8
    %v392 = vld [vmem:[%s391] sm:$0x3]
    %393 = vrot.lane.b32.xlu0 %v392, 31
    %v394 = vpop.permute.xlu0 %393
    %vm395 = vcmask 39936
    %s396 = scalar_lea.vmem %s1, 45
    %397 = vst.msk [vmem:[%s396] ss:$72 sm:$0x3] %vm395, %v394
    %v398 = vld [vmem:[#allocation0] sm:$0x3]
    %399 = vrot.lane.b32.xlu0 %v398, 28
    %v400 = vpop.permute.xlu0 %399
    %vm401 = vcmask 39936
    %s402 = scalar_lea.vmem %s1, 20
    %403 = vst.msk [vmem:[%s402] ss:$72 sm:$0x3] %vm401, %v400
    %s404 = scalar_lea.vmem [#allocation0], 8
    %v405 = vld [vmem:[%s404] sm:$0x3]
    %406 = vrot.lane.b32.xlu0 %v405, 26
    %v407 = vpop.permute.xlu0 %406
    %vm408 = vcmask 39936
    %s409 = scalar_lea.vmem %s1, 46
    %410 = vst.msk [vmem:[%s409] ss:$72 sm:$0x3] %vm408, %v407
    %v411 = vld [vmem:[#allocation0] sm:$0x3]
    %412 = vrot.lane.b32.xlu0 %v411, 23
    %v413 = vpop.permute.xlu0 %412
    %vm414 = vcmask 39936
    %s415 = scalar_lea.vmem %s1, 21
    %416 = vst.msk [vmem:[%s415] ss:$72 sm:$0x3] %vm414, %v413
    %s417 = scalar_lea.vmem [#allocation0], 8
    %v418 = vld [vmem:[%s417] sm:$0x3]
    %419 = vrot.lane.b32.xlu0 %v418, 21
    %v420 = vpop.permute.xlu0 %419
    %vm421 = vcmask 39936
    %s422 = scalar_lea.vmem %s1, 47
    %423 = vst.msk [vmem:[%s422] ss:$72 sm:$0x3] %vm421, %v420
    %v424 = vld [vmem:[#allocation0] sm:$0x3]
    %425 = vrot.lane.b32.xlu0 %v424, 18
    %v426 = vpop.permute.xlu0 %425
    %vm427 = vcmask 39936
    %s428 = scalar_lea.vmem %s1, 22
    %429 = vst.msk [vmem:[%s428] ss:$72 sm:$0x3] %vm427, %v426
    %s430 = scalar_lea.vmem [#allocation0], 8
    %v431 = vld [vmem:[%s430] sm:$0x3]
    %432 = vrot.lane.b32.xlu0 %v431, 16
    %v433 = vpop.permute.xlu0 %432
    %vm434 = vcmask 39936
    %s435 = scalar_lea.vmem %s1, 48
    %436 = vst.msk [vmem:[%s435] ss:$72 sm:$0x3] %vm434, %v433
    %v437 = vld [vmem:[#allocation0] sm:$0x3]
    %438 = vrot.lane.b32.xlu0 %v437, 13
    %v439 = vpop.permute.xlu0 %438
    %vm440 = vcmask 39936
    %s441 = scalar_lea.vmem %s1, 23
    %442 = vst.msk [vmem:[%s441] ss:$72 sm:$0x3] %vm440, %v439
    %s443 = scalar_lea.vmem [#allocation0], 8
    %v444 = vld [vmem:[%s443] sm:$0x3]
    %445 = vrot.lane.b32.xlu0 %v444, 11
    %v446 = vpop.permute.xlu0 %445
    %vm447 = vcmask 39936
    %s448 = scalar_lea.vmem %s1, 49
    %449 = vst.msk [vmem:[%s448] ss:$72 sm:$0x3] %vm447, %v446
    %s450 = scalar_lea.vmem [#allocation0], 1
    %s451 = smov 3
    %v452 = vld [vmem:[%s450] ss:$-1 sm:%s451]
    %453 = vrot.lane.b32.xlu0 %v452, 8
    %v454 = vpop.permute.xlu0 %453
    %vm455 = vcmask 39936
    %s456 = scalar_lea.vmem %s1, 96
    %457 = vst.msk [vmem:[%s456] ss:$-72 sm:$0x3] %vm455, %v454
    %s458 = scalar_lea.vmem [#allocation0], 8
    %v459 = vld [vmem:[%s458] sm:$0x3]
    %460 = vrot.lane.b32.xlu0 %v459, 6
    %v461 = vpop.permute.xlu0 %460
    %vm462 = vcmask 39936
    %s463 = scalar_lea.vmem %s1, 50
    %464 = vst.msk [vmem:[%s463] ss:$72 sm:$0x3] %vm462, %v461
    %s465 = scalar_lea.vmem [#allocation0], 1
    %s466 = smov 3
    %v467 = vld [vmem:[%s465] ss:$-1 sm:%s466]
    %s468 = scalar_lea.vmem [#allocation0], 9
    %s469 = smov 3
    %v470 = vld [vmem:[%s468] ss:$-1 sm:%s469]
    %vm471 = vcmask 1022976
    %v472 = vsel %vm471, %v470, %v467
    %473 = vrot.lane.b32.xlu0 %v472, 3
    %v474 = vpop.permute.xlu0 %473
    %vm475 = vcmask 23552
    %s476 = scalar_lea.vmem %s1, 97
    %477 = vst.msk [vmem:[%s476] ss:$-72 sm:$0x3] %vm475, %v474
    %vm478 = vcmask 39960
    %s479 = scalar_lea.vmem %s1, 97
    %480 = vst.msk [vmem:[%s479] ss:$-72 sm:$0x3] %vm478, %v474
    %s481 = scalar_lea.vmem [#allocation0], 8
    %v482 = vld [vmem:[%s481] sm:$0x3]
    %s483 = scalar_lea.vmem [#allocation0], 16
    %v484 = vld [vmem:[%s483] sm:$0x3]
    %vm485 = vcmask 1039360
    %v486 = vsel %vm485, %v484, %v482
    %487 = vrot.lane.b32.xlu0 %v486, 1
    %v488 = vpop.permute.xlu0 %487
    %vm489 = vcmask 7168
    %s490 = scalar_lea.vmem %s1, 51
    %491 = vst.msk [vmem:[%s490] ss:$72 sm:$0x3] %vm489, %v488
    %vm492 = vcmask 39944
    %s493 = scalar_lea.vmem %s1, 51
    %494 = vst.msk [vmem:[%s493] ss:$72 sm:$0x3] %vm492, %v488

// kernel: hubert_encoder_forward.3
$region0: #{hubert_encoder_forward.3}
  #allocation0 [shape = 'u32[]', space=smem, size = 0x4, offset = 0x4, fixed_abs, tag = 'smem constant byte address 0x4 - core index']
  #allocation1 [shape = 'u32[144,128]{1,0:T(1,128)}', space=vmem, size = 0x12000, scoped, tag = 'internal scratch']
  #allocation2 [shape = 'f32[2,16]{1,0:T(2,128)}', space=vmem, size = 0x400, scoped, tag = 'scratch operand']
  %s0 = inlined_call_operand.vmem [shape: bf16[2,2048], index: 0, kind: input, shape index: {}]
  %s1 = inlined_call_operand.vmem [shape: bf16[2048,16], index: 1, kind: input, shape index: {}]
  %s2 = inlined_call_operand.vmem [shape: f32[1,16], index: 2, kind: input, shape index: {}]
  %s3 = inlined_call_operand.hbm [shape: f32[2,16], index: 3, kind: output, shape index: {}]
  %s4 = sld [smem:[#allocation0]]
  $region30: #{hubert_encoder_forward.3} parent=0
    _
  %s6 = ssub.s32 1, %s4
  %s7 = scalar_select 0, %s6, %s4
  $region1: #{hubert_encoder_forward.3} parent=0
    #allocation3 [shape = 'u8[1024]{0}', space=vmem, size = 0x400, scoped, tag = 'output window, operand 0, single buffered']
    #allocation4 [shape = 's32[1]{0}', space=sflag, size = 0x4, scoped, tag = 'scoped memory for hubert_encoder_forward.3']
    %8 = vsyncpa [#allocation4], 0
    // Predicated region
    $region2: #{hubert_encoder_forward.3} parent=1 // pred_check
      _
    $region3: #{hubert_encoder_forward.3} parent=1 // pred_check_branch
      %10 = sbr.rel (0) target = $region5
    $region4: #{hubert_encoder_forward.3} parent=1 // pred_region
      _
    $region5: #{hubert_encoder_forward.3} parent=1 // pred_fallthru
      _
    // Predicated region
    $region6: #{hubert_encoder_forward.3} parent=1 // pred_check
      _
    $region7: #{hubert_encoder_forward.3} parent=1 // pred_check_branch
      %12 = sbr.rel (0) target = $region9
    $region8: #{hubert_encoder_forward.3} parent=1 // pred_region
      _
    $region9: #{hubert_encoder_forward.3} parent=1 // pred_fallthru
      _
    // Predicated region
    $region10: #{hubert_encoder_forward.3} parent=1 // pred_check
      _
    $region11: #{hubert_encoder_forward.3} parent=1 // pred_check_branch
      %14 = sbr.rel (0) target = $region13
    $region12: #{hubert_encoder_forward.3} parent=1 // pred_region
      _
    $region13: #{hubert_encoder_forward.3} parent=1 // pred_fallthru
      _
    %p16 = scmp.eq.s32.totalorder 0, 0
    // Predicated region
    $region14: #{hubert_encoder_forward.3} parent=1 // pred_check
      %p17 = pneg %p16
    $region15: #{hubert_encoder_forward.3} parent=1 // pred_check_branch
      %19 = sbr.rel (%p17) target = $region17
    $region16: #{hubert_encoder_forward.3} parent=1 // pred_region
      %vm20 = vcmask 123904
      %21 = vst.msk [vmem:[#allocation2] sm:$0x3] %vm20, 0.0
    $region17: #{hubert_encoder_forward.3} parent=1 // pred_fallthru
      _
    %v22 = vld [vmem:[#allocation2] sm:$0x3]
    %v23 = vld [vmem:[%s0] sm:$0xff]
    %v24 = vld [vmem:[%s0 + $0x8] sm:$0xff]
    %v25 = vld [vmem:[%s1] sm:$0xf]
    %v26 = vld [vmem:[%s1 + $0x4] sm:$0xf]
    %v27 = vld [vmem:[%s1 + $0x8] sm:$0xf]
    %v28 = vld [vmem:[%s1 + $0xc] sm:$0xf]
    %v29 = vld [vmem:[%s1 + $0x10] sm:$0xf]
    %v30 = vld [vmem:[%s1 + $0x14] sm:$0xf]
    %v31 = vld [vmem:[%s1 + $0x18] sm:$0xf]
    %v32 = vld [vmem:[%s1 + $0x1c] sm:$0xf]
    %v33 = vld [vmem:[%s1 + $0x20] sm:$0xf]
    %v34 = vld [vmem:[%s1 + $0x24] sm:$0xf]
    %v35 = vld [vmem:[%s1 + $0x28] sm:$0xf]
    %v36 = vld [vmem:[%s1 + $0x2c] sm:$0xf]
    %v37 = vld [vmem:[%s1 + $0x30] sm:$0xf]
    %v38 = vld [vmem:[%s1 + $0x34] sm:$0xf]
    %v39 = vld [vmem:[%s1 + $0x38] sm:$0xf]
    %v40 = vld [vmem:[%s1 + $0x3c] sm:$0xf]
    %v41 = vld [vmem:[%s1 + $0x40] sm:$0xf]
    %v42 = vld [vmem:[%s1 + $0x44] sm:$0xf]
    %v43 = vld [vmem:[%s1 + $0x48] sm:$0xf]
    %v44 = vld [vmem:[%s1 + $0x4c] sm:$0xf]
    %v45 = vld [vmem:[%s1 + $0x50] sm:$0xf]
    %v46 = vld [vmem:[%s1 + $0x54] sm:$0xf]
    %v47 = vld [vmem:[%s1 + $0x58] sm:$0xf]
    %v48 = vld [vmem:[%s1 + $0x5c] sm:$0xf]
    %v49 = vld [vmem:[%s1 + $0x60] sm:$0xf]
    %v50 = vld [vmem:[%s1 + $0x64] sm:$0xf]
    %v51 = vld [vmem:[%s1 + $0x68] sm:$0xf]
    %v52 = vld [vmem:[%s1 + $0x6c] sm:$0xf]
    %v53 = vld [vmem:[%s1 + $0x70] sm:$0xf]
    %v54 = vld [vmem:[%s1 + $0x74] sm:$0xf]
    %v55 = vld [vmem:[%s1 + $0x78] sm:$0xf]
    %v56 = vld [vmem:[%s1 + $0x7c] sm:$0xf]
    %v57 = vld [vmem:[%s1 + $0x80] sm:$0xf]
    %v58 = vld [vmem:[%s1 + $0x84] sm:$0xf]
    %v59 = vld [vmem:[%s1 + $0x88] sm:$0xf]
    %v60 = vld [vmem:[%s1 + $0x8c] sm:$0xf]
    %v61 = vld [vmem:[%s1 + $0x90] sm:$0xf]
    %v62 = vld [vmem:[%s1 + $0x94] sm:$0xf]
    %v63 = vld [vmem:[%s1 + $0x98] sm:$0xf]
    %v64 = vld [vmem:[%s1 + $0x9c] sm:$0xf]
    %v65 = vld [vmem:[%s1 + $0xa0] sm:$0xf]
    %v66 = vld [vmem:[%s1 + $0xa4] sm:$0xf]
    %v67 = vld [vmem:[%s1 + $0xa8] sm:$0xf]
    %v68 = vld [vmem:[%s1 + $0xac] sm:$0xf]
    %v69 = vld [vmem:[%s1 + $0xb0] sm:$0xf]
    %v70 = vld [vmem:[%s1 + $0xb4] sm:$0xf]
    %v71 = vld [vmem:[%s1 + $0xb8] sm:$0xf]
    %v72 = vld [vmem:[%s1 + $0xbc] sm:$0xf]
    %v73 = vld [vmem:[%s1 + $0xc0] sm:$0xf]
    %v74 = vld [vmem:[%s1 + $0xc4] sm:$0xf]
    %v75 = vld [vmem:[%s1 + $0xc8] sm:$0xf]
    %v76 = vld [vmem:[%s1 + $0xcc] sm:$0xf]
    %v77 = vld [vmem:[%s1 + $0xd0] sm:$0xf]
    %v78 = vld [vmem:[%s1 + $0xd4] sm:$0xf]
    %v79 = vld [vmem:[%s1 + $0xd8] sm:$0xf]
    %v80 = vld [vmem:[%s1 + $0xdc] sm:$0xf]
    %v81 = vld [vmem:[%s1 + $0xe0] sm:$0xf]
    %v82 = vld [vmem:[%s1 + $0xe4] sm:$0xf]
    %v83 = vld [vmem:[%s1 + $0xe8] sm:$0xf]
    %v84 = vld [vmem:[%s1 + $0xec] sm:$0xf]
    %v85 = vld [vmem:[%s1 + $0xf0] sm:$0xf]
    %v86 = vld [vmem:[%s1 + $0xf4] sm:$0xf]
    %v87 = vld [vmem:[%s1 + $0xf8] sm:$0xf]
    %v88 = vld [vmem:[%s1 + $0xfc] sm:$0xf]
    %v89 = vld [vmem:[%s1 + $0x100] sm:$0xf]
    %v90 = vld [vmem:[%s1 + $0x104] sm:$0xf]
    %v91 = vld [vmem:[%s1 + $0x108] sm:$0xf]
    %v92 = vld [vmem:[%s1 + $0x10c] sm:$0xf]
    %v93 = vld [vmem:[%s1 + $0x110] sm:$0xf]
    %v94 = vld [vmem:[%s1 + $0x114] sm:$0xf]
    %v95 = vld [vmem:[%s1 + $0x118] sm:$0xf]
    %v96 = vld [vmem:[%s1 + $0x11c] sm:$0xf]
    %v97 = vld [vmem:[%s1 + $0x120] sm:$0xf]
    %v98 = vld [vmem:[%s1 + $0x124] sm:$0xf]
    %v99 = vld [vmem:[%s1 + $0x128] sm:$0xf]
    %v100 = vld [vmem:[%s1 + $0x12c] sm:$0xf]
    %v101 = vld [vmem:[%s1 + $0x130] sm:$0xf]
    %v102 = vld [vmem:[%s1 + $0x134] sm:$0xf]
    %v103 = vld [vmem:[%s1 + $0x138] sm:$0xf]
    %v104 = vld [vmem:[%s1 + $0x13c] sm:$0xf]
    %v105 = vld [vmem:[%s1 + $0x140] sm:$0xf]
    %v106 = vld [vmem:[%s1 + $0x144] sm:$0xf]
    %v107 = vld [vmem:[%s1 + $0x148] sm:$0xf]
    %v108 = vld [vmem:[%s1 + $0x14c] sm:$0xf]
    %v109 = vld [vmem:[%s1 + $0x150] sm:$0xf]
    %v110 = vld [vmem:[%s1 + $0x154] sm:$0xf]
    %v111 = vld [vmem:[%s1 + $0x158] sm:$0xf]
    %v112 = vld [vmem:[%s1 + $0x15c] sm:$0xf]
    %v113 = vld [vmem:[%s1 + $0x160] sm:$0xf]
    %v114 = vld [vmem:[%s1 + $0x164] sm:$0xf]
    %v115 = vld [vmem:[%s1 + $0x168] sm:$0xf]
    %v116 = vld [vmem:[%s1 + $0x16c] sm:$0xf]
    %v117 = vld [vmem:[%s1 + $0x170] sm:$0xf]
    %v118 = vld [vmem:[%s1 + $0x174] sm:$0xf]
    %v119 = vld [vmem:[%s1 + $0x178] sm:$0xf]
    %v120 = vld [vmem:[%s1 + $0x17c] sm:$0xf]
    %v121 = vld [vmem:[%s1 + $0x180] sm:$0xf]
    %v122 = vld [vmem:[%s1 + $0x184] sm:$0xf]
    %v123 = vld [vmem:[%s1 + $0x188] sm:$0xf]
    %v124 = vld [vmem:[%s1 + $0x18c] sm:$0xf]
    %v125 = vld [vmem:[%s1 + $0x190] sm:$0xf]
    %v126 = vld [vmem:[%s1 + $0x194] sm:$0xf]
    %v127 = vld [vmem:[%s1 + $0x198] sm:$0xf]
    %v128 = vld [vmem:[%s1 + $0x19c] sm:$0xf]
    %v129 = vld [vmem:[%s1 + $0x1a0] sm:$0xf]
    %v130 = vld [vmem:[%s1 + $0x1a4] sm:$0xf]
    %v131 = vld [vmem:[%s1 + $0x1a8] sm:$0xf]
    %v132 = vld [vmem:[%s1 + $0x1ac] sm:$0xf]
    %v133 = vld [vmem:[%s1 + $0x1b0] sm:$0xf]
    %v134 = vld [vmem:[%s1 + $0x1b4] sm:$0xf]
    %v135 = vld [vmem:[%s1 + $0x1b8] sm:$0xf]
    %v136 = vld [vmem:[%s1 + $0x1bc] sm:$0xf]
    %v137 = vld [vmem:[%s1 + $0x1c0] sm:$0xf]
    %v138 = vld [vmem:[%s1 + $0x1c4] sm:$0xf]
    %v139 = vld [vmem:[%s1 + $0x1c8] sm:$0xf]
    %v140 = vld [vmem:[%s1 + $0x1cc] sm:$0xf]
    %v141 = vld [vmem:[%s1 + $0x1d0] sm:$0xf]
    %v142 = vld [vmem:[%s1 + $0x1d4] sm:$0xf]
    %v143 = vld [vmem:[%s1 + $0x1d8] sm:$0xf]
    %v144 = vld [vmem:[%s1 + $0x1dc] sm:$0xf]
    %v145 = vld [vmem:[%s1 + $0x1e0] sm:$0xf]
    %v146 = vld [vmem:[%s1 + $0x1e4] sm:$0xf]
    %v147 = vld [vmem:[%s1 + $0x1e8] sm:$0xf]
    %v148 = vld [vmem:[%s1 + $0x1ec] sm:$0xf]
    %v149 = vld [vmem:[%s1 + $0x1f0] sm:$0xf]
    %v150 = vld [vmem:[%s1 + $0x1f4] sm:$0xf]
    %v151 = vld [vmem:[%s1 + $0x1f8] sm:$0xf]
    %v152 = vld [vmem:[%s1 + $0x1fc] sm:$0xf]
    %v153 = vld [vmem:[%s1 + $0x200] sm:$0xf]
    %v154 = vld [vmem:[%s1 + $0x204] sm:$0xf]
    %v155 = vld [vmem:[%s1 + $0x208] sm:$0xf]
    %v156 = vld [vmem:[%s1 + $0x20c] sm:$0xf]
    %v157 = vld [vmem:[%s1 + $0x210] sm:$0xf]
    %v158 = vld [vmem:[%s1 + $0x214] sm:$0xf]
    %v159 = vld [vmem:[%s1 + $0x218] sm:$0xf]
    %v160 = vld [vmem:[%s1 + $0x21c] sm:$0xf]
    %v161 = vld [vmem:[%s1 + $0x220] sm:$0xf]
    %v162 = vld [vmem:[%s1 + $0x224] sm:$0xf]
    %v163 = vld [vmem:[%s1 + $0x228] sm:$0xf]
    %v164 = vld [vmem:[%s1 + $0x22c] sm:$0xf]
    %v165 = vld [vmem:[%s1 + $0x230] sm:$0xf]
    %v166 = vld [vmem:[%s1 + $0x234] sm:$0xf]
    %v167 = vld [vmem:[%s1 + $0x238] sm:$0xf]
    %v168 = vld [vmem:[%s1 + $0x23c] sm:$0xf]
    %v169 = vld [vmem:[%s1 + $0x240] sm:$0xf]
    %v170 = vld [vmem:[%s1 + $0x244] sm:$0xf]
    %v171 = vld [vmem:[%s1 + $0x248] sm:$0xf]
    %v172 = vld [vmem:[%s1 + $0x24c] sm:$0xf]
    %v173 = vld [vmem:[%s1 + $0x250] sm:$0xf]
    %v174 = vld [vmem:[%s1 + $0x254] sm:$0xf]
    %v175 = vld [vmem:[%s1 + $0x258] sm:$0xf]
    %v176 = vld [vmem:[%s1 + $0x25c] sm:$0xf]
    %v177 = vld [vmem:[%s1 + $0x260] sm:$0xf]
    %v178 = vld [vmem:[%s1 + $0x264] sm:$0xf]
    %v179 = vld [vmem:[%s1 + $0x268] sm:$0xf]
    %v180 = vld [vmem:[%s1 + $0x26c] sm:$0xf]
    %v181 = vld [vmem:[%s1 + $0x270] sm:$0xf]
    %v182 = vld [vmem:[%s1 + $0x274] sm:$0xf]
    %v183 = vld [vmem:[%s1 + $0x278] sm:$0xf]
    %v184 = vld [vmem:[%s1 + $0x27c] sm:$0xf]
    %v185 = vld [vmem:[%s1 + $0x280] sm:$0xf]
    %v186 = vld [vmem:[%s1 + $0x284] sm:$0xf]
    %v187 = vld [vmem:[%s1 + $0x288] sm:$0xf]
    %v188 = vld [vmem:[%s1 + $0x28c] sm:$0xf]
    %v189 = vld [vmem:[%s1 + $0x290] sm:$0xf]
    %v190 = vld [vmem:[%s1 + $0x294] sm:$0xf]
    %v191 = vld [vmem:[%s1 + $0x298] sm:$0xf]
    %v192 = vld [vmem:[%s1 + $0x29c] sm:$0xf]
    %v193 = vld [vmem:[%s1 + $0x2a0] sm:$0xf]
    %v194 = vld [vmem:[%s1 + $0x2a4] sm:$0xf]
    %v195 = vld [vmem:[%s1 + $0x2a8] sm:$0xf]
    %v196 = vld [vmem:[%s1 + $0x2ac] sm:$0xf]
    %v197 = vld [vmem:[%s1 + $0x2b0] sm:$0xf]
    %v198 = vld [vmem:[%s1 + $0x2b4] sm:$0xf]
    %v199 = vld [vmem:[%s1 + $0x2b8] sm:$0xf]
    %v200 = vld [vmem:[%s1 + $0x2bc] sm:$0xf]
    %v201 = vld [vmem:[%s1 + $0x2c0] sm:$0xf]
    %v202 = vld [vmem:[%s1 + $0x2c4] sm:$0xf]
    %v203 = vld [vmem:[%s1 + $0x2c8] sm:$0xf]
    %v204 = vld [vmem:[%s1 + $0x2cc] sm:$0xf]
    %v205 = vld [vmem:[%s1 + $0x2d0] sm:$0xf]
    %v206 = vld [vmem:[%s1 + $0x2d4] sm:$0xf]
    %v207 = vld [vmem:[%s1 + $0x2d8] sm:$0xf]
    %v208 = vld [vmem:[%s1 + $0x2dc] sm:$0xf]
    %v209 = vld [vmem:[%s1 + $0x2e0] sm:$0xf]
    %v210 = vld [vmem:[%s1 + $0x2e4] sm:$0xf]
    %v211 = vld [vmem:[%s1 + $0x2e8] sm:$0xf]
    %v212 = vld [vmem:[%s1 + $0x2ec] sm:$0xf]
    %v213 = vld [vmem:[%s1 + $0x2f0] sm:$0xf]
    %v214 = vld [vmem:[%s1 + $0x2f4] sm:$0xf]
    %v215 = vld [vmem:[%s1 + $0x2f8] sm:$0xf]
    %v216 = vld [vmem:[%s1 + $0x2fc] sm:$0xf]
    %v217 = vld [vmem:[%s1 + $0x300] sm:$0xf]
    %v218 = vld [vmem:[%s1 + $0x304] sm:$0xf]
    %v219 = vld [vmem:[%s1 + $0x308] sm:$0xf]
    %v220 = vld [vmem:[%s1 + $0x30c] sm:$0xf]
    %v221 = vld [vmem:[%s1 + $0x310] sm:$0xf]
    %v222 = vld [vmem:[%s1 + $0x314] sm:$0xf]
    %v223 = vld [vmem:[%s1 + $0x318] sm:$0xf]
    %v224 = vld [vmem:[%s1 + $0x31c] sm:$0xf]
    %v225 = vld [vmem:[%s1 + $0x320] sm:$0xf]
    %v226 = vld [vmem:[%s1 + $0x324] sm:$0xf]
    %v227 = vld [vmem:[%s1 + $0x328] sm:$0xf]
    %v228 = vld [vmem:[%s1 + $0x32c] sm:$0xf]
    %v229 = vld [vmem:[%s1 + $0x330] sm:$0xf]
    %v230 = vld [vmem:[%s1 + $0x334] sm:$0xf]
    %v231 = vld [vmem:[%s1 + $0x338] sm:$0xf]
    %v232 = vld [vmem:[%s1 + $0x33c] sm:$0xf]
    %v233 = vld [vmem:[%s1 + $0x340] sm:$0xf]
    %v234 = vld [vmem:[%s1 + $0x344] sm:$0xf]
    %v235 = vld [vmem:[%s1 + $0x348] sm:$0xf]
    %v236 = vld [vmem:[%s1 + $0x34c] sm:$0xf]
    %v237 = vld [vmem:[%s1 + $0x350] sm:$0xf]
    %v238 = vld [vmem:[%s1 + $0x354] sm:$0xf]
    %v239 = vld [vmem:[%s1 + $0x358] sm:$0xf]
    %v240 = vld [vmem:[%s1 + $0x35c] sm:$0xf]
    %v241 = vld [vmem:[%s1 + $0x360] sm:$0xf]
    %v242 = vld [vmem:[%s1 + $0x364] sm:$0xf]
    %v243 = vld [vmem:[%s1 + $0x368] sm:$0xf]
    %v244 = vld [vmem:[%s1 + $0x36c] sm:$0xf]
    %v245 = vld [vmem:[%s1 + $0x370] sm:$0xf]
    %v246 = vld [vmem:[%s1 + $0x374] sm:$0xf]
    %v247 = vld [vmem:[%s1 + $0x378] sm:$0xf]
    %v248 = vld [vmem:[%s1 + $0x37c] sm:$0xf]
    %v249 = vld [vmem:[%s1 + $0x380] sm:$0xf]
    %v250 = vld [vmem:[%s1 + $0x384] sm:$0xf]
    %v251 = vld [vmem:[%s1 + $0x388] sm:$0xf]
    %v252 = vld [vmem:[%s1 + $0x38c] sm:$0xf]
    %v253 = vld [vmem:[%s1 + $0x390] sm:$0xf]
    %v254 = vld [vmem:[%s1 + $0x394] sm:$0xf]
    %v255 = vld [vmem:[%s1 + $0x398] sm:$0xf]
    %v256 = vld [vmem:[%s1 + $0x39c] sm:$0xf]
    %v257 = vld [vmem:[%s1 + $0x3a0] sm:$0xf]
    %v258 = vld [vmem:[%s1 + $0x3a4] sm:$0xf]
    %v259 = vld [vmem:[%s1 + $0x3a8] sm:$0xf]
    %v260 = vld [vmem:[%s1 + $0x3ac] sm:$0xf]
    %v261 = vld [vmem:[%s1 + $0x3b0] sm:$0xf]
    %v262 = vld [vmem:[%s1 + $0x3b4] sm:$0xf]
    %v263 = vld [vmem:[%s1 + $0x3b8] sm:$0xf]
    %v264 = vld [vmem:[%s1 + $0x3bc] sm:$0xf]
    %v265 = vld [vmem:[%s1 + $0x3c0] sm:$0xf]
    %v266 = vld [vmem:[%s1 + $0x3c4] sm:$0xf]
    %v267 = vld [vmem:[%s1 + $0x3c8] sm:$0xf]
    %v268 = vld [vmem:[%s1 + $0x3cc] sm:$0xf]
    %v269 = vld [vmem:[%s1 + $0x3d0] sm:$0xf]
    %v270 = vld [vmem:[%s1 + $0x3d4] sm:$0xf]
    %v271 = vld [vmem:[%s1 + $0x3d8] sm:$0xf]
    %v272 = vld [vmem:[%s1 + $0x3dc] sm:$0xf]
    %v273 = vld [vmem:[%s1 + $0x3e0] sm:$0xf]
    %v274 = vld [vmem:[%s1 + $0x3e4] sm:$0xf]
    %v275 = vld [vmem:[%s1 + $0x3e8] sm:$0xf]
    %v276 = vld [vmem:[%s1 + $0x3ec] sm:$0xf]
    %v277 = vld [vmem:[%s1 + $0x3f0] sm:$0xf]
    %v278 = vld [vmem:[%s1 + $0x3f4] sm:$0xf]
    %v279 = vld [vmem:[%s1 + $0x3f8] sm:$0xf]
    %v280 = vld [vmem:[%s1 + $0x3fc] sm:$0xf]
    %v283 = vcombine.high %v23, %v23
    %v285 = vunpack.c.l.s4 1966171168
    %v286 = vunpack.c.0.s8 %v285
    %v287 = vlaneseq
    %v288 = vshrl.u32 %v287, 7
    %v289 = vsub.s32 %v286, %v288
    %v290 = vrot.slane %v23, %v289
    %v292 = vunpack.c.l.s4 1966171168
    %v293 = vunpack.c.0.s8 %v292
    %v294 = vlaneseq
    %v295 = vshrl.u32 %v294, 7
    %v296 = vsub.s32 %v293, %v295
    %v297 = vrot.slane %v283, %v296
    %v298 = vcombine.high %v290, %v290
    %v299 = vcombine.high %v297, %v297
    %v301 = vunpack.c.l.s4 1966171168
    %v302 = vunpack.c.0.s8 %v301
    %v303 = vlaneseq
    %v304 = vshrl.u32 %v303, 7
    %v305 = vsub.s32 %v302, %v304
    %v306 = vrot.slane %v290, %v305
    %v308 = vunpack.c.l.s4 1966171168
    %v309 = vunpack.c.0.s8 %v308
    %v310 = vlaneseq
    %v311 = vshrl.u32 %v310, 7
    %v312 = vsub.s32 %v309, %v311
    %v313 = vrot.slane %v297, %v312
    %v315 = vunpack.c.l.s4 1966171168
    %v316 = vunpack.c.0.s8 %v315
    %v317 = vlaneseq
    %v318 = vshrl.u32 %v317, 7
    %v319 = vsub.s32 %v316, %v318
    %v320 = vrot.slane %v298, %v319
    %v322 = vunpack.c.l.s4 1966171168
    %v323 = vunpack.c.0.s8 %v322
    %v324 = vlaneseq
    %v325 = vshrl.u32 %v324, 7
    %v326 = vsub.s32 %v323, %v325
    %v327 = vrot.slane %v299, %v326
    %v328 = vcombine.high %v306, %v306
    %v329 = vcombine.high %v313, %v313
    %v330 = vcombine.high %v320, %v320
    %v331 = vcombine.high %v327, %v327
    %v332 = vcombine.high %v24, %v24
    %v334 = vunpack.c.l.s4 1966171168
    %v335 = vunpack.c.0.s8 %v334
    %v336 = vlaneseq
    %v337 = vshrl.u32 %v336, 7
    %v338 = vsub.s32 %v335, %v337
    %v339 = vrot.slane %v24, %v338
    %v341 = vunpack.c.l.s4 1966171168
    %v342 = vunpack.c.0.s8 %v341
    %v343 = vlaneseq
    %v344 = vshrl.u32 %v343, 7
    %v345 = vsub.s32 %v342, %v344
    %v346 = vrot.slane %v332, %v345
    %v347 = vcombine.high %v339, %v339
    %v348 = vcombine.high %v346, %v346
    %v350 = vunpack.c.l.s4 1966171168
    %v351 = vunpack.c.0.s8 %v350
    %v352 = vlaneseq
    %v353 = vshrl.u32 %v352, 7
    %v354 = vsub.s32 %v351, %v353
    %v355 = vrot.slane %v339, %v354
    %v357 = vunpack.c.l.s4 1966171168
    %v358 = vunpack.c.0.s8 %v357
    %v359 = vlaneseq
    %v360 = vshrl.u32 %v359, 7
    %v361 = vsub.s32 %v358, %v360
    %v362 = vrot.slane %v346, %v361
    %v364 = vunpack.c.l.s4 1966171168
    %v365 = vunpack.c.0.s8 %v364
    %v366 = vlaneseq
    %v367 = vshrl.u32 %v366, 7
    %v368 = vsub.s32 %v365, %v367
    %v369 = vrot.slane %v347, %v368
    %v371 = vunpack.c.l.s4 1966171168
    %v372 = vunpack.c.0.s8 %v371
    %v373 = vlaneseq
    %v374 = vshrl.u32 %v373, 7
    %v375 = vsub.s32 %v372, %v374
    %v376 = vrot.slane %v348, %v375
    %v377 = vcombine.high %v355, %v355
    %v378 = vcombine.high %v362, %v362
    %v379 = vcombine.high %v369, %v369
    %v380 = vcombine.high %v376, %v376
    %v653 = vunpack.c.l.b16 %v25
    %v654 = vunpack.c.l.b16 %v26
    %v655 = vunpack.c.l.b16 %v27
    %v656 = vunpack.c.l.b16 %v28
    %v657 = vunpack.c.l.b16 %v29
    %v658 = vunpack.c.l.b16 %v30
    %v659 = vunpack.c.l.b16 %v31
    %v660 = vunpack.c.l.b16 %v32
    %v661 = vunpack.c.l.b16 %v33
    %v662 = vunpack.c.l.b16 %v34
    %v663 = vunpack.c.l.b16 %v35
    %v664 = vunpack.c.l.b16 %v36
    %v665 = vunpack.c.l.b16 %v37
    %v666 = vunpack.c.l.b16 %v38
    %v667 = vunpack.c.l.b16 %v39
    %v668 = vunpack.c.l.b16 %v40
    %v669 = vunpack.c.l.b16 %v41
    %v670 = vunpack.c.l.b16 %v42
    %v671 = vunpack.c.l.b16 %v43
    %v672 = vunpack.c.l.b16 %v44
    %v673 = vunpack.c.l.b16 %v45
    %v674 = vunpack.c.l.b16 %v46
    %v675 = vunpack.c.l.b16 %v47
    %v676 = vunpack.c.l.b16 %v48
    %v677 = vunpack.c.l.b16 %v49
    %v678 = vunpack.c.l.b16 %v50
    %v679 = vunpack.c.l.b16 %v51
    %v680 = vunpack.c.l.b16 %v52
    %v681 = vunpack.c.l.b16 %v53
    %v682 = vunpack.c.l.b16 %v54
    %v683 = vunpack.c.l.b16 %v55
    %v684 = vunpack.c.l.b16 %v56
    %v685 = vunpack.c.l.b16 %v57
    %v686 = vunpack.c.l.b16 %v58
    %v687 = vunpack.c.l.b16 %v59
    %v688 = vunpack.c.l.b16 %v60
    %v689 = vunpack.c.l.b16 %v61
    %v690 = vunpack.c.l.b16 %v62
    %v691 = vunpack.c.l.b16 %v63
    %v692 = vunpack.c.l.b16 %v64
    %v693 = vunpack.c.l.b16 %v65
    %v694 = vunpack.c.l.b16 %v66
    %v695 = vunpack.c.l.b16 %v67
    %v696 = vunpack.c.l.b16 %v68
    %v697 = vunpack.c.l.b16 %v69
    %v698 = vunpack.c.l.b16 %v70
    %v699 = vunpack.c.l.b16 %v71
    %v700 = vunpack.c.l.b16 %v72
    %v701 = vunpack.c.l.b16 %v73
    %v702 = vunpack.c.l.b16 %v74
    %v703 = vunpack.c.l.b16 %v75
    %v704 = vunpack.c.l.b16 %v76
    %v705 = vunpack.c.l.b16 %v77
    %v706 = vunpack.c.l.b16 %v78
    %v707 = vunpack.c.l.b16 %v79
    %v708 = vunpack.c.l.b16 %v80
    %v709 = vunpack.c.l.b16 %v81
    %v710 = vunpack.c.l.b16 %v82
    %v711 = vunpack.c.l.b16 %v83
    %v712 = vunpack.c.l.b16 %v84
    %v713 = vunpack.c.l.b16 %v85
    %v714 = vunpack.c.l.b16 %v86
    %v715 = vunpack.c.l.b16 %v87
    %v716 = vunpack.c.l.b16 %v88
    %v717 = vunpack.c.l.b16 %v89
    %v718 = vunpack.c.l.b16 %v90
    %v719 = vunpack.c.l.b16 %v91
    %v720 = vunpack.c.l.b16 %v92
    %v721 = vunpack.c.l.b16 %v93
    %v722 = vunpack.c.l.b16 %v94
    %v723 = vunpack.c.l.b16 %v95
    %v724 = vunpack.c.l.b16 %v96
    %v725 = vunpack.c.l.b16 %v97
    %v726 = vunpack.c.l.b16 %v98
    %v727 = vunpack.c.l.b16 %v99
    %v728 = vunpack.c.l.b16 %v100
    %v729 = vunpack.c.l.b16 %v101
    %v730 = vunpack.c.l.b16 %v102
    %v731 = vunpack.c.l.b16 %v103
    %v732 = vunpack.c.l.b16 %v104
    %v733 = vunpack.c.l.b16 %v105
    %v734 = vunpack.c.l.b16 %v106
    %v735 = vunpack.c.l.b16 %v107
    %v736 = vunpack.c.l.b16 %v108
    %v737 = vunpack.c.l.b16 %v109
    %v738 = vunpack.c.l.b16 %v110
    %v739 = vunpack.c.l.b16 %v111
    %v740 = vunpack.c.l.b16 %v112
    %v741 = vunpack.c.l.b16 %v113
    %v742 = vunpack.c.l.b16 %v114
    %v743 = vunpack.c.l.b16 %v115
    %v744 = vunpack.c.l.b16 %v116
    %v745 = vunpack.c.l.b16 %v117
    %v746 = vunpack.c.l.b16 %v118
    %v747 = vunpack.c.l.b16 %v119
    %v748 = vunpack.c.l.b16 %v120
    %v749 = vunpack.c.l.b16 %v121
    %v750 = vunpack.c.l.b16 %v122
    %v751 = vunpack.c.l.b16 %v123
    %v752 = vunpack.c.l.b16 %v124
    %v753 = vunpack.c.l.b16 %v125
    %v754 = vunpack.c.l.b16 %v126
    %v755 = vunpack.c.l.b16 %v127
    %v756 = vunpack.c.l.b16 %v128
    %v757 = vunpack.c.l.b16 %v129
    %v758 = vunpack.c.l.b16 %v130
    %v759 = vunpack.c.l.b16 %v131
    %v760 = vunpack.c.l.b16 %v132
    %v761 = vunpack.c.l.b16 %v133
    %v762 = vunpack.c.l.b16 %v134
    %v763 = vunpack.c.l.b16 %v135
    %v764 = vunpack.c.l.b16 %v136
    %v765 = vunpack.c.l.b16 %v137
    %v766 = vunpack.c.l.b16 %v138
    %v767 = vunpack.c.l.b16 %v139
    %v768 = vunpack.c.l.b16 %v140
    %v769 = vunpack.c.l.b16 %v141
    %v770 = vunpack.c.l.b16 %v142
    %v771 = vunpack.c.l.b16 %v143
    %v772 = vunpack.c.l.b16 %v144
    %v773 = vunpack.c.l.b16 %v145
    %v774 = vunpack.c.l.b16 %v146
    %v775 = vunpack.c.l.b16 %v147
    %v776 = vunpack.c.l.b16 %v148
    %v777 = vunpack.c.l.b16 %v149
    %v778 = vunpack.c.l.b16 %v150
    %v779 = vunpack.c.l.b16 %v151
    %v780 = vunpack.c.l.b16 %v152
    %v781 = vunpack.c.l.b16 %v153
    %v782 = vunpack.c.l.b16 %v154
    %v783 = vunpack.c.l.b16 %v155
    %v784 = vunpack.c.l.b16 %v156
    %v785 = vunpack.c.l.b16 %v157
    %v786 = vunpack.c.l.b16 %v158
    %v787 = vunpack.c.l.b16 %v159
    %v788 = vunpack.c.l.b16 %v160
    %v789 = vunpack.c.l.b16 %v161
    %v790 = vunpack.c.l.b16 %v162
    %v791 = vunpack.c.l.b16 %v163
    %v792 = vunpack.c.l.b16 %v164
    %v793 = vunpack.c.l.b16 %v165
    %v794 = vunpack.c.l.b16 %v166
    %v795 = vunpack.c.l.b16 %v167
    %v796 = vunpack.c.l.b16 %v168
    %v797 = vunpack.c.l.b16 %v169
    %v798 = vunpack.c.l.b16 %v170
    %v799 = vunpack.c.l.b16 %v171
    %v800 = vunpack.c.l.b16 %v172
    %v801 = vunpack.c.l.b16 %v173
    %v802 = vunpack.c.l.b16 %v174
    %v803 = vunpack.c.l.b16 %v175
    %v804 = vunpack.c.l.b16 %v176
    %v805 = vunpack.c.l.b16 %v177
    %v806 = vunpack.c.l.b16 %v178
    %v807 = vunpack.c.l.b16 %v179
    %v808 = vunpack.c.l.b16 %v180
    %v809 = vunpack.c.l.b16 %v181
    %v810 = vunpack.c.l.b16 %v182
    %v811 = vunpack.c.l.b16 %v183
    %v812 = vunpack.c.l.b16 %v184
    %v813 = vunpack.c.l.b16 %v185
    %v814 = vunpack.c.l.b16 %v186
    %v815 = vunpack.c.l.b16 %v187
    %v816 = vunpack.c.l.b16 %v188
    %v817 = vunpack.c.l.b16 %v189
    %v818 = vunpack.c.l.b16 %v190
    %v819 = vunpack.c.l.b16 %v191
    %v820 = vunpack.c.l.b16 %v192
    %v821 = vunpack.c.l.b16 %v193
    %v822 = vunpack.c.l.b16 %v194
    %v823 = vunpack.c.l.b16 %v195
    %v824 = vunpack.c.l.b16 %v196
    %v825 = vunpack.c.l.b16 %v197
    %v826 = vunpack.c.l.b16 %v198
    %v827 = vunpack.c.l.b16 %v199
    %v828 = vunpack.c.l.b16 %v200
    %v829 = vunpack.c.l.b16 %v201
    %v830 = vunpack.c.l.b16 %v202
    %v831 = vunpack.c.l.b16 %v203
    %v832 = vunpack.c.l.b16 %v204
    %v833 = vunpack.c.l.b16 %v205
    %v834 = vunpack.c.l.b16 %v206
    %v835 = vunpack.c.l.b16 %v207
    %v836 = vunpack.c.l.b16 %v208
    %v837 = vunpack.c.l.b16 %v209
    %v838 = vunpack.c.l.b16 %v210
    %v839 = vunpack.c.l.b16 %v211
    %v840 = vunpack.c.l.b16 %v212
    %v841 = vunpack.c.l.b16 %v213
    %v842 = vunpack.c.l.b16 %v214
    %v843 = vunpack.c.l.b16 %v215
    %v844 = vunpack.c.l.b16 %v216
    %v845 = vunpack.c.l.b16 %v217
    %v846 = vunpack.c.l.b16 %v218
    %v847 = vunpack.c.l.b16 %v219
    %v848 = vunpack.c.l.b16 %v220
    %v849 = vunpack.c.l.b16 %v221
    %v850 = vunpack.c.l.b16 %v222
    %v851 = vunpack.c.l.b16 %v223
    %v852 = vunpack.c.l.b16 %v224
    %v853 = vunpack.c.l.b16 %v225
    %v854 = vunpack.c.l.b16 %v226
    %v855 = vunpack.c.l.b16 %v227
    %v856 = vunpack.c.l.b16 %v228
    %v857 = vunpack.c.l.b16 %v229
    %v858 = vunpack.c.l.b16 %v230
    %v859 = vunpack.c.l.b16 %v231
    %v860 = vunpack.c.l.b16 %v232
    %v861 = vunpack.c.l.b16 %v233
    %v862 = vunpack.c.l.b16 %v234
    %v863 = vunpack.c.l.b16 %v235
    %v864 = vunpack.c.l.b16 %v236
    %v865 = vunpack.c.l.b16 %v237
    %v866 = vunpack.c.l.b16 %v238
    %v867 = vunpack.c.l.b16 %v239
    %v868 = vunpack.c.l.b16 %v240
    %v869 = vunpack.c.l.b16 %v241
    %v870 = vunpack.c.l.b16 %v242
    %v871 = vunpack.c.l.b16 %v243
    %v872 = vunpack.c.l.b16 %v244
    %v873 = vunpack.c.l.b16 %v245
    %v874 = vunpack.c.l.b16 %v246
    %v875 = vunpack.c.l.b16 %v247
    %v876 = vunpack.c.l.b16 %v248
    %v877 = vunpack.c.l.b16 %v249
    %v878 = vunpack.c.l.b16 %v250
    %v879 = vunpack.c.l.b16 %v251
    %v880 = vunpack.c.l.b16 %v252
    %v881 = vunpack.c.l.b16 %v253
    %v882 = vunpack.c.l.b16 %v254
    %v883 = vunpack.c.l.b16 %v255
    %v884 = vunpack.c.l.b16 %v256
    %v885 = vunpack.c.l.b16 %v257
    %v886 = vunpack.c.l.b16 %v258
    %v887 = vunpack.c.l.b16 %v259
    %v888 = vunpack.c.l.b16 %v260
    %v889 = vunpack.c.l.b16 %v261
    %v890 = vunpack.c.l.b16 %v262
    %v891 = vunpack.c.l.b16 %v263
    %v892 = vunpack.c.l.b16 %v264
    %v893 = vunpack.c.l.b16 %v265
    %v894 = vunpack.c.l.b16 %v266
    %v895 = vunpack.c.l.b16 %v267
    %v896 = vunpack.c.l.b16 %v268
    %v897 = vunpack.c.l.b16 %v269
    %v898 = vunpack.c.l.b16 %v270
    %v899 = vunpack.c.l.b16 %v271
    %v900 = vunpack.c.l.b16 %v272
    %v901 = vunpack.c.l.b16 %v273
    %v902 = vunpack.c.l.b16 %v274
    %v903 = vunpack.c.l.b16 %v275
    %v904 = vunpack.c.l.b16 %v276
    %v905 = vunpack.c.l.b16 %v277
    %v906 = vunpack.c.l.b16 %v278
    %v907 = vunpack.c.l.b16 %v279
    %v908 = vunpack.c.l.b16 %v280
    %v909 = vpack.c.b16 %v654, %v653
    %v910 = vpack.c.b16 %v656, %v655
    %v911 = vpack.c.b16 %v658, %v657
    %v912 = vpack.c.b16 %v660, %v659
    %v913 = vpack.c.b16 %v662, %v661
    %v914 = vpack.c.b16 %v664, %v663
    %v915 = vpack.c.b16 %v666, %v665
    %v916 = vpack.c.b16 %v668, %v667
    %v917 = vpack.c.b16 %v670, %v669
    %v918 = vpack.c.b16 %v672, %v671
    %v919 = vpack.c.b16 %v674, %v673
    %v920 = vpack.c.b16 %v676, %v675
    %v921 = vpack.c.b16 %v678, %v677
    %v922 = vpack.c.b16 %v680, %v679
    %v923 = vpack.c.b16 %v682, %v681
    %v924 = vpack.c.b16 %v684, %v683
    %v925 = vpack.c.b16 %v686, %v685
    %v926 = vpack.c.b16 %v688, %v687
    %v927 = vpack.c.b16 %v690, %v689
    %v928 = vpack.c.b16 %v692, %v691
    %v929 = vpack.c.b16 %v694, %v693
    %v930 = vpack.c.b16 %v696, %v695
    %v931 = vpack.c.b16 %v698, %v697
    %v932 = vpack.c.b16 %v700, %v699
    %v933 = vpack.c.b16 %v702, %v701
    %v934 = vpack.c.b16 %v704, %v703
    %v935 = vpack.c.b16 %v706, %v705
    %v936 = vpack.c.b16 %v708, %v707
    %v937 = vpack.c.b16 %v710, %v709
    %v938 = vpack.c.b16 %v712, %v711
    %v939 = vpack.c.b16 %v714, %v713
    %v940 = vpack.c.b16 %v716, %v715
    %v941 = vpack.c.b16 %v718, %v717
    %v942 = vpack.c.b16 %v720, %v719
    %v943 = vpack.c.b16 %v722, %v721
    %v944 = vpack.c.b16 %v724, %v723
    %v945 = vpack.c.b16 %v726, %v725
    %v946 = vpack.c.b16 %v728, %v727
    %v947 = vpack.c.b16 %v730, %v729
    %v948 = vpack.c.b16 %v732, %v731
    %v949 = vpack.c.b16 %v734, %v733
    %v950 = vpack.c.b16 %v736, %v735
    %v951 = vpack.c.b16 %v738, %v737
    %v952 = vpack.c.b16 %v740, %v739
    %v953 = vpack.c.b16 %v742, %v741
    %v954 = vpack.c.b16 %v744, %v743
    %v955 = vpack.c.b16 %v746, %v745
    %v956 = vpack.c.b16 %v748, %v747
    %v957 = vpack.c.b16 %v750, %v749
    %v958 = vpack.c.b16 %v752, %v751
    %v959 = vpack.c.b16 %v754, %v753
    %v960 = vpack.c.b16 %v756, %v755
    %v961 = vpack.c.b16 %v758, %v757
    %v962 = vpack.c.b16 %v760, %v759
    %v963 = vpack.c.b16 %v762, %v761
    %v964 = vpack.c.b16 %v764, %v763
    %v965 = vpack.c.b16 %v766, %v765
    %v966 = vpack.c.b16 %v768, %v767
    %v967 = vpack.c.b16 %v770, %v769
    %v968 = vpack.c.b16 %v772, %v771
    %v969 = vpack.c.b16 %v774, %v773
    %v970 = vpack.c.b16 %v776, %v775
    %v971 = vpack.c.b16 %v778, %v777
    %v972 = vpack.c.b16 %v780, %v779
    %v973 = vpack.c.b16 %v782, %v781
    %v974 = vpack.c.b16 %v784, %v783
    %v975 = vpack.c.b16 %v786, %v785
    %v976 = vpack.c.b16 %v788, %v787
    %v977 = vpack.c.b16 %v790, %v789
    %v978 = vpack.c.b16 %v792, %v791
    %v979 = vpack.c.b16 %v794, %v793
    %v980 = vpack.c.b16 %v796, %v795
    %v981 = vpack.c.b16 %v798, %v797
    %v982 = vpack.c.b16 %v800, %v799
    %v983 = vpack.c.b16 %v802, %v801
    %v984 = vpack.c.b16 %v804, %v803
    %v985 = vpack.c.b16 %v806, %v805
    %v986 = vpack.c.b16 %v808, %v807
    %v987 = vpack.c.b16 %v810, %v809
    %v988 = vpack.c.b16 %v812, %v811
    %v989 = vpack.c.b16 %v814, %v813
    %v990 = vpack.c.b16 %v816, %v815
    %v991 = vpack.c.b16 %v818, %v817
    %v992 = vpack.c.b16 %v820, %v819
    %v993 = vpack.c.b16 %v822, %v821
    %v994 = vpack.c.b16 %v824, %v823
    %v995 = vpack.c.b16 %v826, %v825
    %v996 = vpack.c.b16 %v828, %v827
    %v997 = vpack.c.b16 %v830, %v829
    %v998 = vpack.c.b16 %v832, %v831
    %v999 = vpack.c.b16 %v834, %v833
    %v1000 = vpack.c.b16 %v836, %v835
    %v1001 = vpack.c.b16 %v838, %v837
    %v1002 = vpack.c.b16 %v840, %v839
    %v1003 = vpack.c.b16 %v842, %v841
    %v1004 = vpack.c.b16 %v844, %v843
    %v1005 = vpack.c.b16 %v846, %v845
    %v1006 = vpack.c.b16 %v848, %v847
    %v1007 = vpack.c.b16 %v850, %v849
    %v1008 = vpack.c.b16 %v852, %v851
    %v1009 = vpack.c.b16 %v854, %v853
    %v1010 = vpack.c.b16 %v856, %v855
    %v1011 = vpack.c.b16 %v858, %v857
    %v1012 = vpack.c.b16 %v860, %v859
    %v1013 = vpack.c.b16 %v862, %v861
    %v1014 = vpack.c.b16 %v864, %v863
    %v1015 = vpack.c.b16 %v866, %v865
    %v1016 = vpack.c.b16 %v868, %v867
    %v1017 = vpack.c.b16 %v870, %v869
    %v1018 = vpack.c.b16 %v872, %v871
    %v1019 = vpack.c.b16 %v874, %v873
    %v1020 = vpack.c.b16 %v876, %v875
    %v1021 = vpack.c.b16 %v878, %v877
    %v1022 = vpack.c.b16 %v880, %v879
    %v1023 = vpack.c.b16 %v882, %v881
    %v1024 = vpack.c.b16 %v884, %v883
    %v1025 = vpack.c.b16 %v886, %v885
    %v1026 = vpack.c.b16 %v888, %v887
    %v1027 = vpack.c.b16 %v890, %v889
    %v1028 = vpack.c.b16 %v892, %v891
    %v1029 = vpack.c.b16 %v894, %v893
    %v1030 = vpack.c.b16 %v896, %v895
    %v1031 = vpack.c.b16 %v898, %v897
    %v1032 = vpack.c.b16 %v900, %v899
    %v1033 = vpack.c.b16 %v902, %v901
    %v1034 = vpack.c.b16 %v904, %v903
    %v1035 = vpack.c.b16 %v906, %v905
    %v1036 = vpack.c.b16 %v908, %v907
    %1165 = vmatprep.subr.bf16.mxu0 0
    %1166 = vmatpush1.bf16.msra.mxu0 %v909
    %1167 = vmatprep.subr.bf16.mxu0 0
    %1168 = vmatpush1.bf16.msra.mxu0 %v910
    %1169 = vmatprep.subr.bf16.mxu0 0
    %1170 = vmatpush1.bf16.msra.mxu0 %v911
    %1171 = vmatprep.subr.bf16.mxu0 0
    %1172 = vmatpush1.bf16.msra.mxu0 %v912
    %1173 = vmatprep.subr.bf16.mxu0 0
    %1174 = vmatpush1.bf16.msra.mxu0 %v913
    %1175 = vmatprep.subr.bf16.mxu0 0
    %1176 = vmatpush1.bf16.msra.mxu0 %v914
    %1177 = vmatprep.subr.bf16.mxu0 0
    %1178 = vmatpush1.bf16.msra.mxu0 %v915
    %1179 = vmatprep.subr.bf16.mxu0 0
    %1180 = vmatpush1.bf16.msra.mxu0 %v916
    %1181 = vmatprep.subr.bf16.mxu0 0
    %1182 = vmatpush1.bf16.msra.mxu0 %v917
    %1183 = vmatprep.subr.bf16.mxu0 0
    %1184 = vmatpush1.bf16.msra.mxu0 %v918
    %1185 = vmatprep.subr.bf16.mxu0 0
    %1186 = vmatpush1.bf16.msra.mxu0 %v919
    %1187 = vmatprep.subr.bf16.mxu0 0
    %1188 = vmatpush1.bf16.msra.mxu0 %v920
    %1189 = vmatprep.subr.bf16.mxu0 0
    %1190 = vmatpush1.bf16.msra.mxu0 %v921
    %1191 = vmatprep.subr.bf16.mxu0 0
    %1192 = vmatpush1.bf16.msra.mxu0 %v922
    %1193 = vmatprep.subr.bf16.mxu0 0
    %1194 = vmatpush1.bf16.msra.mxu0 %v923
    %1195 = vmatprep.subr.bf16.mxu0 0
    %1196 = vmatpush1.bf16.msra.mxu0 %v924
    %1197 = vmatprep.mubr.bf16.mxu0 %v320
    %1198 = vmatmul.mubr.bf16.gmra.mrb[0].mxu0 %v306
    %v1199 = vpop.f32.mrb[0].mxu0
    %v1200 = vadd.f32 0.0, %v1199
    %v1201 = vpop.f32.mrb[0].mxu0
    %v1202 = vpop.f32.mrb[0].mxu0
    %v1203 = vpop.f32.mrb[0].mxu0
    %1204 = vdwg.mxu0
    %1205 = vmatprep.subr.bf16.mxu0 0
    %1206 = vmatpush1.bf16.msra.mxu0 %v925
    %1207 = vmatprep.subr.bf16.mxu0 0
    %1208 = vmatpush1.bf16.msra.mxu0 %v926
    %1209 = vmatprep.subr.bf16.mxu0 0
    %1210 = vmatpush1.bf16.msra.mxu0 %v927
    %1211 = vmatprep.subr.bf16.mxu0 0
    %1212 = vmatpush1.bf16.msra.mxu0 %v928
    %1213 = vmatprep.subr.bf16.mxu0 0
    %1214 = vmatpush1.bf16.msra.mxu0 %v929
    %1215 = vmatprep.subr.bf16.mxu0 0
    %1216 = vmatpush1.bf16.msra.mxu0 %v930
    %1217 = vmatprep.subr.bf16.mxu0 0
    %1218 = vmatpush1.bf16.msra.mxu0 %v931
    %1219 = vmatprep.subr.bf16.mxu0 0
    %1220 = vmatpush1.bf16.msra.mxu0 %v932
    %1221 = vmatprep.subr.bf16.mxu0 0
    %1222 = vmatpush1.bf16.msra.mxu0 %v933
    %1223 = vmatprep.subr.bf16.mxu0 0
    %1224 = vmatpush1.bf16.msra.mxu0 %v934
    %1225 = vmatprep.subr.bf16.mxu0 0
    %1226 = vmatpush1.bf16.msra.mxu0 %v935
    %1227 = vmatprep.subr.bf16.mxu0 0
    %1228 = vmatpush1.bf16.msra.mxu0 %v936
    %1229 = vmatprep.subr.bf16.mxu0 0
    %1230 = vmatpush1.bf16.msra.mxu0 %v937
    %1231 = vmatprep.subr.bf16.mxu0 0
    %1232 = vmatpush1.bf16.msra.mxu0 %v938
    %1233 = vmatprep.subr.bf16.mxu0 0
    %1234 = vmatpush1.bf16.msra.mxu0 %v939
    %1235 = vmatprep.subr.bf16.mxu0 0
    %1236 = vmatpush1.bf16.msra.mxu0 %v940
    %1237 = vmatprep.mubr.bf16.mxu0 %v330
    %1238 = vmatmul.mubr.bf16.gmra.mrb[0].mxu0 %v328
    %v1239 = vpop.f32.mrb[0].mxu0
    %v1240 = vadd.f32 %v1200, %v1239
    %v1241 = vpop.f32.mrb[0].mxu0
    %v1242 = vpop.f32.mrb[0].mxu0
    %v1243 = vpop.f32.mrb[0].mxu0
    %1244 = vdwg.mxu0
    %1245 = vmatprep.subr.bf16.mxu0 0
    %1246 = vmatpush1.bf16.msra.mxu0 %v941
    %1247 = vmatprep.subr.bf16.mxu0 0
    %1248 = vmatpush1.bf16.msra.mxu0 %v942
    %1249 = vmatprep.subr.bf16.mxu0 0
    %1250 = vmatpush1.bf16.msra.mxu0 %v943
    %1251 = vmatprep.subr.bf16.mxu0 0
    %1252 = vmatpush1.bf16.msra.mxu0 %v944
    %1253 = vmatprep.subr.bf16.mxu0 0
    %1254 = vmatpush1.bf16.msra.mxu0 %v945
    %1255 = vmatprep.subr.bf16.mxu0 0
    %1256 = vmatpush1.bf16.msra.mxu0 %v946
    %1257 = vmatprep.subr.bf16.mxu0 0
    %1258 = vmatpush1.bf16.msra.mxu0 %v947
    %1259 = vmatprep.subr.bf16.mxu0 0
    %1260 = vmatpush1.bf16.msra.mxu0 %v948
    %1261 = vmatprep.subr.bf16.mxu0 0
    %1262 = vmatpush1.bf16.msra.mxu0 %v949
    %1263 = vmatprep.subr.bf16.mxu0 0
    %1264 = vmatpush1.bf16.msra.mxu0 %v950
    %1265 = vmatprep.subr.bf16.mxu0 0
    %1266 = vmatpush1.bf16.msra.mxu0 %v951
    %1267 = vmatprep.subr.bf16.mxu0 0
    %1268 = vmatpush1.bf16.msra.mxu0 %v952
    %1269 = vmatprep.subr.bf16.mxu0 0
    %1270 = vmatpush1.bf16.msra.mxu0 %v953
    %1271 = vmatprep.subr.bf16.mxu0 0
    %1272 = vmatpush1.bf16.msra.mxu0 %v954
    %1273 = vmatprep.subr.bf16.mxu0 0
    %1274 = vmatpush1.bf16.msra.mxu0 %v955
    %1275 = vmatprep.subr.bf16.mxu0 0
    %1276 = vmatpush1.bf16.msra.mxu0 %v956
    %1277 = vmatprep.mubr.bf16.mxu0 %v327
    %1278 = vmatmul.mubr.bf16.gmra.mrb[0].mxu0 %v313
    %v1279 = vpop.f32.mrb[0].mxu0
    %v1280 = vadd.f32 %v1240, %v1279
    %v1281 = vpop.f32.mrb[0].mxu0
    %v1282 = vpop.f32.mrb[0].mxu0
    %v1283 = vpop.f32.mrb[0].mxu0
    %1284 = vdwg.mxu0
    %1285 = vmatprep.subr.bf16.mxu0 0
    %1286 = vmatpush1.bf16.msra.mxu0 %v957
    %1287 = vmatprep.subr.bf16.mxu0 0
    %1288 = vmatpush1.bf16.msra.mxu0 %v958
    %1289 = vmatprep.subr.bf16.mxu0 0
    %1290 = vmatpush1.bf16.msra.mxu0 %v959
    %1291 = vmatprep.subr.bf16.mxu0 0
    %1292 = vmatpush1.bf16.msra.mxu0 %v960
    %1293 = vmatprep.subr.bf16.mxu0 0
    %1294 = vmatpush1.bf16.msra.mxu0 %v961
    %1295 = vmatprep.subr.bf16.mxu0 0
    %1296 = vmatpush1.bf16.msra.mxu0 %v962
    %1297 = vmatprep.subr.bf16.mxu0 0
    %1298 = vmatpush1.bf16.msra.mxu0 %v963
    %1299 = vmatprep.subr.bf16.mxu0 0
    %1300 = vmatpush1.bf16.msra.mxu0 %v964
    %1301 = vmatprep.subr.bf16.mxu0 0
    %1302 = vmatpush1.bf16.msra.mxu0 %v965
    %1303 = vmatprep.subr.bf16.mxu0 0
    %1304 = vmatpush1.bf16.msra.mxu0 %v966
    %1305 = vmatprep.subr.bf16.mxu0 0
    %1306 = vmatpush1.bf16.msra.mxu0 %v967
    %1307 = vmatprep.subr.bf16.mxu0 0
    %1308 = vmatpush1.bf16.msra.mxu0 %v968
    %1309 = vmatprep.subr.bf16.mxu0 0
    %1310 = vmatpush1.bf16.msra.mxu0 %v969
    %1311 = vmatprep.subr.bf16.mxu0 0
    %1312 = vmatpush1.bf16.msra.mxu0 %v970
    %1313 = vmatprep.subr.bf16.mxu0 0
    %1314 = vmatpush1.bf16.msra.mxu0 %v971
    %1315 = vmatprep.subr.bf16.mxu0 0
    %1316 = vmatpush1.bf16.msra.mxu0 %v972
    %1317 = vmatprep.mubr.bf16.mxu0 %v331
    %1318 = vmatmul.mubr.bf16.gmra.mrb[0].mxu0 %v329
    %v1319 = vpop.f32.mrb[0].mxu0
    %v1320 = vadd.f32 %v1280, %v1319
    %v1321 = vpop.f32.mrb[0].mxu0
    %v1322 = vpop.f32.mrb[0].mxu0
    %v1323 = vpop.f32.mrb[0].mxu0
    %1324 = vdwg.mxu0
    %1325 = vmatprep.subr.bf16.mxu0 0
    %1326 = vmatpush1.bf16.msra.mxu0 %v973
    %1327 = vmatprep.subr.bf16.mxu0 0
    %1328 = vmatpush1.bf16.msra.mxu0 %v974
    %1329 = vmatprep.subr.bf16.mxu0 0
    %1330 = vmatpush1.bf16.msra.mxu0 %v975
    %1331 = vmatprep.subr.bf16.mxu0 0
    %1332 = vmatpush1.bf16.msra.mxu0 %v976
    %1333 = vmatprep.subr.bf16.mxu0 0
    %1334 = vmatpush1.bf16.msra.mxu0 %v977
    %1335 = vmatprep.subr.bf16.mxu0 0
    %1336 = vmatpush1.bf16.msra.mxu0 %v978
    %1337 = vmatprep.subr.bf16.mxu0 0
    %1338 = vmatpush1.bf16.msra.mxu0 %v979
    %1339 = vmatprep.subr.bf16.mxu0 0
    %1340 = vmatpush1.bf16.msra.mxu0 %v980
    %1341 = vmatprep.subr.bf16.mxu0 0
    %1342 = vmatpush1.bf16.msra.mxu0 %v981
    %1343 = vmatprep.subr.bf16.mxu0 0
    %1344 = vmatpush1.bf16.msra.mxu0 %v982
    %1345 = vmatprep.subr.bf16.mxu0 0
    %1346 = vmatpush1.bf16.msra.mxu0 %v983
    %1347 = vmatprep.subr.bf16.mxu0 0
    %1348 = vmatpush1.bf16.msra.mxu0 %v984
    %1349 = vmatprep.subr.bf16.mxu0 0
    %1350 = vmatpush1.bf16.msra.mxu0 %v985
    %1351 = vmatprep.subr.bf16.mxu0 0
    %1352 = vmatpush1.bf16.msra.mxu0 %v986
    %1353 = vmatprep.subr.bf16.mxu0 0
    %1354 = vmatpush1.bf16.msra.mxu0 %v987
    %1355 = vmatprep.subr.bf16.mxu0 0
    %1356 = vmatpush1.bf16.msra.mxu0 %v988
    %1357 = vmatprep.mubr.bf16.mxu0 %v369
    %1358 = vmatmul.mubr.bf16.gmra.mrb[0].mxu0 %v355
    %v1359 = vpop.f32.mrb[0].mxu0
    %v1360 = vadd.f32 %v1320, %v1359
    %v1361 = vpop.f32.mrb[0].mxu0
    %v1362 = vpop.f32.mrb[0].mxu0
    %v1363 = vpop.f32.mrb[0].mxu0
    %1364 = vdwg.mxu0
    %1365 = vmatprep.subr.bf16.mxu0 0
    %1366 = vmatpush1.bf16.msra.mxu0 %v989
    %1367 = vmatprep.subr.bf16.mxu0 0
    %1368 = vmatpush1.bf16.msra.mxu0 %v990
    %1369 = vmatprep.subr.bf16.mxu0 0
    %1370 = vmatpush1.bf16.msra.mxu0 %v991
    %1371 = vmatprep.subr.bf16.mxu0 0
    %1372 = vmatpush1.bf16.msra.mxu0 %v992
    %1373 = vmatprep.subr.bf16.mxu0 0
    %1374 = vmatpush1.bf16.msra.mxu0 %v993
    %1375 = vmatprep.subr.bf16.mxu0 0
    %1376 = vmatpush1.bf16.msra.mxu0 %v994
    %1377 = vmatprep.subr.bf16.mxu0 0
    %1378 = vmatpush1.bf16.msra.mxu0 %v995
    %1379 = vmatprep.subr.bf16.mxu0 0
    %1380 = vmatpush1.bf16.msra.mxu0 %v996
    %1381 = vmatprep.subr.bf16.mxu0 0
    %1382 = vmatpush1.bf16.msra.mxu0 %v997
    %1383 = vmatprep.subr.bf16.mxu0 0
    %1384 = vmatpush1.bf16.msra.mxu0 %v998
    %1385 = vmatprep.subr.bf16.mxu0 0
    %1386 = vmatpush1.bf16.msra.mxu0 %v999
    %1387 = vmatprep.subr.bf16.mxu0 0
    %1388 = vmatpush1.bf16.msra.mxu0 %v1000
    %1389 = vmatprep.subr.bf16.mxu0 0
    %1390 = vmatpush1.bf16.msra.mxu0 %v1001
    %1391 = vmatprep.subr.bf16.mxu0 0
    %1392 = vmatpush1.bf16.msra.mxu0 %v1002
    %1393 = vmatprep.subr.bf16.mxu0 0
    %1394 = vmatpush1.bf16.msra.mxu0 %v1003
    %1395 = vmatprep.subr.bf16.mxu0 0
    %1396 = vmatpush1.bf16.msra.mxu0 %v1004
    %1397 = vmatprep.mubr.bf16.mxu0 %v379
    %1398 = vmatmul.mubr.bf16.gmra.mrb[0].mxu0 %v377
    %v1399 = vpop.f32.mrb[0].mxu0
    %v1400 = vadd.f32 %v1360, %v1399
    %v1401 = vpop.f32.mrb[0].mxu0
    %v1402 = vpop.f32.mrb[0].mxu0
    %v1403 = vpop.f32.mrb[0].mxu0
    %1404 = vdwg.mxu0
    %1405 = vmatprep.subr.bf16.mxu0 0
    %1406 = vmatpush1.bf16.msra.mxu0 %v1005
    %1407 = vmatprep.subr.bf16.mxu0 0
    %1408 = vmatpush1.bf16.msra.mxu0 %v1006
    %1409 = vmatprep.subr.bf16.mxu0 0
    %1410 = vmatpush1.bf16.msra.mxu0 %v1007
    %1411 = vmatprep.subr.bf16.mxu0 0
    %1412 = vmatpush1.bf16.msra.mxu0 %v1008
    %1413 = vmatprep.subr.bf16.mxu0 0
    %1414 = vmatpush1.bf16.msra.mxu0 %v1009
    %1415 = vmatprep.subr.bf16.mxu0 0
    %1416 = vmatpush1.bf16.msra.mxu0 %v1010
    %1417 = vmatprep.subr.bf16.mxu0 0
    %1418 = vmatpush1.bf16.msra.mxu0 %v1011
    %1419 = vmatprep.subr.bf16.mxu0 0
    %1420 = vmatpush1.bf16.msra.mxu0 %v1012
    %1421 = vmatprep.subr.bf16.mxu0 0
    %1422 = vmatpush1.bf16.msra.mxu0 %v1013
    %1423 = vmatprep.subr.bf16.mxu0 0
    %1424 = vmatpush1.bf16.msra.mxu0 %v1014
    %1425 = vmatprep.subr.bf16.mxu0 0
    %1426 = vmatpush1.bf16.msra.mxu0 %v1015
    %1427 = vmatprep.subr.bf16.mxu0 0
    %1428 = vmatpush1.bf16.msra.mxu0 %v1016
    %1429 = vmatprep.subr.bf16.mxu0 0
    %1430 = vmatpush1.bf16.msra.mxu0 %v1017
    %1431 = vmatprep.subr.bf16.mxu0 0
    %1432 = vmatpush1.bf16.msra.mxu0 %v1018
    %1433 = vmatprep.subr.bf16.mxu0 0
    %1434 = vmatpush1.bf16.msra.mxu0 %v1019
    %1435 = vmatprep.subr.bf16.mxu0 0
    %1436 = vmatpush1.bf16.msra.mxu0 %v1020
    %1437 = vmatprep.mubr.bf16.mxu0 %v376
    %1438 = vmatmul.mubr.bf16.gmra.mrb[0].mxu0 %v362
    %v1439 = vpop.f32.mrb[0].mxu0
    %v1440 = vadd.f32 %v1400, %v1439
    %v1441 = vpop.f32.mrb[0].mxu0
    %v1442 = vpop.f32.mrb[0].mxu0
    %v1443 = vpop.f32.mrb[0].mxu0
    %1444 = vdwg.mxu0
    %1445 = vmatprep.subr.bf16.mxu0 0
    %1446 = vmatpush1.bf16.msra.mxu0 %v1021
    %1447 = vmatprep.subr.bf16.mxu0 0
    %1448 = vmatpush1.bf16.msra.mxu0 %v1022
    %1449 = vmatprep.subr.bf16.mxu0 0
    %1450 = vmatpush1.bf16.msra.mxu0 %v1023
    %1451 = vmatprep.subr.bf16.mxu0 0
    %1452 = vmatpush1.bf16.msra.mxu0 %v1024
    %1453 = vmatprep.subr.bf16.mxu0 0
    %1454 = vmatpush1.bf16.msra.mxu0 %v1025
    %1455 = vmatprep.subr.bf16.mxu0 0
    %1456 = vmatpush1.bf16.msra.mxu0 %v1026
    %1457 = vmatprep.subr.bf16.mxu0 0
    %1458 = vmatpush1.bf16.msra.mxu0 %v1027
    %1459 = vmatprep.subr.bf16.mxu0 0
    %1460 = vmatpush1.bf16.msra.mxu0 %v1028
    %1461 = vmatprep.subr.bf16.mxu0 0
    %1462 = vmatpush1.bf16.msra.mxu0 %v1029
    %1463 = vmatprep.subr.bf16.mxu0 0
    %1464 = vmatpush1.bf16.msra.mxu0 %v1030
    %1465 = vmatprep.subr.bf16.mxu0 0
    %1466 = vmatpush1.bf16.msra.mxu0 %v1031
    %1467 = vmatprep.subr.bf16.mxu0 0
    %1468 = vmatpush1.bf16.msra.mxu0 %v1032
    %1469 = vmatprep.subr.bf16.mxu0 0
    %1470 = vmatpush1.bf16.msra.mxu0 %v1033
    %1471 = vmatprep.subr.bf16.mxu0 0
    %1472 = vmatpush1.bf16.msra.mxu0 %v1034
    %1473 = vmatprep.subr.bf16.mxu0 0
    %1474 = vmatpush1.bf16.msra.mxu0 %v1035
    %1475 = vmatprep.subr.bf16.mxu0 0
    %1476 = vmatpush1.bf16.msra.mxu0 %v1036
    %1477 = vmatprep.mubr.bf16.mxu0 %v380
    %1478 = vmatmul.mubr.bf16.gmra.mrb[0].mxu0 %v378
    %v1479 = vpop.f32.mrb[0].mxu0
    %v1480 = vadd.f32 %v1440, %v1479
    %v1481 = vpop.f32.mrb[0].mxu0
    %v1482 = vpop.f32.mrb[0].mxu0
    %v1483 = vpop.f32.mrb[0].mxu0
    %1484 = vdwg.mxu0
    %v1485 = vadd.f32 %v22, %v1480
    %vm1486 = vcmask 123904
    %1487 = vst.msk [vmem:[#allocation2] sm:$0x3] %vm1486, %v1485
    // Predicated region
    $region18: #{hubert_encoder_forward.3} parent=1 // pred_check
      %p1488 = pneg %p16
    $region19: #{hubert_encoder_forward.3} parent=1 // pred_check_branch
      %1490 = sbr.rel (%p1488) target = $region21
    $region20: #{hubert_encoder_forward.3} parent=1 // pred_region
      %v1491 = vld [vmem:[#allocation2] sm:$0x3]
      %v1492 = vld [vmem:[%s2] sm:$0x1]
      %v1494 = vlaneseq
      %v1495 = vshrl.u32 %v1494, 7
      %v1496 = vsub.s32 0, %v1495
      %v1497 = vrot.slane %v1492, %v1496
      %v1499 = vadd.f32 %v1491, %v1497
      %1500 = vst.msk [vmem:[#allocation3] sm:$0x3] %vm1486, %v1499
    $region21: #{hubert_encoder_forward.3} parent=1 // pred_fallthru
      _
    // Predicated region
    $region22: #{hubert_encoder_forward.3} parent=1 // pred_check
      _
    $region23: #{hubert_encoder_forward.3} parent=1 // pred_check_branch
      %1502 = sbr.rel (0) target = $region25
    $region24: #{hubert_encoder_forward.3} parent=1 // pred_region
      %s1504 = ssub.s32 32, 32
      %1505 = vsyncadd [#allocation4], %s1504
      %s1507 = sshll.u32 [#allocation3], 4
      %s1508 = int_to_ptr.vmem [resolvable:$true] %s1507
      %1510 = dma.vmem_to_hbm [thread:$0]  %s1508, 32, %s3, [#allocation4]
    $region25: #{hubert_encoder_forward.3} parent=1 // pred_fallthru
      _
    // Predicated region
    $region26: #{hubert_encoder_forward.3} parent=1 // pred_check
      _
    $region27: #{hubert_encoder_forward.3} parent=1 // pred_check_branch
      %1512 = sbr.rel (0) target = $region29
    $region28: #{hubert_encoder_forward.3} parent=1 // pred_region
      %1513 = dma.done [#allocation4], 32
    $region29: #{hubert_encoder_forward.3} parent=1 // pred_fallthru
      _
    %1514 = vsyncpa [#allocation4], 1

// kernel: hubert_encoder_forward.2
$region0: #{hubert_encoder_forward.2}
  #allocation0 [shape = 'u32[]', space=smem, size = 0x4, offset = 0x4, fixed_abs, tag = 'smem constant byte address 0x4 - core index']
  #allocation1 [shape = 'u32[144,128]{1,0:T(1,128)}', space=vmem, size = 0x12000, scoped, tag = 'internal scratch']
  #allocation2 [shape = 'f32[16,128]{1,0:T(8,128)}', space=vmem, size = 0x2000, scoped, tag = 'scratch operand']
  %s0 = inlined_call_operand.vmem [shape: f32[2,68,5], index: 0, kind: input, shape index: {}]
  %s1 = inlined_call_operand.vmem [shape: bf16[10,128], index: 1, kind: input, shape index: {}]
  %s2 = inlined_call_operand.vmem [shape: f32[1,128], index: 2, kind: input, shape index: {}]
  %s3 = inlined_call_operand.vmem [shape: f32[1,128], index: 3, kind: input, shape index: {}]
  %s4 = inlined_call_operand.hbm [shape: bf16[3,128,128], index: 4, kind: input, shape index: {}]
  %s5 = inlined_call_operand.hbm [shape: bf16[3,128,128], index: 5, kind: input, shape index: {}]
  %s6 = inlined_call_operand.vmem [shape: f32[1,128], index: 6, kind: input, shape index: {}]
  %s7 = inlined_call_operand.vmem [shape: f32[1,128], index: 7, kind: input, shape index: {}]
  %s8 = inlined_call_operand.vmem [shape: bf16[128,128], index: 8, kind: input, shape index: {}]
  %s9 = inlined_call_operand.vmem [shape: f32[1,128], index: 9, kind: input, shape index: {}]
  %s10 = inlined_call_operand.vmem [shape: f32[1,128], index: 10, kind: input, shape index: {}]
  %s11 = inlined_call_operand.vmem [shape: f32[1,128], index: 11, kind: input, shape index: {}]
  %s12 = inlined_call_operand.hbm [shape: bf16[2,128,384], index: 12, kind: input, shape index: {}]
  %s13 = inlined_call_operand.vmem [shape: f32[2,1,384], index: 13, kind: input, shape index: {}]
  %s14 = inlined_call_operand.vmem [shape: bf16[2,128,128], index: 14, kind: input, shape index: {}]
  %s15 = inlined_call_operand.vmem [shape: f32[2,1,128], index: 15, kind: input, shape index: {}]
  %s16 = inlined_call_operand.vmem [shape: f32[2,1,128], index: 16, kind: input, shape index: {}]
  %s17 = inlined_call_operand.vmem [shape: f32[2,1,128], index: 17, kind: input, shape index: {}]
  %s18 = inlined_call_operand.hbm [shape: bf16[2,128,256], index: 18, kind: input, shape index: {}]
  %s19 = inlined_call_operand.vmem [shape: f32[2,1,256], index: 19, kind: input, shape index: {}]
  %s20 = inlined_call_operand.hbm [shape: bf16[2,256,128], index: 20, kind: input, shape index: {}]
  %s21 = inlined_call_operand.vmem [shape: f32[2,1,128], index: 21, kind: input, shape index: {}]
  %s22 = inlined_call_operand.vmem [shape: f32[2,1,128], index: 22, kind: input, shape index: {}]
  %s23 = inlined_call_operand.vmem [shape: f32[2,1,128], index: 23, kind: input, shape index: {}]
  %s24 = inlined_call_operand.vmem [shape: bf16[2,16,128], index: 24, kind: output, shape index: {}]
  %s25 = sld [smem:[#allocation0]]
  $region149: #{hubert_encoder_forward.2} parent=0
    _
  %s27 = ssub.s32 1, %s25
  %s28 = scalar_select 0, %s27, %s25
  $region1: #{hubert_encoder_forward.2} parent=0
    #allocation3 [shape = 'u8[98304]{0}', space=vmem, size = 0x18000, scoped, tag = 'input window, operand 4, single buffered']
    #allocation4 [shape = 's32[2]{0}', space=sflag, size = 0x8, scoped, tag = 'scoped memory for hubert_encoder_forward.2']
    #allocation5 [shape = 'u8[98304]{0}', space=vmem, size = 0x18000, scoped, tag = 'input window, operand 5, single buffered']
    #allocation6 [shape = 's32[1]{0}', space=sflag, size = 0x4, scoped, tag = 'scoped memory for hubert_encoder_forward.2']
    #allocation7 [shape = 'u8[196608]{0}', space=vmem, size = 0x30000, scoped, tag = 'input window, operand 12, single buffered']
    #allocation8 [shape = 'u8[131072]{0}', space=vmem, size = 0x20000, scoped, tag = 'input window, operand 18, single buffered']
    #allocation9 [shape = 's32[1]{0}', space=sflag, size = 0x4, scoped, tag = 'scoped memory for hubert_encoder_forward.2']
    #allocation10 [shape = 'u8[131072]{0}', space=vmem, size = 0x20000, scoped, tag = 'input window, operand 20, single buffered']
    %29 = vsyncpa [#allocation4], 0
    %30 = vsyncpa [#allocation6], 0
    %31 = vsyncpa [#allocation9], 0
    loop: start=0, step=1, limit=4
    $region2: #{hubert_encoder_forward.2} parent=1 // loop_pre_header
      _
    $region3: #{hubert_encoder_forward.2} parent=1 // loop_header
      %s33 = sphi 0, %s37
      %p34 = scmp.ge.s32.totalorder %s33, 4
      %s43 = sphi 0, %s45
      %s46 = sphi 0, %s43
      %s47 = sphi 0, %s46
      %s63 = sphi 0, %s47
      %s67 = sphi 0, %s67
      %s69 = sphi 0, %s67
      %s70 = sphi 0, %s69
      %s84 = sphi 0, %s70
      %s88 = sphi 0, %s88
      %s90 = sphi 0, %s88
      %s91 = sphi 0, %s90
      %s105 = sphi 0, %s91
      %s109 = sphi 0, %s109
      %s111 = sphi 0, %s109
      %s112 = sphi 0, %s111
      %s126 = sphi 0, %s112
      %s130 = sphi 0, %s130
      %s132 = sphi 0, %s130
      %s133 = sphi 0, %s132
      %s147 = sphi 0, %s133
      %s151 = sphi 0, %s151
      %s153 = sphi 0, %s151
      %s154 = sphi 0, %s153
      %s168 = sphi 0, %s154
      %s172 = sphi 0, %s172
      %s174 = sphi 0, %s172
      %s175 = sphi 0, %s174
      %s189 = sphi 0, %s175
      %s193 = sphi 0, %s193
      %s195 = sphi 0, %s193
      %s196 = sphi 0, %s195
      %s210 = sphi 0, %s196
      %s214 = sphi 0, %s214
      %s216 = sphi 0, %s214
      %s217 = sphi 0, %s216
      %s231 = sphi 0, %s217
      %s235 = sphi 0, %s235
      %s237 = sphi 0, %s235
      %s238 = sphi 0, %s237
      %s252 = sphi 0, %s238
      %s256 = sphi 0, %s256
      %s258 = sphi 0, %s256
      %s259 = sphi 0, %s258
      %s273 = sphi 0, %s259
      %s277 = sphi 0, %s277
      %s279 = sphi 0, %s277
      %s280 = sphi 0, %s279
      %s294 = sphi 0, %s280
      %s298 = sphi 0, %s298
      %s300 = sphi 0, %s298
      %s301 = sphi 0, %s300
      %s315 = sphi 0, %s301
      %s319 = sphi 0, %s319
      %s321 = sphi 0, %s319
      %s322 = sphi 0, %s321
      %s336 = sphi 0, %s322
      %s340 = sphi 0, %s340
      %s342 = sphi 0, %s340
      %s343 = sphi 0, %s342
      %s357 = sphi 0, %s343
      %s361 = sphi 0, %s361
      %s363 = sphi 0, %s361
      %s364 = sphi 0, %s363
      %s378 = sphi 0, %s364
      %s382 = sphi 0, %s382
      %s384 = sphi 0, %s382
      %s385 = sphi 0, %s384
      %s399 = sphi 0, %s385
      %s403 = sphi 0, %s403
      %s405 = sphi 0, %s403
      %s406 = sphi 0, %s405
      %s420 = sphi 0, %s406
      %s424 = sphi 0, %s424
      %s426 = sphi 0, %s424
      %s427 = sphi 0, %s426
      %s441 = sphi 0, %s427
      %s445 = sphi 0, %s445
      %s447 = sphi 0, %s445
      %s448 = sphi 0, %s447
      %s462 = sphi 0, %s448
      %s466 = sphi 0, %s466
      %s468 = sphi 0, %s466
      %s469 = sphi 0, %s468
      %s483 = sphi 0, %s469
      %s487 = sphi 0, %s487
      %s489 = sphi 0, %s487
      %s490 = sphi 0, %s489
      %s504 = sphi 0, %s490
      %s508 = sphi 0, %s508
      %s510 = sphi 0, %s508
      %s511 = sphi 0, %s510
      %s525 = sphi 0, %s511
      %s529 = sphi 0, %s529
      %s531 = sphi 0, %s529
      %s532 = sphi 0, %s531
      %s546 = sphi 0, %s532
      %s552 = sphi 0, %s554
      %s555 = sphi 0, %s552
      %s556 = sphi 0, %s555
      %s572 = sphi 0, %s556
    $region4: #{hubert_encoder_forward.2} parent=1 // loop_header_branch
      %36 = sbr.rel (%p34) target = $region8
    $region5: #{hubert_encoder_forward.2} parent=1 // loop_body
      %s38 = ssub.s32 %s33, 1
      %s39 = ssub.s32 %s33, 2
      %s40 = sadd.s32 %s33, 1
      %s41 = ssub.s32 %s33, %s40
      %p42 = scmp.eq.s32.totalorder %s41, 0
      %s44 = sadd.s32 %s43, 1
      %s45 = scalar_select %p42, %s43, %s44
      %p48 = pneg %p42
      %p49 = scmp.eq.s32.totalorder %s33, 1
      %p50 = por %p48, %p49
      %p51 = scmp.ne.s32.totalorder %s43, %s46
      %p52 = scmp.eq.s32.totalorder %s33, 0
      %p53 = por %p51, %p52
      %p54 = scmp.ne.s32.totalorder %s43, %s46
      %p55 = scmp.eq.s32.totalorder %s38, 1
      %p56 = por %p54, %p55
      %p57 = scmp.ne.s32.totalorder %s46, %s47
      %p58 = scmp.eq.s32.totalorder %s38, 0
      %p59 = por %p57, %p58
      %p60 = scmp.ne.s32.totalorder %s46, %s47
      %p61 = scmp.eq.s32.totalorder %s39, 1
      %p62 = por %p60, %p61
      %p64 = scmp.ne.s32.totalorder %s47, %s63
      %p65 = scmp.eq.s32.totalorder %s39, 0
      %p66 = por %p64, %p65
      %s68 = sadd.s32 %s67, 1
      %p71 = scmp.eq.s32.totalorder %s33, 1
      %p72 = scmp.ne.s32.totalorder %s67, %s69
      %p73 = scmp.eq.s32.totalorder %s33, 0
      %p74 = por %p72, %p73
      %p75 = scmp.ne.s32.totalorder %s67, %s69
      %p76 = scmp.eq.s32.totalorder %s38, 1
      %p77 = por %p75, %p76
      %p78 = scmp.ne.s32.totalorder %s69, %s70
      %p79 = scmp.eq.s32.totalorder %s38, 0
      %p80 = por %p78, %p79
      %p81 = scmp.ne.s32.totalorder %s69, %s70
      %p82 = scmp.eq.s32.totalorder %s39, 1
      %p83 = por %p81, %p82
      %p85 = scmp.ne.s32.totalorder %s70, %s84
      %p86 = scmp.eq.s32.totalorder %s39, 0
      %p87 = por %p85, %p86
      %s89 = sadd.s32 %s88, 1
      %p92 = scmp.eq.s32.totalorder %s33, 1
      %p93 = scmp.ne.s32.totalorder %s88, %s90
      %p94 = scmp.eq.s32.totalorder %s33, 0
      %p95 = por %p93, %p94
      %p96 = scmp.ne.s32.totalorder %s88, %s90
      %p97 = scmp.eq.s32.totalorder %s38, 1
      %p98 = por %p96, %p97
      %p99 = scmp.ne.s32.totalorder %s90, %s91
      %p100 = scmp.eq.s32.totalorder %s38, 0
      %p101 = por %p99, %p100
      %p102 = scmp.ne.s32.totalorder %s90, %s91
      %p103 = scmp.eq.s32.totalorder %s39, 1
      %p104 = por %p102, %p103
      %p106 = scmp.ne.s32.totalorder %s91, %s105
      %p107 = scmp.eq.s32.totalorder %s39, 0
      %p108 = por %p106, %p107
      %s110 = sadd.s32 %s109, 1
      %p113 = scmp.eq.s32.totalorder %s33, 1
      %p114 = scmp.ne.s32.totalorder %s109, %s111
      %p115 = scmp.eq.s32.totalorder %s33, 0
      %p116 = por %p114, %p115
      %p117 = scmp.ne.s32.totalorder %s109, %s111
      %p118 = scmp.eq.s32.totalorder %s38, 1
      %p119 = por %p117, %p118
      %p120 = scmp.ne.s32.totalorder %s111, %s112
      %p121 = scmp.eq.s32.totalorder %s38, 0
      %p122 = por %p120, %p121
      %p123 = scmp.ne.s32.totalorder %s111, %s112
      %p124 = scmp.eq.s32.totalorder %s39, 1
      %p125 = por %p123, %p124
      %p127 = scmp.ne.s32.totalorder %s112, %s126
      %p128 = scmp.eq.s32.totalorder %s39, 0
      %p129 = por %p127, %p128
      %s131 = sadd.s32 %s130, 1
      %p134 = scmp.eq.s32.totalorder %s33, 1
      %p135 = scmp.ne.s32.totalorder %s130, %s132
      %p136 = scmp.eq.s32.totalorder %s33, 0
      %p137 = por %p135, %p136
      %p138 = scmp.ne.s32.totalorder %s130, %s132
      %p139 = scmp.eq.s32.totalorder %s38, 1
      %p140 = por %p138, %p139
      %p141 = scmp.ne.s32.totalorder %s132, %s133
      %p142 = scmp.eq.s32.totalorder %s38, 0
      %p143 = por %p141, %p142
      %p144 = scmp.ne.s32.totalorder %s132, %s133
      %p145 = scmp.eq.s32.totalorder %s39, 1
      %p146 = por %p144, %p145
      %p148 = scmp.ne.s32.totalorder %s133, %s147
      %p149 = scmp.eq.s32.totalorder %s39, 0
      %p150 = por %p148, %p149
      %s152 = sadd.s32 %s151, 1
      %p155 = scmp.eq.s32.totalorder %s33, 1
      %p156 = scmp.ne.s32.totalorder %s151, %s153
      %p157 = scmp.eq.s32.totalorder %s33, 0
      %p158 = por %p156, %p157
      %p159 = scmp.ne.s32.totalorder %s151, %s153
      %p160 = scmp.eq.s32.totalorder %s38, 1
      %p161 = por %p159, %p160
      %p162 = scmp.ne.s32.totalorder %s153, %s154
      %p163 = scmp.eq.s32.totalorder %s38, 0
      %p164 = por %p162, %p163
      %p165 = scmp.ne.s32.totalorder %s153, %s154
      %p166 = scmp.eq.s32.totalorder %s39, 1
      %p167 = por %p165, %p166
      %p169 = scmp.ne.s32.totalorder %s154, %s168
      %p170 = scmp.eq.s32.totalorder %s39, 0
      %p171 = por %p169, %p170
      %s173 = sadd.s32 %s172, 1
      %p176 = scmp.eq.s32.totalorder %s33, 1
      %p177 = scmp.ne.s32.totalorder %s172, %s174
      %p178 = scmp.eq.s32.totalorder %s33, 0
      %p179 = por %p177, %p178
      %p180 = scmp.ne.s32.totalorder %s172, %s174
      %p181 = scmp.eq.s32.totalorder %s38, 1
      %p182 = por %p180, %p181
      %p183 = scmp.ne.s32.totalorder %s174, %s175
      %p184 = scmp.eq.s32.totalorder %s38, 0
      %p185 = por %p183, %p184
      %p186 = scmp.ne.s32.totalorder %s174, %s175
      %p187 = scmp.eq.s32.totalorder %s39, 1
      %p188 = por %p186, %p187
      %p190 = scmp.ne.s32.totalorder %s175, %s189
      %p191 = scmp.eq.s32.totalorder %s39, 0
      %p192 = por %p190, %p191
      %s194 = sadd.s32 %s193, 1
      %p197 = scmp.eq.s32.totalorder %s33, 1
      %p198 = scmp.ne.s32.totalorder %s193, %s195
      %p199 = scmp.eq.s32.totalorder %s33, 0
      %p200 = por %p198, %p199
      %p201 = scmp.ne.s32.totalorder %s193, %s195
      %p202 = scmp.eq.s32.totalorder %s38, 1
      %p203 = por %p201, %p202
      %p204 = scmp.ne.s32.totalorder %s195, %s196
      %p205 = scmp.eq.s32.totalorder %s38, 0
      %p206 = por %p204, %p205
      %p207 = scmp.ne.s32.totalorder %s195, %s196
      %p208 = scmp.eq.s32.totalorder %s39, 1
      %p209 = por %p207, %p208
      %p211 = scmp.ne.s32.totalorder %s196, %s210
      %p212 = scmp.eq.s32.totalorder %s39, 0
      %p213 = por %p211, %p212
      %s215 = sadd.s32 %s214, 1
      %p218 = scmp.eq.s32.totalorder %s33, 1
      %p219 = scmp.ne.s32.totalorder %s214, %s216
      %p220 = scmp.eq.s32.totalorder %s33, 0
      %p221 = por %p219, %p220
      %p222 = scmp.ne.s32.totalorder %s214, %s216
      %p223 = scmp.eq.s32.totalorder %s38, 1
      %p224 = por %p222, %p223
      %p225 = scmp.ne.s32.totalorder %s216, %s217
      %p226 = scmp.eq.s32.totalorder %s38, 0
      %p227 = por %p225, %p226
      %p228 = scmp.ne.s32.totalorder %s216, %s217
      %p229 = scmp.eq.s32.totalorder %s39, 1
      %p230 = por %p228, %p229
      %p232 = scmp.ne.s32.totalorder %s217, %s231
      %p233 = scmp.eq.s32.totalorder %s39, 0
      %p234 = por %p232, %p233
      %s236 = sadd.s32 %s235, 1
      %p239 = scmp.eq.s32.totalorder %s33, 1
      %p240 = scmp.ne.s32.totalorder %s235, %s237
      %p241 = scmp.eq.s32.totalorder %s33, 0
      %p242 = por %p240, %p241
      %p243 = scmp.ne.s32.totalorder %s235, %s237
      %p244 = scmp.eq.s32.totalorder %s38, 1
      %p245 = por %p243, %p244
      %p246 = scmp.ne.s32.totalorder %s237, %s238
      %p247 = scmp.eq.s32.totalorder %s38, 0
      %p248 = por %p246, %p247
      %p249 = scmp.ne.s32.totalorder %s237, %s238
      %p250 = scmp.eq.s32.totalorder %s39, 1
      %p251 = por %p249, %p250
      %p253 = scmp.ne.s32.totalorder %s238, %s252
      %p254 = scmp.eq.s32.totalorder %s39, 0
      %p255 = por %p253, %p254
      %s257 = sadd.s32 %s256, 1
      %p260 = scmp.eq.s32.totalorder %s33, 1
      %p261 = scmp.ne.s32.totalorder %s256, %s258
      %p262 = scmp.eq.s32.totalorder %s33, 0
      %p263 = por %p261, %p262
      %p264 = scmp.ne.s32.totalorder %s256, %s258
      %p265 = scmp.eq.s32.totalorder %s38, 1
      %p266 = por %p264, %p265
      %p267 = scmp.ne.s32.totalorder %s258, %s259
      %p268 = scmp.eq.s32.totalorder %s38, 0
      %p269 = por %p267, %p268
      %p270 = scmp.ne.s32.totalorder %s258, %s259
      %p271 = scmp.eq.s32.totalorder %s39, 1
      %p272 = por %p270, %p271
      %p274 = scmp.ne.s32.totalorder %s259, %s273
      %p275 = scmp.eq.s32.totalorder %s39, 0
      %p276 = por %p274, %p275
      %s278 = sadd.s32 %s277, 1
      %p281 = scmp.eq.s32.totalorder %s33, 1
      %p282 = scmp.ne.s32.totalorder %s277, %s279
      %p283 = scmp.eq.s32.totalorder %s33, 0
      %p284 = por %p282, %p283
      %p285 = scmp.ne.s32.totalorder %s277, %s279
      %p286 = scmp.eq.s32.totalorder %s38, 1
      %p287 = por %p285, %p286
      %p288 = scmp.ne.s32.totalorder %s279, %s280
      %p289 = scmp.eq.s32.totalorder %s38, 0
      %p290 = por %p288, %p289
      %p291 = scmp.ne.s32.totalorder %s279, %s280
      %p292 = scmp.eq.s32.totalorder %s39, 1
      %p293 = por %p291, %p292
      %p295 = scmp.ne.s32.totalorder %s280, %s294
      %p296 = scmp.eq.s32.totalorder %s39, 0
      %p297 = por %p295, %p296
      %s299 = sadd.s32 %s298, 1
      %p302 = scmp.eq.s32.totalorder %s33, 1
      %p303 = scmp.ne.s32.totalorder %s298, %s300
      %p304 = scmp.eq.s32.totalorder %s33, 0
      %p305 = por %p303, %p304
      %p306 = scmp.ne.s32.totalorder %s298, %s300
      %p307 = scmp.eq.s32.totalorder %s38, 1
      %p308 = por %p306, %p307
      %p309 = scmp.ne.s32.totalorder %s300, %s301
      %p310 = scmp.eq.s32.totalorder %s38, 0
      %p311 = por %p309, %p310
      %p312 = scmp.ne.s32.totalorder %s300, %s301
      %p313 = scmp.eq.s32.totalorder %s39, 1
      %p314 = por %p312, %p313
      %p316 = scmp.ne.s32.totalorder %s301, %s315
      %p317 = scmp.eq.s32.totalorder %s39, 0
      %p318 = por %p316, %p317
      %s320 = sadd.s32 %s319, 1
      %p323 = scmp.eq.s32.totalorder %s33, 1
      %p324 = scmp.ne.s32.totalorder %s319, %s321
      %p325 = scmp.eq.s32.totalorder %s33, 0
      %p326 = por %p324, %p325
      %p327 = scmp.ne.s32.totalorder %s319, %s321
      %p328 = scmp.eq.s32.totalorder %s38, 1
      %p329 = por %p327, %p328
      %p330 = scmp.ne.s32.totalorder %s321, %s322
      %p331 = scmp.eq.s32.totalorder %s38, 0
      %p332 = por %p330, %p331
      %p333 = scmp.ne.s32.totalorder %s321, %s322
      %p334 = scmp.eq.s32.totalorder %s39, 1
      %p335 = por %p333, %p334
      %p337 = scmp.ne.s32.totalorder %s322, %s336
      %p338 = scmp.eq.s32.totalorder %s39, 0
      %p339 = por %p337, %p338
      %s341 = sadd.s32 %s340, 1
      %p344 = scmp.eq.s32.totalorder %s33, 1
      %p345 = scmp.ne.s32.totalorder %s340, %s342
      %p346 = scmp.eq.s32.totalorder %s33, 0
      %p347 = por %p345, %p346
      %p348 = scmp.ne.s32.totalorder %s340, %s342
      %p349 = scmp.eq.s32.totalorder %s38, 1
      %p350 = por %p348, %p349
      %p351 = scmp.ne.s32.totalorder %s342, %s343
      %p352 = scmp.eq.s32.totalorder %s38, 0
      %p353 = por %p351, %p352
      %p354 = scmp.ne.s32.totalorder %s342, %s343
      %p355 = scmp.eq.s32.totalorder %s39, 1
      %p356 = por %p354, %p355
      %p358 = scmp.ne.s32.totalorder %s343, %s357
      %p359 = scmp.eq.s32.totalorder %s39, 0
      %p360 = por %p358, %p359
      %s362 = sadd.s32 %s361, 1
      %p365 = scmp.eq.s32.totalorder %s33, 1
      %p366 = scmp.ne.s32.totalorder %s361, %s363
      %p367 = scmp.eq.s32.totalorder %s33, 0
      %p368 = por %p366, %p367
      %p369 = scmp.ne.s32.totalorder %s361, %s363
      %p370 = scmp.eq.s32.totalorder %s38, 1
      %p371 = por %p369, %p370
      %p372 = scmp.ne.s32.totalorder %s363, %s364
      %p373 = scmp.eq.s32.totalorder %s38, 0
      %p374 = por %p372, %p373
      %p375 = scmp.ne.s32.totalorder %s363, %s364
      %p376 = scmp.eq.s32.totalorder %s39, 1
      %p377 = por %p375, %p376
      %p379 = scmp.ne.s32.totalorder %s364, %s378
      %p380 = scmp.eq.s32.totalorder %s39, 0
      %p381 = por %p379, %p380
      %s383 = sadd.s32 %s382, 1
      %p386 = scmp.eq.s32.totalorder %s33, 1
      %p387 = scmp.ne.s32.totalorder %s382, %s384
      %p388 = scmp.eq.s32.totalorder %s33, 0
      %p389 = por %p387, %p388
      %p390 = scmp.ne.s32.totalorder %s382, %s384
      %p391 = scmp.eq.s32.totalorder %s38, 1
      %p392 = por %p390, %p391
      %p393 = scmp.ne.s32.totalorder %s384, %s385
      %p394 = scmp.eq.s32.totalorder %s38, 0
      %p395 = por %p393, %p394
      %p396 = scmp.ne.s32.totalorder %s384, %s385
      %p397 = scmp.eq.s32.totalorder %s39, 1
      %p398 = por %p396, %p397
      %p400 = scmp.ne.s32.totalorder %s385, %s399
      %p401 = scmp.eq.s32.totalorder %s39, 0
      %p402 = por %p400, %p401
      %s404 = sadd.s32 %s403, 1
      %p407 = scmp.eq.s32.totalorder %s33, 1
      %p408 = scmp.ne.s32.totalorder %s403, %s405
      %p409 = scmp.eq.s32.totalorder %s33, 0
      %p410 = por %p408, %p409
      %p411 = scmp.ne.s32.totalorder %s403, %s405
      %p412 = scmp.eq.s32.totalorder %s38, 1
      %p413 = por %p411, %p412
      %p414 = scmp.ne.s32.totalorder %s405, %s406
      %p415 = scmp.eq.s32.totalorder %s38, 0
      %p416 = por %p414, %p415
      %p417 = scmp.ne.s32.totalorder %s405, %s406
      %p418 = scmp.eq.s32.totalorder %s39, 1
      %p419 = por %p417, %p418
      %p421 = scmp.ne.s32.totalorder %s406, %s420
      %p422 = scmp.eq.s32.totalorder %s39, 0
      %p423 = por %p421, %p422
      %s425 = sadd.s32 %s424, 1
      %p428 = scmp.eq.s32.totalorder %s33, 1
      %p429 = scmp.ne.s32.totalorder %s424, %s426
      %p430 = scmp.eq.s32.totalorder %s33, 0
      %p431 = por %p429, %p430
      %p432 = scmp.ne.s32.totalorder %s424, %s426
      %p433 = scmp.eq.s32.totalorder %s38, 1
      %p434 = por %p432, %p433
      %p435 = scmp.ne.s32.totalorder %s426, %s427
      %p436 = scmp.eq.s32.totalorder %s38, 0
      %p437 = por %p435, %p436
      %p438 = scmp.ne.s32.totalorder %s426, %s427
      %p439 = scmp.eq.s32.totalorder %s39, 1
      %p440 = por %p438, %p439
      %p442 = scmp.ne.s32.totalorder %s427, %s441
      %p443 = scmp.eq.s32.totalorder %s39, 0
      %p444 = por %p442, %p443
      %s446 = sadd.s32 %s445, 1
      %p449 = scmp.eq.s32.totalorder %s33, 1
      %p450 = scmp.ne.s32.totalorder %s445, %s447
      %p451 = scmp.eq.s32.totalorder %s33, 0
      %p452 = por %p450, %p451
      %p453 = scmp.ne.s32.totalorder %s445, %s447
      %p454 = scmp.eq.s32.totalorder %s38, 1
      %p455 = por %p453, %p454
      %p456 = scmp.ne.s32.totalorder %s447, %s448
      %p457 = scmp.eq.s32.totalorder %s38, 0
      %p458 = por %p456, %p457
      %p459 = scmp.ne.s32.totalorder %s447, %s448
      %p460 = scmp.eq.s32.totalorder %s39, 1
      %p461 = por %p459, %p460
      %p463 = scmp.ne.s32.totalorder %s448, %s462
      %p464 = scmp.eq.s32.totalorder %s39, 0
      %p465 = por %p463, %p464
      %s467 = sadd.s32 %s466, 1
      %p470 = scmp.eq.s32.totalorder %s33, 1
      %p471 = scmp.ne.s32.totalorder %s466, %s468
      %p472 = scmp.eq.s32.totalorder %s33, 0
      %p473 = por %p471, %p472
      %p474 = scmp.ne.s32.totalorder %s466, %s468
      %p475 = scmp.eq.s32.totalorder %s38, 1
      %p476 = por %p474, %p475
      %p477 = scmp.ne.s32.totalorder %s468, %s469
      %p478 = scmp.eq.s32.totalorder %s38, 0
      %p479 = por %p477, %p478
      %p480 = scmp.ne.s32.totalorder %s468, %s469
      %p481 = scmp.eq.s32.totalorder %s39, 1
      %p482 = por %p480, %p481
      %p484 = scmp.ne.s32.totalorder %s469, %s483
      %p485 = scmp.eq.s32.totalorder %s39, 0
      %p486 = por %p484, %p485
      %s488 = sadd.s32 %s487, 1
      %p491 = scmp.eq.s32.totalorder %s33, 1
      %p492 = scmp.ne.s32.totalorder %s487, %s489
      %p493 = scmp.eq.s32.totalorder %s33, 0
      %p494 = por %p492, %p493
      %p495 = scmp.ne.s32.totalorder %s487, %s489
      %p496 = scmp.eq.s32.totalorder %s38, 1
      %p497 = por %p495, %p496
      %p498 = scmp.ne.s32.totalorder %s489, %s490
      %p499 = scmp.eq.s32.totalorder %s38, 0
      %p500 = por %p498, %p499
      %p501 = scmp.ne.s32.totalorder %s489, %s490
      %p502 = scmp.eq.s32.totalorder %s39, 1
      %p503 = por %p501, %p502
      %p505 = scmp.ne.s32.totalorder %s490, %s504
      %p506 = scmp.eq.s32.totalorder %s39, 0
      %p507 = por %p505, %p506
      %s509 = sadd.s32 %s508, 1
      %p512 = scmp.eq.s32.totalorder %s33, 1
      %p513 = scmp.ne.s32.totalorder %s508, %s510
      %p514 = scmp.eq.s32.totalorder %s33, 0
      %p515 = por %p513, %p514
      %p516 = scmp.ne.s32.totalorder %s508, %s510
      %p517 = scmp.eq.s32.totalorder %s38, 1
      %p518 = por %p516, %p517
      %p519 = scmp.ne.s32.totalorder %s510, %s511
      %p520 = scmp.eq.s32.totalorder %s38, 0
      %p521 = por %p519, %p520
      %p522 = scmp.ne.s32.totalorder %s510, %s511
      %p523 = scmp.eq.s32.totalorder %s39, 1
      %p524 = por %p522, %p523
      %p526 = scmp.ne.s32.totalorder %s511, %s525
      %p527 = scmp.eq.s32.totalorder %s39, 0
      %p528 = por %p526, %p527
      %s530 = sadd.s32 %s529, 1
      %p533 = scmp.eq.s32.totalorder %s33, 1
      %p534 = scmp.ne.s32.totalorder %s529, %s531
      %p535 = scmp.eq.s32.totalorder %s33, 0
      %p536 = por %p534, %p535
      %p537 = scmp.ne.s32.totalorder %s529, %s531
      %p538 = scmp.eq.s32.totalorder %s38, 1
      %p539 = por %p537, %p538
      %p540 = scmp.ne.s32.totalorder %s531, %s532
      %p541 = scmp.eq.s32.totalorder %s38, 0
      %p542 = por %p540, %p541
      %p543 = scmp.ne.s32.totalorder %s531, %s532
      %p544 = scmp.eq.s32.totalorder %s39, 1
      %p545 = por %p543, %p544
      %p547 = scmp.ne.s32.totalorder %s532, %s546
      %p548 = scmp.eq.s32.totalorder %s39, 0
      %p549 = por %p547, %p548
      %s550 = ssub.s32 %s33, %s40
      %p551 = scmp.eq.s32.totalorder %s550, 0
      %s553 = sadd.s32 %s552, 1
      %s554 = scalar_select %p551, %s552, %s553
      %p557 = pneg %p551
      %p558 = scmp.eq.s32.totalorder %s33, 1
      %p559 = por %p557, %p558
      %p560 = scmp.ne.s32.totalorder %s552, %s555
      %p561 = scmp.eq.s32.totalorder %s33, 0
      %p562 = por %p560, %p561
      %p563 = scmp.ne.s32.totalorder %s552, %s555
      %p564 = scmp.eq.s32.totalorder %s38, 1
      %p565 = por %p563, %p564
      %p566 = scmp.ne.s32.totalorder %s555, %s556
      %p567 = scmp.eq.s32.totalorder %s38, 0
      %p568 = por %p566, %p567
      %p569 = scmp.ne.s32.totalorder %s555, %s556
      %p570 = scmp.eq.s32.totalorder %s39, 1
      %p571 = por %p569, %p570
      %p573 = scmp.ne.s32.totalorder %s556, %s572
      %p574 = scmp.eq.s32.totalorder %s39, 0
      %p575 = por %p573, %p574
      %p576 = scmp.le.s32.totalorder 1, %s33
      %p577 = scmp.lt.s32.totalorder %s33, 3
      %p578 = pnand %p576, %p577
      %p579 = pneg %p578
      // Predicated region
      $region9: #{hubert_encoder_forward.2} parent=5 // pred_check
        _
      $region10: #{hubert_encoder_forward.2} parent=5 // pred_check_branch
        %581 = sbr.rel (%p578) target = $region12
      $region11: #{hubert_encoder_forward.2} parent=5 // pred_region
        %s582 = ssub.s32 %s33, 1
        // Predicated region
        $region13: #{hubert_encoder_forward.2} parent=11 // pred_check
          %p583 = pneg %p80
        $region14: #{hubert_encoder_forward.2} parent=11 // pred_check_branch
          %585 = sbr.rel (%p583) target = $region16
        $region15: #{hubert_encoder_forward.2} parent=11 // pred_region
          _
        $region16: #{hubert_encoder_forward.2} parent=11 // pred_fallthru
          _
        // Predicated region
        $region17: #{hubert_encoder_forward.2} parent=11 // pred_check
          %p586 = pneg %p101
        $region18: #{hubert_encoder_forward.2} parent=11 // pred_check_branch
          %588 = sbr.rel (%p586) target = $region20
        $region19: #{hubert_encoder_forward.2} parent=11 // pred_region
          _
        $region20: #{hubert_encoder_forward.2} parent=11 // pred_fallthru
          _
        // Predicated region
        $region21: #{hubert_encoder_forward.2} parent=11 // pred_check
          %p589 = pneg %p122
        $region22: #{hubert_encoder_forward.2} parent=11 // pred_check_branch
          %591 = sbr.rel (%p589) target = $region24
        $region23: #{hubert_encoder_forward.2} parent=11 // pred_region
          _
        $region24: #{hubert_encoder_forward.2} parent=11 // pred_fallthru
          _
        // Predicated region
        $region25: #{hubert_encoder_forward.2} parent=11 // pred_check
          %p592 = pneg %p143
        $region26: #{hubert_encoder_forward.2} parent=11 // pred_check_branch
          %594 = sbr.rel (%p592) target = $region28
        $region27: #{hubert_encoder_forward.2} parent=11 // pred_region
          %s596 = ssub.s32 3072, 3072
          %597 = vsyncadd [#allocation4], %s596
          %s598 = sshll.u32 [#allocation3], 4
          %s599 = int_to_ptr.vmem [resolvable:$true] %s598
          %604 = dma.hbm_to_vmem [thread:$0]  %s4, 3072, %s599, [#allocation4], 64, 64, 4
        $region28: #{hubert_encoder_forward.2} parent=11 // pred_fallthru
          _
        // Predicated region
        $region29: #{hubert_encoder_forward.2} parent=11 // pred_check
          %p605 = pneg %p164
        $region30: #{hubert_encoder_forward.2} parent=11 // pred_check_branch
          %607 = sbr.rel (%p605) target = $region32
        $region31: #{hubert_encoder_forward.2} parent=11 // pred_region
          %s609 = ssub.s32 3072, 3072
          %610 = vsyncadd [#allocation6], %s609
          %s611 = sshll.u32 [#allocation5], 4
          %s612 = int_to_ptr.vmem [resolvable:$true] %s611
          %617 = dma.hbm_to_vmem [thread:$0]  %s5, 3072, %s612, [#allocation6], 64, 64, 4
        $region32: #{hubert_encoder_forward.2} parent=11 // pred_fallthru
          _
        // Predicated region
        $region33: #{hubert_encoder_forward.2} parent=11 // pred_check
          %p618 = pneg %p185
        $region34: #{hubert_encoder_forward.2} parent=11 // pred_check_branch
          %620 = sbr.rel (%p618) target = $region36
        $region35: #{hubert_encoder_forward.2} parent=11 // pred_region
          _
        $region36: #{hubert_encoder_forward.2} parent=11 // pred_fallthru
          _
        // Predicated region
        $region37: #{hubert_encoder_forward.2} parent=11 // pred_check
          %p621 = pneg %p206
        $region38: #{hubert_encoder_forward.2} parent=11 // pred_check_branch
          %623 = sbr.rel (%p621) target = $region40
        $region39: #{hubert_encoder_forward.2} parent=11 // pred_region
          _
        $region40: #{hubert_encoder_forward.2} parent=11 // pred_fallthru
          _
        // Predicated region
        $region41: #{hubert_encoder_forward.2} parent=11 // pred_check
          %p624 = pneg %p227
        $region42: #{hubert_encoder_forward.2} parent=11 // pred_check_branch
          %626 = sbr.rel (%p624) target = $region44
        $region43: #{hubert_encoder_forward.2} parent=11 // pred_region
          _
        $region44: #{hubert_encoder_forward.2} parent=11 // pred_fallthru
          _
        // Predicated region
        $region45: #{hubert_encoder_forward.2} parent=11 // pred_check
          %p627 = pneg %p248
        $region46: #{hubert_encoder_forward.2} parent=11 // pred_check_branch
          %629 = sbr.rel (%p627) target = $region48
        $region47: #{hubert_encoder_forward.2} parent=11 // pred_region
          _
        $region48: #{hubert_encoder_forward.2} parent=11 // pred_fallthru
          _
        // Predicated region
        $region49: #{hubert_encoder_forward.2} parent=11 // pred_check
          %p630 = pneg %p269
        $region50: #{hubert_encoder_forward.2} parent=11 // pred_check_branch
          %632 = sbr.rel (%p630) target = $region52
        $region51: #{hubert_encoder_forward.2} parent=11 // pred_region
          _
        $region52: #{hubert_encoder_forward.2} parent=11 // pred_fallthru
          _
        // Predicated region
        $region53: #{hubert_encoder_forward.2} parent=11 // pred_check
          %p633 = pneg %p290
        $region54: #{hubert_encoder_forward.2} parent=11 // pred_check_branch
          %635 = sbr.rel (%p633) target = $region56
        $region55: #{hubert_encoder_forward.2} parent=11 // pred_region
          _
        $region56: #{hubert_encoder_forward.2} parent=11 // pred_fallthru
          _
        // Predicated region
        $region57: #{hubert_encoder_forward.2} parent=11 // pred_check
          %p636 = pneg %p311
        $region58: #{hubert_encoder_forward.2} parent=11 // pred_check_branch
          %638 = sbr.rel (%p636) target = $region60
        $region59: #{hubert_encoder_forward.2} parent=11 // pred_region
          %s640 = ssub.s32 6144, 6144
          %641 = vsyncadd [#allocation6], %s640
          %s642 = sshll.u32 [#allocation7], 4
          %s643 = int_to_ptr.vmem [resolvable:$true] %s642
          %648 = dma.hbm_to_vmem [thread:$0]  %s12, 6144, %s643, [#allocation6], 192, 192, 12
        $region60: #{hubert_encoder_forward.2} parent=11 // pred_fallthru
          _
        // Predicated region
        $region61: #{hubert_encoder_forward.2} parent=11 // pred_check
          %p649 = pneg %p332
        $region62: #{hubert_encoder_forward.2} parent=11 // pred_check_branch
          %651 = sbr.rel (%p649) target = $region64
        $region63: #{hubert_encoder_forward.2} parent=11 // pred_region
          _
        $region64: #{hubert_encoder_forward.2} parent=11 // pred_fallthru
          _
        // Predicated region
        $region65: #{hubert_encoder_forward.2} parent=11 // pred_check
          %p652 = pneg %p353
        $region66: #{hubert_encoder_forward.2} parent=11 // pred_check_branch
          %654 = sbr.rel (%p652) target = $region68
        $region67: #{hubert_encoder_forward.2} parent=11 // pred_region
          _
        $region68: #{hubert_encoder_forward.2} parent=11 // pred_fallthru
          _
        // Predicated region
        $region69: #{hubert_encoder_forward.2} parent=11 // pred_check
          %p655 = pneg %p374
        $region70: #{hubert_encoder_forward.2} parent=11 // pred_check_branch
          %657 = sbr.rel (%p655) target = $region72
        $region71: #{hubert_encoder_forward.2} parent=11 // pred_region
          _
        $region72: #{hubert_encoder_forward.2} parent=11 // pred_fallthru
          _
        // Predicated region
        $region73: #{hubert_encoder_forward.2} parent=11 // pred_check
          %p658 = pneg %p395
        $region74: #{hubert_encoder_forward.2} parent=11 // pred_check_branch
          %660 = sbr.rel (%p658) target = $region76
        $region75: #{hubert_encoder_forward.2} parent=11 // pred_region
          _
        $region76: #{hubert_encoder_forward.2} parent=11 // pred_fallthru
          _
        // Predicated region
        $region77: #{hubert_encoder_forward.2} parent=11 // pred_check
          %p661 = pneg %p416
        $region78: #{hubert_encoder_forward.2} parent=11 // pred_check_branch
          %663 = sbr.rel (%p661) target = $region80
        $region79: #{hubert_encoder_forward.2} parent=11 // pred_region
          _
        $region80: #{hubert_encoder_forward.2} parent=11 // pred_fallthru
          _
        // Predicated region
        $region81: #{hubert_encoder_forward.2} parent=11 // pred_check
          %p664 = pneg %p437
        $region82: #{hubert_encoder_forward.2} parent=11 // pred_check_branch
          %666 = sbr.rel (%p664) target = $region84
        $region83: #{hubert_encoder_forward.2} parent=11 // pred_region
          %s668 = ssub.s32 4096, 4096
          %669 = vsyncadd [#allocation9], %s668
          %s670 = sshll.u32 [#allocation8], 4
          %s671 = int_to_ptr.vmem [resolvable:$true] %s670
          %676 = dma.hbm_to_vmem [thread:$0]  %s18, 4096, %s671, [#allocation9], 128, 128, 8
        $region84: #{hubert_encoder_forward.2} parent=11 // pred_fallthru
          _
        // Predicated region
        $region85: #{hubert_encoder_forward.2} parent=11 // pred_check
          %p677 = pneg %p458
        $region86: #{hubert_encoder_forward.2} parent=11 // pred_check_branch
          %679 = sbr.rel (%p677) target = $region88
        $region87: #{hubert_encoder_forward.2} parent=11 // pred_region
          _
        $region88: #{hubert_encoder_forward.2} parent=11 // pred_fallthru
          _
        // Predicated region
        $region89: #{hubert_encoder_forward.2} parent=11 // pred_check
          %p680 = pneg %p479
        $region90: #{hubert_encoder_forward.2} parent=11 // pred_check_branch
          %682 = sbr.rel (%p680) target = $region92
        $region91: #{hubert_encoder_forward.2} parent=11 // pred_region
          %s684 = ssub.s32 4096, 4096
          %685 = vsyncadd [#allocation9], %s684
          %s686 = sshll.u32 [#allocation10], 4
          %s687 = int_to_ptr.vmem [resolvable:$true] %s686
          %692 = dma.hbm_to_vmem [thread:$0]  %s20, 4096, %s687, [#allocation9], 64, 64, 4
        $region92: #{hubert_encoder_forward.2} parent=11 // pred_fallthru
          _
        // Predicated region
        $region93: #{hubert_encoder_forward.2} parent=11 // pred_check
          %p693 = pneg %p500
        $region94: #{hubert_encoder_forward.2} parent=11 // pred_check_branch
          %695 = sbr.rel (%p693) target = $region96
        $region95: #{hubert_encoder_forward.2} parent=11 // pred_region
          _
        $region96: #{hubert_encoder_forward.2} parent=11 // pred_fallthru
          _
        // Predicated region
        $region97: #{hubert_encoder_forward.2} parent=11 // pred_check
          %p696 = pneg %p521
        $region98: #{hubert_encoder_forward.2} parent=11 // pred_check_branch
          %698 = sbr.rel (%p696) target = $region100
        $region99: #{hubert_encoder_forward.2} parent=11 // pred_region
          _
        $region100: #{hubert_encoder_forward.2} parent=11 // pred_fallthru
          _
        // Predicated region
        $region101: #{hubert_encoder_forward.2} parent=11 // pred_check
          %p699 = pneg %p542
        $region102: #{hubert_encoder_forward.2} parent=11 // pred_check_branch
          %701 = sbr.rel (%p699) target = $region104
        $region103: #{hubert_encoder_forward.2} parent=11 // pred_region
          _
        $region104: #{hubert_encoder_forward.2} parent=11 // pred_fallthru
          _
      $region12: #{hubert_encoder_forward.2} parent=5 // pred_fallthru
        _
      %p702 = scmp.lt.s32.totalorder %s33, 2
      // Predicated region
      $region105: #{hubert_encoder_forward.2} parent=5 // pred_check
        %p703 = pneg %p702
      $region106: #{hubert_encoder_forward.2} parent=5 // pred_check_branch
        %705 = sbr.rel (%p703) target = $region108
      $region107: #{hubert_encoder_forward.2} parent=5 // pred_region
        // Predicated region
        $region109: #{hubert_encoder_forward.2} parent=107 // pred_check
          %p706 = pneg %p53
        $region110: #{hubert_encoder_forward.2} parent=107 // pred_check_branch
          %708 = sbr.rel (%p706) target = $region112
        $region111: #{hubert_encoder_forward.2} parent=107 // pred_region
          %p709 = scmp.lt.s32.totalorder %s33, 1
          %s710 = scalar_select %p709, %s33, 1
          %s711 = smul.addr %s710, 9
          %s712 = smul.addr %s711, 8
          %s713 = scalar_lea.vmem %s0, %s712
        $region112: #{hubert_encoder_forward.2} parent=107 // pred_fallthru
          _
      $region108: #{hubert_encoder_forward.2} parent=5 // pred_fallthru
        _
      %p714 = scmp.le.s32.totalorder 1, %s33
      %p715 = scmp.lt.s32.totalorder %s33, 3
      %p716 = pnand %p714, %p715
      %p717 = pneg %p716
      // Predicated region
      $region113: #{hubert_encoder_forward.2} parent=5 // pred_check
        _
      $region114: #{hubert_encoder_forward.2} parent=5 // pred_check_branch
        %719 = sbr.rel (%p716) target = $region116
      $region115: #{hubert_encoder_forward.2} parent=5 // pred_region
        %s720 = ssub.s32 %s33, 1
        // Predicated region
        $region117: #{hubert_encoder_forward.2} parent=115 // pred_check
          %p721 = pneg %p143
        $region118: #{hubert_encoder_forward.2} parent=115 // pred_check_branch
          %723 = sbr.rel (%p721) target = $region120
        $region119: #{hubert_encoder_forward.2} parent=115 // pred_region
          %724 = dma.done [#allocation4], 3072
        $region120: #{hubert_encoder_forward.2} parent=115 // pred_fallthru
          _
        // Predicated region
        $region121: #{hubert_encoder_forward.2} parent=115 // pred_check
          %p725 = pneg %p164
        $region122: #{hubert_encoder_forward.2} parent=115 // pred_check_branch
          %727 = sbr.rel (%p725) target = $region124
        $region123: #{hubert_encoder_forward.2} parent=115 // pred_region
          %728 = dma.done [#allocation6], 3072
        $region124: #{hubert_encoder_forward.2} parent=115 // pred_fallthru
          _
        // Predicated region
        $region125: #{hubert_encoder_forward.2} parent=115 // pred_check
          %p729 = pneg %p311
        $region126: #{hubert_encoder_forward.2} parent=115 // pred_check_branch
          %731 = sbr.rel (%p729) target = $region128
        $region127: #{hubert_encoder_forward.2} parent=115 // pred_region
          %732 = dma.done [#allocation6], 6144
        $region128: #{hubert_encoder_forward.2} parent=115 // pred_fallthru
          _
        // Predicated region
        $region129: #{hubert_encoder_forward.2} parent=115 // pred_check
          %p733 = pneg %p437
        $region130: #{hubert_encoder_forward.2} parent=115 // pred_check_branch
          %735 = sbr.rel (%p733) target = $region132
        $region131: #{hubert_encoder_forward.2} parent=115 // pred_region
          %736 = dma.done [#allocation9], 4096
        $region132: #{hubert_encoder_forward.2} parent=115 // pred_fallthru
          _
        // Predicated region
        $region133: #{hubert_encoder_forward.2} parent=115 // pred_check
          %p737 = pneg %p479
        $region134: #{hubert_encoder_forward.2} parent=115 // pred_check_branch
          %739 = sbr.rel (%p737) target = $region136
        $region135: #{hubert_encoder_forward.2} parent=115 // pred_region
          %740 = dma.done [#allocation9], 4096
        $region136: #{hubert_encoder_forward.2} parent=115 // pred_fallthru
          _
        %p741 = scmp.lt.s32.totalorder %s38, 1
        %s742 = scalar_select %p741, %s38, 1
        %s743 = smul.addr %s742, 9
        %s744 = smul.addr %s743, 8
        %s745 = scalar_lea.vmem %s0, %s744
        %p746 = pneg %p59
        %p747 = pneg %p56
        %p748 = pneg %p80
        %p749 = pneg %p77
        %p750 = pneg %p101
        %p751 = pneg %p98
        %p752 = pneg %p122
        %p753 = pneg %p119
        %p754 = pneg %p143
        %p755 = pneg %p140
        %p756 = pneg %p164
        %p757 = pneg %p161
        %p758 = pneg %p185
        %p759 = pneg %p182
        %p760 = pneg %p206
        %p761 = pneg %p203
        %p762 = pneg %p227
        %p763 = pneg %p224
        %p764 = pneg %p248
        %p765 = pneg %p245
        %p766 = pneg %p269
        %p767 = pneg %p266
        %p768 = pneg %p290
        %p769 = pneg %p287
        %p770 = pneg %p311
        %p771 = pneg %p308
        %p772 = pneg %p332
        %p773 = pneg %p329
        %p774 = pneg %p353
        %p775 = pneg %p350
        %p776 = pneg %p374
        %p777 = pneg %p371
        %p778 = pneg %p395
        %p779 = pneg %p392
        %p780 = pneg %p416
        %p781 = pneg %p413
        %p782 = pneg %p437
        %p783 = pneg %p434
        %p784 = pneg %p458
        %p785 = pneg %p455
        %p786 = pneg %p479
        %p787 = pneg %p476
        %p788 = pneg %p500
        %p789 = pneg %p497
        %p790 = pneg %p521
        %p791 = pneg %p518
        %p792 = pneg %p542
        %p793 = pneg %p539
        %p794 = pneg %p568
        %p795 = pneg %p565
        %p796 = scmp.lt.s32.totalorder %s38, 1
        %s797 = scalar_select %p796, %s38, 1
        %s798 = smul.addr %s797, 2
        %s799 = smul.addr %s798, 4
        %s800 = scalar_lea.vmem %s24, %s799
        %p801 = scmp.lt.s32.totalorder %s38, 1
        %s802 = scalar_select %p801, %s38, 1
        %s803 = smul.addr %s802, 9
        %s804 = smul.addr %s803, 8
        %s805 = scalar_lea.vmem %s0, %s804
        %p806 = scmp.lt.s32.totalorder %s38, 1
        %s807 = scalar_select %p806, %s38, 1
        %s808 = smul.addr %s807, 2
        %s809 = smul.addr %s808, 4
        %s810 = scalar_lea.vmem %s24, %s809
        %v812 = vld [vmem:[%s805] sm:$0xff]
        %v813 = vld [vmem:[%s805 + $0x8] sm:$0xff]
        %v814 = vld [vmem:[%s805 + $0x10] sm:$0xff]
        %v815 = vld [vmem:[%s805 + $0x18] sm:$0xff]
        %v816 = vld [vmem:[%s805 + $0x20] sm:$0xff]
        %v817 = vld [vmem:[%s805 + $0x28] sm:$0xff]
        %v818 = vld [vmem:[%s805 + $0x30] sm:$0xff]
        %v819 = vld [vmem:[%s805 + $0x38] sm:$0xff]
        %v820 = vld [vmem:[%s805 + $0x40] sm:$0xf]
        %vm821 = vcmask 39936
        %v822 = vsel %vm821, %v812, 0.0
        %823 = vadd.xlane.f32.xlu0 %v822
        %v824 = vpop.xlane.xlu0 %823
        %v825 = vsel %vm821, %v813, 0.0
        %826 = vadd.xlane.f32.xlu0 %v825
        %v827 = vpop.xlane.xlu0 %826
        %v828 = vsel %vm821, %v814, 0.0
        %829 = vadd.xlane.f32.xlu0 %v828
        %v830 = vpop.xlane.xlu0 %829
        %v831 = vsel %vm821, %v815, 0.0
        %832 = vadd.xlane.f32.xlu0 %v831
        %v833 = vpop.xlane.xlu0 %832
        %v834 = vsel %vm821, %v816, 0.0
        %835 = vadd.xlane.f32.xlu0 %v834
        %v836 = vpop.xlane.xlu0 %835
        %v837 = vsel %vm821, %v817, 0.0
        %838 = vadd.xlane.f32.xlu0 %v837
        %v839 = vpop.xlane.xlu0 %838
        %v840 = vsel %vm821, %v818, 0.0
        %841 = vadd.xlane.f32.xlu0 %v840
        %v842 = vpop.xlane.xlu0 %841
        %v843 = vsel %vm821, %v819, 0.0
        %844 = vadd.xlane.f32.xlu0 %v843
        %v845 = vpop.xlane.xlu0 %844
        %vm846 = vcmask 35840
        %v847 = vsel %vm846, %v820, 0.0
        %848 = vadd.xlane.f32.xlu0 %v847
        %v849 = vpop.xlane.xlu0 %848
        %v850 = vrcp.pop 5.0
        %v851 = vmul.f32 %v824, %v850
        %v852 = vmul.f32 %v827, %v850
        %v853 = vmul.f32 %v830, %v850
        %v854 = vmul.f32 %v833, %v850
        %v855 = vmul.f32 %v836, %v850
        %v856 = vmul.f32 %v839, %v850
        %v857 = vmul.f32 %v842, %v850
        %v858 = vmul.f32 %v845, %v850
        %v859 = vmul.f32 %v849, %v850
        %v860 = vadd.f32 %v851, %v852
        %v861 = vadd.f32 %v860, %v853
        %v862 = vadd.f32 %v861, %v854
        %v863 = vadd.f32 %v862, %v855
        %v864 = vadd.f32 %v863, %v856
        %v865 = vadd.f32 %v864, %v857
        %v866 = vadd.f32 %v865, %v858
        %vm867 = vcmask 1043456
        %v868 = vsel %vm867, %v859, 0.0
        %v869 = vadd.f32 %v866, %v868
        %v870 = vrot.slane %v869, 4
        %v871 = vadd.f32 %v869, %v870
        %v872 = vrot.slane %v871, 2
        %v873 = vadd.f32 %v871, %v872
        %v874 = vrot.slane %v873, 1
        %v875 = vadd.f32 %v873, %v874
        %v876 = vrcp.pop 68.0
        %v877 = vmul.f32 %v875, %v876
        %v878 = vsub.f32 %v812, %v877
        %v879 = vsub.f32 %v813, %v877
        %v880 = vsub.f32 %v814, %v877
        %v881 = vsub.f32 %v815, %v877
        %v882 = vsub.f32 %v816, %v877
        %v883 = vsub.f32 %v817, %v877
        %v884 = vsub.f32 %v818, %v877
        %v885 = vsub.f32 %v819, %v877
        %v886 = vsub.f32 %v820, %v877
        %v887 = vmul.f32 %v878, %v878
        %v888 = vmul.f32 %v879, %v879
        %v889 = vmul.f32 %v880, %v880
        %v890 = vmul.f32 %v881, %v881
        %v891 = vmul.f32 %v882, %v882
        %v892 = vmul.f32 %v883, %v883
        %v893 = vmul.f32 %v884, %v884
        %v894 = vmul.f32 %v885, %v885
        %v895 = vmul.f32 %v886, %v886
        %v896 = vsel %vm821, %v887, 0.0
        %897 = vadd.xlane.f32.xlu0 %v896
        %v898 = vpop.xlane.xlu0 %897
        %v899 = vsel %vm821, %v888, 0.0
        %900 = vadd.xlane.f32.xlu0 %v899
        %v901 = vpop.xlane.xlu0 %900
        %v902 = vsel %vm821, %v889, 0.0
        %903 = vadd.xlane.f32.xlu0 %v902
        %v904 = vpop.xlane.xlu0 %903
        %v905 = vsel %vm821, %v890, 0.0
        %906 = vadd.xlane.f32.xlu0 %v905
        %v907 = vpop.xlane.xlu0 %906
        %v908 = vsel %vm821, %v891, 0.0
        %909 = vadd.xlane.f32.xlu0 %v908
        %v910 = vpop.xlane.xlu0 %909
        %v911 = vsel %vm821, %v892, 0.0
        %912 = vadd.xlane.f32.xlu0 %v911
        %v913 = vpop.xlane.xlu0 %912
        %v914 = vsel %vm821, %v893, 0.0
        %915 = vadd.xlane.f32.xlu0 %v914
        %v916 = vpop.xlane.xlu0 %915
        %v917 = vsel %vm821, %v894, 0.0
        %918 = vadd.xlane.f32.xlu0 %v917
        %v919 = vpop.xlane.xlu0 %918
        %v920 = vsel %vm846, %v895, 0.0
        %921 = vadd.xlane.f32.xlu0 %v920
        %v922 = vpop.xlane.xlu0 %921
        %v923 = vmul.f32 %v898, %v850
        %v924 = vmul.f32 %v901, %v850
        %v925 = vmul.f32 %v904, %v850
        %v926 = vmul.f32 %v907, %v850
        %v927 = vmul.f32 %v910, %v850
        %v928 = vmul.f32 %v913, %v850
        %v929 = vmul.f32 %v916, %v850
        %v930 = vmul.f32 %v919, %v850
        %v931 = vmul.f32 %v922, %v850
        %v932 = vadd.f32 %v923, %v924
        %v933 = vadd.f32 %v932, %v925
        %v934 = vadd.f32 %v933, %v926
        %v935 = vadd.f32 %v934, %v927
        %v936 = vadd.f32 %v935, %v928
        %v937 = vadd.f32 %v936, %v929
        %v938 = vadd.f32 %v937, %v930
        %v939 = vsel %vm867, %v931, 0.0
        %v940 = vadd.f32 %v938, %v939
        %v941 = vrot.slane %v940, 4
        %v942 = vadd.f32 %v940, %v941
        %v943 = vrot.slane %v942, 2
        %v944 = vadd.f32 %v942, %v943
        %v945 = vrot.slane %v944, 1
        %v946 = vadd.f32 %v944, %v945
        %v947 = vmul.f32 %v946, %v876
        %v948 = vadd.f32 %v947, 1e-07
        %v949 = vrsqrt.pop %v948
        %v950 = vmul.f32 %v878, %v949
        %v951 = vmul.f32 %v879, %v949
        %v952 = vmul.f32 %v880, %v949
        %v953 = vmul.f32 %v881, %v949
        %v954 = vmul.f32 %v882, %v949
        %v955 = vmul.f32 %v883, %v949
        %v956 = vmul.f32 %v884, %v949
        %v957 = vmul.f32 %v885, %v949
        %v958 = vmul.f32 %v886, %v949
        %v959 = vld [vmem:[%s1] sm:$0xf]
        %v960 = vld [vmem:[%s1 + $0x4] sm:$0x1]
        %v961 = vpack.c.bf16 %v951, %v950
        %v962 = vpack.c.bf16 %v953, %v952
        %v963 = vpack.c.bf16 %v955, %v954
        %v964 = vpack.c.bf16 %v957, %v956
        %v965 = vpack.c.bf16 %v958, %v958
        %vm966 = vsmask.f32 7424
        %v968 = vshrl.u32 %v961, 16
        %v970 = vshll.u32 %v961, 16
        %v972 = vrot.slane %v970, 1
        %v973 = vor.u32 %v968, %v972
        %v975 = vshll.u32 %v962, 16
        %v977 = vrot.slane %v975, 1
        %v978 = vsel %vm966, %v973, %v977
        %v979 = vshrl.u32 %v962, 16
        %v981 = vor.u32 %v979, %v977
        %v983 = vshll.u32 %v963, 16
        %v985 = vrot.slane %v983, 1
        %v986 = vsel %vm966, %v981, %v985
        %v987 = vshrl.u32 %v963, 16
        %v989 = vor.u32 %v987, %v985
        %v991 = vshll.u32 %v964, 16
        %v993 = vrot.slane %v991, 1
        %v994 = vsel %vm966, %v989, %v993
        %v995 = vshrl.u32 %v964, 16
        %v997 = vor.u32 %v995, %v993
        %v999 = vshll.u32 %v965, 16
        %v1001 = vrot.slane %v999, 1
        %v1002 = vsel %vm966, %v997, %v1001
        %v1003 = vshrl.u32 %v965, 16
        %v1005 = vor.u32 %v1003, %v1001
        %v1008 = vunpack.c.l.b16 %v959
        %v1009 = vunpack.c.l.b16 %v960
        %v1010 = vpack.c.b16 %v1009, %v1008
        %v1012 = vshrl.u32 %v1010, 16
        %v1014 = vrot.slane %v1012, 2
        %v1015 = vshll.u32 %v1010, 16
        %v1017 = vrot.slane %v1015, 3
        %v1018 = vor.u32 %v1014, %v1017
        %v1020 = vsel %vm821, %v978, 0
        %v1023 = vsel %vm821, %v986, 0
        %v1026 = vsel %vm821, %v994, 0
        %v1029 = vsel %vm821, %v1002, 0
        %v1032 = vsel %vm821, %v1005, 0
        %vm1034 = vcmask 1041408
        %vm1035 = vcmask 1042432
        %v1036 = vsel %vm1034, 4294967295, 65535
        %v1037 = vsel %vm1035, %v1036, 0
        %v1039 = vand.u32 %v1018, %v1037
        %1041 = vmatprep.subr.bf16.mxu0 0
        %1042 = vmatpush1.bf16.msra.mxu0 %v1039
        %1043 = vmatprep.subr.bf16.mxu0 0
        %1044 = vmatpush1.bf16.msra.mxu0 0
        %1045 = vmatprep.subr.bf16.mxu0 0
        %1046 = vmatpush1.bf16.msra.mxu0 0
        %1047 = vmatprep.subr.bf16.mxu0 0
        %1048 = vmatpush1.bf16.msra.mxu0 0
        %1049 = vmatprep.subr.bf16.mxu0 0
        %1050 = vmatpush1.bf16.msra.mxu0 0
        %1051 = vmatprep.subr.bf16.mxu0 0
        %1052 = vmatpush1.bf16.msra.mxu0 0
        %1053 = vmatprep.subr.bf16.mxu0 0
        %1054 = vmatpush1.bf16.msra.mxu0 0
        %1055 = vmatprep.subr.bf16.mxu0 0
        %1056 = vmatpush1.bf16.msra.mxu0 0
        %1057 = vmatprep.subr.bf16.mxu0 0
        %1058 = vmatpush1.bf16.msra.mxu0 0
        %1059 = vmatprep.subr.bf16.mxu0 0
        %1060 = vmatpush1.bf16.msra.mxu0 0
        %1061 = vmatprep.subr.bf16.mxu0 0
        %1062 = vmatpush1.bf16.msra.mxu0 0
        %1063 = vmatprep.subr.bf16.mxu0 0
        %1064 = vmatpush1.bf16.msra.mxu0 0
        %1065 = vmatprep.subr.bf16.mxu0 0
        %1066 = vmatpush1.bf16.msra.mxu0 0
        %1067 = vmatprep.subr.bf16.mxu0 0
        %1068 = vmatpush1.bf16.msra.mxu0 0
        %1069 = vmatprep.subr.bf16.mxu0 0
        %1070 = vmatpush1.bf16.msra.mxu0 0
        %1071 = vmatprep.subr.bf16.mxu0 0
        %1072 = vmatpush1.bf16.msra.mxu0 0
        %1073 = vmatprep.mubr.bf16.mxu0 0
        %1074 = vmatmul.mubr.bf16.gmra.mrb[0].mxu0 %v1020
        %v1075 = vpop.f32.mrb[0].mxu0
        %v1076 = vadd.f32 0.0, %v1075
        %v1077 = vpop.f32.mrb[0].mxu0
        %v1078 = vpop.f32.mrb[0].mxu0
        %v1079 = vadd.f32 0.0, %v1078
        %v1080 = vpop.f32.mrb[0].mxu0
        %1081 = vmatprep.mubr.bf16.mxu0 0
        %1082 = vmatmul.mubr.bf16.gmra.mrb[0].mxu0 %v1023
        %v1083 = vpop.f32.mrb[0].mxu0
        %v1084 = vadd.f32 0.0, %v1083
        %v1085 = vpop.f32.mrb[0].mxu0
        %v1086 = vpop.f32.mrb[0].mxu0
        %v1087 = vadd.f32 0.0, %v1086
        %v1088 = vpop.f32.mrb[0].mxu0
        %1089 = vmatprep.mubr.bf16.mxu0 0
        %1090 = vmatmul.mubr.bf16.gmra.mrb[0].mxu0 %v1026
        %v1091 = vpop.f32.mrb[0].mxu0
        %v1092 = vadd.f32 0.0, %v1091
        %v1093 = vpop.f32.mrb[0].mxu0
        %v1094 = vpop.f32.mrb[0].mxu0
        %v1095 = vadd.f32 0.0, %v1094
        %v1096 = vpop.f32.mrb[0].mxu0
        %1097 = vmatprep.mubr.bf16.mxu0 0
        %1098 = vmatmul.mubr.bf16.gmra.mrb[0].mxu0 %v1029
        %v1099 = vpop.f32.mrb[0].mxu0
        %v1100 = vadd.f32 0.0, %v1099
        %v1101 = vpop.f32.mrb[0].mxu0
        %v1102 = vpop.f32.mrb[0].mxu0
        %v1103 = vadd.f32 0.0, %v1102
        %v1104 = vpop.f32.mrb[0].mxu0
        %1105 = vmatprep.mubr.bf16.mxu0 0
        %1106 = vmatmul.mubr.bf16.gmra.mrb[0].mxu0 %v1032
        %v1107 = vpop.f32.mrb[0].mxu0
        %v1108 = vadd.f32 0.0, %v1107
        %v1109 = vpop.f32.mrb[0].mxu0
        %v1110 = vpop.f32.mrb[0].mxu0
        %v1111 = vpop.f32.mrb[0].mxu0
        %1112 = vdwg.mxu0
        %v1113 = vsel %vm821, %v961, 0
        %v1115 = vsel %vm821, %v962, 0
        %v1117 = vsel %vm821, %v963, 0
        %v1119 = vsel %vm821, %v964, 0
        %v1121 = vsel %vm821, %v965, 0
        %v1124 = vand.u32 %v959, %v1037
        %1126 = vmatprep.subr.bf16.mxu0 0
        %1127 = vmatpush1.bf16.msra.mxu0 %v1124
        %1128 = vmatprep.subr.bf16.mxu0 0
        %1129 = vmatpush1.bf16.msra.mxu0 0
        %1130 = vmatprep.subr.bf16.mxu0 0
        %1131 = vmatpush1.bf16.msra.mxu0 0
        %1132 = vmatprep.subr.bf16.mxu0 0
        %1133 = vmatpush1.bf16.msra.mxu0 0
        %1134 = vmatprep.subr.bf16.mxu0 0
        %1135 = vmatpush1.bf16.msra.mxu0 0
        %1136 = vmatprep.subr.bf16.mxu0 0
        %1137 = vmatpush1.bf16.msra.mxu0 0
        %1138 = vmatprep.subr.bf16.mxu0 0
        %1139 = vmatpush1.bf16.msra.mxu0 0
        %1140 = vmatprep.subr.bf16.mxu0 0
        %1141 = vmatpush1.bf16.msra.mxu0 0
        %1142 = vmatprep.subr.bf16.mxu0 0
        %1143 = vmatpush1.bf16.msra.mxu0 0
        %1144 = vmatprep.subr.bf16.mxu0 0
        %1145 = vmatpush1.bf16.msra.mxu0 0
        %1146 = vmatprep.subr.bf16.mxu0 0
        %1147 = vmatpush1.bf16.msra.mxu0 0
        %1148 = vmatprep.subr.bf16.mxu0 0
        %1149 = vmatpush1.bf16.msra.mxu0 0
        %1150 = vmatprep.subr.bf16.mxu0 0
        %1151 = vmatpush1.bf16.msra.mxu0 0
        %1152 = vmatprep.subr.bf16.mxu0 0
        %1153 = vmatpush1.bf16.msra.mxu0 0
        %1154 = vmatprep.subr.bf16.mxu0 0
        %1155 = vmatpush1.bf16.msra.mxu0 0
        %1156 = vmatprep.subr.bf16.mxu0 0
        %1157 = vmatpush1.bf16.msra.mxu0 0
        %1158 = vmatprep.mubr.bf16.mxu0 0
        %1159 = vmatmul.mubr.bf16.gmra.mrb[0].mxu0 %v1113
        %v1160 = vpop.f32.mrb[0].mxu0
        %v1161 = vadd.f32 %v1076, %v1160
        %v1162 = vpop.f32.mrb[0].mxu0
        %v1163 = vpop.f32.mrb[0].mxu0
        %v1164 = vadd.f32 %v1079, %v1163
        %v1165 = vpop.f32.mrb[0].mxu0
        %1166 = vmatprep.mubr.bf16.mxu0 0
        %1167 = vmatmul.mubr.bf16.gmra.mrb[0].mxu0 %v1115
        %v1168 = vpop.f32.mrb[0].mxu0
        %v1169 = vadd.f32 %v1084, %v1168
        %v1170 = vpop.f32.mrb[0].mxu0
        %v1171 = vpop.f32.mrb[0].mxu0
        %v1172 = vadd.f32 %v1087, %v1171
        %v1173 = vpop.f32.mrb[0].mxu0
        %1174 = vmatprep.mubr.bf16.mxu0 0
        %1175 = vmatmul.mubr.bf16.gmra.mrb[0].mxu0 %v1117
        %v1176 = vpop.f32.mrb[0].mxu0
        %v1177 = vadd.f32 %v1092, %v1176
        %v1178 = vpop.f32.mrb[0].mxu0
        %v1179 = vpop.f32.mrb[0].mxu0
        %v1180 = vadd.f32 %v1095, %v1179
        %v1181 = vpop.f32.mrb[0].mxu0
        %1182 = vmatprep.mubr.bf16.mxu0 0
        %1183 = vmatmul.mubr.bf16.gmra.mrb[0].mxu0 %v1119
        %v1184 = vpop.f32.mrb[0].mxu0
        %v1185 = vadd.f32 %v1100, %v1184
        %v1186 = vpop.f32.mrb[0].mxu0
        %v1187 = vpop.f32.mrb[0].mxu0
        %v1188 = vadd.f32 %v1103, %v1187
        %v1189 = vpop.f32.mrb[0].mxu0
        %1190 = vmatprep.mubr.bf16.mxu0 0
        %1191 = vmatmul.mubr.bf16.gmra.mrb[0].mxu0 %v1121
        %v1192 = vpop.f32.mrb[0].mxu0
        %v1193 = vadd.f32 %v1108, %v1192
        %v1194 = vpop.f32.mrb[0].mxu0
        %v1195 = vpop.f32.mrb[0].mxu0
        %v1196 = vpop.f32.mrb[0].mxu0
        %1197 = vdwg.mxu0
        %v1198 = vadd.f32 %v1161, %v1164
        %v1199 = vadd.f32 %v1198, %v1169
        %v1200 = vadd.f32 %v1199, %v1172
        %v1201 = vadd.f32 %v1200, %v1177
        %v1202 = vadd.f32 %v1201, %v1180
        %v1203 = vadd.f32 %v1202, %v1185
        %v1204 = vadd.f32 %v1203, %v1188
        %v1205 = vsel %vm1035, %v1193, 0.0
        %v1206 = vadd.f32 %v1204, %v1205
        %v1207 = vrot.slane %v1206, 4
        %v1208 = vadd.f32 %v1206, %v1207
        %v1209 = vrot.slane %v1208, 2
        %v1210 = vadd.f32 %v1208, %v1209
        %v1211 = vrot.slane %v1210, 1
        %v1212 = vadd.f32 %v1210, %v1211
        %v1213 = vrcp.pop 67.0
        %v1214 = vmul.f32 %v1212, %v1213
        %v1215 = vsub.f32 %v1161, %v1214
        %v1216 = vsub.f32 %v1164, %v1214
        %v1217 = vsub.f32 %v1169, %v1214
        %v1218 = vsub.f32 %v1172, %v1214
        %v1219 = vsub.f32 %v1177, %v1214
        %v1220 = vsub.f32 %v1180, %v1214
        %v1221 = vsub.f32 %v1185, %v1214
        %v1222 = vsub.f32 %v1188, %v1214
        %v1223 = vsub.f32 %v1193, %v1214
        %v1224 = vmul.f32 %v1215, %v1215
        %v1225 = vmul.f32 %v1216, %v1216
        %v1226 = vmul.f32 %v1217, %v1217
        %v1227 = vmul.f32 %v1218, %v1218
        %v1228 = vmul.f32 %v1219, %v1219
        %v1229 = vmul.f32 %v1220, %v1220
        %v1230 = vmul.f32 %v1221, %v1221
        %v1231 = vmul.f32 %v1222, %v1222
        %v1232 = vmul.f32 %v1223, %v1223
        %v1233 = vadd.f32 %v1224, %v1225
        %v1234 = vadd.f32 %v1233, %v1226
        %v1235 = vadd.f32 %v1234, %v1227
        %v1236 = vadd.f32 %v1235, %v1228
        %v1237 = vadd.f32 %v1236, %v1229
        %v1238 = vadd.f32 %v1237, %v1230
        %v1239 = vadd.f32 %v1238, %v1231
        %v1240 = vsel %vm1035, %v1232, 0.0
        %v1241 = vadd.f32 %v1239, %v1240
        %v1242 = vrot.slane %v1241, 4
        %v1243 = vadd.f32 %v1241, %v1242
        %v1244 = vrot.slane %v1243, 2
        %v1245 = vadd.f32 %v1243, %v1244
        %v1246 = vrot.slane %v1245, 1
        %v1247 = vadd.f32 %v1245, %v1246
        %v1248 = vmul.f32 %v1247, %v1213
        %v1249 = vadd.f32 %v1248, 1e-05
        %v1250 = vrsqrt.pop %v1249
        %v1251 = vmul.f32 %v1215, %v1250
        %v1252 = vmul.f32 %v1216, %v1250
        %v1253 = vmul.f32 %v1217, %v1250
        %v1254 = vmul.f32 %v1218, %v1250
        %v1255 = vmul.f32 %v1219, %v1250
        %v1256 = vmul.f32 %v1220, %v1250
        %v1257 = vmul.f32 %v1221, %v1250
        %v1258 = vmul.f32 %v1222, %v1250
        %v1259 = vmul.f32 %v1223, %v1250
        %v1260 = vld [vmem:[%s2] sm:$0x1]
        %v1262 = vlaneseq
        %v1263 = vshrl.u32 %v1262, 7
        %v1264 = vsub.s32 0, %v1263
        %v1265 = vrot.slane %v1260, %v1264
        %v1267 = vmul.f32 %v1251, %v1265
        %v1268 = vmul.f32 %v1252, %v1265
        %v1269 = vmul.f32 %v1253, %v1265
        %v1270 = vmul.f32 %v1254, %v1265
        %v1271 = vmul.f32 %v1255, %v1265
        %v1272 = vmul.f32 %v1256, %v1265
        %v1273 = vmul.f32 %v1257, %v1265
        %v1274 = vmul.f32 %v1258, %v1265
        %v1275 = vmul.f32 %v1259, %v1265
        %v1276 = vld [vmem:[%s3] sm:$0x1]
        %v1278 = vlaneseq
        %v1279 = vshrl.u32 %v1278, 7
        %v1280 = vsub.s32 0, %v1279
        %v1281 = vrot.slane %v1276, %v1280
        %v1283 = vadd.f32 %v1267, %v1281
        %v1284 = vadd.f32 %v1268, %v1281
        %v1285 = vadd.f32 %v1269, %v1281
        %v1286 = vadd.f32 %v1270, %v1281
        %v1287 = vadd.f32 %v1271, %v1281
        %v1288 = vadd.f32 %v1272, %v1281
        %v1289 = vadd.f32 %v1273, %v1281
        %v1290 = vadd.f32 %v1274, %v1281
        %v1291 = vadd.f32 %v1275, %v1281
        %v1292 = vmul.f32 %v1283, 0.5
        %v1293 = vmul.f32 %v1284, 0.5
        %v1294 = vmul.f32 %v1285, 0.5
        %v1295 = vmul.f32 %v1286, 0.5
        %v1296 = vmul.f32 %v1287, 0.5
        %v1297 = vmul.f32 %v1288, 0.5
        %v1298 = vmul.f32 %v1289, 0.5
        %v1299 = vmul.f32 %v1290, 0.5
        %v1300 = vmul.f32 %v1291, 0.5
        %v1301 = vmul.f32 %v1283, 0.044715
        %v1302 = vmul.f32 %v1284, 0.044715
        %v1303 = vmul.f32 %v1285, 0.044715
        %v1304 = vmul.f32 %v1286, 0.044715
        %v1305 = vmul.f32 %v1287, 0.044715
        %v1306 = vmul.f32 %v1288, 0.044715
        %v1307 = vmul.f32 %v1289, 0.044715
        %v1308 = vmul.f32 %v1290, 0.044715
        %v1309 = vmul.f32 %v1291, 0.044715
        %v1310 = vmul.f32 %v1301, %v1283
        %v1311 = vmul.f32 %v1302, %v1284
        %v1312 = vmul.f32 %v1303, %v1285
        %v1313 = vmul.f32 %v1304, %v1286
        %v1314 = vmul.f32 %v1305, %v1287
        %v1315 = vmul.f32 %v1306, %v1288
        %v1316 = vmul.f32 %v1307, %v1289
        %v1317 = vmul.f32 %v1308, %v1290
        %v1318 = vmul.f32 %v1309, %v1291
        %v1319 = vmul.f32 %v1310, %v1283
        %v1320 = vmul.f32 %v1311, %v1284
        %v1321 = vmul.f32 %v1312, %v1285
        %v1322 = vmul.f32 %v1313, %v1286
        %v1323 = vmul.f32 %v1314, %v1287
        %v1324 = vmul.f32 %v1315, %v1288
        %v1325 = vmul.f32 %v1316, %v1289
        %v1326 = vmul.f32 %v1317, %v1290
        %v1327 = vmul.f32 %v1318, %v1291
        %v1328 = vadd.f32 %v1283, %v1319
        %v1329 = vadd.f32 %v1284, %v1320
        %v1330 = vadd.f32 %v1285, %v1321
        %v1331 = vadd.f32 %v1286, %v1322
        %v1332 = vadd.f32 %v1287, %v1323
        %v1333 = vadd.f32 %v1288, %v1324
        %v1334 = vadd.f32 %v1289, %v1325
        %v1335 = vadd.f32 %v1290, %v1326
        %v1336 = vadd.f32 %v1291, %v1327
        %v1337 = vmul.f32 %v1328, 0.7978846
        %v1338 = vmul.f32 %v1329, 0.7978846
        %v1339 = vmul.f32 %v1330, 0.7978846
        %v1340 = vmul.f32 %v1331, 0.7978846
        %v1341 = vmul.f32 %v1332, 0.7978846
        %v1342 = vmul.f32 %v1333, 0.7978846
        %v1343 = vmul.f32 %v1334, 0.7978846
        %v1344 = vmul.f32 %v1335, 0.7978846
        %v1345 = vmul.f32 %v1336, 0.7978846
        %v1346 = vtanh.pop %v1337
        %v1347 = vtanh.pop %v1338
        %v1348 = vtanh.pop %v1339
        %v1349 = vtanh.pop %v1340
        %v1350 = vtanh.pop %v1341
        %v1351 = vtanh.pop %v1342
        %v1352 = vtanh.pop %v1343
        %v1353 = vtanh.pop %v1344
        %v1354 = vtanh.pop %v1345
        %v1355 = vadd.f32 %v1346, 1.0
        %v1356 = vadd.f32 %v1347, 1.0
        %v1357 = vadd.f32 %v1348, 1.0
        %v1358 = vadd.f32 %v1349, 1.0
        %v1359 = vadd.f32 %v1350, 1.0
        %v1360 = vadd.f32 %v1351, 1.0
        %v1361 = vadd.f32 %v1352, 1.0
        %v1362 = vadd.f32 %v1353, 1.0
        %v1363 = vadd.f32 %v1354, 1.0
        %v1364 = vmul.f32 %v1292, %v1355
        %v1365 = vmul.f32 %v1293, %v1356
        %v1366 = vmul.f32 %v1294, %v1357
        %v1367 = vmul.f32 %v1295, %v1358
        %v1368 = vmul.f32 %v1296, %v1359
        %v1369 = vmul.f32 %v1297, %v1360
        %v1370 = vmul.f32 %v1298, %v1361
        %v1371 = vmul.f32 %v1299, %v1362
        %v1372 = vmul.f32 %v1300, %v1363
        %v1373 = vlaneseq
        %v1374 = vshrl.u32 %v1373, 7
        %v1375 = vadd.s32 %v1374, 8
        %v1376 = vadd.s32 %v1374, 16
        %v1377 = vadd.s32 %v1374, 24
        %v1378 = vadd.s32 %v1374, 32
        %v1379 = vlaneseq
        %v1380 = vand.u32 %v1379, 127
        %v1381 = vpack.c.bf16 %v1365, %v1364
        %v1382 = vpack.c.bf16 %v1367, %v1366
        %v1383 = vpack.c.bf16 %v1369, %v1368
        %v1384 = vpack.c.bf16 %v1371, %v1370
        %v1385 = vpack.c.bf16 %v1372, %v1372
        %v1386 = vmul.u32 %v1374, 2
        %v1387 = vmul.u32 %v1375, 2
        %v1388 = vmul.u32 %v1376, 2
        %v1389 = vmul.u32 %v1377, 2
        %v1390 = vmul.u32 %v1378, 2
        %vm1391 = vcmp.eq.s32.totalorder %v1380, %v1386
        %vm1392 = vcmp.eq.s32.totalorder %v1380, %v1387
        %vm1393 = vcmp.eq.s32.totalorder %v1380, %v1388
        %vm1394 = vcmp.eq.s32.totalorder %v1380, %v1389
        %vm1395 = vcmp.eq.s32.totalorder %v1380, %v1390
        %v1396 = vsel %vm1391, 1, 0
        %v1397 = vsel %vm1392, 1, 0
        %v1398 = vsel %vm1393, 1, 0
        %v1399 = vsel %vm1394, 1, 0
        %v1400 = vsel %vm1395, 1, 0
        %v1401 = vcvt.s32.f32 %v1396
        %v1402 = vcvt.s32.f32 %v1397
        %v1403 = vcvt.s32.f32 %v1398
        %v1404 = vcvt.s32.f32 %v1399
        %v1405 = vcvt.s32.f32 %v1400
        %v1406 = vpack.c.bf16 %v1402, %v1401
        %v1407 = vpack.c.bf16 %v1404, %v1403
        %v1408 = vpack.c.bf16 %v1405, %v1405
        %vm1409 = vcmask 547840
        %v1411 = vsel %vm1409, %v1406, 0
        %v1414 = vsel %vm1409, %v1407, 0
        %v1417 = vsel %vm1409, %v1408, 0
        %vm1419 = vcmask 1040384
        %v1420 = vsel %vm1419, 4294967295, 65535
        %v1421 = vsel %vm1034, %v1420, 0
        %v1423 = vand.u32 %v1385, %v1421
        %1425 = vmatprep.subr.bf16.mxu0 0
        %1426 = vmatpush1.bf16.msra.mxu0 %v1381
        %1427 = vmatprep.subr.bf16.mxu0 0
        %1428 = vmatpush1.bf16.msra.mxu0 %v1382
        %1429 = vmatprep.subr.bf16.mxu0 0
        %1430 = vmatpush1.bf16.msra.mxu0 %v1383
        %1431 = vmatprep.subr.bf16.mxu0 0
        %1432 = vmatpush1.bf16.msra.mxu0 %v1384
        %1433 = vmatprep.subr.bf16.mxu0 0
        %1434 = vmatpush1.bf16.msra.mxu0 %v1423
        %1435 = vmatprep.subr.bf16.mxu0 0
        %1436 = vmatpush1.bf16.msra.mxu0 0
        %1437 = vmatprep.subr.bf16.mxu0 0
        %1438 = vmatpush1.bf16.msra.mxu0 0
        %1439 = vmatprep.subr.bf16.mxu0 0
        %1440 = vmatpush1.bf16.msra.mxu0 0
        %1441 = vmatprep.subr.bf16.mxu0 0
        %1442 = vmatpush1.bf16.msra.mxu0 0
        %1443 = vmatprep.subr.bf16.mxu0 0
        %1444 = vmatpush1.bf16.msra.mxu0 0
        %1445 = vmatprep.subr.bf16.mxu0 0
        %1446 = vmatpush1.bf16.msra.mxu0 0
        %1447 = vmatprep.subr.bf16.mxu0 0
        %1448 = vmatpush1.bf16.msra.mxu0 0
        %1449 = vmatprep.subr.bf16.mxu0 0
        %1450 = vmatpush1.bf16.msra.mxu0 0
        %1451 = vmatprep.subr.bf16.mxu0 0
        %1452 = vmatpush1.bf16.msra.mxu0 0
        %1453 = vmatprep.subr.bf16.mxu0 0
        %1454 = vmatpush1.bf16.msra.mxu0 0
        %1455 = vmatprep.subr.bf16.mxu0 0
        %1456 = vmatpush1.bf16.msra.mxu0 0
        %1457 = vmatprep.mubr.bf16.mxu0 0
        %1458 = vmatmul.mubr.bf16.gmra.mrb[0].mxu0 %v1411
        %v1459 = vpop.f32.mrb[0].mxu0
        %v1460 = vadd.f32 0.0, %v1459
        %v1461 = vpop.f32.mrb[0].mxu0
        %v1462 = vpop.f32.mrb[0].mxu0
        %v1463 = vadd.f32 0.0, %v1462
        %v1464 = vpop.f32.mrb[0].mxu0
        %1465 = vmatprep.mubr.bf16.mxu0 0
        %1466 = vmatmul.mubr.bf16.gmra.mrb[0].mxu0 %v1414
        %v1467 = vpop.f32.mrb[0].mxu0
        %v1468 = vadd.f32 0.0, %v1467
        %v1469 = vpop.f32.mrb[0].mxu0
        %v1470 = vpop.f32.mrb[0].mxu0
        %v1471 = vadd.f32 0.0, %v1470
        %v1472 = vpop.f32.mrb[0].mxu0
        %1473 = vmatprep.mubr.bf16.mxu0 0
        %1474 = vmatmul.mubr.bf16.gmra.mrb[0].mxu0 %v1417
        %v1475 = vpop.f32.mrb[0].mxu0
        %v1476 = vadd.f32 0.0, %v1475
        %v1477 = vpop.f32.mrb[0].mxu0
        %v1478 = vpop.f32.mrb[0].mxu0
        %v1479 = vpop.f32.mrb[0].mxu0
        %1480 = vdwg.mxu0
        %v1481 = vpack.c.bf16 %v1463, %v1460
        %v1482 = vpack.c.bf16 %v1471, %v1468
        %v1483 = vpack.c.bf16 %v1476, %v1476
        %v1484 = vld [vmem:[#allocation3] sm:$0xf]
        %v1485 = vld [vmem:[#allocation3 + $0x4] sm:$0xf]
        %v1486 = vld [vmem:[#allocation3 + $0x8] sm:$0xf]
        %v1487 = vld [vmem:[#allocation3 + $0xc] sm:$0xf]
        %v1488 = vld [vmem:[#allocation3 + $0x10] sm:$0xf]
        %v1489 = vld [vmem:[#allocation3 + $0x14] sm:$0xf]
        %v1490 = vld [vmem:[#allocation3 + $0x18] sm:$0xf]
        %v1491 = vld [vmem:[#allocation3 + $0x1c] sm:$0xf]
        %v1492 = vld [vmem:[#allocation3 + $0x20] sm:$0xf]
        %v1493 = vld [vmem:[#allocation3 + $0x24] sm:$0xf]
        %v1494 = vld [vmem:[#allocation3 + $0x28] sm:$0xf]
        %v1495 = vld [vmem:[#allocation3 + $0x2c] sm:$0xf]
        %v1496 = vld [vmem:[#allocation3 + $0x30] sm:$0xf]
        %v1497 = vld [vmem:[#allocation3 + $0x34] sm:$0xf]
        %v1498 = vld [vmem:[#allocation3 + $0x38] sm:$0xf]
        %v1499 = vld [vmem:[#allocation3 + $0x3c] sm:$0xf]
        %v1500 = vadd.s32 %v1386, 1
        %v1501 = vadd.s32 %v1387, 1
        %v1502 = vadd.s32 %v1388, 1
        %v1503 = vadd.s32 %v1389, 1
        %v1504 = vadd.s32 %v1390, 1
        %vm1505 = vcmp.eq.s32.totalorder %v1380, %v1500
        %vm1506 = vcmp.eq.s32.totalorder %v1380, %v1501
        %vm1507 = vcmp.eq.s32.totalorder %v1380, %v1502
        %vm1508 = vcmp.eq.s32.totalorder %v1380, %v1503
        %vm1509 = vcmp.eq.s32.totalorder %v1380, %v1504
        %v1510 = vsel %vm1505, 1, 0
        %v1511 = vsel %vm1506, 1, 0
        %v1512 = vsel %vm1507, 1, 0
        %v1513 = vsel %vm1508, 1, 0
        %v1514 = vsel %vm1509, 1, 0
        %v1515 = vcvt.s32.f32 %v1510
        %v1516 = vcvt.s32.f32 %v1511
        %v1517 = vcvt.s32.f32 %v1512
        %v1518 = vcvt.s32.f32 %v1513
        %v1519 = vcvt.s32.f32 %v1514
        %v1520 = vpack.c.bf16 %v1516, %v1515
        %v1521 = vpack.c.bf16 %v1518, %v1517
        %v1522 = vpack.c.bf16 %v1519, %v1519
        %v1524 = vsel %vm1409, %v1520, 0
        %v1527 = vsel %vm1409, %v1521, 0
        %v1530 = vsel %vm1409, %v1522, 0
        %1532 = vmatprep.subr.bf16.mxu0 0
        %1533 = vmatpush1.bf16.msra.mxu0 %v1381
        %1534 = vmatprep.subr.bf16.mxu0 0
        %1535 = vmatpush1.bf16.msra.mxu0 %v1382
        %1536 = vmatprep.subr.bf16.mxu0 0
        %1537 = vmatpush1.bf16.msra.mxu0 %v1383
        %1538 = vmatprep.subr.bf16.mxu0 0
        %1539 = vmatpush1.bf16.msra.mxu0 %v1384
        %1540 = vmatprep.subr.bf16.mxu0 0
        %1541 = vmatpush1.bf16.msra.mxu0 %v1423
        %1542 = vmatprep.subr.bf16.mxu0 0
        %1543 = vmatpush1.bf16.msra.mxu0 0
        %1544 = vmatprep.subr.bf16.mxu0 0
        %1545 = vmatpush1.bf16.msra.mxu0 0
        %1546 = vmatprep.subr.bf16.mxu0 0
        %1547 = vmatpush1.bf16.msra.mxu0 0
        %1548 = vmatprep.subr.bf16.mxu0 0
        %1549 = vmatpush1.bf16.msra.mxu0 0
        %1550 = vmatprep.subr.bf16.mxu0 0
        %1551 = vmatpush1.bf16.msra.mxu0 0
        %1552 = vmatprep.subr.bf16.mxu0 0
        %1553 = vmatpush1.bf16.msra.mxu0 0
        %1554 = vmatprep.subr.bf16.mxu0 0
        %1555 = vmatpush1.bf16.msra.mxu0 0
        %1556 = vmatprep.subr.bf16.mxu0 0
        %1557 = vmatpush1.bf16.msra.mxu0 0
        %1558 = vmatprep.subr.bf16.mxu0 0
        %1559 = vmatpush1.bf16.msra.mxu0 0
        %1560 = vmatprep.subr.bf16.mxu0 0
        %1561 = vmatpush1.bf16.msra.mxu0 0
        %1562 = vmatprep.subr.bf16.mxu0 0
        %1563 = vmatpush1.bf16.msra.mxu0 0
        %1564 = vmatprep.mubr.bf16.mxu0 0
        %1565 = vmatmul.mubr.bf16.gmra.mrb[0].mxu0 %v1524
        %v1566 = vpop.f32.mrb[0].mxu0
        %v1567 = vadd.f32 0.0, %v1566
        %v1568 = vpop.f32.mrb[0].mxu0
        %v1569 = vpop.f32.mrb[0].mxu0
        %v1570 = vadd.f32 0.0, %v1569
        %v1571 = vpop.f32.mrb[0].mxu0
        %1572 = vmatprep.mubr.bf16.mxu0 0
        %1573 = vmatmul.mubr.bf16.gmra.mrb[0].mxu0 %v1527
        %v1574 = vpop.f32.mrb[0].mxu0
        %v1575 = vadd.f32 0.0, %v1574
        %v1576 = vpop.f32.mrb[0].mxu0
        %v1577 = vpop.f32.mrb[0].mxu0
        %v1578 = vadd.f32 0.0, %v1577
        %v1579 = vpop.f32.mrb[0].mxu0
        %1580 = vmatprep.mubr.bf16.mxu0 0
        %1581 = vmatmul.mubr.bf16.gmra.mrb[0].mxu0 %v1530
        %v1582 = vpop.f32.mrb[0].mxu0
        %v1583 = vadd.f32 0.0, %v1582
        %v1584 = vpop.f32.mrb[0].mxu0
        %v1585 = vpop.f32.mrb[0].mxu0
        %v1586 = vpop.f32.mrb[0].mxu0
        %1587 = vdwg.mxu0
        %v1588 = vpack.c.bf16 %v1570, %v1567
        %v1589 = vpack.c.bf16 %v1578, %v1575
        %v1590 = vpack.c.bf16 %v1583, %v1583
        %s1591 = scalar_lea.vmem [#allocation3], 64
        %v1592 = vld [vmem:[%s1591] sm:$0xf]
        %v1593 = vld [vmem:[%s1591 + $0x4] sm:$0xf]
        %v1594 = vld [vmem:[%s1591 + $0x8] sm:$0xf]
        %v1595 = vld [vmem:[%s1591 + $0xc] sm:$0xf]
        %v1596 = vld [vmem:[%s1591 + $0x10] sm:$0xf]
        %v1597 = vld [vmem:[%s1591 + $0x14] sm:$0xf]
        %v1598 = vld [vmem:[%s1591 + $0x18] sm:$0xf]
        %v1599 = vld [vmem:[%s1591 + $0x1c] sm:$0xf]
        %v1600 = vld [vmem:[%s1591 + $0x20] sm:$0xf]
        %v1601 = vld [vmem:[%s1591 + $0x24] sm:$0xf]
        %v1602 = vld [vmem:[%s1591 + $0x28] sm:$0xf]
        %v1603 = vld [vmem:[%s1591 + $0x2c] sm:$0xf]
        %v1604 = vld [vmem:[%s1591 + $0x30] sm:$0xf]
        %v1605 = vld [vmem:[%s1591 + $0x34] sm:$0xf]
        %v1606 = vld [vmem:[%s1591 + $0x38] sm:$0xf]
        %v1607 = vld [vmem:[%s1591 + $0x3c] sm:$0xf]
        %v1624 = vunpack.c.l.b16 %v1592
        %v1625 = vunpack.c.l.b16 %v1593
        %v1626 = vunpack.c.l.b16 %v1594
        %v1627 = vunpack.c.l.b16 %v1595
        %v1628 = vunpack.c.l.b16 %v1596
        %v1629 = vunpack.c.l.b16 %v1597
        %v1630 = vunpack.c.l.b16 %v1598
        %v1631 = vunpack.c.l.b16 %v1599
        %v1632 = vunpack.c.l.b16 %v1600
        %v1633 = vunpack.c.l.b16 %v1601
        %v1634 = vunpack.c.l.b16 %v1602
        %v1635 = vunpack.c.l.b16 %v1603
        %v1636 = vunpack.c.l.b16 %v1604
        %v1637 = vunpack.c.l.b16 %v1605
        %v1638 = vunpack.c.l.b16 %v1606
        %v1639 = vunpack.c.l.b16 %v1607
        %v1640 = vpack.c.b16 %v1625, %v1624
        %v1641 = vpack.c.b16 %v1627, %v1626
        %v1642 = vpack.c.b16 %v1629, %v1628
        %v1643 = vpack.c.b16 %v1631, %v1630
        %v1644 = vpack.c.b16 %v1633, %v1632
        %v1645 = vpack.c.b16 %v1635, %v1634
        %v1646 = vpack.c.b16 %v1637, %v1636
        %v1647 = vpack.c.b16 %v1639, %v1638
        %1656 = vmatprep.subr.bf16.mxu0 0
        %1657 = vmatpush1.bf16.msra.mxu0 %v1640
        %1658 = vmatprep.subr.bf16.mxu0 0
        %1659 = vmatpush1.bf16.msra.mxu0 %v1641
        %1660 = vmatprep.subr.bf16.mxu0 0
        %1661 = vmatpush1.bf16.msra.mxu0 %v1642
        %1662 = vmatprep.subr.bf16.mxu0 0
        %1663 = vmatpush1.bf16.msra.mxu0 %v1643
        %1664 = vmatprep.subr.bf16.mxu0 0
        %1665 = vmatpush1.bf16.msra.mxu0 %v1644
        %1666 = vmatprep.subr.bf16.mxu0 0
        %1667 = vmatpush1.bf16.msra.mxu0 %v1645
        %1668 = vmatprep.subr.bf16.mxu0 0
        %1669 = vmatpush1.bf16.msra.mxu0 %v1646
        %1670 = vmatprep.subr.bf16.mxu0 0
        %1671 = vmatpush1.bf16.msra.mxu0 %v1647
        %1672 = vmatprep.subr.bf16.mxu0 0
        %1673 = vmatpush1.bf16.msra.mxu0 0
        %1674 = vmatprep.subr.bf16.mxu0 0
        %1675 = vmatpush1.bf16.msra.mxu0 0
        %1676 = vmatprep.subr.bf16.mxu0 0
        %1677 = vmatpush1.bf16.msra.mxu0 0
        %1678 = vmatprep.subr.bf16.mxu0 0
        %1679 = vmatpush1.bf16.msra.mxu0 0
        %1680 = vmatprep.subr.bf16.mxu0 0
        %1681 = vmatpush1.bf16.msra.mxu0 0
        %1682 = vmatprep.subr.bf16.mxu0 0
        %1683 = vmatpush1.bf16.msra.mxu0 0
        %1684 = vmatprep.subr.bf16.mxu0 0
        %1685 = vmatpush1.bf16.msra.mxu0 0
        %1686 = vmatprep.subr.bf16.mxu0 0
        %1687 = vmatpush1.bf16.msra.mxu0 0
        %1688 = vmatprep.mubr.bf16.mxu0 0
        %1689 = vmatmul.mubr.bf16.gmra.mrb[0].mxu0 %v1588
        %v1690 = vpop.f32.mrb[0].mxu0
        %v1691 = vadd.f32 0.0, %v1690
        %v1692 = vpop.f32.mrb[0].mxu0
        %v1693 = vpop.f32.mrb[0].mxu0
        %v1694 = vadd.f32 0.0, %v1693
        %v1695 = vpop.f32.mrb[0].mxu0
        %1696 = vmatprep.mubr.bf16.mxu0 0
        %1697 = vmatmul.mubr.bf16.gmra.mrb[0].mxu0 %v1589
        %v1698 = vpop.f32.mrb[0].mxu0
        %v1699 = vadd.f32 0.0, %v1698
        %v1700 = vpop.f32.mrb[0].mxu0
        %v1701 = vpop.f32.mrb[0].mxu0
        %v1702 = vadd.f32 0.0, %v1701
        %v1703 = vpop.f32.mrb[0].mxu0
        %1704 = vmatprep.mubr.bf16.mxu0 0
        %1705 = vmatmul.mubr.bf16.gmra.mrb[0].mxu0 %v1590
        %v1706 = vpop.f32.mrb[0].mxu0
        %v1707 = vadd.f32 0.0, %v1706
        %v1708 = vpop.f32.mrb[0].mxu0
        %v1709 = vpop.f32.mrb[0].mxu0
        %v1710 = vpop.f32.mrb[0].mxu0
        %1711 = vdwg.mxu0
        %v1728 = vunpack.c.l.b16 %v1484
        %v1729 = vunpack.c.l.b16 %v1485
        %v1730 = vunpack.c.l.b16 %v1486
        %v1731 = vunpack.c.l.b16 %v1487
        %v1732 = vunpack.c.l.b16 %v1488
        %v1733 = vunpack.c.l.b16 %v1489
        %v1734 = vunpack.c.l.b16 %v1490
        %v1735 = vunpack.c.l.b16 %v1491
        %v1736 = vunpack.c.l.b16 %v1492
        %v1737 = vunpack.c.l.b16 %v1493
        %v1738 = vunpack.c.l.b16 %v1494
        %v1739 = vunpack.c.l.b16 %v1495
        %v1740 = vunpack.c.l.b16 %v1496
        %v1741 = vunpack.c.l.b16 %v1497
        %v1742 = vunpack.c.l.b16 %v1498
        %v1743 = vunpack.c.l.b16 %v1499
        %v1744 = vpack.c.b16 %v1729, %v1728
        %v1745 = vpack.c.b16 %v1731, %v1730
        %v1746 = vpack.c.b16 %v1733, %v1732
        %v1747 = vpack.c.b16 %v1735, %v1734
        %v1748 = vpack.c.b16 %v1737, %v1736
        %v1749 = vpack.c.b16 %v1739, %v1738
        %v1750 = vpack.c.b16 %v1741, %v1740
        %v1751 = vpack.c.b16 %v1743, %v1742
        %1760 = vmatprep.subr.bf16.mxu0 0
        %1761 = vmatpush1.bf16.msra.mxu0 %v1744
        %1762 = vmatprep.subr.bf16.mxu0 0
        %1763 = vmatpush1.bf16.msra.mxu0 %v1745
        %1764 = vmatprep.subr.bf16.mxu0 0
        %1765 = vmatpush1.bf16.msra.mxu0 %v1746
        %1766 = vmatprep.subr.bf16.mxu0 0
        %1767 = vmatpush1.bf16.msra.mxu0 %v1747
        %1768 = vmatprep.subr.bf16.mxu0 0
        %1769 = vmatpush1.bf16.msra.mxu0 %v1748
        %1770 = vmatprep.subr.bf16.mxu0 0
        %1771 = vmatpush1.bf16.msra.mxu0 %v1749
        %1772 = vmatprep.subr.bf16.mxu0 0
        %1773 = vmatpush1.bf16.msra.mxu0 %v1750
        %1774 = vmatprep.subr.bf16.mxu0 0
        %1775 = vmatpush1.bf16.msra.mxu0 %v1751
        %1776 = vmatprep.subr.bf16.mxu0 0
        %1777 = vmatpush1.bf16.msra.mxu0 0
        %1778 = vmatprep.subr.bf16.mxu0 0
        %1779 = vmatpush1.bf16.msra.mxu0 0
        %1780 = vmatprep.subr.bf16.mxu0 0
        %1781 = vmatpush1.bf16.msra.mxu0 0
        %1782 = vmatprep.subr.bf16.mxu0 0
        %1783 = vmatpush1.bf16.msra.mxu0 0
        %1784 = vmatprep.subr.bf16.mxu0 0
        %1785 = vmatpush1.bf16.msra.mxu0 0
        %1786 = vmatprep.subr.bf16.mxu0 0
        %1787 = vmatpush1.bf16.msra.mxu0 0
        %1788 = vmatprep.subr.bf16.mxu0 0
        %1789 = vmatpush1.bf16.msra.mxu0 0
        %1790 = vmatprep.subr.bf16.mxu0 0
        %1791 = vmatpush1.bf16.msra.mxu0 0
        %1792 = vmatprep.mubr.bf16.mxu0 0
        %1793 = vmatmul.mubr.bf16.gmra.mrb[0].mxu0 %v1481
        %v1794 = vpop.f32.mrb[0].mxu0
        %v1795 = vadd.f32 %v1691, %v1794
        %v1796 = vpop.f32.mrb[0].mxu0
        %v1797 = vpop.f32.mrb[0].mxu0
        %v1798 = vadd.f32 %v1694, %v1797
        %v1799 = vpop.f32.mrb[0].mxu0
        %1800 = vmatprep.mubr.bf16.mxu0 0
        %1801 = vmatmul.mubr.bf16.gmra.mrb[0].mxu0 %v1482
        %v1802 = vpop.f32.mrb[0].mxu0
        %v1803 = vadd.f32 %v1699, %v1802
        %v1804 = vpop.f32.mrb[0].mxu0
        %v1805 = vpop.f32.mrb[0].mxu0
        %v1806 = vadd.f32 %v1702, %v1805
        %v1807 = vpop.f32.mrb[0].mxu0
        %1808 = vmatprep.mubr.bf16.mxu0 0
        %1809 = vmatmul.mubr.bf16.gmra.mrb[0].mxu0 %v1483
        %v1810 = vpop.f32.mrb[0].mxu0
        %v1811 = vadd.f32 %v1707, %v1810
        %v1812 = vpop.f32.mrb[0].mxu0
        %v1813 = vpop.f32.mrb[0].mxu0
        %v1814 = vpop.f32.mrb[0].mxu0
        %1815 = vdwg.mxu0
        %v1816 = vadd.s32 %v1386, 2
        %v1817 = vadd.s32 %v1387, 2
        %v1818 = vadd.s32 %v1388, 2
        %v1819 = vadd.s32 %v1389, 2
        %v1820 = vadd.s32 %v1390, 2
        %vm1821 = vcmp.eq.s32.totalorder %v1380, %v1816
        %vm1822 = vcmp.eq.s32.totalorder %v1380, %v1817
        %vm1823 = vcmp.eq.s32.totalorder %v1380, %v1818
        %vm1824 = vcmp.eq.s32.totalorder %v1380, %v1819
        %vm1825 = vcmp.eq.s32.totalorder %v1380, %v1820
        %v1826 = vsel %vm1821, 1, 0
        %v1827 = vsel %vm1822, 1, 0
        %v1828 = vsel %vm1823, 1, 0
        %v1829 = vsel %vm1824, 1, 0
        %v1830 = vsel %vm1825, 1, 0
        %v1831 = vcvt.s32.f32 %v1826
        %v1832 = vcvt.s32.f32 %v1827
        %v1833 = vcvt.s32.f32 %v1828
        %v1834 = vcvt.s32.f32 %v1829
        %v1835 = vcvt.s32.f32 %v1830
        %v1836 = vpack.c.bf16 %v1832, %v1831
        %v1837 = vpack.c.bf16 %v1834, %v1833
        %v1838 = vpack.c.bf16 %v1835, %v1835
        %v1840 = vsel %vm1409, %v1836, 0
        %v1843 = vsel %vm1409, %v1837, 0
        %v1846 = vsel %vm1409, %v1838, 0
        %1848 = vmatprep.subr.bf16.mxu0 0
        %1849 = vmatpush1.bf16.msra.mxu0 %v1381
        %1850 = vmatprep.subr.bf16.mxu0 0
        %1851 = vmatpush1.bf16.msra.mxu0 %v1382
        %1852 = vmatprep.subr.bf16.mxu0 0
        %1853 = vmatpush1.bf16.msra.mxu0 %v1383
        %1854 = vmatprep.subr.bf16.mxu0 0
        %1855 = vmatpush1.bf16.msra.mxu0 %v1384
        %1856 = vmatprep.subr.bf16.mxu0 0
        %1857 = vmatpush1.bf16.msra.mxu0 %v1423
        %1858 = vmatprep.subr.bf16.mxu0 0
        %1859 = vmatpush1.bf16.msra.mxu0 0
        %1860 = vmatprep.subr.bf16.mxu0 0
        %1861 = vmatpush1.bf16.msra.mxu0 0
        %1862 = vmatprep.subr.bf16.mxu0 0
        %1863 = vmatpush1.bf16.msra.mxu0 0
        %1864 = vmatprep.subr.bf16.mxu0 0
        %1865 = vmatpush1.bf16.msra.mxu0 0
        %1866 = vmatprep.subr.bf16.mxu0 0
        %1867 = vmatpush1.bf16.msra.mxu0 0
        %1868 = vmatprep.subr.bf16.mxu0 0
        %1869 = vmatpush1.bf16.msra.mxu0 0
        %1870 = vmatprep.subr.bf16.mxu0 0
        %1871 = vmatpush1.bf16.msra.mxu0 0
        %1872 = vmatprep.subr.bf16.mxu0 0
        %1873 = vmatpush1.bf16.msra.mxu0 0
        %1874 = vmatprep.subr.bf16.mxu0 0
        %1875 = vmatpush1.bf16.msra.mxu0 0
        %1876 = vmatprep.subr.bf16.mxu0 0
        %1877 = vmatpush1.bf16.msra.mxu0 0
        %1878 = vmatprep.subr.bf16.mxu0 0
        %1879 = vmatpush1.bf16.msra.mxu0 0
        %1880 = vmatprep.mubr.bf16.mxu0 0
        %1881 = vmatmul.mubr.bf16.gmra.mrb[0].mxu0 %v1840
        %v1882 = vpop.f32.mrb[0].mxu0
        %v1883 = vadd.f32 0.0, %v1882
        %v1884 = vpop.f32.mrb[0].mxu0
        %v1885 = vpop.f32.mrb[0].mxu0
        %v1886 = vadd.f32 0.0, %v1885
        %v1887 = vpop.f32.mrb[0].mxu0
        %1888 = vmatprep.mubr.bf16.mxu0 0
        %1889 = vmatmul.mubr.bf16.gmra.mrb[0].mxu0 %v1843
        %v1890 = vpop.f32.mrb[0].mxu0
        %v1891 = vadd.f32 0.0, %v1890
        %v1892 = vpop.f32.mrb[0].mxu0
        %v1893 = vpop.f32.mrb[0].mxu0
        %v1894 = vadd.f32 0.0, %v1893
        %v1895 = vpop.f32.mrb[0].mxu0
        %1896 = vmatprep.mubr.bf16.mxu0 0
        %1897 = vmatmul.mubr.bf16.gmra.mrb[0].mxu0 %v1846
        %v1898 = vpop.f32.mrb[0].mxu0
        %v1899 = vadd.f32 0.0, %v1898
        %v1900 = vpop.f32.mrb[0].mxu0
        %v1901 = vpop.f32.mrb[0].mxu0
        %v1902 = vpop.f32.mrb[0].mxu0
        %1903 = vdwg.mxu0
        %v1904 = vpack.c.bf16 %v1886, %v1883
        %v1905 = vpack.c.bf16 %v1894, %v1891
        %v1906 = vpack.c.bf16 %v1899, %v1899
        %s1907 = scalar_lea.vmem [#allocation3], 128
        %v1908 = vld [vmem:[%s1907] sm:$0xf]
        %v1909 = vld [vmem:[%s1907 + $0x4] sm:$0xf]
        %v1910 = vld [vmem:[%s1907 + $0x8] sm:$0xf]
        %v1911 = vld [vmem:[%s1907 + $0xc] sm:$0xf]
        %v1912 = vld [vmem:[%s1907 + $0x10] sm:$0xf]
        %v1913 = vld [vmem:[%s1907 + $0x14] sm:$0xf]
        %v1914 = vld [vmem:[%s1907 + $0x18] sm:$0xf]
        %v1915 = vld [vmem:[%s1907 + $0x1c] sm:$0xf]
        %v1916 = vld [vmem:[%s1907 + $0x20] sm:$0xf]
        %v1917 = vld [vmem:[%s1907 + $0x24] sm:$0xf]
        %v1918 = vld [vmem:[%s1907 + $0x28] sm:$0xf]
        %v1919 = vld [vmem:[%s1907 + $0x2c] sm:$0xf]
        %v1920 = vld [vmem:[%s1907 + $0x30] sm:$0xf]
        %v1921 = vld [vmem:[%s1907 + $0x34] sm:$0xf]
        %v1922 = vld [vmem:[%s1907 + $0x38] sm:$0xf]
        %v1923 = vld [vmem:[%s1907 + $0x3c] sm:$0xf]
        %v1940 = vunpack.c.l.b16 %v1908
        %v1941 = vunpack.c.l.b16 %v1909
        %v1942 = vunpack.c.l.b16 %v1910
        %v1943 = vunpack.c.l.b16 %v1911
        %v1944 = vunpack.c.l.b16 %v1912
        %v1945 = vunpack.c.l.b16 %v1913
        %v1946 = vunpack.c.l.b16 %v1914
        %v1947 = vunpack.c.l.b16 %v1915
        %v1948 = vunpack.c.l.b16 %v1916
        %v1949 = vunpack.c.l.b16 %v1917
        %v1950 = vunpack.c.l.b16 %v1918
        %v1951 = vunpack.c.l.b16 %v1919
        %v1952 = vunpack.c.l.b16 %v1920
        %v1953 = vunpack.c.l.b16 %v1921
        %v1954 = vunpack.c.l.b16 %v1922
        %v1955 = vunpack.c.l.b16 %v1923
        %v1956 = vpack.c.b16 %v1941, %v1940
        %v1957 = vpack.c.b16 %v1943, %v1942
        %v1958 = vpack.c.b16 %v1945, %v1944
        %v1959 = vpack.c.b16 %v1947, %v1946
        %v1960 = vpack.c.b16 %v1949, %v1948
        %v1961 = vpack.c.b16 %v1951, %v1950
        %v1962 = vpack.c.b16 %v1953, %v1952
        %v1963 = vpack.c.b16 %v1955, %v1954
        %1972 = vmatprep.subr.bf16.mxu0 0
        %1973 = vmatpush1.bf16.msra.mxu0 %v1956
        %1974 = vmatprep.subr.bf16.mxu0 0
        %1975 = vmatpush1.bf16.msra.mxu0 %v1957
        %1976 = vmatprep.subr.bf16.mxu0 0
        %1977 = vmatpush1.bf16.msra.mxu0 %v1958
        %1978 = vmatprep.subr.bf16.mxu0 0
        %1979 = vmatpush1.bf16.msra.mxu0 %v1959
        %1980 = vmatprep.subr.bf16.mxu0 0
        %1981 = vmatpush1.bf16.msra.mxu0 %v1960
        %1982 = vmatprep.subr.bf16.mxu0 0
        %1983 = vmatpush1.bf16.msra.mxu0 %v1961
        %1984 = vmatprep.subr.bf16.mxu0 0
        %1985 = vmatpush1.bf16.msra.mxu0 %v1962
        %1986 = vmatprep.subr.bf16.mxu0 0
        %1987 = vmatpush1.bf16.msra.mxu0 %v1963
        %1988 = vmatprep.subr.bf16.mxu0 0
        %1989 = vmatpush1.bf16.msra.mxu0 0
        %1990 = vmatprep.subr.bf16.mxu0 0
        %1991 = vmatpush1.bf16.msra.mxu0 0
        %1992 = vmatprep.subr.bf16.mxu0 0
        %1993 = vmatpush1.bf16.msra.mxu0 0
        %1994 = vmatprep.subr.bf16.mxu0 0
        %1995 = vmatpush1.bf16.msra.mxu0 0
        %1996 = vmatprep.subr.bf16.mxu0 0
        %1997 = vmatpush1.bf16.msra.mxu0 0
        %1998 = vmatprep.subr.bf16.mxu0 0
        %1999 = vmatpush1.bf16.msra.mxu0 0
        %2000 = vmatprep.subr.bf16.mxu0 0
        %2001 = vmatpush1.bf16.msra.mxu0 0
        %2002 = vmatprep.subr.bf16.mxu0 0
        %2003 = vmatpush1.bf16.msra.mxu0 0
        %2004 = vmatprep.mubr.bf16.mxu0 0
        %2005 = vmatmul.mubr.bf16.gmra.mrb[0].mxu0 %v1904
        %v2006 = vpop.f32.mrb[0].mxu0
        %v2007 = vadd.f32 0.0, %v2006
        %v2008 = vpop.f32.mrb[0].mxu0
        %v2009 = vpop.f32.mrb[0].mxu0
        %v2010 = vadd.f32 0.0, %v2009
        %v2011 = vpop.f32.mrb[0].mxu0
        %2012 = vmatprep.mubr.bf16.mxu0 0
        %2013 = vmatmul.mubr.bf16.gmra.mrb[0].mxu0 %v1905
        %v2014 = vpop.f32.mrb[0].mxu0
        %v2015 = vadd.f32 0.0, %v2014
        %v2016 = vpop.f32.mrb[0].mxu0
        %v2017 = vpop.f32.mrb[0].mxu0
        %v2018 = vadd.f32 0.0, %v2017
        %v2019 = vpop.f32.mrb[0].mxu0
        %2020 = vmatprep.mubr.bf16.mxu0 0
        %2021 = vmatmul.mubr.bf16.gmra.mrb[0].mxu0 %v1906
        %v2022 = vpop.f32.mrb[0].mxu0
        %v2023 = vadd.f32 0.0, %v2022
        %v2024 = vpop.f32.mrb[0].mxu0
        %v2025 = vpop.f32.mrb[0].mxu0
        %v2026 = vpop.f32.mrb[0].mxu0
        %2027 = vdwg.mxu0
        %v2028 = vadd.f32 %v1795, %v2007
        %v2029 = vadd.f32 %v1798, %v2010
        %v2030 = vadd.f32 %v1803, %v2015
        %v2031 = vadd.f32 %v1806, %v2018
        %v2032 = vadd.f32 %v1811, %v2023
        %v2033 = vmul.f32 %v2028, 0.5
        %v2034 = vmul.f32 %v2029, 0.5
        %v2035 = vmul.f32 %v2030, 0.5
        %v2036 = vmul.f32 %v2031, 0.5
        %v2037 = vmul.f32 %v2032, 0.5
        %v2038 = vmul.f32 %v2028, 0.044715
        %v2039 = vmul.f32 %v2029, 0.044715
        %v2040 = vmul.f32 %v2030, 0.044715
        %v2041 = vmul.f32 %v2031, 0.044715
        %v2042 = vmul.f32 %v2032, 0.044715
        %v2043 = vmul.f32 %v2038, %v2028
        %v2044 = vmul.f32 %v2039, %v2029
        %v2045 = vmul.f32 %v2040, %v2030
        %v2046 = vmul.f32 %v2041, %v2031
        %v2047 = vmul.f32 %v2042, %v2032
        %v2048 = vmul.f32 %v2043, %v2028
        %v2049 = vmul.f32 %v2044, %v2029
        %v2050 = vmul.f32 %v2045, %v2030
        %v2051 = vmul.f32 %v2046, %v2031
        %v2052 = vmul.f32 %v2047, %v2032
        %v2053 = vadd.f32 %v2028, %v2048
        %v2054 = vadd.f32 %v2029, %v2049
        %v2055 = vadd.f32 %v2030, %v2050
        %v2056 = vadd.f32 %v2031, %v2051
        %v2057 = vadd.f32 %v2032, %v2052
        %v2058 = vmul.f32 %v2053, 0.7978846
        %v2059 = vmul.f32 %v2054, 0.7978846
        %v2060 = vmul.f32 %v2055, 0.7978846
        %v2061 = vmul.f32 %v2056, 0.7978846
        %v2062 = vmul.f32 %v2057, 0.7978846
        %v2063 = vtanh.pop %v2058
        %v2064 = vtanh.pop %v2059
        %v2065 = vtanh.pop %v2060
        %v2066 = vtanh.pop %v2061
        %v2067 = vtanh.pop %v2062
        %v2068 = vadd.f32 %v2063, 1.0
        %v2069 = vadd.f32 %v2064, 1.0
        %v2070 = vadd.f32 %v2065, 1.0
        %v2071 = vadd.f32 %v2066, 1.0
        %v2072 = vadd.f32 %v2067, 1.0
        %v2073 = vmul.f32 %v2033, %v2068
        %v2074 = vmul.f32 %v2034, %v2069
        %v2075 = vmul.f32 %v2035, %v2070
        %v2076 = vmul.f32 %v2036, %v2071
        %v2077 = vmul.f32 %v2037, %v2072
        %v2078 = vpack.c.bf16 %v2074, %v2073
        %v2079 = vpack.c.bf16 %v2076, %v2075
        %v2080 = vpack.c.bf16 %v2077, %v2077
        %vm2081 = vcmask 269312
        %v2082 = vsel %vm2081, %v1406, 0
        %v2084 = vsel 0, 4294967295, 65535
        %v2085 = vsel %vm1419, %v2084, 0
        %v2087 = vand.u32 %v2080, %v2085
        %2089 = vmatprep.subr.bf16.mxu0 0
        %2090 = vmatpush1.bf16.msra.mxu0 %v2078
        %2091 = vmatprep.subr.bf16.mxu0 0
        %2092 = vmatpush1.bf16.msra.mxu0 %v2079
        %2093 = vmatprep.subr.bf16.mxu0 0
        %2094 = vmatpush1.bf16.msra.mxu0 %v2087
        %2095 = vmatprep.subr.bf16.mxu0 0
        %2096 = vmatpush1.bf16.msra.mxu0 0
        %2097 = vmatprep.subr.bf16.mxu0 0
        %2098 = vmatpush1.bf16.msra.mxu0 0
        %2099 = vmatprep.subr.bf16.mxu0 0
        %2100 = vmatpush1.bf16.msra.mxu0 0
        %2101 = vmatprep.subr.bf16.mxu0 0
        %2102 = vmatpush1.bf16.msra.mxu0 0
        %2103 = vmatprep.subr.bf16.mxu0 0
        %2104 = vmatpush1.bf16.msra.mxu0 0
        %2105 = vmatprep.subr.bf16.mxu0 0
        %2106 = vmatpush1.bf16.msra.mxu0 0
        %2107 = vmatprep.subr.bf16.mxu0 0
        %2108 = vmatpush1.bf16.msra.mxu0 0
        %2109 = vmatprep.subr.bf16.mxu0 0
        %2110 = vmatpush1.bf16.msra.mxu0 0
        %2111 = vmatprep.subr.bf16.mxu0 0
        %2112 = vmatpush1.bf16.msra.mxu0 0
        %2113 = vmatprep.subr.bf16.mxu0 0
        %2114 = vmatpush1.bf16.msra.mxu0 0
        %2115 = vmatprep.subr.bf16.mxu0 0
        %2116 = vmatpush1.bf16.msra.mxu0 0
        %2117 = vmatprep.subr.bf16.mxu0 0
        %2118 = vmatpush1.bf16.msra.mxu0 0
        %2119 = vmatprep.subr.bf16.mxu0 0
        %2120 = vmatpush1.bf16.msra.mxu0 0
        %2121 = vmatprep.mubr.bf16.mxu0 0
        %2122 = vmatmul.mubr.bf16.gmra.mrb[0].mxu0 %v2082
        %v2123 = vpop.f32.mrb[0].mxu0
        %v2124 = vadd.f32 0.0, %v2123
        %v2125 = vpop.f32.mrb[0].mxu0
        %v2126 = vpop.f32.mrb[0].mxu0
        %v2127 = vadd.f32 0.0, %v2126
        %v2128 = vpop.f32.mrb[0].mxu0
        %2129 = vdwg.mxu0
        %v2130 = vpack.c.bf16 %v2127, %v2124
        %v2131 = vld [vmem:[#allocation5] sm:$0xf]
        %v2132 = vld [vmem:[#allocation5 + $0x4] sm:$0xf]
        %v2133 = vld [vmem:[#allocation5 + $0x8] sm:$0xf]
        %v2134 = vld [vmem:[#allocation5 + $0xc] sm:$0xf]
        %v2135 = vld [vmem:[#allocation5 + $0x10] sm:$0xf]
        %v2136 = vld [vmem:[#allocation5 + $0x14] sm:$0xf]
        %v2137 = vld [vmem:[#allocation5 + $0x18] sm:$0xf]
        %v2138 = vld [vmem:[#allocation5 + $0x1c] sm:$0xf]
        %v2139 = vld [vmem:[#allocation5 + $0x20] sm:$0xf]
        %v2140 = vld [vmem:[#allocation5 + $0x24] sm:$0xf]
        %v2141 = vld [vmem:[#allocation5 + $0x28] sm:$0xf]
        %v2142 = vld [vmem:[#allocation5 + $0x2c] sm:$0xf]
        %v2143 = vld [vmem:[#allocation5 + $0x30] sm:$0xf]
        %v2144 = vld [vmem:[#allocation5 + $0x34] sm:$0xf]
        %v2145 = vld [vmem:[#allocation5 + $0x38] sm:$0xf]
        %v2146 = vld [vmem:[#allocation5 + $0x3c] sm:$0xf]
        %v2147 = vsel %vm2081, %v1520, 0
        %2149 = vmatprep.subr.bf16.mxu0 0
        %2150 = vmatpush1.bf16.msra.mxu0 %v2078
        %2151 = vmatprep.subr.bf16.mxu0 0
        %2152 = vmatpush1.bf16.msra.mxu0 %v2079
        %2153 = vmatprep.subr.bf16.mxu0 0
        %2154 = vmatpush1.bf16.msra.mxu0 %v2087
        %2155 = vmatprep.subr.bf16.mxu0 0
        %2156 = vmatpush1.bf16.msra.mxu0 0
        %2157 = vmatprep.subr.bf16.mxu0 0
        %2158 = vmatpush1.bf16.msra.mxu0 0
        %2159 = vmatprep.subr.bf16.mxu0 0
        %2160 = vmatpush1.bf16.msra.mxu0 0
        %2161 = vmatprep.subr.bf16.mxu0 0
        %2162 = vmatpush1.bf16.msra.mxu0 0
        %2163 = vmatprep.subr.bf16.mxu0 0
        %2164 = vmatpush1.bf16.msra.mxu0 0
        %2165 = vmatprep.subr.bf16.mxu0 0
        %2166 = vmatpush1.bf16.msra.mxu0 0
        %2167 = vmatprep.subr.bf16.mxu0 0
        %2168 = vmatpush1.bf16.msra.mxu0 0
        %2169 = vmatprep.subr.bf16.mxu0 0
        %2170 = vmatpush1.bf16.msra.mxu0 0
        %2171 = vmatprep.subr.bf16.mxu0 0
        %2172 = vmatpush1.bf16.msra.mxu0 0
        %2173 = vmatprep.subr.bf16.mxu0 0
        %2174 = vmatpush1.bf16.msra.mxu0 0
        %2175 = vmatprep.subr.bf16.mxu0 0
        %2176 = vmatpush1.bf16.msra.mxu0 0
        %2177 = vmatprep.subr.bf16.mxu0 0
        %2178 = vmatpush1.bf16.msra.mxu0 0
        %2179 = vmatprep.subr.bf16.mxu0 0
        %2180 = vmatpush1.bf16.msra.mxu0 0
        %2181 = vmatprep.mubr.bf16.mxu0 0
        %2182 = vmatmul.mubr.bf16.gmra.mrb[0].mxu0 %v2147
        %v2183 = vpop.f32.mrb[0].mxu0
        %v2184 = vadd.f32 0.0, %v2183
        %v2185 = vpop.f32.mrb[0].mxu0
        %v2186 = vpop.f32.mrb[0].mxu0
        %v2187 = vadd.f32 0.0, %v2186
        %v2188 = vpop.f32.mrb[0].mxu0
        %2189 = vdwg.mxu0
        %v2190 = vpack.c.bf16 %v2187, %v2184
        %s2191 = scalar_lea.vmem [#allocation5], 64
        %v2192 = vld [vmem:[%s2191] sm:$0xf]
        %v2193 = vld [vmem:[%s2191 + $0x4] sm:$0xf]
        %v2194 = vld [vmem:[%s2191 + $0x8] sm:$0xf]
        %v2195 = vld [vmem:[%s2191 + $0xc] sm:$0xf]
        %v2196 = vld [vmem:[%s2191 + $0x10] sm:$0xf]
        %v2197 = vld [vmem:[%s2191 + $0x14] sm:$0xf]
        %v2198 = vld [vmem:[%s2191 + $0x18] sm:$0xf]
        %v2199 = vld [vmem:[%s2191 + $0x1c] sm:$0xf]
        %v2200 = vld [vmem:[%s2191 + $0x20] sm:$0xf]
        %v2201 = vld [vmem:[%s2191 + $0x24] sm:$0xf]
        %v2202 = vld [vmem:[%s2191 + $0x28] sm:$0xf]
        %v2203 = vld [vmem:[%s2191 + $0x2c] sm:$0xf]
        %v2204 = vld [vmem:[%s2191 + $0x30] sm:$0xf]
        %v2205 = vld [vmem:[%s2191 + $0x34] sm:$0xf]
        %v2206 = vld [vmem:[%s2191 + $0x38] sm:$0xf]
        %v2207 = vld [vmem:[%s2191 + $0x3c] sm:$0xf]
        %v2224 = vunpack.c.l.b16 %v2192
        %v2225 = vunpack.c.l.b16 %v2193
        %v2226 = vunpack.c.l.b16 %v2194
        %v2227 = vunpack.c.l.b16 %v2195
        %v2228 = vunpack.c.l.b16 %v2196
        %v2229 = vunpack.c.l.b16 %v2197
        %v2230 = vunpack.c.l.b16 %v2198
        %v2231 = vunpack.c.l.b16 %v2199
        %v2232 = vunpack.c.l.b16 %v2200
        %v2233 = vunpack.c.l.b16 %v2201
        %v2234 = vunpack.c.l.b16 %v2202
        %v2235 = vunpack.c.l.b16 %v2203
        %v2236 = vunpack.c.l.b16 %v2204
        %v2237 = vunpack.c.l.b16 %v2205
        %v2238 = vunpack.c.l.b16 %v2206
        %v2239 = vunpack.c.l.b16 %v2207
        %v2240 = vpack.c.b16 %v2225, %v2224
        %v2241 = vpack.c.b16 %v2227, %v2226
        %v2242 = vpack.c.b16 %v2229, %v2228
        %v2243 = vpack.c.b16 %v2231, %v2230
        %v2244 = vpack.c.b16 %v2233, %v2232
        %v2245 = vpack.c.b16 %v2235, %v2234
        %v2246 = vpack.c.b16 %v2237, %v2236
        %v2247 = vpack.c.b16 %v2239, %v2238
        %2256 = vmatprep.subr.bf16.mxu0 0
        %2257 = vmatpush1.bf16.msra.mxu0 %v2240
        %2258 = vmatprep.subr.bf16.mxu0 0
        %2259 = vmatpush1.bf16.msra.mxu0 %v2241
        %2260 = vmatprep.subr.bf16.mxu0 0
        %2261 = vmatpush1.bf16.msra.mxu0 %v2242
        %2262 = vmatprep.subr.bf16.mxu0 0
        %2263 = vmatpush1.bf16.msra.mxu0 %v2243
        %2264 = vmatprep.subr.bf16.mxu0 0
        %2265 = vmatpush1.bf16.msra.mxu0 %v2244
        %2266 = vmatprep.subr.bf16.mxu0 0
        %2267 = vmatpush1.bf16.msra.mxu0 %v2245
        %2268 = vmatprep.subr.bf16.mxu0 0
        %2269 = vmatpush1.bf16.msra.mxu0 %v2246
        %2270 = vmatprep.subr.bf16.mxu0 0
        %2271 = vmatpush1.bf16.msra.mxu0 %v2247
        %2272 = vmatprep.subr.bf16.mxu0 0
        %2273 = vmatpush1.bf16.msra.mxu0 0
        %2274 = vmatprep.subr.bf16.mxu0 0
        %2275 = vmatpush1.bf16.msra.mxu0 0
        %2276 = vmatprep.subr.bf16.mxu0 0
        %2277 = vmatpush1.bf16.msra.mxu0 0
        %2278 = vmatprep.subr.bf16.mxu0 0
        %2279 = vmatpush1.bf16.msra.mxu0 0
        %2280 = vmatprep.subr.bf16.mxu0 0
        %2281 = vmatpush1.bf16.msra.mxu0 0
        %2282 = vmatprep.subr.bf16.mxu0 0
        %2283 = vmatpush1.bf16.msra.mxu0 0
        %2284 = vmatprep.subr.bf16.mxu0 0
        %2285 = vmatpush1.bf16.msra.mxu0 0
        %2286 = vmatprep.subr.bf16.mxu0 0
        %2287 = vmatpush1.bf16.msra.mxu0 0
        %2288 = vmatprep.mubr.bf16.mxu0 0
        %2289 = vmatmul.mubr.bf16.gmra.mrb[0].mxu0 %v2190
        %v2290 = vpop.f32.mrb[0].mxu0
        %v2291 = vadd.f32 0.0, %v2290
        %v2292 = vpop.f32.mrb[0].mxu0
        %v2293 = vpop.f32.mrb[0].mxu0
        %v2294 = vadd.f32 0.0, %v2293
        %v2295 = vpop.f32.mrb[0].mxu0
        %2296 = vdwg.mxu0
        %v2313 = vunpack.c.l.b16 %v2131
        %v2314 = vunpack.c.l.b16 %v2132
        %v2315 = vunpack.c.l.b16 %v2133
        %v2316 = vunpack.c.l.b16 %v2134
        %v2317 = vunpack.c.l.b16 %v2135
        %v2318 = vunpack.c.l.b16 %v2136
        %v2319 = vunpack.c.l.b16 %v2137
        %v2320 = vunpack.c.l.b16 %v2138
        %v2321 = vunpack.c.l.b16 %v2139
        %v2322 = vunpack.c.l.b16 %v2140
        %v2323 = vunpack.c.l.b16 %v2141
        %v2324 = vunpack.c.l.b16 %v2142
        %v2325 = vunpack.c.l.b16 %v2143
        %v2326 = vunpack.c.l.b16 %v2144
        %v2327 = vunpack.c.l.b16 %v2145
        %v2328 = vunpack.c.l.b16 %v2146
        %v2329 = vpack.c.b16 %v2314, %v2313
        %v2330 = vpack.c.b16 %v2316, %v2315
        %v2331 = vpack.c.b16 %v2318, %v2317
        %v2332 = vpack.c.b16 %v2320, %v2319
        %v2333 = vpack.c.b16 %v2322, %v2321
        %v2334 = vpack.c.b16 %v2324, %v2323
        %v2335 = vpack.c.b16 %v2326, %v2325
        %v2336 = vpack.c.b16 %v2328, %v2327
        %2345 = vmatprep.subr.bf16.mxu0 0
        %2346 = vmatpush1.bf16.msra.mxu0 %v2329
        %2347 = vmatprep.subr.bf16.mxu0 0
        %2348 = vmatpush1.bf16.msra.mxu0 %v2330
        %2349 = vmatprep.subr.bf16.mxu0 0
        %2350 = vmatpush1.bf16.msra.mxu0 %v2331
        %2351 = vmatprep.subr.bf16.mxu0 0
        %2352 = vmatpush1.bf16.msra.mxu0 %v2332
        %2353 = vmatprep.subr.bf16.mxu0 0
        %2354 = vmatpush1.bf16.msra.mxu0 %v2333
        %2355 = vmatprep.subr.bf16.mxu0 0
        %2356 = vmatpush1.bf16.msra.mxu0 %v2334
        %2357 = vmatprep.subr.bf16.mxu0 0
        %2358 = vmatpush1.bf16.msra.mxu0 %v2335
        %2359 = vmatprep.subr.bf16.mxu0 0
        %2360 = vmatpush1.bf16.msra.mxu0 %v2336
        %2361 = vmatprep.subr.bf16.mxu0 0
        %2362 = vmatpush1.bf16.msra.mxu0 0
        %2363 = vmatprep.subr.bf16.mxu0 0
        %2364 = vmatpush1.bf16.msra.mxu0 0
        %2365 = vmatprep.subr.bf16.mxu0 0
        %2366 = vmatpush1.bf16.msra.mxu0 0
        %2367 = vmatprep.subr.bf16.mxu0 0
        %2368 = vmatpush1.bf16.msra.mxu0 0
        %2369 = vmatprep.subr.bf16.mxu0 0
        %2370 = vmatpush1.bf16.msra.mxu0 0
        %2371 = vmatprep.subr.bf16.mxu0 0
        %2372 = vmatpush1.bf16.msra.mxu0 0
        %2373 = vmatprep.subr.bf16.mxu0 0
        %2374 = vmatpush1.bf16.msra.mxu0 0
        %2375 = vmatprep.subr.bf16.mxu0 0
        %2376 = vmatpush1.bf16.msra.mxu0 0
        %2377 = vmatprep.mubr.bf16.mxu0 0
        %2378 = vmatmul.mubr.bf16.gmra.mrb[0].mxu0 %v2130
        %v2379 = vpop.f32.mrb[0].mxu0
        %v2380 = vadd.f32 %v2291, %v2379
        %v2381 = vpop.f32.mrb[0].mxu0
        %v2382 = vpop.f32.mrb[0].mxu0
        %v2383 = vadd.f32 %v2294, %v2382
        %v2384 = vpop.f32.mrb[0].mxu0
        %2385 = vdwg.mxu0
        %v2386 = vsel %vm2081, %v1836, 0
        %2388 = vmatprep.subr.bf16.mxu0 0
        %2389 = vmatpush1.bf16.msra.mxu0 %v2078
        %2390 = vmatprep.subr.bf16.mxu0 0
        %2391 = vmatpush1.bf16.msra.mxu0 %v2079
        %2392 = vmatprep.subr.bf16.mxu0 0
        %2393 = vmatpush1.bf16.msra.mxu0 %v2087
        %2394 = vmatprep.subr.bf16.mxu0 0
        %2395 = vmatpush1.bf16.msra.mxu0 0
        %2396 = vmatprep.subr.bf16.mxu0 0
        %2397 = vmatpush1.bf16.msra.mxu0 0
        %2398 = vmatprep.subr.bf16.mxu0 0
        %2399 = vmatpush1.bf16.msra.mxu0 0
        %2400 = vmatprep.subr.bf16.mxu0 0
        %2401 = vmatpush1.bf16.msra.mxu0 0
        %2402 = vmatprep.subr.bf16.mxu0 0
        %2403 = vmatpush1.bf16.msra.mxu0 0
        %2404 = vmatprep.subr.bf16.mxu0 0
        %2405 = vmatpush1.bf16.msra.mxu0 0
        %2406 = vmatprep.subr.bf16.mxu0 0
        %2407 = vmatpush1.bf16.msra.mxu0 0
        %2408 = vmatprep.subr.bf16.mxu0 0
        %2409 = vmatpush1.bf16.msra.mxu0 0
        %2410 = vmatprep.subr.bf16.mxu0 0
        %2411 = vmatpush1.bf16.msra.mxu0 0
        %2412 = vmatprep.subr.bf16.mxu0 0
        %2413 = vmatpush1.bf16.msra.mxu0 0
        %2414 = vmatprep.subr.bf16.mxu0 0
        %2415 = vmatpush1.bf16.msra.mxu0 0
        %2416 = vmatprep.subr.bf16.mxu0 0
        %2417 = vmatpush1.bf16.msra.mxu0 0
        %2418 = vmatprep.subr.bf16.mxu0 0
        %2419 = vmatpush1.bf16.msra.mxu0 0
        %2420 = vmatprep.mubr.bf16.mxu0 0
        %2421 = vmatmul.mubr.bf16.gmra.mrb[0].mxu0 %v2386
        %v2422 = vpop.f32.mrb[0].mxu0
        %v2423 = vadd.f32 0.0, %v2422
        %v2424 = vpop.f32.mrb[0].mxu0
        %v2425 = vpop.f32.mrb[0].mxu0
        %v2426 = vadd.f32 0.0, %v2425
        %v2427 = vpop.f32.mrb[0].mxu0
        %2428 = vdwg.mxu0
        %v2429 = vpack.c.bf16 %v2426, %v2423
        %s2430 = scalar_lea.vmem [#allocation5], 128
        %v2431 = vld [vmem:[%s2430] sm:$0xf]
        %v2432 = vld [vmem:[%s2430 + $0x4] sm:$0xf]
        %v2433 = vld [vmem:[%s2430 + $0x8] sm:$0xf]
        %v2434 = vld [vmem:[%s2430 + $0xc] sm:$0xf]
        %v2435 = vld [vmem:[%s2430 + $0x10] sm:$0xf]
        %v2436 = vld [vmem:[%s2430 + $0x14] sm:$0xf]
        %v2437 = vld [vmem:[%s2430 + $0x18] sm:$0xf]
        %v2438 = vld [vmem:[%s2430 + $0x1c] sm:$0xf]
        %v2439 = vld [vmem:[%s2430 + $0x20] sm:$0xf]
        %v2440 = vld [vmem:[%s2430 + $0x24] sm:$0xf]
        %v2441 = vld [vmem:[%s2430 + $0x28] sm:$0xf]
        %v2442 = vld [vmem:[%s2430 + $0x2c] sm:$0xf]
        %v2443 = vld [vmem:[%s2430 + $0x30] sm:$0xf]
        %v2444 = vld [vmem:[%s2430 + $0x34] sm:$0xf]
        %v2445 = vld [vmem:[%s2430 + $0x38] sm:$0xf]
        %v2446 = vld [vmem:[%s2430 + $0x3c] sm:$0xf]
        %v2463 = vunpack.c.l.b16 %v2431
        %v2464 = vunpack.c.l.b16 %v2432
        %v2465 = vunpack.c.l.b16 %v2433
        %v2466 = vunpack.c.l.b16 %v2434
        %v2467 = vunpack.c.l.b16 %v2435
        %v2468 = vunpack.c.l.b16 %v2436
        %v2469 = vunpack.c.l.b16 %v2437
        %v2470 = vunpack.c.l.b16 %v2438
        %v2471 = vunpack.c.l.b16 %v2439
        %v2472 = vunpack.c.l.b16 %v2440
        %v2473 = vunpack.c.l.b16 %v2441
        %v2474 = vunpack.c.l.b16 %v2442
        %v2475 = vunpack.c.l.b16 %v2443
        %v2476 = vunpack.c.l.b16 %v2444
        %v2477 = vunpack.c.l.b16 %v2445
        %v2478 = vunpack.c.l.b16 %v2446
        %v2479 = vpack.c.b16 %v2464, %v2463
        %v2480 = vpack.c.b16 %v2466, %v2465
        %v2481 = vpack.c.b16 %v2468, %v2467
        %v2482 = vpack.c.b16 %v2470, %v2469
        %v2483 = vpack.c.b16 %v2472, %v2471
        %v2484 = vpack.c.b16 %v2474, %v2473
        %v2485 = vpack.c.b16 %v2476, %v2475
        %v2486 = vpack.c.b16 %v2478, %v2477
        %2495 = vmatprep.subr.bf16.mxu0 0
        %2496 = vmatpush1.bf16.msra.mxu0 %v2479
        %2497 = vmatprep.subr.bf16.mxu0 0
        %2498 = vmatpush1.bf16.msra.mxu0 %v2480
        %2499 = vmatprep.subr.bf16.mxu0 0
        %2500 = vmatpush1.bf16.msra.mxu0 %v2481
        %2501 = vmatprep.subr.bf16.mxu0 0
        %2502 = vmatpush1.bf16.msra.mxu0 %v2482
        %2503 = vmatprep.subr.bf16.mxu0 0
        %2504 = vmatpush1.bf16.msra.mxu0 %v2483
        %2505 = vmatprep.subr.bf16.mxu0 0
        %2506 = vmatpush1.bf16.msra.mxu0 %v2484
        %2507 = vmatprep.subr.bf16.mxu0 0
        %2508 = vmatpush1.bf16.msra.mxu0 %v2485
        %2509 = vmatprep.subr.bf16.mxu0 0
        %2510 = vmatpush1.bf16.msra.mxu0 %v2486
        %2511 = vmatprep.subr.bf16.mxu0 0
        %2512 = vmatpush1.bf16.msra.mxu0 0
        %2513 = vmatprep.subr.bf16.mxu0 0
        %2514 = vmatpush1.bf16.msra.mxu0 0
        %2515 = vmatprep.subr.bf16.mxu0 0
        %2516 = vmatpush1.bf16.msra.mxu0 0
        %2517 = vmatprep.subr.bf16.mxu0 0
        %2518 = vmatpush1.bf16.msra.mxu0 0
        %2519 = vmatprep.subr.bf16.mxu0 0
        %2520 = vmatpush1.bf16.msra.mxu0 0
        %2521 = vmatprep.subr.bf16.mxu0 0
        %2522 = vmatpush1.bf16.msra.mxu0 0
        %2523 = vmatprep.subr.bf16.mxu0 0
        %2524 = vmatpush1.bf16.msra.mxu0 0
        %2525 = vmatprep.subr.bf16.mxu0 0
        %2526 = vmatpush1.bf16.msra.mxu0 0
        %2527 = vmatprep.mubr.bf16.mxu0 0
        %2528 = vmatmul.mubr.bf16.gmra.mrb[0].mxu0 %v2429
        %v2529 = vpop.f32.mrb[0].mxu0
        %v2530 = vadd.f32 0.0, %v2529
        %v2531 = vpop.f32.mrb[0].mxu0
        %v2532 = vpop.f32.mrb[0].mxu0
        %v2533 = vadd.f32 0.0, %v2532
        %v2534 = vpop.f32.mrb[0].mxu0
        %2535 = vdwg.mxu0
        %v2536 = vadd.f32 %v2380, %v2530
        %v2537 = vadd.f32 %v2383, %v2533
        %v2538 = vmul.f32 %v2536, 0.5
        %v2539 = vmul.f32 %v2537, 0.5
        %v2540 = vmul.f32 %v2536, 0.044715
        %v2541 = vmul.f32 %v2537, 0.044715
        %v2542 = vmul.f32 %v2540, %v2536
        %v2543 = vmul.f32 %v2541, %v2537
        %v2544 = vmul.f32 %v2542, %v2536
        %v2545 = vmul.f32 %v2543, %v2537
        %v2546 = vadd.f32 %v2536, %v2544
        %v2547 = vadd.f32 %v2537, %v2545
        %v2548 = vmul.f32 %v2546, 0.7978846
        %v2549 = vmul.f32 %v2547, 0.7978846
        %v2550 = vtanh.pop %v2548
        %v2551 = vtanh.pop %v2549
        %v2552 = vadd.f32 %v2550, 1.0
        %v2553 = vadd.f32 %v2551, 1.0
        %v2554 = vmul.f32 %v2538, %v2552
        %v2555 = vmul.f32 %v2539, %v2553
        %v2556 = vld [vmem:[%s6] sm:$0x1]
        %v2557 = vld [vmem:[%s7] sm:$0x1]
        %2558 = vadd.xlane.f32.xlu0 %v2554
        %v2559 = vpop.xlane.xlu0 %2558
        %2560 = vadd.xlane.f32.xlu0 %v2555
        %v2561 = vpop.xlane.xlu0 %2560
        %v2562 = vrcp.pop 128.0
        %v2563 = vmul.f32 %v2559, %v2562
        %v2564 = vmul.f32 %v2561, %v2562
        %v2565 = vsub.f32 %v2554, %v2563
        %v2566 = vsub.f32 %v2555, %v2564
        %v2567 = vmul.f32 %v2565, %v2565
        %v2568 = vmul.f32 %v2566, %v2566
        %2569 = vadd.xlane.f32.xlu0 %v2567
        %v2570 = vpop.xlane.xlu0 %2569
        %2571 = vadd.xlane.f32.xlu0 %v2568
        %v2572 = vpop.xlane.xlu0 %2571
        %v2573 = vmul.f32 %v2570, %v2562
        %v2574 = vmul.f32 %v2572, %v2562
        %v2575 = vadd.f32 %v2573, 1e-05
        %v2576 = vadd.f32 %v2574, 1e-05
        %v2577 = vrsqrt.pop %v2575
        %v2578 = vrsqrt.pop %v2576
        %v2579 = vmul.f32 %v2565, %v2577
        %v2580 = vmul.f32 %v2566, %v2578
        %v2582 = vlaneseq
        %v2583 = vshrl.u32 %v2582, 7
        %v2584 = vsub.s32 0, %v2583
        %v2585 = vrot.slane %v2556, %v2584
        %v2587 = vmul.f32 %v2579, %v2585
        %v2588 = vmul.f32 %v2580, %v2585
        %v2590 = vlaneseq
        %v2591 = vshrl.u32 %v2590, 7
        %v2592 = vsub.s32 0, %v2591
        %v2593 = vrot.slane %v2557, %v2592
        %v2595 = vadd.f32 %v2587, %v2593
        %v2596 = vadd.f32 %v2588, %v2593
        %v2597 = vpack.c.bf16 %v2596, %v2595
        %v2598 = vld [vmem:[%s8] sm:$0xf]
        %v2599 = vld [vmem:[%s8 + $0x4] sm:$0xf]
        %v2600 = vld [vmem:[%s8 + $0x8] sm:$0xf]
        %v2601 = vld [vmem:[%s8 + $0xc] sm:$0xf]
        %v2602 = vld [vmem:[%s8 + $0x10] sm:$0xf]
        %v2603 = vld [vmem:[%s8 + $0x14] sm:$0xf]
        %v2604 = vld [vmem:[%s8 + $0x18] sm:$0xf]
        %v2605 = vld [vmem:[%s8 + $0x1c] sm:$0xf]
        %v2606 = vld [vmem:[%s8 + $0x20] sm:$0xf]
        %v2607 = vld [vmem:[%s8 + $0x24] sm:$0xf]
        %v2608 = vld [vmem:[%s8 + $0x28] sm:$0xf]
        %v2609 = vld [vmem:[%s8 + $0x2c] sm:$0xf]
        %v2610 = vld [vmem:[%s8 + $0x30] sm:$0xf]
        %v2611 = vld [vmem:[%s8 + $0x34] sm:$0xf]
        %v2612 = vld [vmem:[%s8 + $0x38] sm:$0xf]
        %v2613 = vld [vmem:[%s8 + $0x3c] sm:$0xf]
        %v2614 = vld [vmem:[%s9] sm:$0x1]
        %v2616 = vlaneseq
        %v2617 = vshrl.u32 %v2616, 7
        %v2618 = vsub.s32 0, %v2617
        %v2619 = vrot.slane %v2614, %v2618
        %v2637 = vunpack.c.l.b16 %v2598
        %v2638 = vunpack.c.l.b16 %v2599
        %v2639 = vunpack.c.l.b16 %v2600
        %v2640 = vunpack.c.l.b16 %v2601
        %v2641 = vunpack.c.l.b16 %v2602
        %v2642 = vunpack.c.l.b16 %v2603
        %v2643 = vunpack.c.l.b16 %v2604
        %v2644 = vunpack.c.l.b16 %v2605
        %v2645 = vunpack.c.l.b16 %v2606
        %v2646 = vunpack.c.l.b16 %v2607
        %v2647 = vunpack.c.l.b16 %v2608
        %v2648 = vunpack.c.l.b16 %v2609
        %v2649 = vunpack.c.l.b16 %v2610
        %v2650 = vunpack.c.l.b16 %v2611
        %v2651 = vunpack.c.l.b16 %v2612
        %v2652 = vunpack.c.l.b16 %v2613
        %v2653 = vpack.c.b16 %v2638, %v2637
        %v2654 = vpack.c.b16 %v2640, %v2639
        %v2655 = vpack.c.b16 %v2642, %v2641
        %v2656 = vpack.c.b16 %v2644, %v2643
        %v2657 = vpack.c.b16 %v2646, %v2645
        %v2658 = vpack.c.b16 %v2648, %v2647
        %v2659 = vpack.c.b16 %v2650, %v2649
        %v2660 = vpack.c.b16 %v2652, %v2651
        %2669 = vmatprep.subr.bf16.mxu0 0
        %2670 = vmatpush1.bf16.msra.mxu0 %v2653
        %2671 = vmatprep.subr.bf16.mxu0 0
        %2672 = vmatpush1.bf16.msra.mxu0 %v2654
        %2673 = vmatprep.subr.bf16.mxu0 0
        %2674 = vmatpush1.bf16.msra.mxu0 %v2655
        %2675 = vmatprep.subr.bf16.mxu0 0
        %2676 = vmatpush1.bf16.msra.mxu0 %v2656
        %2677 = vmatprep.subr.bf16.mxu0 0
        %2678 = vmatpush1.bf16.msra.mxu0 %v2657
        %2679 = vmatprep.subr.bf16.mxu0 0
        %2680 = vmatpush1.bf16.msra.mxu0 %v2658
        %2681 = vmatprep.subr.bf16.mxu0 0
        %2682 = vmatpush1.bf16.msra.mxu0 %v2659
        %2683 = vmatprep.subr.bf16.mxu0 0
        %2684 = vmatpush1.bf16.msra.mxu0 %v2660
        %2685 = vmatprep.subr.bf16.mxu0 0
        %2686 = vmatpush1.bf16.msra.mxu0 0
        %2687 = vmatprep.subr.bf16.mxu0 0
        %2688 = vmatpush1.bf16.msra.mxu0 0
        %2689 = vmatprep.subr.bf16.mxu0 0
        %2690 = vmatpush1.bf16.msra.mxu0 0
        %2691 = vmatprep.subr.bf16.mxu0 0
        %2692 = vmatpush1.bf16.msra.mxu0 0
        %2693 = vmatprep.subr.bf16.mxu0 0
        %2694 = vmatpush1.bf16.msra.mxu0 0
        %2695 = vmatprep.subr.bf16.mxu0 0
        %2696 = vmatpush1.bf16.msra.mxu0 0
        %2697 = vmatprep.subr.bf16.mxu0 0
        %2698 = vmatpush1.bf16.msra.mxu0 0
        %2699 = vmatprep.subr.bf16.mxu0 0
        %2700 = vmatpush1.bf16.msra.mxu0 0
        %2701 = vmatprep.mubr.bf16.mxu0 0
        %2702 = vmatmul.mubr.bf16.gmra.mrb[0].mxu0 %v2597
        %v2703 = vpop.f32.mrb[0].mxu0
        %v2704 = vadd.f32 %v2619, %v2703
        %v2705 = vpop.f32.mrb[0].mxu0
        %v2706 = vpop.f32.mrb[0].mxu0
        %v2707 = vadd.f32 %v2619, %v2706
        %v2708 = vpop.f32.mrb[0].mxu0
        %2709 = vdwg.mxu0
        %v2710 = vld [vmem:[%s10] sm:$0x1]
        %v2711 = vld [vmem:[%s11] sm:$0x1]
        %2712 = vadd.xlane.f32.xlu0 %v2704
        %v2713 = vpop.xlane.xlu0 %2712
        %2714 = vadd.xlane.f32.xlu0 %v2707
        %v2715 = vpop.xlane.xlu0 %2714
        %v2716 = vmul.f32 %v2713, %v2562
        %v2717 = vmul.f32 %v2715, %v2562
        %v2718 = vsub.f32 %v2704, %v2716
        %v2719 = vsub.f32 %v2707, %v2717
        %v2720 = vmul.f32 %v2718, %v2718
        %v2721 = vmul.f32 %v2719, %v2719
        %2722 = vadd.xlane.f32.xlu0 %v2720
        %v2723 = vpop.xlane.xlu0 %2722
        %2724 = vadd.xlane.f32.xlu0 %v2721
        %v2725 = vpop.xlane.xlu0 %2724
        %v2726 = vmul.f32 %v2723, %v2562
        %v2727 = vmul.f32 %v2725, %v2562
        %v2728 = vadd.f32 %v2726, 1e-05
        %v2729 = vadd.f32 %v2727, 1e-05
        %v2730 = vrsqrt.pop %v2728
        %v2731 = vrsqrt.pop %v2729
        %v2732 = vmul.f32 %v2718, %v2730
        %v2733 = vmul.f32 %v2719, %v2731
        %v2735 = vlaneseq
        %v2736 = vshrl.u32 %v2735, 7
        %v2737 = vsub.s32 0, %v2736
        %v2738 = vrot.slane %v2710, %v2737
        %v2740 = vmul.f32 %v2732, %v2738
        %v2741 = vmul.f32 %v2733, %v2738
        %v2743 = vlaneseq
        %v2744 = vshrl.u32 %v2743, 7
        %v2745 = vsub.s32 0, %v2744
        %v2746 = vrot.slane %v2711, %v2745
        %v2748 = vadd.f32 %v2740, %v2746
        %v2749 = vadd.f32 %v2741, %v2746
        %v2750 = vpack.c.bf16 %v2749, %v2748
        %v2751 = vld [vmem:[#allocation7] sm:$0xff]
        %v2752 = vld [vmem:[#allocation7 + $0x8] sm:$0xf]
        %v2753 = vld [vmem:[#allocation7 + $0xc] sm:$0xff]
        %v2754 = vld [vmem:[#allocation7 + $0x14] sm:$0xf]
        %v2755 = vld [vmem:[#allocation7 + $0x18] sm:$0xff]
        %v2756 = vld [vmem:[#allocation7 + $0x20] sm:$0xf]
        %v2757 = vld [vmem:[#allocation7 + $0x24] sm:$0xff]
        %v2758 = vld [vmem:[#allocation7 + $0x2c] sm:$0xf]
        %v2759 = vld [vmem:[#allocation7 + $0x30] sm:$0xff]
        %v2760 = vld [vmem:[#allocation7 + $0x38] sm:$0xf]
        %v2761 = vld [vmem:[#allocation7 + $0x3c] sm:$0xff]
        %v2762 = vld [vmem:[#allocation7 + $0x44] sm:$0xf]
        %v2763 = vld [vmem:[#allocation7 + $0x48] sm:$0xff]
        %v2764 = vld [vmem:[#allocation7 + $0x50] sm:$0xf]
        %v2765 = vld [vmem:[#allocation7 + $0x54] sm:$0xff]
        %v2766 = vld [vmem:[#allocation7 + $0x5c] sm:$0xf]
        %v2767 = vld [vmem:[#allocation7 + $0x60] sm:$0xff]
        %v2768 = vld [vmem:[#allocation7 + $0x68] sm:$0xf]
        %v2769 = vld [vmem:[#allocation7 + $0x6c] sm:$0xff]
        %v2770 = vld [vmem:[#allocation7 + $0x74] sm:$0xf]
        %v2771 = vld [vmem:[#allocation7 + $0x78] sm:$0xff]
        %v2772 = vld [vmem:[#allocation7 + $0x80] sm:$0xf]
        %v2773 = vld [vmem:[#allocation7 + $0x84] sm:$0xff]
        %v2774 = vld [vmem:[#allocation7 + $0x8c] sm:$0xf]
        %v2775 = vld [vmem:[#allocation7 + $0x90] sm:$0xff]
        %v2776 = vld [vmem:[#allocation7 + $0x98] sm:$0xf]
        %v2777 = vld [vmem:[#allocation7 + $0x9c] sm:$0xff]
        %v2778 = vld [vmem:[#allocation7 + $0xa4] sm:$0xf]
        %v2779 = vld [vmem:[#allocation7 + $0xa8] sm:$0xff]
        %v2780 = vld [vmem:[#allocation7 + $0xb0] sm:$0xf]
        %v2781 = vld [vmem:[#allocation7 + $0xb4] sm:$0xff]
        %v2782 = vld [vmem:[#allocation7 + $0xbc] sm:$0xf]
        %v2783 = vld [vmem:[%s13] sm:$0x7]
        %v2785 = vlaneseq
        %v2786 = vshrl.u32 %v2785, 7
        %v2787 = vsub.s32 0, %v2786
        %v2788 = vrot.slane %v2783, %v2787
        %v2789 = vlaneseq
        %v2790 = vshrl.u32 %v2789, 7
        %v2791 = vsub.s32 1, %v2790
        %v2792 = vrot.slane %v2783, %v2791
        %v2793 = vlaneseq
        %v2794 = vshrl.u32 %v2793, 7
        %v2795 = vsub.s32 2, %v2794
        %v2796 = vrot.slane %v2783, %v2795
        %v2832 = vunpack.c.l.b16 %v2751
        %v2833 = vunpack.c.h.b16 %v2751
        %v2834 = vunpack.c.l.b16 %v2752
        %v2835 = vunpack.c.l.b16 %v2753
        %v2836 = vunpack.c.h.b16 %v2753
        %v2837 = vunpack.c.l.b16 %v2754
        %v2838 = vunpack.c.l.b16 %v2755
        %v2839 = vunpack.c.h.b16 %v2755
        %v2840 = vunpack.c.l.b16 %v2756
        %v2841 = vunpack.c.l.b16 %v2757
        %v2842 = vunpack.c.h.b16 %v2757
        %v2843 = vunpack.c.l.b16 %v2758
        %v2844 = vunpack.c.l.b16 %v2759
        %v2845 = vunpack.c.h.b16 %v2759
        %v2846 = vunpack.c.l.b16 %v2760
        %v2847 = vunpack.c.l.b16 %v2761
        %v2848 = vunpack.c.h.b16 %v2761
        %v2849 = vunpack.c.l.b16 %v2762
        %v2850 = vunpack.c.l.b16 %v2763
        %v2851 = vunpack.c.h.b16 %v2763
        %v2852 = vunpack.c.l.b16 %v2764
        %v2853 = vunpack.c.l.b16 %v2765
        %v2854 = vunpack.c.h.b16 %v2765
        %v2855 = vunpack.c.l.b16 %v2766
        %v2856 = vunpack.c.l.b16 %v2767
        %v2857 = vunpack.c.h.b16 %v2767
        %v2858 = vunpack.c.l.b16 %v2768
        %v2859 = vunpack.c.l.b16 %v2769
        %v2860 = vunpack.c.h.b16 %v2769
        %v2861 = vunpack.c.l.b16 %v2770
        %v2862 = vunpack.c.l.b16 %v2771
        %v2863 = vunpack.c.h.b16 %v2771
        %v2864 = vunpack.c.l.b16 %v2772
        %v2865 = vunpack.c.l.b16 %v2773
        %v2866 = vunpack.c.h.b16 %v2773
        %v2867 = vunpack.c.l.b16 %v2774
        %v2868 = vunpack.c.l.b16 %v2775
        %v2869 = vunpack.c.h.b16 %v2775
        %v2870 = vunpack.c.l.b16 %v2776
        %v2871 = vunpack.c.l.b16 %v2777
        %v2872 = vunpack.c.h.b16 %v2777
        %v2873 = vunpack.c.l.b16 %v2778
        %v2874 = vunpack.c.l.b16 %v2779
        %v2875 = vunpack.c.h.b16 %v2779
        %v2876 = vunpack.c.l.b16 %v2780
        %v2877 = vunpack.c.l.b16 %v2781
        %v2878 = vunpack.c.h.b16 %v2781
        %v2879 = vunpack.c.l.b16 %v2782
        %v2880 = vpack.c.b16 %v2835, %v2832
        %v2881 = vpack.c.b16 %v2836, %v2833
        %v2882 = vpack.c.b16 %v2837, %v2834
        %v2883 = vpack.c.b16 %v2841, %v2838
        %v2884 = vpack.c.b16 %v2842, %v2839
        %v2885 = vpack.c.b16 %v2843, %v2840
        %v2886 = vpack.c.b16 %v2847, %v2844
        %v2887 = vpack.c.b16 %v2848, %v2845
        %v2888 = vpack.c.b16 %v2849, %v2846
        %v2889 = vpack.c.b16 %v2853, %v2850
        %v2890 = vpack.c.b16 %v2854, %v2851
        %v2891 = vpack.c.b16 %v2855, %v2852
        %v2892 = vpack.c.b16 %v2859, %v2856
        %v2893 = vpack.c.b16 %v2860, %v2857
        %v2894 = vpack.c.b16 %v2861, %v2858
        %v2895 = vpack.c.b16 %v2865, %v2862
        %v2896 = vpack.c.b16 %v2866, %v2863
        %v2897 = vpack.c.b16 %v2867, %v2864
        %v2898 = vpack.c.b16 %v2871, %v2868
        %v2899 = vpack.c.b16 %v2872, %v2869
        %v2900 = vpack.c.b16 %v2873, %v2870
        %v2901 = vpack.c.b16 %v2877, %v2874
        %v2902 = vpack.c.b16 %v2878, %v2875
        %v2903 = vpack.c.b16 %v2879, %v2876
        %2928 = vmatprep.subr.bf16.mxu0 %v2881
        %2929 = vmatpush1.bf16.msra.mxu0 %v2880
        %2930 = vmatprep.subr.bf16.mxu0 %v2884
        %2931 = vmatpush1.bf16.msra.mxu0 %v2883
        %2932 = vmatprep.subr.bf16.mxu0 %v2887
        %2933 = vmatpush1.bf16.msra.mxu0 %v2886
        %2934 = vmatprep.subr.bf16.mxu0 %v2890
        %2935 = vmatpush1.bf16.msra.mxu0 %v2889
        %2936 = vmatprep.subr.bf16.mxu0 %v2893
        %2937 = vmatpush1.bf16.msra.mxu0 %v2892
        %2938 = vmatprep.subr.bf16.mxu0 %v2896
        %2939 = vmatpush1.bf16.msra.mxu0 %v2895
        %2940 = vmatprep.subr.bf16.mxu0 %v2899
        %2941 = vmatpush1.bf16.msra.mxu0 %v2898
        %2942 = vmatprep.subr.bf16.mxu0 %v2902
        %2943 = vmatpush1.bf16.msra.mxu0 %v2901
        %2944 = vmatprep.subr.bf16.mxu0 0
        %2945 = vmatpush1.bf16.msra.mxu0 0
        %2946 = vmatprep.subr.bf16.mxu0 0
        %2947 = vmatpush1.bf16.msra.mxu0 0
        %2948 = vmatprep.subr.bf16.mxu0 0
        %2949 = vmatpush1.bf16.msra.mxu0 0
        %2950 = vmatprep.subr.bf16.mxu0 0
        %2951 = vmatpush1.bf16.msra.mxu0 0
        %2952 = vmatprep.subr.bf16.mxu0 0
        %2953 = vmatpush1.bf16.msra.mxu0 0
        %2954 = vmatprep.subr.bf16.mxu0 0
        %2955 = vmatpush1.bf16.msra.mxu0 0
        %2956 = vmatprep.subr.bf16.mxu0 0
        %2957 = vmatpush1.bf16.msra.mxu0 0
        %2958 = vmatprep.subr.bf16.mxu0 0
        %2959 = vmatpush1.bf16.msra.mxu0 0
        %2960 = vmatprep.mubr.bf16.mxu0 0
        %2961 = vmatmul.mubr.bf16.gmra.mrb[0].mxu0 %v2750
        %v2962 = vpop.f32.mrb[0].mxu0
        %v2963 = vadd.f32 %v2788, %v2962
        %v2964 = vpop.f32.mrb[0].mxu0
        %v2965 = vadd.f32 %v2792, %v2964
        %v2966 = vpop.f32.mrb[0].mxu0
        %v2967 = vadd.f32 %v2788, %v2966
        %v2968 = vpop.f32.mrb[0].mxu0
        %v2969 = vadd.f32 %v2792, %v2968
        %2970 = vdwg.mxu0
        %2971 = vmatprep.subr.bf16.mxu0 0
        %2972 = vmatpush1.bf16.msra.mxu0 %v2882
        %2973 = vmatprep.subr.bf16.mxu0 0
        %2974 = vmatpush1.bf16.msra.mxu0 %v2885
        %2975 = vmatprep.subr.bf16.mxu0 0
        %2976 = vmatpush1.bf16.msra.mxu0 %v2888
        %2977 = vmatprep.subr.bf16.mxu0 0
        %2978 = vmatpush1.bf16.msra.mxu0 %v2891
        %2979 = vmatprep.subr.bf16.mxu0 0
        %2980 = vmatpush1.bf16.msra.mxu0 %v2894
        %2981 = vmatprep.subr.bf16.mxu0 0
        %2982 = vmatpush1.bf16.msra.mxu0 %v2897
        %2983 = vmatprep.subr.bf16.mxu0 0
        %2984 = vmatpush1.bf16.msra.mxu0 %v2900
        %2985 = vmatprep.subr.bf16.mxu0 0
        %2986 = vmatpush1.bf16.msra.mxu0 %v2903
        %2987 = vmatprep.subr.bf16.mxu0 0
        %2988 = vmatpush1.bf16.msra.mxu0 0
        %2989 = vmatprep.subr.bf16.mxu0 0
        %2990 = vmatpush1.bf16.msra.mxu0 0
        %2991 = vmatprep.subr.bf16.mxu0 0
        %2992 = vmatpush1.bf16.msra.mxu0 0
        %2993 = vmatprep.subr.bf16.mxu0 0
        %2994 = vmatpush1.bf16.msra.mxu0 0
        %2995 = vmatprep.subr.bf16.mxu0 0
        %2996 = vmatpush1.bf16.msra.mxu0 0
        %2997 = vmatprep.subr.bf16.mxu0 0
        %2998 = vmatpush1.bf16.msra.mxu0 0
        %2999 = vmatprep.subr.bf16.mxu0 0
        %3000 = vmatpush1.bf16.msra.mxu0 0
        %3001 = vmatprep.subr.bf16.mxu0 0
        %3002 = vmatpush1.bf16.msra.mxu0 0
        %3003 = vmatprep.mubr.bf16.mxu0 0
        %3004 = vmatmul.mubr.bf16.gmra.mrb[0].mxu0 %v2750
        %v3005 = vpop.f32.mrb[0].mxu0
        %v3006 = vadd.f32 %v2796, %v3005
        %v3007 = vpop.f32.mrb[0].mxu0
        %v3008 = vpop.f32.mrb[0].mxu0
        %v3009 = vadd.f32 %v2796, %v3008
        %v3010 = vpop.f32.mrb[0].mxu0
        %3011 = vdwg.mxu0
        %v3012 = vpack.c.bf16 %v2967, %v2963
        %v3013 = vpack.c.bf16 %v2969, %v2965
        %v3014 = vpack.c.bf16 %v3009, %v3006
        %vm3015 = vcmask 261120
        %v3017 = vsel %vm3015, %v3012, 0
        %v3020 = vsel %vm3015, %v3013, 0
        %3022 = vmatprep.subr.bf16.mxu0 0
        %3023 = vmatpush1.bf16.xpose.msra.mxu0 %v3020
        %3024 = vmatprep.subr.bf16.mxu0 0
        %3025 = vmatpush1.bf16.xpose.msra.mxu0 0
        %3026 = vmatprep.subr.bf16.mxu0 0
        %3027 = vmatpush1.bf16.xpose.msra.mxu0 0
        %3028 = vmatprep.subr.bf16.mxu0 0
        %3029 = vmatpush1.bf16.xpose.msra.mxu0 0
        %3030 = vmatprep.subr.bf16.mxu0 0
        %3031 = vmatpush1.bf16.xpose.msra.mxu0 0
        %3032 = vmatprep.subr.bf16.mxu0 0
        %3033 = vmatpush1.bf16.xpose.msra.mxu0 0
        %3034 = vmatprep.subr.bf16.mxu0 0
        %3035 = vmatpush1.bf16.xpose.msra.mxu0 0
        %3036 = vmatprep.subr.bf16.mxu0 0
        %3037 = vmatpush1.bf16.xpose.msra.mxu0 0
        %3038 = vmatprep.subr.bf16.mxu0 0
        %3039 = vmatpush1.bf16.xpose.msra.mxu0 0
        %3040 = vmatprep.subr.bf16.mxu0 0
        %3041 = vmatpush1.bf16.xpose.msra.mxu0 0
        %3042 = vmatprep.subr.bf16.mxu0 0
        %3043 = vmatpush1.bf16.xpose.msra.mxu0 0
        %3044 = vmatprep.subr.bf16.mxu0 0
        %3045 = vmatpush1.bf16.xpose.msra.mxu0 0
        %3046 = vmatprep.subr.bf16.mxu0 0
        %3047 = vmatpush1.bf16.xpose.msra.mxu0 0
        %3048 = vmatprep.subr.bf16.mxu0 0
        %3049 = vmatpush1.bf16.xpose.msra.mxu0 0
        %3050 = vmatprep.subr.bf16.mxu0 0
        %3051 = vmatpush1.bf16.xpose.msra.mxu0 0
        %3052 = vmatprep.subr.bf16.mxu0 0
        %3053 = vmatpush1.bf16.xpose.msra.mxu0 0
        %3054 = vmatprep.mubr.bf16.mxu0 0
        %3055 = vmatmul.mubr.bf16.gmra.mrb[0].mxu0 %v3017
        %v3056 = vpop.f32.mrb[0].mxu0
        %v3057 = vadd.f32 0.0, %v3056
        %v3058 = vpop.f32.mrb[0].mxu0
        %v3059 = vpop.f32.mrb[0].mxu0
        %v3060 = vadd.f32 0.0, %v3059
        %v3061 = vpop.f32.mrb[0].mxu0
        %3062 = vdwg.mxu0
        %vm3063 = vcmask 130048
        %v3064 = vsel %vm3063, %v3057, -inf
        %3065 = vmax.xlane.f32.xlu0 %v3064
        %v3066 = vpop.xlane.xlu0 %3065
        %v3067 = vsel %vm3063, %v3060, -inf
        %3068 = vmax.xlane.f32.xlu0 %v3067
        %v3069 = vpop.xlane.xlu0 %3068
        %v3070 = vsub.f32 %v3057, %v3066
        %v3071 = vsub.f32 %v3060, %v3069
        %v3072 = vmul.f32 %v3070, 1.442695
        %v3073 = vpow.pop %v3072
        %v3074 = vmul.f32 %v3071, 1.442695
        %v3075 = vpow.pop %v3074
        %v3076 = vsel %vm3063, %v3073, 0.0
        %3077 = vadd.xlane.f32.xlu0 %v3076
        %v3078 = vpop.xlane.xlu0 %3077
        %v3079 = vsel %vm3063, %v3075, 0.0
        %3080 = vadd.xlane.f32.xlu0 %v3079
        %v3081 = vpop.xlane.xlu0 %3080
        %v3082 = vrcp.pop %v3078
        %v3083 = vmul.f32 %v3073, %v3082
        %v3084 = vrcp.pop %v3081
        %v3085 = vmul.f32 %v3075, %v3084
        %v3086 = vpack.c.bf16 %v3085, %v3083
        %v3088 = vsel %vm3063, %v3086, 0
        %3090 = vmatprep.subr.bf16.mxu0 0
        %3091 = vmatpush1.bf16.msra.mxu0 %v3014
        %3092 = vmatprep.subr.bf16.mxu0 0
        %3093 = vmatpush1.bf16.msra.mxu0 0
        %3094 = vmatprep.subr.bf16.mxu0 0
        %3095 = vmatpush1.bf16.msra.mxu0 0
        %3096 = vmatprep.subr.bf16.mxu0 0
        %3097 = vmatpush1.bf16.msra.mxu0 0
        %3098 = vmatprep.subr.bf16.mxu0 0
        %3099 = vmatpush1.bf16.msra.mxu0 0
        %3100 = vmatprep.subr.bf16.mxu0 0
        %3101 = vmatpush1.bf16.msra.mxu0 0
        %3102 = vmatprep.subr.bf16.mxu0 0
        %3103 = vmatpush1.bf16.msra.mxu0 0
        %3104 = vmatprep.subr.bf16.mxu0 0
        %3105 = vmatpush1.bf16.msra.mxu0 0
        %3106 = vmatprep.subr.bf16.mxu0 0
        %3107 = vmatpush1.bf16.msra.mxu0 0
        %3108 = vmatprep.subr.bf16.mxu0 0
        %3109 = vmatpush1.bf16.msra.mxu0 0
        %3110 = vmatprep.subr.bf16.mxu0 0
        %3111 = vmatpush1.bf16.msra.mxu0 0
        %3112 = vmatprep.subr.bf16.mxu0 0
        %3113 = vmatpush1.bf16.msra.mxu0 0
        %3114 = vmatprep.subr.bf16.mxu0 0
        %3115 = vmatpush1.bf16.msra.mxu0 0
        %3116 = vmatprep.subr.bf16.mxu0 0
        %3117 = vmatpush1.bf16.msra.mxu0 0
        %3118 = vmatprep.subr.bf16.mxu0 0
        %3119 = vmatpush1.bf16.msra.mxu0 0
        %3120 = vmatprep.subr.bf16.mxu0 0
        %3121 = vmatpush1.bf16.msra.mxu0 0
        %3122 = vmatprep.mubr.bf16.mxu0 0
        %3123 = vmatmul.mubr.bf16.gmra.mrb[0].mxu0 %v3088
        %v3124 = vpop.f32.mrb[0].mxu0
        %v3125 = vadd.f32 0.0, %v3124
        %v3126 = vpop.f32.mrb[0].mxu0
        %v3127 = vpop.f32.mrb[0].mxu0
        %v3128 = vadd.f32 0.0, %v3127
        %v3129 = vpop.f32.mrb[0].mxu0
        %3130 = vdwg.mxu0
        %3131 = vst.msk [vmem:[#allocation2] sm:$0xff] %vm3015, %v3125
        %3132 = vst.msk [vmem:[#allocation2 + $0x8] sm:$0xff] %vm3015, %v3128
        %3134 = vrot.lane.b32.xlu0 %v3012, 96
        %v3135 = vpop.permute.xlu0 %3134
        %3137 = vrot.lane.b32.xlu0 %v3013, 96
        %v3138 = vpop.permute.xlu0 %3137
        %v3140 = vsel %vm3015, %v3135, 0
        %v3143 = vsel %vm3015, %v3138, 0
        %3145 = vmatprep.subr.bf16.mxu0 0
        %3146 = vmatpush1.bf16.xpose.msra.mxu0 %v3143
        %3147 = vmatprep.subr.bf16.mxu0 0
        %3148 = vmatpush1.bf16.xpose.msra.mxu0 0
        %3149 = vmatprep.subr.bf16.mxu0 0
        %3150 = vmatpush1.bf16.xpose.msra.mxu0 0
        %3151 = vmatprep.subr.bf16.mxu0 0
        %3152 = vmatpush1.bf16.xpose.msra.mxu0 0
        %3153 = vmatprep.subr.bf16.mxu0 0
        %3154 = vmatpush1.bf16.xpose.msra.mxu0 0
        %3155 = vmatprep.subr.bf16.mxu0 0
        %3156 = vmatpush1.bf16.xpose.msra.mxu0 0
        %3157 = vmatprep.subr.bf16.mxu0 0
        %3158 = vmatpush1.bf16.xpose.msra.mxu0 0
        %3159 = vmatprep.subr.bf16.mxu0 0
        %3160 = vmatpush1.bf16.xpose.msra.mxu0 0
        %3161 = vmatprep.subr.bf16.mxu0 0
        %3162 = vmatpush1.bf16.xpose.msra.mxu0 0
        %3163 = vmatprep.subr.bf16.mxu0 0
        %3164 = vmatpush1.bf16.xpose.msra.mxu0 0
        %3165 = vmatprep.subr.bf16.mxu0 0
        %3166 = vmatpush1.bf16.xpose.msra.mxu0 0
        %3167 = vmatprep.subr.bf16.mxu0 0
        %3168 = vmatpush1.bf16.xpose.msra.mxu0 0
        %3169 = vmatprep.subr.bf16.mxu0 0
        %3170 = vmatpush1.bf16.xpose.msra.mxu0 0
        %3171 = vmatprep.subr.bf16.mxu0 0
        %3172 = vmatpush1.bf16.xpose.msra.mxu0 0
        %3173 = vmatprep.subr.bf16.mxu0 0
        %3174 = vmatpush1.bf16.xpose.msra.mxu0 0
        %3175 = vmatprep.subr.bf16.mxu0 0
        %3176 = vmatpush1.bf16.xpose.msra.mxu0 0
        %3177 = vmatprep.mubr.bf16.mxu0 0
        %3178 = vmatmul.mubr.bf16.gmra.mrb[0].mxu0 %v3140
        %v3179 = vpop.f32.mrb[0].mxu0
        %v3180 = vadd.f32 0.0, %v3179
        %v3181 = vpop.f32.mrb[0].mxu0
        %v3182 = vpop.f32.mrb[0].mxu0
        %v3183 = vadd.f32 0.0, %v3182
        %v3184 = vpop.f32.mrb[0].mxu0
        %3185 = vdwg.mxu0
        %v3186 = vsel %vm3063, %v3180, -inf
        %3187 = vmax.xlane.f32.xlu0 %v3186
        %v3188 = vpop.xlane.xlu0 %3187
        %v3189 = vsel %vm3063, %v3183, -inf
        %3190 = vmax.xlane.f32.xlu0 %v3189
        %v3191 = vpop.xlane.xlu0 %3190
        %v3192 = vsub.f32 %v3180, %v3188
        %v3193 = vsub.f32 %v3183, %v3191
        %v3194 = vmul.f32 %v3192, 1.442695
        %v3195 = vpow.pop %v3194
        %v3196 = vmul.f32 %v3193, 1.442695
        %v3197 = vpow.pop %v3196
        %v3198 = vsel %vm3063, %v3195, 0.0
        %3199 = vadd.xlane.f32.xlu0 %v3198
        %v3200 = vpop.xlane.xlu0 %3199
        %v3201 = vsel %vm3063, %v3197, 0.0
        %3202 = vadd.xlane.f32.xlu0 %v3201
        %v3203 = vpop.xlane.xlu0 %3202
        %v3204 = vrcp.pop %v3200
        %v3205 = vmul.f32 %v3195, %v3204
        %v3206 = vrcp.pop %v3203
        %v3207 = vmul.f32 %v3197, %v3206
        %v3208 = vpack.c.bf16 %v3207, %v3205
        %3210 = vrot.lane.b32.xlu0 %v3014, 96
        %v3211 = vpop.permute.xlu0 %3210
        %v3214 = vsel %vm3063, %v3208, 0
        %3216 = vmatprep.subr.bf16.mxu0 0
        %3217 = vmatpush1.bf16.msra.mxu0 %v3211
        %3218 = vmatprep.subr.bf16.mxu0 0
        %3219 = vmatpush1.bf16.msra.mxu0 0
        %3220 = vmatprep.subr.bf16.mxu0 0
        %3221 = vmatpush1.bf16.msra.mxu0 0
        %3222 = vmatprep.subr.bf16.mxu0 0
        %3223 = vmatpush1.bf16.msra.mxu0 0
        %3224 = vmatprep.subr.bf16.mxu0 0
        %3225 = vmatpush1.bf16.msra.mxu0 0
        %3226 = vmatprep.subr.bf16.mxu0 0
        %3227 = vmatpush1.bf16.msra.mxu0 0
        %3228 = vmatprep.subr.bf16.mxu0 0
        %3229 = vmatpush1.bf16.msra.mxu0 0
        %3230 = vmatprep.subr.bf16.mxu0 0
        %3231 = vmatpush1.bf16.msra.mxu0 0
        %3232 = vmatprep.subr.bf16.mxu0 0
        %3233 = vmatpush1.bf16.msra.mxu0 0
        %3234 = vmatprep.subr.bf16.mxu0 0
        %3235 = vmatpush1.bf16.msra.mxu0 0
        %3236 = vmatprep.subr.bf16.mxu0 0
        %3237 = vmatpush1.bf16.msra.mxu0 0
        %3238 = vmatprep.subr.bf16.mxu0 0
        %3239 = vmatpush1.bf16.msra.mxu0 0
        %3240 = vmatprep.subr.bf16.mxu0 0
        %3241 = vmatpush1.bf16.msra.mxu0 0
        %3242 = vmatprep.subr.bf16.mxu0 0
        %3243 = vmatpush1.bf16.msra.mxu0 0
        %3244 = vmatprep.subr.bf16.mxu0 0
        %3245 = vmatpush1.bf16.msra.mxu0 0
        %3246 = vmatprep.subr.bf16.mxu0 0
        %3247 = vmatpush1.bf16.msra.mxu0 0
        %3248 = vmatprep.mubr.bf16.mxu0 0
        %3249 = vmatmul.mubr.bf16.gmra.mrb[0].mxu0 %v3214
        %v3250 = vpop.f32.mrb[0].mxu0
        %v3251 = vadd.f32 0.0, %v3250
        %v3252 = vpop.f32.mrb[0].mxu0
        %v3253 = vpop.f32.mrb[0].mxu0
        %v3254 = vadd.f32 0.0, %v3253
        %v3255 = vpop.f32.mrb[0].mxu0
        %3256 = vdwg.mxu0
        %3259 = vrot.lane.b32.xlu0 %v3251, 32
        %v3260 = vpop.permute.xlu0 %3259
        %3261 = vrot.lane.b32.xlu0 %v3254, 32
        %v3262 = vpop.permute.xlu0 %3261
        %vm3265 = vcmask 523520
        %3266 = vst.msk [vmem:[#allocation2] sm:$0xff] %vm3265, %v3260
        %3267 = vst.msk [vmem:[#allocation2 + $0x8] sm:$0xff] %vm3265, %v3262
        %3268 = vrot.lane.b32.xlu0 %v3012, 64
        %v3269 = vpop.permute.xlu0 %3268
        %3270 = vrot.lane.b32.xlu0 %v3013, 64
        %v3271 = vpop.permute.xlu0 %3270
        %v3273 = vsel %vm3015, %v3269, 0
        %v3276 = vsel %vm3015, %v3271, 0
        %3278 = vmatprep.subr.bf16.mxu0 0
        %3279 = vmatpush1.bf16.xpose.msra.mxu0 %v3276
        %3280 = vmatprep.subr.bf16.mxu0 0
        %3281 = vmatpush1.bf16.xpose.msra.mxu0 0
        %3282 = vmatprep.subr.bf16.mxu0 0
        %3283 = vmatpush1.bf16.xpose.msra.mxu0 0
        %3284 = vmatprep.subr.bf16.mxu0 0
        %3285 = vmatpush1.bf16.xpose.msra.mxu0 0
        %3286 = vmatprep.subr.bf16.mxu0 0
        %3287 = vmatpush1.bf16.xpose.msra.mxu0 0
        %3288 = vmatprep.subr.bf16.mxu0 0
        %3289 = vmatpush1.bf16.xpose.msra.mxu0 0
        %3290 = vmatprep.subr.bf16.mxu0 0
        %3291 = vmatpush1.bf16.xpose.msra.mxu0 0
        %3292 = vmatprep.subr.bf16.mxu0 0
        %3293 = vmatpush1.bf16.xpose.msra.mxu0 0
        %3294 = vmatprep.subr.bf16.mxu0 0
        %3295 = vmatpush1.bf16.xpose.msra.mxu0 0
        %3296 = vmatprep.subr.bf16.mxu0 0
        %3297 = vmatpush1.bf16.xpose.msra.mxu0 0
        %3298 = vmatprep.subr.bf16.mxu0 0
        %3299 = vmatpush1.bf16.xpose.msra.mxu0 0
        %3300 = vmatprep.subr.bf16.mxu0 0
        %3301 = vmatpush1.bf16.xpose.msra.mxu0 0
        %3302 = vmatprep.subr.bf16.mxu0 0
        %3303 = vmatpush1.bf16.xpose.msra.mxu0 0
        %3304 = vmatprep.subr.bf16.mxu0 0
        %3305 = vmatpush1.bf16.xpose.msra.mxu0 0
        %3306 = vmatprep.subr.bf16.mxu0 0
        %3307 = vmatpush1.bf16.xpose.msra.mxu0 0
        %3308 = vmatprep.subr.bf16.mxu0 0
        %3309 = vmatpush1.bf16.xpose.msra.mxu0 0
        %3310 = vmatprep.mubr.bf16.mxu0 0
        %3311 = vmatmul.mubr.bf16.gmra.mrb[0].mxu0 %v3273
        %v3312 = vpop.f32.mrb[0].mxu0
        %v3313 = vadd.f32 0.0, %v3312
        %v3314 = vpop.f32.mrb[0].mxu0
        %v3315 = vpop.f32.mrb[0].mxu0
        %v3316 = vadd.f32 0.0, %v3315
        %v3317 = vpop.f32.mrb[0].mxu0
        %3318 = vdwg.mxu0
        %v3319 = vsel %vm3063, %v3313, -inf
        %3320 = vmax.xlane.f32.xlu0 %v3319
        %v3321 = vpop.xlane.xlu0 %3320
        %v3322 = vsel %vm3063, %v3316, -inf
        %3323 = vmax.xlane.f32.xlu0 %v3322
        %v3324 = vpop.xlane.xlu0 %3323
        %v3325 = vsub.f32 %v3313, %v3321
        %v3326 = vsub.f32 %v3316, %v3324
        %v3327 = vmul.f32 %v3325, 1.442695
        %v3328 = vpow.pop %v3327
        %v3329 = vmul.f32 %v3326, 1.442695
        %v3330 = vpow.pop %v3329
        %v3331 = vsel %vm3063, %v3328, 0.0
        %3332 = vadd.xlane.f32.xlu0 %v3331
        %v3333 = vpop.xlane.xlu0 %3332
        %v3334 = vsel %vm3063, %v3330, 0.0
        %3335 = vadd.xlane.f32.xlu0 %v3334
        %v3336 = vpop.xlane.xlu0 %3335
        %v3337 = vrcp.pop %v3333
        %v3338 = vmul.f32 %v3328, %v3337
        %v3339 = vrcp.pop %v3336
        %v3340 = vmul.f32 %v3330, %v3339
        %v3341 = vpack.c.bf16 %v3340, %v3338
        %3342 = vrot.lane.b32.xlu0 %v3014, 64
        %v3343 = vpop.permute.xlu0 %3342
        %v3346 = vsel %vm3063, %v3341, 0
        %3348 = vmatprep.subr.bf16.mxu0 0
        %3349 = vmatpush1.bf16.msra.mxu0 %v3343
        %3350 = vmatprep.subr.bf16.mxu0 0
        %3351 = vmatpush1.bf16.msra.mxu0 0
        %3352 = vmatprep.subr.bf16.mxu0 0
        %3353 = vmatpush1.bf16.msra.mxu0 0
        %3354 = vmatprep.subr.bf16.mxu0 0
        %3355 = vmatpush1.bf16.msra.mxu0 0
        %3356 = vmatprep.subr.bf16.mxu0 0
        %3357 = vmatpush1.bf16.msra.mxu0 0
        %3358 = vmatprep.subr.bf16.mxu0 0
        %3359 = vmatpush1.bf16.msra.mxu0 0
        %3360 = vmatprep.subr.bf16.mxu0 0
        %3361 = vmatpush1.bf16.msra.mxu0 0
        %3362 = vmatprep.subr.bf16.mxu0 0
        %3363 = vmatpush1.bf16.msra.mxu0 0
        %3364 = vmatprep.subr.bf16.mxu0 0
        %3365 = vmatpush1.bf16.msra.mxu0 0
        %3366 = vmatprep.subr.bf16.mxu0 0
        %3367 = vmatpush1.bf16.msra.mxu0 0
        %3368 = vmatprep.subr.bf16.mxu0 0
        %3369 = vmatpush1.bf16.msra.mxu0 0
        %3370 = vmatprep.subr.bf16.mxu0 0
        %3371 = vmatpush1.bf16.msra.mxu0 0
        %3372 = vmatprep.subr.bf16.mxu0 0
        %3373 = vmatpush1.bf16.msra.mxu0 0
        %3374 = vmatprep.subr.bf16.mxu0 0
        %3375 = vmatpush1.bf16.msra.mxu0 0
        %3376 = vmatprep.subr.bf16.mxu0 0
        %3377 = vmatpush1.bf16.msra.mxu0 0
        %3378 = vmatprep.subr.bf16.mxu0 0
        %3379 = vmatpush1.bf16.msra.mxu0 0
        %3380 = vmatprep.mubr.bf16.mxu0 0
        %3381 = vmatmul.mubr.bf16.gmra.mrb[0].mxu0 %v3346
        %v3382 = vpop.f32.mrb[0].mxu0
        %v3383 = vadd.f32 0.0, %v3382
        %v3384 = vpop.f32.mrb[0].mxu0
        %v3385 = vpop.f32.mrb[0].mxu0
        %v3386 = vadd.f32 0.0, %v3385
        %v3387 = vpop.f32.mrb[0].mxu0
        %3388 = vdwg.mxu0
        %3391 = vrot.lane.b32.xlu0 %v3383, 64
        %v3392 = vpop.permute.xlu0 %3391
        %3393 = vrot.lane.b32.xlu0 %v3386, 64
        %v3394 = vpop.permute.xlu0 %3393
        %vm3397 = vcmask 785920
        %3398 = vst.msk [vmem:[#allocation2] sm:$0xff] %vm3397, %v3392
        %3399 = vst.msk [vmem:[#allocation2 + $0x8] sm:$0xff] %vm3397, %v3394
        %3400 = vrot.lane.b32.xlu0 %v3012, 32
        %v3401 = vpop.permute.xlu0 %3400
        %3402 = vrot.lane.b32.xlu0 %v3013, 32
        %v3403 = vpop.permute.xlu0 %3402
        %v3405 = vsel %vm3015, %v3401, 0
        %v3408 = vsel %vm3015, %v3403, 0
        %3410 = vmatprep.subr.bf16.mxu0 0
        %3411 = vmatpush1.bf16.xpose.msra.mxu0 %v3408
        %3412 = vmatprep.subr.bf16.mxu0 0
        %3413 = vmatpush1.bf16.xpose.msra.mxu0 0
        %3414 = vmatprep.subr.bf16.mxu0 0
        %3415 = vmatpush1.bf16.xpose.msra.mxu0 0
        %3416 = vmatprep.subr.bf16.mxu0 0
        %3417 = vmatpush1.bf16.xpose.msra.mxu0 0
        %3418 = vmatprep.subr.bf16.mxu0 0
        %3419 = vmatpush1.bf16.xpose.msra.mxu0 0
        %3420 = vmatprep.subr.bf16.mxu0 0
        %3421 = vmatpush1.bf16.xpose.msra.mxu0 0
        %3422 = vmatprep.subr.bf16.mxu0 0
        %3423 = vmatpush1.bf16.xpose.msra.mxu0 0
        %3424 = vmatprep.subr.bf16.mxu0 0
        %3425 = vmatpush1.bf16.xpose.msra.mxu0 0
        %3426 = vmatprep.subr.bf16.mxu0 0
        %3427 = vmatpush1.bf16.xpose.msra.mxu0 0
        %3428 = vmatprep.subr.bf16.mxu0 0
        %3429 = vmatpush1.bf16.xpose.msra.mxu0 0
        %3430 = vmatprep.subr.bf16.mxu0 0
        %3431 = vmatpush1.bf16.xpose.msra.mxu0 0
        %3432 = vmatprep.subr.bf16.mxu0 0
        %3433 = vmatpush1.bf16.xpose.msra.mxu0 0
        %3434 = vmatprep.subr.bf16.mxu0 0
        %3435 = vmatpush1.bf16.xpose.msra.mxu0 0
        %3436 = vmatprep.subr.bf16.mxu0 0
        %3437 = vmatpush1.bf16.xpose.msra.mxu0 0
        %3438 = vmatprep.subr.bf16.mxu0 0
        %3439 = vmatpush1.bf16.xpose.msra.mxu0 0
        %3440 = vmatprep.subr.bf16.mxu0 0
        %3441 = vmatpush1.bf16.xpose.msra.mxu0 0
        %3442 = vmatprep.mubr.bf16.mxu0 0
        %3443 = vmatmul.mubr.bf16.gmra.mrb[0].mxu0 %v3405
        %v3444 = vpop.f32.mrb[0].mxu0
        %v3445 = vadd.f32 0.0, %v3444
        %v3446 = vpop.f32.mrb[0].mxu0
        %v3447 = vpop.f32.mrb[0].mxu0
        %v3448 = vadd.f32 0.0, %v3447
        %v3449 = vpop.f32.mrb[0].mxu0
        %3450 = vdwg.mxu0
        %v3451 = vsel %vm3063, %v3445, -inf
        %3452 = vmax.xlane.f32.xlu0 %v3451
        %v3453 = vpop.xlane.xlu0 %3452
        %v3454 = vsel %vm3063, %v3448, -inf
        %3455 = vmax.xlane.f32.xlu0 %v3454
        %v3456 = vpop.xlane.xlu0 %3455
        %v3457 = vsub.f32 %v3445, %v3453
        %v3458 = vsub.f32 %v3448, %v3456
        %v3459 = vmul.f32 %v3457, 1.442695
        %v3460 = vpow.pop %v3459
        %v3461 = vmul.f32 %v3458, 1.442695
        %v3462 = vpow.pop %v3461
        %v3463 = vsel %vm3063, %v3460, 0.0
        %3464 = vadd.xlane.f32.xlu0 %v3463
        %v3465 = vpop.xlane.xlu0 %3464
        %v3466 = vsel %vm3063, %v3462, 0.0
        %3467 = vadd.xlane.f32.xlu0 %v3466
        %v3468 = vpop.xlane.xlu0 %3467
        %v3469 = vrcp.pop %v3465
        %v3470 = vmul.f32 %v3460, %v3469
        %v3471 = vrcp.pop %v3468
        %v3472 = vmul.f32 %v3462, %v3471
        %v3473 = vpack.c.bf16 %v3472, %v3470
        %3474 = vrot.lane.b32.xlu0 %v3014, 32
        %v3475 = vpop.permute.xlu0 %3474
        %v3478 = vsel %vm3063, %v3473, 0
        %3480 = vmatprep.subr.bf16.mxu0 0
        %3481 = vmatpush1.bf16.msra.mxu0 %v3475
        %3482 = vmatprep.subr.bf16.mxu0 0
        %3483 = vmatpush1.bf16.msra.mxu0 0
        %3484 = vmatprep.subr.bf16.mxu0 0
        %3485 = vmatpush1.bf16.msra.mxu0 0
        %3486 = vmatprep.subr.bf16.mxu0 0
        %3487 = vmatpush1.bf16.msra.mxu0 0
        %3488 = vmatprep.subr.bf16.mxu0 0
        %3489 = vmatpush1.bf16.msra.mxu0 0
        %3490 = vmatprep.subr.bf16.mxu0 0
        %3491 = vmatpush1.bf16.msra.mxu0 0
        %3492 = vmatprep.subr.bf16.mxu0 0
        %3493 = vmatpush1.bf16.msra.mxu0 0
        %3494 = vmatprep.subr.bf16.mxu0 0
        %3495 = vmatpush1.bf16.msra.mxu0 0
        %3496 = vmatprep.subr.bf16.mxu0 0
        %3497 = vmatpush1.bf16.msra.mxu0 0
        %3498 = vmatprep.subr.bf16.mxu0 0
        %3499 = vmatpush1.bf16.msra.mxu0 0
        %3500 = vmatprep.subr.bf16.mxu0 0
        %3501 = vmatpush1.bf16.msra.mxu0 0
        %3502 = vmatprep.subr.bf16.mxu0 0
        %3503 = vmatpush1.bf16.msra.mxu0 0
        %3504 = vmatprep.subr.bf16.mxu0 0
        %3505 = vmatpush1.bf16.msra.mxu0 0
        %3506 = vmatprep.subr.bf16.mxu0 0
        %3507 = vmatpush1.bf16.msra.mxu0 0
        %3508 = vmatprep.subr.bf16.mxu0 0
        %3509 = vmatpush1.bf16.msra.mxu0 0
        %3510 = vmatprep.subr.bf16.mxu0 0
        %3511 = vmatpush1.bf16.msra.mxu0 0
        %3512 = vmatprep.mubr.bf16.mxu0 0
        %3513 = vmatmul.mubr.bf16.gmra.mrb[0].mxu0 %v3478
        %v3514 = vpop.f32.mrb[0].mxu0
        %v3515 = vadd.f32 0.0, %v3514
        %v3516 = vpop.f32.mrb[0].mxu0
        %v3517 = vpop.f32.mrb[0].mxu0
        %v3518 = vadd.f32 0.0, %v3517
        %v3519 = vpop.f32.mrb[0].mxu0
        %3520 = vdwg.mxu0
        %3523 = vrot.lane.b32.xlu0 %v3515, 96
        %v3524 = vpop.permute.xlu0 %3523
        %3525 = vrot.lane.b32.xlu0 %v3518, 96
        %v3526 = vpop.permute.xlu0 %3525
        %vm3529 = vcmask 1048320
        %3530 = vst.msk [vmem:[#allocation2] sm:$0xff] %vm3529, %v3524
        %3531 = vst.msk [vmem:[#allocation2 + $0x8] sm:$0xff] %vm3529, %v3526
        %v3532 = vld [vmem:[#allocation2] sm:$0xff]
        %v3533 = vld [vmem:[#allocation2 + $0x8] sm:$0xff]
        %v3534 = vpack.c.bf16 %v3533, %v3532
        %v3535 = vld [vmem:[%s14] sm:$0xf]
        %v3536 = vld [vmem:[%s14 + $0x4] sm:$0xf]
        %v3537 = vld [vmem:[%s14 + $0x8] sm:$0xf]
        %v3538 = vld [vmem:[%s14 + $0xc] sm:$0xf]
        %v3539 = vld [vmem:[%s14 + $0x10] sm:$0xf]
        %v3540 = vld [vmem:[%s14 + $0x14] sm:$0xf]
        %v3541 = vld [vmem:[%s14 + $0x18] sm:$0xf]
        %v3542 = vld [vmem:[%s14 + $0x1c] sm:$0xf]
        %v3543 = vld [vmem:[%s14 + $0x20] sm:$0xf]
        %v3544 = vld [vmem:[%s14 + $0x24] sm:$0xf]
        %v3545 = vld [vmem:[%s14 + $0x28] sm:$0xf]
        %v3546 = vld [vmem:[%s14 + $0x2c] sm:$0xf]
        %v3547 = vld [vmem:[%s14 + $0x30] sm:$0xf]
        %v3548 = vld [vmem:[%s14 + $0x34] sm:$0xf]
        %v3549 = vld [vmem:[%s14 + $0x38] sm:$0xf]
        %v3550 = vld [vmem:[%s14 + $0x3c] sm:$0xf]
        %v3551 = vld [vmem:[%s15] sm:$0x1]
        %v3553 = vlaneseq
        %v3554 = vshrl.u32 %v3553, 7
        %v3555 = vsub.s32 0, %v3554
        %v3556 = vrot.slane %v3551, %v3555
        %v3574 = vunpack.c.l.b16 %v3535
        %v3575 = vunpack.c.l.b16 %v3536
        %v3576 = vunpack.c.l.b16 %v3537
        %v3577 = vunpack.c.l.b16 %v3538
        %v3578 = vunpack.c.l.b16 %v3539
        %v3579 = vunpack.c.l.b16 %v3540
        %v3580 = vunpack.c.l.b16 %v3541
        %v3581 = vunpack.c.l.b16 %v3542
        %v3582 = vunpack.c.l.b16 %v3543
        %v3583 = vunpack.c.l.b16 %v3544
        %v3584 = vunpack.c.l.b16 %v3545
        %v3585 = vunpack.c.l.b16 %v3546
        %v3586 = vunpack.c.l.b16 %v3547
        %v3587 = vunpack.c.l.b16 %v3548
        %v3588 = vunpack.c.l.b16 %v3549
        %v3589 = vunpack.c.l.b16 %v3550
        %v3590 = vpack.c.b16 %v3575, %v3574
        %v3591 = vpack.c.b16 %v3577, %v3576
        %v3592 = vpack.c.b16 %v3579, %v3578
        %v3593 = vpack.c.b16 %v3581, %v3580
        %v3594 = vpack.c.b16 %v3583, %v3582
        %v3595 = vpack.c.b16 %v3585, %v3584
        %v3596 = vpack.c.b16 %v3587, %v3586
        %v3597 = vpack.c.b16 %v3589, %v3588
        %3606 = vmatprep.subr.bf16.mxu0 0
        %3607 = vmatpush1.bf16.msra.mxu0 %v3590
        %3608 = vmatprep.subr.bf16.mxu0 0
        %3609 = vmatpush1.bf16.msra.mxu0 %v3591
        %3610 = vmatprep.subr.bf16.mxu0 0
        %3611 = vmatpush1.bf16.msra.mxu0 %v3592
        %3612 = vmatprep.subr.bf16.mxu0 0
        %3613 = vmatpush1.bf16.msra.mxu0 %v3593
        %3614 = vmatprep.subr.bf16.mxu0 0
        %3615 = vmatpush1.bf16.msra.mxu0 %v3594
        %3616 = vmatprep.subr.bf16.mxu0 0
        %3617 = vmatpush1.bf16.msra.mxu0 %v3595
        %3618 = vmatprep.subr.bf16.mxu0 0
        %3619 = vmatpush1.bf16.msra.mxu0 %v3596
        %3620 = vmatprep.subr.bf16.mxu0 0
        %3621 = vmatpush1.bf16.msra.mxu0 %v3597
        %3622 = vmatprep.subr.bf16.mxu0 0
        %3623 = vmatpush1.bf16.msra.mxu0 0
        %3624 = vmatprep.subr.bf16.mxu0 0
        %3625 = vmatpush1.bf16.msra.mxu0 0
        %3626 = vmatprep.subr.bf16.mxu0 0
        %3627 = vmatpush1.bf16.msra.mxu0 0
        %3628 = vmatprep.subr.bf16.mxu0 0
        %3629 = vmatpush1.bf16.msra.mxu0 0
        %3630 = vmatprep.subr.bf16.mxu0 0
        %3631 = vmatpush1.bf16.msra.mxu0 0
        %3632 = vmatprep.subr.bf16.mxu0 0
        %3633 = vmatpush1.bf16.msra.mxu0 0
        %3634 = vmatprep.subr.bf16.mxu0 0
        %3635 = vmatpush1.bf16.msra.mxu0 0
        %3636 = vmatprep.subr.bf16.mxu0 0
        %3637 = vmatpush1.bf16.msra.mxu0 0
        %3638 = vmatprep.mubr.bf16.mxu0 0
        %3639 = vmatmul.mubr.bf16.gmra.mrb[0].mxu0 %v3534
        %v3640 = vpop.f32.mrb[0].mxu0
        %v3641 = vadd.f32 %v3556, %v3640
        %v3642 = vpop.f32.mrb[0].mxu0
        %v3643 = vpop.f32.mrb[0].mxu0
        %v3644 = vadd.f32 %v3556, %v3643
        %v3645 = vpop.f32.mrb[0].mxu0
        %3646 = vdwg.mxu0
        %v3647 = vadd.f32 %v2748, %v3641
        %v3648 = vadd.f32 %v2749, %v3644
        %v3649 = vld [vmem:[%s16] sm:$0x1]
        %v3650 = vld [vmem:[%s17] sm:$0x1]
        %3651 = vadd.xlane.f32.xlu0 %v3647
        %v3652 = vpop.xlane.xlu0 %3651
        %3653 = vadd.xlane.f32.xlu0 %v3648
        %v3654 = vpop.xlane.xlu0 %3653
        %v3655 = vmul.f32 %v3652, %v2562
        %v3656 = vmul.f32 %v3654, %v2562
        %v3657 = vsub.f32 %v3647, %v3655
        %v3658 = vsub.f32 %v3648, %v3656
        %v3659 = vmul.f32 %v3657, %v3657
        %v3660 = vmul.f32 %v3658, %v3658
        %3661 = vadd.xlane.f32.xlu0 %v3659
        %v3662 = vpop.xlane.xlu0 %3661
        %3663 = vadd.xlane.f32.xlu0 %v3660
        %v3664 = vpop.xlane.xlu0 %3663
        %v3665 = vmul.f32 %v3662, %v2562
        %v3666 = vmul.f32 %v3664, %v2562
        %v3667 = vadd.f32 %v3665, 1e-05
        %v3668 = vadd.f32 %v3666, 1e-05
        %v3669 = vrsqrt.pop %v3667
        %v3670 = vrsqrt.pop %v3668
        %v3671 = vmul.f32 %v3657, %v3669
        %v3672 = vmul.f32 %v3658, %v3670
        %v3674 = vlaneseq
        %v3675 = vshrl.u32 %v3674, 7
        %v3676 = vsub.s32 0, %v3675
        %v3677 = vrot.slane %v3649, %v3676
        %v3679 = vmul.f32 %v3671, %v3677
        %v3680 = vmul.f32 %v3672, %v3677
        %v3682 = vlaneseq
        %v3683 = vshrl.u32 %v3682, 7
        %v3684 = vsub.s32 0, %v3683
        %v3685 = vrot.slane %v3650, %v3684
        %v3687 = vadd.f32 %v3679, %v3685
        %v3688 = vadd.f32 %v3680, %v3685
        %v3689 = vpack.c.bf16 %v3688, %v3687
        %v3690 = vld [vmem:[#allocation8] sm:$0xff]
        %v3691 = vld [vmem:[#allocation8 + $0x8] sm:$0xff]
        %v3692 = vld [vmem:[#allocation8 + $0x10] sm:$0xff]
        %v3693 = vld [vmem:[#allocation8 + $0x18] sm:$0xff]
        %v3694 = vld [vmem:[#allocation8 + $0x20] sm:$0xff]
        %v3695 = vld [vmem:[#allocation8 + $0x28] sm:$0xff]
        %v3696 = vld [vmem:[#allocation8 + $0x30] sm:$0xff]
        %v3697 = vld [vmem:[#allocation8 + $0x38] sm:$0xff]
        %v3698 = vld [vmem:[#allocation8 + $0x40] sm:$0xff]
        %v3699 = vld [vmem:[#allocation8 + $0x48] sm:$0xff]
        %v3700 = vld [vmem:[#allocation8 + $0x50] sm:$0xff]
        %v3701 = vld [vmem:[#allocation8 + $0x58] sm:$0xff]
        %v3702 = vld [vmem:[#allocation8 + $0x60] sm:$0xff]
        %v3703 = vld [vmem:[#allocation8 + $0x68] sm:$0xff]
        %v3704 = vld [vmem:[#allocation8 + $0x70] sm:$0xff]
        %v3705 = vld [vmem:[#allocation8 + $0x78] sm:$0xff]
        %v3706 = vld [vmem:[%s19] sm:$0x3]
        %v3708 = vlaneseq
        %v3709 = vshrl.u32 %v3708, 7
        %v3710 = vsub.s32 0, %v3709
        %v3711 = vrot.slane %v3706, %v3710
        %v3712 = vlaneseq
        %v3713 = vshrl.u32 %v3712, 7
        %v3714 = vsub.s32 1, %v3713
        %v3715 = vrot.slane %v3706, %v3714
        %v3734 = vunpack.c.l.b16 %v3690
        %v3735 = vunpack.c.h.b16 %v3690
        %v3736 = vunpack.c.l.b16 %v3691
        %v3737 = vunpack.c.h.b16 %v3691
        %v3738 = vunpack.c.l.b16 %v3692
        %v3739 = vunpack.c.h.b16 %v3692
        %v3740 = vunpack.c.l.b16 %v3693
        %v3741 = vunpack.c.h.b16 %v3693
        %v3742 = vunpack.c.l.b16 %v3694
        %v3743 = vunpack.c.h.b16 %v3694
        %v3744 = vunpack.c.l.b16 %v3695
        %v3745 = vunpack.c.h.b16 %v3695
        %v3746 = vunpack.c.l.b16 %v3696
        %v3747 = vunpack.c.h.b16 %v3696
        %v3748 = vunpack.c.l.b16 %v3697
        %v3749 = vunpack.c.h.b16 %v3697
        %v3750 = vunpack.c.l.b16 %v3698
        %v3751 = vunpack.c.h.b16 %v3698
        %v3752 = vunpack.c.l.b16 %v3699
        %v3753 = vunpack.c.h.b16 %v3699
        %v3754 = vunpack.c.l.b16 %v3700
        %v3755 = vunpack.c.h.b16 %v3700
        %v3756 = vunpack.c.l.b16 %v3701
        %v3757 = vunpack.c.h.b16 %v3701
        %v3758 = vunpack.c.l.b16 %v3702
        %v3759 = vunpack.c.h.b16 %v3702
        %v3760 = vunpack.c.l.b16 %v3703
        %v3761 = vunpack.c.h.b16 %v3703
        %v3762 = vunpack.c.l.b16 %v3704
        %v3763 = vunpack.c.h.b16 %v3704
        %v3764 = vunpack.c.l.b16 %v3705
        %v3765 = vunpack.c.h.b16 %v3705
        %v3766 = vpack.c.b16 %v3736, %v3734
        %v3767 = vpack.c.b16 %v3737, %v3735
        %v3768 = vpack.c.b16 %v3740, %v3738
        %v3769 = vpack.c.b16 %v3741, %v3739
        %v3770 = vpack.c.b16 %v3744, %v3742
        %v3771 = vpack.c.b16 %v3745, %v3743
        %v3772 = vpack.c.b16 %v3748, %v3746
        %v3773 = vpack.c.b16 %v3749, %v3747
        %v3774 = vpack.c.b16 %v3752, %v3750
        %v3775 = vpack.c.b16 %v3753, %v3751
        %v3776 = vpack.c.b16 %v3756, %v3754
        %v3777 = vpack.c.b16 %v3757, %v3755
        %v3778 = vpack.c.b16 %v3760, %v3758
        %v3779 = vpack.c.b16 %v3761, %v3759
        %v3780 = vpack.c.b16 %v3764, %v3762
        %v3781 = vpack.c.b16 %v3765, %v3763
        %3798 = vmatprep.subr.bf16.mxu0 %v3767
        %3799 = vmatpush1.bf16.msra.mxu0 %v3766
        %3800 = vmatprep.subr.bf16.mxu0 %v3769
        %3801 = vmatpush1.bf16.msra.mxu0 %v3768
        %3802 = vmatprep.subr.bf16.mxu0 %v3771
        %3803 = vmatpush1.bf16.msra.mxu0 %v3770
        %3804 = vmatprep.subr.bf16.mxu0 %v3773
        %3805 = vmatpush1.bf16.msra.mxu0 %v3772
        %3806 = vmatprep.subr.bf16.mxu0 %v3775
        %3807 = vmatpush1.bf16.msra.mxu0 %v3774
        %3808 = vmatprep.subr.bf16.mxu0 %v3777
        %3809 = vmatpush1.bf16.msra.mxu0 %v3776
        %3810 = vmatprep.subr.bf16.mxu0 %v3779
        %3811 = vmatpush1.bf16.msra.mxu0 %v3778
        %3812 = vmatprep.subr.bf16.mxu0 %v3781
        %3813 = vmatpush1.bf16.msra.mxu0 %v3780
        %3814 = vmatprep.subr.bf16.mxu0 0
        %3815 = vmatpush1.bf16.msra.mxu0 0
        %3816 = vmatprep.subr.bf16.mxu0 0
        %3817 = vmatpush1.bf16.msra.mxu0 0
        %3818 = vmatprep.subr.bf16.mxu0 0
        %3819 = vmatpush1.bf16.msra.mxu0 0
        %3820 = vmatprep.subr.bf16.mxu0 0
        %3821 = vmatpush1.bf16.msra.mxu0 0
        %3822 = vmatprep.subr.bf16.mxu0 0
        %3823 = vmatpush1.bf16.msra.mxu0 0
        %3824 = vmatprep.subr.bf16.mxu0 0
        %3825 = vmatpush1.bf16.msra.mxu0 0
        %3826 = vmatprep.subr.bf16.mxu0 0
        %3827 = vmatpush1.bf16.msra.mxu0 0
        %3828 = vmatprep.subr.bf16.mxu0 0
        %3829 = vmatpush1.bf16.msra.mxu0 0
        %3830 = vmatprep.mubr.bf16.mxu0 0
        %3831 = vmatmul.mubr.bf16.gmra.mrb[0].mxu0 %v3689
        %v3832 = vpop.f32.mrb[0].mxu0
        %v3833 = vadd.f32 %v3711, %v3832
        %v3834 = vpop.f32.mrb[0].mxu0
        %v3835 = vadd.f32 %v3715, %v3834
        %v3836 = vpop.f32.mrb[0].mxu0
        %v3837 = vadd.f32 %v3711, %v3836
        %v3838 = vpop.f32.mrb[0].mxu0
        %v3839 = vadd.f32 %v3715, %v3838
        %3840 = vdwg.mxu0
        %v3841 = vmul.f32 %v3833, 0.5
        %v3842 = vmul.f32 %v3835, 0.5
        %v3843 = vmul.f32 %v3837, 0.5
        %v3844 = vmul.f32 %v3839, 0.5
        %v3845 = vmul.f32 %v3833, 0.044715
        %v3846 = vmul.f32 %v3835, 0.044715
        %v3847 = vmul.f32 %v3837, 0.044715
        %v3848 = vmul.f32 %v3839, 0.044715
        %v3849 = vmul.f32 %v3845, %v3833
        %v3850 = vmul.f32 %v3846, %v3835
        %v3851 = vmul.f32 %v3847, %v3837
        %v3852 = vmul.f32 %v3848, %v3839
        %v3853 = vmul.f32 %v3849, %v3833
        %v3854 = vmul.f32 %v3850, %v3835
        %v3855 = vmul.f32 %v3851, %v3837
        %v3856 = vmul.f32 %v3852, %v3839
        %v3857 = vadd.f32 %v3833, %v3853
        %v3858 = vadd.f32 %v3835, %v3854
        %v3859 = vadd.f32 %v3837, %v3855
        %v3860 = vadd.f32 %v3839, %v3856
        %v3861 = vmul.f32 %v3857, 0.7978846
        %v3862 = vmul.f32 %v3858, 0.7978846
        %v3863 = vmul.f32 %v3859, 0.7978846
        %v3864 = vmul.f32 %v3860, 0.7978846
        %v3865 = vtanh.pop %v3861
        %v3866 = vtanh.pop %v3862
        %v3867 = vtanh.pop %v3863
        %v3868 = vtanh.pop %v3864
        %v3869 = vadd.f32 %v3865, 1.0
        %v3870 = vadd.f32 %v3866, 1.0
        %v3871 = vadd.f32 %v3867, 1.0
        %v3872 = vadd.f32 %v3868, 1.0
        %v3873 = vmul.f32 %v3841, %v3869
        %v3874 = vmul.f32 %v3842, %v3870
        %v3875 = vmul.f32 %v3843, %v3871
        %v3876 = vmul.f32 %v3844, %v3872
        %v3877 = vpack.c.bf16 %v3875, %v3873
        %v3878 = vpack.c.bf16 %v3876, %v3874
        %v3879 = vld [vmem:[#allocation10] sm:$0xf]
        %v3880 = vld [vmem:[#allocation10 + $0x4] sm:$0xf]
        %v3881 = vld [vmem:[#allocation10 + $0x8] sm:$0xf]
        %v3882 = vld [vmem:[#allocation10 + $0xc] sm:$0xf]
        %v3883 = vld [vmem:[#allocation10 + $0x10] sm:$0xf]
        %v3884 = vld [vmem:[#allocation10 + $0x14] sm:$0xf]
        %v3885 = vld [vmem:[#allocation10 + $0x18] sm:$0xf]
        %v3886 = vld [vmem:[#allocation10 + $0x1c] sm:$0xf]
        %v3887 = vld [vmem:[#allocation10 + $0x20] sm:$0xf]
        %v3888 = vld [vmem:[#allocation10 + $0x24] sm:$0xf]
        %v3889 = vld [vmem:[#allocation10 + $0x28] sm:$0xf]
        %v3890 = vld [vmem:[#allocation10 + $0x2c] sm:$0xf]
        %v3891 = vld [vmem:[#allocation10 + $0x30] sm:$0xf]
        %v3892 = vld [vmem:[#allocation10 + $0x34] sm:$0xf]
        %v3893 = vld [vmem:[#allocation10 + $0x38] sm:$0xf]
        %v3894 = vld [vmem:[#allocation10 + $0x3c] sm:$0xf]
        %v3895 = vld [vmem:[#allocation10 + $0x40] sm:$0xf]
        %v3896 = vld [vmem:[#allocation10 + $0x44] sm:$0xf]
        %v3897 = vld [vmem:[#allocation10 + $0x48] sm:$0xf]
        %v3898 = vld [vmem:[#allocation10 + $0x4c] sm:$0xf]
        %v3899 = vld [vmem:[#allocation10 + $0x50] sm:$0xf]
        %v3900 = vld [vmem:[#allocation10 + $0x54] sm:$0xf]
        %v3901 = vld [vmem:[#allocation10 + $0x58] sm:$0xf]
        %v3902 = vld [vmem:[#allocation10 + $0x5c] sm:$0xf]
        %v3903 = vld [vmem:[#allocation10 + $0x60] sm:$0xf]
        %v3904 = vld [vmem:[#allocation10 + $0x64] sm:$0xf]
        %v3905 = vld [vmem:[#allocation10 + $0x68] sm:$0xf]
        %v3906 = vld [vmem:[#allocation10 + $0x6c] sm:$0xf]
        %v3907 = vld [vmem:[#allocation10 + $0x70] sm:$0xf]
        %v3908 = vld [vmem:[#allocation10 + $0x74] sm:$0xf]
        %v3909 = vld [vmem:[#allocation10 + $0x78] sm:$0xf]
        %v3910 = vld [vmem:[#allocation10 + $0x7c] sm:$0xf]
        %v3911 = vld [vmem:[%s21] sm:$0x1]
        %v3913 = vlaneseq
        %v3914 = vshrl.u32 %v3913, 7
        %v3915 = vsub.s32 0, %v3914
        %v3916 = vrot.slane %v3911, %v3915
        %v3950 = vunpack.c.l.b16 %v3879
        %v3951 = vunpack.c.l.b16 %v3880
        %v3952 = vunpack.c.l.b16 %v3881
        %v3953 = vunpack.c.l.b16 %v3882
        %v3954 = vunpack.c.l.b16 %v3883
        %v3955 = vunpack.c.l.b16 %v3884
        %v3956 = vunpack.c.l.b16 %v3885
        %v3957 = vunpack.c.l.b16 %v3886
        %v3958 = vunpack.c.l.b16 %v3887
        %v3959 = vunpack.c.l.b16 %v3888
        %v3960 = vunpack.c.l.b16 %v3889
        %v3961 = vunpack.c.l.b16 %v3890
        %v3962 = vunpack.c.l.b16 %v3891
        %v3963 = vunpack.c.l.b16 %v3892
        %v3964 = vunpack.c.l.b16 %v3893
        %v3965 = vunpack.c.l.b16 %v3894
        %v3966 = vunpack.c.l.b16 %v3895
        %v3967 = vunpack.c.l.b16 %v3896
        %v3968 = vunpack.c.l.b16 %v3897
        %v3969 = vunpack.c.l.b16 %v3898
        %v3970 = vunpack.c.l.b16 %v3899
        %v3971 = vunpack.c.l.b16 %v3900
        %v3972 = vunpack.c.l.b16 %v3901
        %v3973 = vunpack.c.l.b16 %v3902
        %v3974 = vunpack.c.l.b16 %v3903
        %v3975 = vunpack.c.l.b16 %v3904
        %v3976 = vunpack.c.l.b16 %v3905
        %v3977 = vunpack.c.l.b16 %v3906
        %v3978 = vunpack.c.l.b16 %v3907
        %v3979 = vunpack.c.l.b16 %v3908
        %v3980 = vunpack.c.l.b16 %v3909
        %v3981 = vunpack.c.l.b16 %v3910
        %v3982 = vpack.c.b16 %v3951, %v3950
        %v3983 = vpack.c.b16 %v3953, %v3952
        %v3984 = vpack.c.b16 %v3955, %v3954
        %v3985 = vpack.c.b16 %v3957, %v3956
        %v3986 = vpack.c.b16 %v3959, %v3958
        %v3987 = vpack.c.b16 %v3961, %v3960
        %v3988 = vpack.c.b16 %v3963, %v3962
        %v3989 = vpack.c.b16 %v3965, %v3964
        %v3990 = vpack.c.b16 %v3967, %v3966
        %v3991 = vpack.c.b16 %v3969, %v3968
        %v3992 = vpack.c.b16 %v3971, %v3970
        %v3993 = vpack.c.b16 %v3973, %v3972
        %v3994 = vpack.c.b16 %v3975, %v3974
        %v3995 = vpack.c.b16 %v3977, %v3976
        %v3996 = vpack.c.b16 %v3979, %v3978
        %v3997 = vpack.c.b16 %v3981, %v3980
        %4014 = vmatprep.subr.bf16.mxu0 0
        %4015 = vmatpush1.bf16.msra.mxu0 %v3982
        %4016 = vmatprep.subr.bf16.mxu0 0
        %4017 = vmatpush1.bf16.msra.mxu0 %v3983
        %4018 = vmatprep.subr.bf16.mxu0 0
        %4019 = vmatpush1.bf16.msra.mxu0 %v3984
        %4020 = vmatprep.subr.bf16.mxu0 0
        %4021 = vmatpush1.bf16.msra.mxu0 %v3985
        %4022 = vmatprep.subr.bf16.mxu0 0
        %4023 = vmatpush1.bf16.msra.mxu0 %v3986
        %4024 = vmatprep.subr.bf16.mxu0 0
        %4025 = vmatpush1.bf16.msra.mxu0 %v3987
        %4026 = vmatprep.subr.bf16.mxu0 0
        %4027 = vmatpush1.bf16.msra.mxu0 %v3988
        %4028 = vmatprep.subr.bf16.mxu0 0
        %4029 = vmatpush1.bf16.msra.mxu0 %v3989
        %4030 = vmatprep.subr.bf16.mxu0 0
        %4031 = vmatpush1.bf16.msra.mxu0 %v3990
        %4032 = vmatprep.subr.bf16.mxu0 0
        %4033 = vmatpush1.bf16.msra.mxu0 %v3991
        %4034 = vmatprep.subr.bf16.mxu0 0
        %4035 = vmatpush1.bf16.msra.mxu0 %v3992
        %4036 = vmatprep.subr.bf16.mxu0 0
        %4037 = vmatpush1.bf16.msra.mxu0 %v3993
        %4038 = vmatprep.subr.bf16.mxu0 0
        %4039 = vmatpush1.bf16.msra.mxu0 %v3994
        %4040 = vmatprep.subr.bf16.mxu0 0
        %4041 = vmatpush1.bf16.msra.mxu0 %v3995
        %4042 = vmatprep.subr.bf16.mxu0 0
        %4043 = vmatpush1.bf16.msra.mxu0 %v3996
        %4044 = vmatprep.subr.bf16.mxu0 0
        %4045 = vmatpush1.bf16.msra.mxu0 %v3997
        %4046 = vmatprep.mubr.bf16.mxu0 %v3878
        %4047 = vmatmul.mubr.bf16.gmra.mrb[0].mxu0 %v3877
        %v4048 = vpop.f32.mrb[0].mxu0
        %v4049 = vadd.f32 %v3916, %v4048
        %v4050 = vpop.f32.mrb[0].mxu0
        %v4051 = vpop.f32.mrb[0].mxu0
        %v4052 = vadd.f32 %v3916, %v4051
        %v4053 = vpop.f32.mrb[0].mxu0
        %4054 = vdwg.mxu0
        %v4055 = vadd.f32 %v3687, %v4049
        %v4056 = vadd.f32 %v3688, %v4052
        %v4057 = vld [vmem:[%s22] sm:$0x1]
        %v4058 = vld [vmem:[%s23] sm:$0x1]
        %4059 = vadd.xlane.f32.xlu0 %v4055
        %v4060 = vpop.xlane.xlu0 %4059
        %4061 = vadd.xlane.f32.xlu0 %v4056
        %v4062 = vpop.xlane.xlu0 %4061
        %v4063 = vmul.f32 %v4060, %v2562
        %v4064 = vmul.f32 %v4062, %v2562
        %v4065 = vsub.f32 %v4055, %v4063
        %v4066 = vsub.f32 %v4056, %v4064
        %v4067 = vmul.f32 %v4065, %v4065
        %v4068 = vmul.f32 %v4066, %v4066
        %4069 = vadd.xlane.f32.xlu0 %v4067
        %v4070 = vpop.xlane.xlu0 %4069
        %4071 = vadd.xlane.f32.xlu0 %v4068
        %v4072 = vpop.xlane.xlu0 %4071
        %v4073 = vmul.f32 %v4070, %v2562
        %v4074 = vmul.f32 %v4072, %v2562
        %v4075 = vadd.f32 %v4073, 1e-05
        %v4076 = vadd.f32 %v4074, 1e-05
        %v4077 = vrsqrt.pop %v4075
        %v4078 = vrsqrt.pop %v4076
        %v4079 = vmul.f32 %v4065, %v4077
        %v4080 = vmul.f32 %v4066, %v4078
        %v4082 = vlaneseq
        %v4083 = vshrl.u32 %v4082, 7
        %v4084 = vsub.s32 0, %v4083
        %v4085 = vrot.slane %v4057, %v4084
        %v4087 = vmul.f32 %v4079, %v4085
        %v4088 = vmul.f32 %v4080, %v4085
        %v4090 = vlaneseq
        %v4091 = vshrl.u32 %v4090, 7
        %v4092 = vsub.s32 0, %v4091
        %v4093 = vrot.slane %v4058, %v4092
        %v4095 = vadd.f32 %v4087, %v4093
        %v4096 = vadd.f32 %v4088, %v4093
        %v4097 = vpack.c.bf16 %v4096, %v4095
        %s4098 = scalar_lea.vmem [#allocation7], 192
        %v4099 = vld [vmem:[%s4098] sm:$0xff]
        %v4100 = vld [vmem:[%s4098 + $0x8] sm:$0xf]
        %v4101 = vld [vmem:[%s4098 + $0xc] sm:$0xff]
        %v4102 = vld [vmem:[%s4098 + $0x14] sm:$0xf]
        %v4103 = vld [vmem:[%s4098 + $0x18] sm:$0xff]
        %v4104 = vld [vmem:[%s4098 + $0x20] sm:$0xf]
        %v4105 = vld [vmem:[%s4098 + $0x24] sm:$0xff]
        %v4106 = vld [vmem:[%s4098 + $0x2c] sm:$0xf]
        %v4107 = vld [vmem:[%s4098 + $0x30] sm:$0xff]
        %v4108 = vld [vmem:[%s4098 + $0x38] sm:$0xf]
        %v4109 = vld [vmem:[%s4098 + $0x3c] sm:$0xff]
        %v4110 = vld [vmem:[%s4098 + $0x44] sm:$0xf]
        %v4111 = vld [vmem:[%s4098 + $0x48] sm:$0xff]
        %v4112 = vld [vmem:[%s4098 + $0x50] sm:$0xf]
        %v4113 = vld [vmem:[%s4098 + $0x54] sm:$0xff]
        %v4114 = vld [vmem:[%s4098 + $0x5c] sm:$0xf]
        %v4115 = vld [vmem:[%s4098 + $0x60] sm:$0xff]
        %v4116 = vld [vmem:[%s4098 + $0x68] sm:$0xf]
        %v4117 = vld [vmem:[%s4098 + $0x6c] sm:$0xff]
        %v4118 = vld [vmem:[%s4098 + $0x74] sm:$0xf]
        %v4119 = vld [vmem:[%s4098 + $0x78] sm:$0xff]
        %v4120 = vld [vmem:[%s4098 + $0x80] sm:$0xf]
        %v4121 = vld [vmem:[%s4098 + $0x84] sm:$0xff]
        %v4122 = vld [vmem:[%s4098 + $0x8c] sm:$0xf]
        %v4123 = vld [vmem:[%s4098 + $0x90] sm:$0xff]
        %v4124 = vld [vmem:[%s4098 + $0x98] sm:$0xf]
        %v4125 = vld [vmem:[%s4098 + $0x9c] sm:$0xff]
        %v4126 = vld [vmem:[%s4098 + $0xa4] sm:$0xf]
        %v4127 = vld [vmem:[%s4098 + $0xa8] sm:$0xff]
        %v4128 = vld [vmem:[%s4098 + $0xb0] sm:$0xf]
        %v4129 = vld [vmem:[%s4098 + $0xb4] sm:$0xff]
        %v4130 = vld [vmem:[%s4098 + $0xbc] sm:$0xf]
        %s4131 = scalar_lea.vmem %s13, 3
        %v4132 = vld [vmem:[%s4131] sm:$0x7]
        %v4134 = vlaneseq
        %v4135 = vshrl.u32 %v4134, 7
        %v4136 = vsub.s32 0, %v4135
        %v4137 = vrot.slane %v4132, %v4136
        %v4138 = vlaneseq
        %v4139 = vshrl.u32 %v4138, 7
        %v4140 = vsub.s32 1, %v4139
        %v4141 = vrot.slane %v4132, %v4140
        %v4142 = vlaneseq
        %v4143 = vshrl.u32 %v4142, 7
        %v4144 = vsub.s32 2, %v4143
        %v4145 = vrot.slane %v4132, %v4144
        %v4181 = vunpack.c.l.b16 %v4099
        %v4182 = vunpack.c.h.b16 %v4099
        %v4183 = vunpack.c.l.b16 %v4100
        %v4184 = vunpack.c.l.b16 %v4101
        %v4185 = vunpack.c.h.b16 %v4101
        %v4186 = vunpack.c.l.b16 %v4102
        %v4187 = vunpack.c.l.b16 %v4103
        %v4188 = vunpack.c.h.b16 %v4103
        %v4189 = vunpack.c.l.b16 %v4104
        %v4190 = vunpack.c.l.b16 %v4105
        %v4191 = vunpack.c.h.b16 %v4105
        %v4192 = vunpack.c.l.b16 %v4106
        %v4193 = vunpack.c.l.b16 %v4107
        %v4194 = vunpack.c.h.b16 %v4107
        %v4195 = vunpack.c.l.b16 %v4108
        %v4196 = vunpack.c.l.b16 %v4109
        %v4197 = vunpack.c.h.b16 %v4109
        %v4198 = vunpack.c.l.b16 %v4110
        %v4199 = vunpack.c.l.b16 %v4111
        %v4200 = vunpack.c.h.b16 %v4111
        %v4201 = vunpack.c.l.b16 %v4112
        %v4202 = vunpack.c.l.b16 %v4113
        %v4203 = vunpack.c.h.b16 %v4113
        %v4204 = vunpack.c.l.b16 %v4114
        %v4205 = vunpack.c.l.b16 %v4115
        %v4206 = vunpack.c.h.b16 %v4115
        %v4207 = vunpack.c.l.b16 %v4116
        %v4208 = vunpack.c.l.b16 %v4117
        %v4209 = vunpack.c.h.b16 %v4117
        %v4210 = vunpack.c.l.b16 %v4118
        %v4211 = vunpack.c.l.b16 %v4119
        %v4212 = vunpack.c.h.b16 %v4119
        %v4213 = vunpack.c.l.b16 %v4120
        %v4214 = vunpack.c.l.b16 %v4121
        %v4215 = vunpack.c.h.b16 %v4121
        %v4216 = vunpack.c.l.b16 %v4122
        %v4217 = vunpack.c.l.b16 %v4123
        %v4218 = vunpack.c.h.b16 %v4123
        %v4219 = vunpack.c.l.b16 %v4124
        %v4220 = vunpack.c.l.b16 %v4125
        %v4221 = vunpack.c.h.b16 %v4125
        %v4222 = vunpack.c.l.b16 %v4126
        %v4223 = vunpack.c.l.b16 %v4127
        %v4224 = vunpack.c.h.b16 %v4127
        %v4225 = vunpack.c.l.b16 %v4128
        %v4226 = vunpack.c.l.b16 %v4129
        %v4227 = vunpack.c.h.b16 %v4129
        %v4228 = vunpack.c.l.b16 %v4130
        %v4229 = vpack.c.b16 %v4184, %v4181
        %v4230 = vpack.c.b16 %v4185, %v4182
        %v4231 = vpack.c.b16 %v4186, %v4183
        %v4232 = vpack.c.b16 %v4190, %v4187
        %v4233 = vpack.c.b16 %v4191, %v4188
        %v4234 = vpack.c.b16 %v4192, %v4189
        %v4235 = vpack.c.b16 %v4196, %v4193
        %v4236 = vpack.c.b16 %v4197, %v4194
        %v4237 = vpack.c.b16 %v4198, %v4195
        %v4238 = vpack.c.b16 %v4202, %v4199
        %v4239 = vpack.c.b16 %v4203, %v4200
        %v4240 = vpack.c.b16 %v4204, %v4201
        %v4241 = vpack.c.b16 %v4208, %v4205
        %v4242 = vpack.c.b16 %v4209, %v4206
        %v4243 = vpack.c.b16 %v4210, %v4207
        %v4244 = vpack.c.b16 %v4214, %v4211
        %v4245 = vpack.c.b16 %v4215, %v4212
        %v4246 = vpack.c.b16 %v4216, %v4213
        %v4247 = vpack.c.b16 %v4220, %v4217
        %v4248 = vpack.c.b16 %v4221, %v4218
        %v4249 = vpack.c.b16 %v4222, %v4219
        %v4250 = vpack.c.b16 %v4226, %v4223
        %v4251 = vpack.c.b16 %v4227, %v4224
        %v4252 = vpack.c.b16 %v4228, %v4225
        %4277 = vmatprep.subr.bf16.mxu0 %v4230
        %4278 = vmatpush1.bf16.msra.mxu0 %v4229
        %4279 = vmatprep.subr.bf16.mxu0 %v4233
        %4280 = vmatpush1.bf16.msra.mxu0 %v4232
        %4281 = vmatprep.subr.bf16.mxu0 %v4236
        %4282 = vmatpush1.bf16.msra.mxu0 %v4235
        %4283 = vmatprep.subr.bf16.mxu0 %v4239
        %4284 = vmatpush1.bf16.msra.mxu0 %v4238
        %4285 = vmatprep.subr.bf16.mxu0 %v4242
        %4286 = vmatpush1.bf16.msra.mxu0 %v4241
        %4287 = vmatprep.subr.bf16.mxu0 %v4245
        %4288 = vmatpush1.bf16.msra.mxu0 %v4244
        %4289 = vmatprep.subr.bf16.mxu0 %v4248
        %4290 = vmatpush1.bf16.msra.mxu0 %v4247
        %4291 = vmatprep.subr.bf16.mxu0 %v4251
        %4292 = vmatpush1.bf16.msra.mxu0 %v4250
        %4293 = vmatprep.subr.bf16.mxu0 0
        %4294 = vmatpush1.bf16.msra.mxu0 0
        %4295 = vmatprep.subr.bf16.mxu0 0
        %4296 = vmatpush1.bf16.msra.mxu0 0
        %4297 = vmatprep.subr.bf16.mxu0 0
        %4298 = vmatpush1.bf16.msra.mxu0 0
        %4299 = vmatprep.subr.bf16.mxu0 0
        %4300 = vmatpush1.bf16.msra.mxu0 0
        %4301 = vmatprep.subr.bf16.mxu0 0
        %4302 = vmatpush1.bf16.msra.mxu0 0
        %4303 = vmatprep.subr.bf16.mxu0 0
        %4304 = vmatpush1.bf16.msra.mxu0 0
        %4305 = vmatprep.subr.bf16.mxu0 0
        %4306 = vmatpush1.bf16.msra.mxu0 0
        %4307 = vmatprep.subr.bf16.mxu0 0
        %4308 = vmatpush1.bf16.msra.mxu0 0
        %4309 = vmatprep.mubr.bf16.mxu0 0
        %4310 = vmatmul.mubr.bf16.gmra.mrb[0].mxu0 %v4097
        %v4311 = vpop.f32.mrb[0].mxu0
        %v4312 = vadd.f32 %v4137, %v4311
        %v4313 = vpop.f32.mrb[0].mxu0
        %v4314 = vadd.f32 %v4141, %v4313
        %v4315 = vpop.f32.mrb[0].mxu0
        %v4316 = vadd.f32 %v4137, %v4315
        %v4317 = vpop.f32.mrb[0].mxu0
        %v4318 = vadd.f32 %v4141, %v4317
        %4319 = vdwg.mxu0
        %4320 = vmatprep.subr.bf16.mxu0 0
        %4321 = vmatpush1.bf16.msra.mxu0 %v4231
        %4322 = vmatprep.subr.bf16.mxu0 0
        %4323 = vmatpush1.bf16.msra.mxu0 %v4234
        %4324 = vmatprep.subr.bf16.mxu0 0
        %4325 = vmatpush1.bf16.msra.mxu0 %v4237
        %4326 = vmatprep.subr.bf16.mxu0 0
        %4327 = vmatpush1.bf16.msra.mxu0 %v4240
        %4328 = vmatprep.subr.bf16.mxu0 0
        %4329 = vmatpush1.bf16.msra.mxu0 %v4243
        %4330 = vmatprep.subr.bf16.mxu0 0
        %4331 = vmatpush1.bf16.msra.mxu0 %v4246
        %4332 = vmatprep.subr.bf16.mxu0 0
        %4333 = vmatpush1.bf16.msra.mxu0 %v4249
        %4334 = vmatprep.subr.bf16.mxu0 0
        %4335 = vmatpush1.bf16.msra.mxu0 %v4252
        %4336 = vmatprep.subr.bf16.mxu0 0
        %4337 = vmatpush1.bf16.msra.mxu0 0
        %4338 = vmatprep.subr.bf16.mxu0 0
        %4339 = vmatpush1.bf16.msra.mxu0 0
        %4340 = vmatprep.subr.bf16.mxu0 0
        %4341 = vmatpush1.bf16.msra.mxu0 0
        %4342 = vmatprep.subr.bf16.mxu0 0
        %4343 = vmatpush1.bf16.msra.mxu0 0
        %4344 = vmatprep.subr.bf16.mxu0 0
        %4345 = vmatpush1.bf16.msra.mxu0 0
        %4346 = vmatprep.subr.bf16.mxu0 0
        %4347 = vmatpush1.bf16.msra.mxu0 0
        %4348 = vmatprep.subr.bf16.mxu0 0
        %4349 = vmatpush1.bf16.msra.mxu0 0
        %4350 = vmatprep.subr.bf16.mxu0 0
        %4351 = vmatpush1.bf16.msra.mxu0 0
        %4352 = vmatprep.mubr.bf16.mxu0 0
        %4353 = vmatmul.mubr.bf16.gmra.mrb[0].mxu0 %v4097
        %v4354 = vpop.f32.mrb[0].mxu0
        %v4355 = vadd.f32 %v4145, %v4354
        %v4356 = vpop.f32.mrb[0].mxu0
        %v4357 = vpop.f32.mrb[0].mxu0
        %v4358 = vadd.f32 %v4145, %v4357
        %v4359 = vpop.f32.mrb[0].mxu0
        %4360 = vdwg.mxu0
        %v4361 = vpack.c.bf16 %v4316, %v4312
        %v4362 = vpack.c.bf16 %v4318, %v4314
        %v4363 = vpack.c.bf16 %v4358, %v4355
        %v4365 = vsel %vm3015, %v4361, 0
        %v4368 = vsel %vm3015, %v4362, 0
        %4370 = vmatprep.subr.bf16.mxu0 0
        %4371 = vmatpush1.bf16.xpose.msra.mxu0 %v4368
        %4372 = vmatprep.subr.bf16.mxu0 0
        %4373 = vmatpush1.bf16.xpose.msra.mxu0 0
        %4374 = vmatprep.subr.bf16.mxu0 0
        %4375 = vmatpush1.bf16.xpose.msra.mxu0 0
        %4376 = vmatprep.subr.bf16.mxu0 0
        %4377 = vmatpush1.bf16.xpose.msra.mxu0 0
        %4378 = vmatprep.subr.bf16.mxu0 0
        %4379 = vmatpush1.bf16.xpose.msra.mxu0 0
        %4380 = vmatprep.subr.bf16.mxu0 0
        %4381 = vmatpush1.bf16.xpose.msra.mxu0 0
        %4382 = vmatprep.subr.bf16.mxu0 0
        %4383 = vmatpush1.bf16.xpose.msra.mxu0 0
        %4384 = vmatprep.subr.bf16.mxu0 0
        %4385 = vmatpush1.bf16.xpose.msra.mxu0 0
        %4386 = vmatprep.subr.bf16.mxu0 0
        %4387 = vmatpush1.bf16.xpose.msra.mxu0 0
        %4388 = vmatprep.subr.bf16.mxu0 0
        %4389 = vmatpush1.bf16.xpose.msra.mxu0 0
        %4390 = vmatprep.subr.bf16.mxu0 0
        %4391 = vmatpush1.bf16.xpose.msra.mxu0 0
        %4392 = vmatprep.subr.bf16.mxu0 0
        %4393 = vmatpush1.bf16.xpose.msra.mxu0 0
        %4394 = vmatprep.subr.bf16.mxu0 0
        %4395 = vmatpush1.bf16.xpose.msra.mxu0 0
        %4396 = vmatprep.subr.bf16.mxu0 0
        %4397 = vmatpush1.bf16.xpose.msra.mxu0 0
        %4398 = vmatprep.subr.bf16.mxu0 0
        %4399 = vmatpush1.bf16.xpose.msra.mxu0 0
        %4400 = vmatprep.subr.bf16.mxu0 0
        %4401 = vmatpush1.bf16.xpose.msra.mxu0 0
        %4402 = vmatprep.mubr.bf16.mxu0 0
        %4403 = vmatmul.mubr.bf16.gmra.mrb[0].mxu0 %v4365
        %v4404 = vpop.f32.mrb[0].mxu0
        %v4405 = vadd.f32 0.0, %v4404
        %v4406 = vpop.f32.mrb[0].mxu0
        %v4407 = vpop.f32.mrb[0].mxu0
        %v4408 = vadd.f32 0.0, %v4407
        %v4409 = vpop.f32.mrb[0].mxu0
        %4410 = vdwg.mxu0
        %v4411 = vsel %vm3063, %v4405, -inf
        %4412 = vmax.xlane.f32.xlu0 %v4411
        %v4413 = vpop.xlane.xlu0 %4412
        %v4414 = vsel %vm3063, %v4408, -inf
        %4415 = vmax.xlane.f32.xlu0 %v4414
        %v4416 = vpop.xlane.xlu0 %4415
        %v4417 = vsub.f32 %v4405, %v4413
        %v4418 = vsub.f32 %v4408, %v4416
        %v4419 = vmul.f32 %v4417, 1.442695
        %v4420 = vpow.pop %v4419
        %v4421 = vmul.f32 %v4418, 1.442695
        %v4422 = vpow.pop %v4421
        %v4423 = vsel %vm3063, %v4420, 0.0
        %4424 = vadd.xlane.f32.xlu0 %v4423
        %v4425 = vpop.xlane.xlu0 %4424
        %v4426 = vsel %vm3063, %v4422, 0.0
        %4427 = vadd.xlane.f32.xlu0 %v4426
        %v4428 = vpop.xlane.xlu0 %4427
        %v4429 = vrcp.pop %v4425
        %v4430 = vmul.f32 %v4420, %v4429
        %v4431 = vrcp.pop %v4428
        %v4432 = vmul.f32 %v4422, %v4431
        %v4433 = vpack.c.bf16 %v4432, %v4430
        %v4435 = vsel %vm3063, %v4433, 0
        %4437 = vmatprep.subr.bf16.mxu0 0
        %4438 = vmatpush1.bf16.msra.mxu0 %v4363
        %4439 = vmatprep.subr.bf16.mxu0 0
        %4440 = vmatpush1.bf16.msra.mxu0 0
        %4441 = vmatprep.subr.bf16.mxu0 0
        %4442 = vmatpush1.bf16.msra.mxu0 0
        %4443 = vmatprep.subr.bf16.mxu0 0
        %4444 = vmatpush1.bf16.msra.mxu0 0
        %4445 = vmatprep.subr.bf16.mxu0 0
        %4446 = vmatpush1.bf16.msra.mxu0 0
        %4447 = vmatprep.subr.bf16.mxu0 0
        %4448 = vmatpush1.bf16.msra.mxu0 0
        %4449 = vmatprep.subr.bf16.mxu0 0
        %4450 = vmatpush1.bf16.msra.mxu0 0
        %4451 = vmatprep.subr.bf16.mxu0 0
        %4452 = vmatpush1.bf16.msra.mxu0 0
        %4453 = vmatprep.subr.bf16.mxu0 0
        %4454 = vmatpush1.bf16.msra.mxu0 0
        %4455 = vmatprep.subr.bf16.mxu0 0
        %4456 = vmatpush1.bf16.msra.mxu0 0
        %4457 = vmatprep.subr.bf16.mxu0 0
        %4458 = vmatpush1.bf16.msra.mxu0 0
        %4459 = vmatprep.subr.bf16.mxu0 0
        %4460 = vmatpush1.bf16.msra.mxu0 0
        %4461 = vmatprep.subr.bf16.mxu0 0
        %4462 = vmatpush1.bf16.msra.mxu0 0
        %4463 = vmatprep.subr.bf16.mxu0 0
        %4464 = vmatpush1.bf16.msra.mxu0 0
        %4465 = vmatprep.subr.bf16.mxu0 0
        %4466 = vmatpush1.bf16.msra.mxu0 0
        %4467 = vmatprep.subr.bf16.mxu0 0
        %4468 = vmatpush1.bf16.msra.mxu0 0
        %4469 = vmatprep.mubr.bf16.mxu0 0
        %4470 = vmatmul.mubr.bf16.gmra.mrb[0].mxu0 %v4435
        %v4471 = vpop.f32.mrb[0].mxu0
        %v4472 = vadd.f32 0.0, %v4471
        %v4473 = vpop.f32.mrb[0].mxu0
        %v4474 = vpop.f32.mrb[0].mxu0
        %v4475 = vadd.f32 0.0, %v4474
        %v4476 = vpop.f32.mrb[0].mxu0
        %4477 = vdwg.mxu0
        %4478 = vst.msk [vmem:[#allocation2] sm:$0xff] %vm3015, %v4472
        %4479 = vst.msk [vmem:[#allocation2 + $0x8] sm:$0xff] %vm3015, %v4475
        %4481 = vrot.lane.b32.xlu0 %v4361, 96
        %v4482 = vpop.permute.xlu0 %4481
        %4484 = vrot.lane.b32.xlu0 %v4362, 96
        %v4485 = vpop.permute.xlu0 %4484
        %v4487 = vsel %vm3015, %v4482, 0
        %v4490 = vsel %vm3015, %v4485, 0
        %4492 = vmatprep.subr.bf16.mxu0 0
        %4493 = vmatpush1.bf16.xpose.msra.mxu0 %v4490
        %4494 = vmatprep.subr.bf16.mxu0 0
        %4495 = vmatpush1.bf16.xpose.msra.mxu0 0
        %4496 = vmatprep.subr.bf16.mxu0 0
        %4497 = vmatpush1.bf16.xpose.msra.mxu0 0
        %4498 = vmatprep.subr.bf16.mxu0 0
        %4499 = vmatpush1.bf16.xpose.msra.mxu0 0
        %4500 = vmatprep.subr.bf16.mxu0 0
        %4501 = vmatpush1.bf16.xpose.msra.mxu0 0
        %4502 = vmatprep.subr.bf16.mxu0 0
        %4503 = vmatpush1.bf16.xpose.msra.mxu0 0
        %4504 = vmatprep.subr.bf16.mxu0 0
        %4505 = vmatpush1.bf16.xpose.msra.mxu0 0
        %4506 = vmatprep.subr.bf16.mxu0 0
        %4507 = vmatpush1.bf16.xpose.msra.mxu0 0
        %4508 = vmatprep.subr.bf16.mxu0 0
        %4509 = vmatpush1.bf16.xpose.msra.mxu0 0
        %4510 = vmatprep.subr.bf16.mxu0 0
        %4511 = vmatpush1.bf16.xpose.msra.mxu0 0
        %4512 = vmatprep.subr.bf16.mxu0 0
        %4513 = vmatpush1.bf16.xpose.msra.mxu0 0
        %4514 = vmatprep.subr.bf16.mxu0 0
        %4515 = vmatpush1.bf16.xpose.msra.mxu0 0
        %4516 = vmatprep.subr.bf16.mxu0 0
        %4517 = vmatpush1.bf16.xpose.msra.mxu0 0
        %4518 = vmatprep.subr.bf16.mxu0 0
        %4519 = vmatpush1.bf16.xpose.msra.mxu0 0
        %4520 = vmatprep.subr.bf16.mxu0 0
        %4521 = vmatpush1.bf16.xpose.msra.mxu0 0
        %4522 = vmatprep.subr.bf16.mxu0 0
        %4523 = vmatpush1.bf16.xpose.msra.mxu0 0
        %4524 = vmatprep.mubr.bf16.mxu0 0
        %4525 = vmatmul.mubr.bf16.gmra.mrb[0].mxu0 %v4487
        %v4526 = vpop.f32.mrb[0].mxu0
        %v4527 = vadd.f32 0.0, %v4526
        %v4528 = vpop.f32.mrb[0].mxu0
        %v4529 = vpop.f32.mrb[0].mxu0
        %v4530 = vadd.f32 0.0, %v4529
        %v4531 = vpop.f32.mrb[0].mxu0
        %4532 = vdwg.mxu0
        %v4533 = vsel %vm3063, %v4527, -inf
        %4534 = vmax.xlane.f32.xlu0 %v4533
        %v4535 = vpop.xlane.xlu0 %4534
        %v4536 = vsel %vm3063, %v4530, -inf
        %4537 = vmax.xlane.f32.xlu0 %v4536
        %v4538 = vpop.xlane.xlu0 %4537
        %v4539 = vsub.f32 %v4527, %v4535
        %v4540 = vsub.f32 %v4530, %v4538
        %v4541 = vmul.f32 %v4539, 1.442695
        %v4542 = vpow.pop %v4541
        %v4543 = vmul.f32 %v4540, 1.442695
        %v4544 = vpow.pop %v4543
        %v4545 = vsel %vm3063, %v4542, 0.0
        %4546 = vadd.xlane.f32.xlu0 %v4545
        %v4547 = vpop.xlane.xlu0 %4546
        %v4548 = vsel %vm3063, %v4544, 0.0
        %4549 = vadd.xlane.f32.xlu0 %v4548
        %v4550 = vpop.xlane.xlu0 %4549
        %v4551 = vrcp.pop %v4547
        %v4552 = vmul.f32 %v4542, %v4551
        %v4553 = vrcp.pop %v4550
        %v4554 = vmul.f32 %v4544, %v4553
        %v4555 = vpack.c.bf16 %v4554, %v4552
        %4557 = vrot.lane.b32.xlu0 %v4363, 96
        %v4558 = vpop.permute.xlu0 %4557
        %v4561 = vsel %vm3063, %v4555, 0
        %4563 = vmatprep.subr.bf16.mxu0 0
        %4564 = vmatpush1.bf16.msra.mxu0 %v4558
        %4565 = vmatprep.subr.bf16.mxu0 0
        %4566 = vmatpush1.bf16.msra.mxu0 0
        %4567 = vmatprep.subr.bf16.mxu0 0
        %4568 = vmatpush1.bf16.msra.mxu0 0
        %4569 = vmatprep.subr.bf16.mxu0 0
        %4570 = vmatpush1.bf16.msra.mxu0 0
        %4571 = vmatprep.subr.bf16.mxu0 0
        %4572 = vmatpush1.bf16.msra.mxu0 0
        %4573 = vmatprep.subr.bf16.mxu0 0
        %4574 = vmatpush1.bf16.msra.mxu0 0
        %4575 = vmatprep.subr.bf16.mxu0 0
        %4576 = vmatpush1.bf16.msra.mxu0 0
        %4577 = vmatprep.subr.bf16.mxu0 0
        %4578 = vmatpush1.bf16.msra.mxu0 0
        %4579 = vmatprep.subr.bf16.mxu0 0
        %4580 = vmatpush1.bf16.msra.mxu0 0
        %4581 = vmatprep.subr.bf16.mxu0 0
        %4582 = vmatpush1.bf16.msra.mxu0 0
        %4583 = vmatprep.subr.bf16.mxu0 0
        %4584 = vmatpush1.bf16.msra.mxu0 0
        %4585 = vmatprep.subr.bf16.mxu0 0
        %4586 = vmatpush1.bf16.msra.mxu0 0
        %4587 = vmatprep.subr.bf16.mxu0 0
        %4588 = vmatpush1.bf16.msra.mxu0 0
        %4589 = vmatprep.subr.bf16.mxu0 0
        %4590 = vmatpush1.bf16.msra.mxu0 0
        %4591 = vmatprep.subr.bf16.mxu0 0
        %4592 = vmatpush1.bf16.msra.mxu0 0
        %4593 = vmatprep.subr.bf16.mxu0 0
        %4594 = vmatpush1.bf16.msra.mxu0 0
        %4595 = vmatprep.mubr.bf16.mxu0 0
        %4596 = vmatmul.mubr.bf16.gmra.mrb[0].mxu0 %v4561
        %v4597 = vpop.f32.mrb[0].mxu0
        %v4598 = vadd.f32 0.0, %v4597
        %v4599 = vpop.f32.mrb[0].mxu0
        %v4600 = vpop.f32.mrb[0].mxu0
        %v4601 = vadd.f32 0.0, %v4600
        %v4602 = vpop.f32.mrb[0].mxu0
        %4603 = vdwg.mxu0
        %4606 = vrot.lane.b32.xlu0 %v4598, 32
        %v4607 = vpop.permute.xlu0 %4606
        %4608 = vrot.lane.b32.xlu0 %v4601, 32
        %v4609 = vpop.permute.xlu0 %4608
        %4612 = vst.msk [vmem:[#allocation2] sm:$0xff] %vm3265, %v4607
        %4613 = vst.msk [vmem:[#allocation2 + $0x8] sm:$0xff] %vm3265, %v4609
        %4614 = vrot.lane.b32.xlu0 %v4361, 64
        %v4615 = vpop.permute.xlu0 %4614
        %4616 = vrot.lane.b32.xlu0 %v4362, 64
        %v4617 = vpop.permute.xlu0 %4616
        %v4619 = vsel %vm3015, %v4615, 0
        %v4622 = vsel %vm3015, %v4617, 0
        %4624 = vmatprep.subr.bf16.mxu0 0
        %4625 = vmatpush1.bf16.xpose.msra.mxu0 %v4622
        %4626 = vmatprep.subr.bf16.mxu0 0
        %4627 = vmatpush1.bf16.xpose.msra.mxu0 0
        %4628 = vmatprep.subr.bf16.mxu0 0
        %4629 = vmatpush1.bf16.xpose.msra.mxu0 0
        %4630 = vmatprep.subr.bf16.mxu0 0
        %4631 = vmatpush1.bf16.xpose.msra.mxu0 0
        %4632 = vmatprep.subr.bf16.mxu0 0
        %4633 = vmatpush1.bf16.xpose.msra.mxu0 0
        %4634 = vmatprep.subr.bf16.mxu0 0
        %4635 = vmatpush1.bf16.xpose.msra.mxu0 0
        %4636 = vmatprep.subr.bf16.mxu0 0
        %4637 = vmatpush1.bf16.xpose.msra.mxu0 0
        %4638 = vmatprep.subr.bf16.mxu0 0
        %4639 = vmatpush1.bf16.xpose.msra.mxu0 0
        %4640 = vmatprep.subr.bf16.mxu0 0
        %4641 = vmatpush1.bf16.xpose.msra.mxu0 0
        %4642 = vmatprep.subr.bf16.mxu0 0
        %4643 = vmatpush1.bf16.xpose.msra.mxu0 0
        %4644 = vmatprep.subr.bf16.mxu0 0
        %4645 = vmatpush1.bf16.xpose.msra.mxu0 0
        %4646 = vmatprep.subr.bf16.mxu0 0
        %4647 = vmatpush1.bf16.xpose.msra.mxu0 0
        %4648 = vmatprep.subr.bf16.mxu0 0
        %4649 = vmatpush1.bf16.xpose.msra.mxu0 0
        %4650 = vmatprep.subr.bf16.mxu0 0
        %4651 = vmatpush1.bf16.xpose.msra.mxu0 0
        %4652 = vmatprep.subr.bf16.mxu0 0
        %4653 = vmatpush1.bf16.xpose.msra.mxu0 0
        %4654 = vmatprep.subr.bf16.mxu0 0
        %4655 = vmatpush1.bf16.xpose.msra.mxu0 0
        %4656 = vmatprep.mubr.bf16.mxu0 0
        %4657 = vmatmul.mubr.bf16.gmra.mrb[0].mxu0 %v4619
        %v4658 = vpop.f32.mrb[0].mxu0
        %v4659 = vadd.f32 0.0, %v4658
        %v4660 = vpop.f32.mrb[0].mxu0
        %v4661 = vpop.f32.mrb[0].mxu0
        %v4662 = vadd.f32 0.0, %v4661
        %v4663 = vpop.f32.mrb[0].mxu0
        %4664 = vdwg.mxu0
        %v4665 = vsel %vm3063, %v4659, -inf
        %4666 = vmax.xlane.f32.xlu0 %v4665
        %v4667 = vpop.xlane.xlu0 %4666
        %v4668 = vsel %vm3063, %v4662, -inf
        %4669 = vmax.xlane.f32.xlu0 %v4668
        %v4670 = vpop.xlane.xlu0 %4669
        %v4671 = vsub.f32 %v4659, %v4667
        %v4672 = vsub.f32 %v4662, %v4670
        %v4673 = vmul.f32 %v4671, 1.442695
        %v4674 = vpow.pop %v4673
        %v4675 = vmul.f32 %v4672, 1.442695
        %v4676 = vpow.pop %v4675
        %v4677 = vsel %vm3063, %v4674, 0.0
        %4678 = vadd.xlane.f32.xlu0 %v4677
        %v4679 = vpop.xlane.xlu0 %4678
        %v4680 = vsel %vm3063, %v4676, 0.0
        %4681 = vadd.xlane.f32.xlu0 %v4680
        %v4682 = vpop.xlane.xlu0 %4681
        %v4683 = vrcp.pop %v4679
        %v4684 = vmul.f32 %v4674, %v4683
        %v4685 = vrcp.pop %v4682
        %v4686 = vmul.f32 %v4676, %v4685
        %v4687 = vpack.c.bf16 %v4686, %v4684
        %4688 = vrot.lane.b32.xlu0 %v4363, 64
        %v4689 = vpop.permute.xlu0 %4688
        %v4692 = vsel %vm3063, %v4687, 0
        %4694 = vmatprep.subr.bf16.mxu0 0
        %4695 = vmatpush1.bf16.msra.mxu0 %v4689
        %4696 = vmatprep.subr.bf16.mxu0 0
        %4697 = vmatpush1.bf16.msra.mxu0 0
        %4698 = vmatprep.subr.bf16.mxu0 0
        %4699 = vmatpush1.bf16.msra.mxu0 0
        %4700 = vmatprep.subr.bf16.mxu0 0
        %4701 = vmatpush1.bf16.msra.mxu0 0
        %4702 = vmatprep.subr.bf16.mxu0 0
        %4703 = vmatpush1.bf16.msra.mxu0 0
        %4704 = vmatprep.subr.bf16.mxu0 0
        %4705 = vmatpush1.bf16.msra.mxu0 0
        %4706 = vmatprep.subr.bf16.mxu0 0
        %4707 = vmatpush1.bf16.msra.mxu0 0
        %4708 = vmatprep.subr.bf16.mxu0 0
        %4709 = vmatpush1.bf16.msra.mxu0 0
        %4710 = vmatprep.subr.bf16.mxu0 0
        %4711 = vmatpush1.bf16.msra.mxu0 0
        %4712 = vmatprep.subr.bf16.mxu0 0
        %4713 = vmatpush1.bf16.msra.mxu0 0
        %4714 = vmatprep.subr.bf16.mxu0 0
        %4715 = vmatpush1.bf16.msra.mxu0 0
        %4716 = vmatprep.subr.bf16.mxu0 0
        %4717 = vmatpush1.bf16.msra.mxu0 0
        %4718 = vmatprep.subr.bf16.mxu0 0
        %4719 = vmatpush1.bf16.msra.mxu0 0
        %4720 = vmatprep.subr.bf16.mxu0 0
        %4721 = vmatpush1.bf16.msra.mxu0 0
        %4722 = vmatprep.subr.bf16.mxu0 0
        %4723 = vmatpush1.bf16.msra.mxu0 0
        %4724 = vmatprep.subr.bf16.mxu0 0
        %4725 = vmatpush1.bf16.msra.mxu0 0
        %4726 = vmatprep.mubr.bf16.mxu0 0
        %4727 = vmatmul.mubr.bf16.gmra.mrb[0].mxu0 %v4692
        %v4728 = vpop.f32.mrb[0].mxu0
        %v4729 = vadd.f32 0.0, %v4728
        %v4730 = vpop.f32.mrb[0].mxu0
        %v4731 = vpop.f32.mrb[0].mxu0
        %v4732 = vadd.f32 0.0, %v4731
        %v4733 = vpop.f32.mrb[0].mxu0
        %4734 = vdwg.mxu0
        %4737 = vrot.lane.b32.xlu0 %v4729, 64
        %v4738 = vpop.permute.xlu0 %4737
        %4739 = vrot.lane.b32.xlu0 %v4732, 64
        %v4740 = vpop.permute.xlu0 %4739
        %4743 = vst.msk [vmem:[#allocation2] sm:$0xff] %vm3397, %v4738
        %4744 = vst.msk [vmem:[#allocation2 + $0x8] sm:$0xff] %vm3397, %v4740
        %4745 = vrot.lane.b32.xlu0 %v4361, 32
        %v4746 = vpop.permute.xlu0 %4745
        %4747 = vrot.lane.b32.xlu0 %v4362, 32
        %v4748 = vpop.permute.xlu0 %4747
        %v4750 = vsel %vm3015, %v4746, 0
        %v4753 = vsel %vm3015, %v4748, 0
        %4755 = vmatprep.subr.bf16.mxu0 0
        %4756 = vmatpush1.bf16.xpose.msra.mxu0 %v4753
        %4757 = vmatprep.subr.bf16.mxu0 0
        %4758 = vmatpush1.bf16.xpose.msra.mxu0 0
        %4759 = vmatprep.subr.bf16.mxu0 0
        %4760 = vmatpush1.bf16.xpose.msra.mxu0 0
        %4761 = vmatprep.subr.bf16.mxu0 0
        %4762 = vmatpush1.bf16.xpose.msra.mxu0 0
        %4763 = vmatprep.subr.bf16.mxu0 0
        %4764 = vmatpush1.bf16.xpose.msra.mxu0 0
        %4765 = vmatprep.subr.bf16.mxu0 0
        %4766 = vmatpush1.bf16.xpose.msra.mxu0 0
        %4767 = vmatprep.subr.bf16.mxu0 0
        %4768 = vmatpush1.bf16.xpose.msra.mxu0 0
        %4769 = vmatprep.subr.bf16.mxu0 0
        %4770 = vmatpush1.bf16.xpose.msra.mxu0 0
        %4771 = vmatprep.subr.bf16.mxu0 0
        %4772 = vmatpush1.bf16.xpose.msra.mxu0 0
        %4773 = vmatprep.subr.bf16.mxu0 0
        %4774 = vmatpush1.bf16.xpose.msra.mxu0 0
        %4775 = vmatprep.subr.bf16.mxu0 0
        %4776 = vmatpush1.bf16.xpose.msra.mxu0 0
        %4777 = vmatprep.subr.bf16.mxu0 0
        %4778 = vmatpush1.bf16.xpose.msra.mxu0 0
        %4779 = vmatprep.subr.bf16.mxu0 0
        %4780 = vmatpush1.bf16.xpose.msra.mxu0 0
        %4781 = vmatprep.subr.bf16.mxu0 0
        %4782 = vmatpush1.bf16.xpose.msra.mxu0 0
        %4783 = vmatprep.subr.bf16.mxu0 0
        %4784 = vmatpush1.bf16.xpose.msra.mxu0 0
        %4785 = vmatprep.subr.bf16.mxu0 0
        %4786 = vmatpush1.bf16.xpose.msra.mxu0 0
        %4787 = vmatprep.mubr.bf16.mxu0 0
        %4788 = vmatmul.mubr.bf16.gmra.mrb[0].mxu0 %v4750
        %v4789 = vpop.f32.mrb[0].mxu0
        %v4790 = vadd.f32 0.0, %v4789
        %v4791 = vpop.f32.mrb[0].mxu0
        %v4792 = vpop.f32.mrb[0].mxu0
        %v4793 = vadd.f32 0.0, %v4792
        %v4794 = vpop.f32.mrb[0].mxu0
        %4795 = vdwg.mxu0
        %v4796 = vsel %vm3063, %v4790, -inf
        %4797 = vmax.xlane.f32.xlu0 %v4796
        %v4798 = vpop.xlane.xlu0 %4797
        %v4799 = vsel %vm3063, %v4793, -inf
        %4800 = vmax.xlane.f32.xlu0 %v4799
        %v4801 = vpop.xlane.xlu0 %4800
        %v4802 = vsub.f32 %v4790, %v4798
        %v4803 = vsub.f32 %v4793, %v4801
        %v4804 = vmul.f32 %v4802, 1.442695
        %v4805 = vpow.pop %v4804
        %v4806 = vmul.f32 %v4803, 1.442695
        %v4807 = vpow.pop %v4806
        %v4808 = vsel %vm3063, %v4805, 0.0
        %4809 = vadd.xlane.f32.xlu0 %v4808
        %v4810 = vpop.xlane.xlu0 %4809
        %v4811 = vsel %vm3063, %v4807, 0.0
        %4812 = vadd.xlane.f32.xlu0 %v4811
        %v4813 = vpop.xlane.xlu0 %4812
        %v4814 = vrcp.pop %v4810
        %v4815 = vmul.f32 %v4805, %v4814
        %v4816 = vrcp.pop %v4813
        %v4817 = vmul.f32 %v4807, %v4816
        %v4818 = vpack.c.bf16 %v4817, %v4815
        %4819 = vrot.lane.b32.xlu0 %v4363, 32
        %v4820 = vpop.permute.xlu0 %4819
        %v4823 = vsel %vm3063, %v4818, 0
        %4825 = vmatprep.subr.bf16.mxu0 0
        %4826 = vmatpush1.bf16.msra.mxu0 %v4820
        %4827 = vmatprep.subr.bf16.mxu0 0
        %4828 = vmatpush1.bf16.msra.mxu0 0
        %4829 = vmatprep.subr.bf16.mxu0 0
        %4830 = vmatpush1.bf16.msra.mxu0 0
        %4831 = vmatprep.subr.bf16.mxu0 0
        %4832 = vmatpush1.bf16.msra.mxu0 0
        %4833 = vmatprep.subr.bf16.mxu0 0
        %4834 = vmatpush1.bf16.msra.mxu0 0
        %4835 = vmatprep.subr.bf16.mxu0 0
        %4836 = vmatpush1.bf16.msra.mxu0 0
        %4837 = vmatprep.subr.bf16.mxu0 0
        %4838 = vmatpush1.bf16.msra.mxu0 0
        %4839 = vmatprep.subr.bf16.mxu0 0
        %4840 = vmatpush1.bf16.msra.mxu0 0
        %4841 = vmatprep.subr.bf16.mxu0 0
        %4842 = vmatpush1.bf16.msra.mxu0 0
        %4843 = vmatprep.subr.bf16.mxu0 0
        %4844 = vmatpush1.bf16.msra.mxu0 0
        %4845 = vmatprep.subr.bf16.mxu0 0
        %4846 = vmatpush1.bf16.msra.mxu0 0
        %4847 = vmatprep.subr.bf16.mxu0 0
        %4848 = vmatpush1.bf16.msra.mxu0 0
        %4849 = vmatprep.subr.bf16.mxu0 0
        %4850 = vmatpush1.bf16.msra.mxu0 0
        %4851 = vmatprep.subr.bf16.mxu0 0
        %4852 = vmatpush1.bf16.msra.mxu0 0
        %4853 = vmatprep.subr.bf16.mxu0 0
        %4854 = vmatpush1.bf16.msra.mxu0 0
        %4855 = vmatprep.subr.bf16.mxu0 0
        %4856 = vmatpush1.bf16.msra.mxu0 0
        %4857 = vmatprep.mubr.bf16.mxu0 0
        %4858 = vmatmul.mubr.bf16.gmra.mrb[0].mxu0 %v4823
        %v4859 = vpop.f32.mrb[0].mxu0
        %v4860 = vadd.f32 0.0, %v4859
        %v4861 = vpop.f32.mrb[0].mxu0
        %v4862 = vpop.f32.mrb[0].mxu0
        %v4863 = vadd.f32 0.0, %v4862
        %v4864 = vpop.f32.mrb[0].mxu0
        %4865 = vdwg.mxu0
        %4868 = vrot.lane.b32.xlu0 %v4860, 96
        %v4869 = vpop.permute.xlu0 %4868
        %4870 = vrot.lane.b32.xlu0 %v4863, 96
        %v4871 = vpop.permute.xlu0 %4870
        %4874 = vst.msk [vmem:[#allocation2] sm:$0xff] %vm3529, %v4869
        %4875 = vst.msk [vmem:[#allocation2 + $0x8] sm:$0xff] %vm3529, %v4871
        %v4876 = vld [vmem:[#allocation2] sm:$0xff]
        %v4877 = vld [vmem:[#allocation2 + $0x8] sm:$0xff]
        %v4878 = vpack.c.bf16 %v4877, %v4876
        %s4879 = scalar_lea.vmem %s14, 64
        %v4880 = vld [vmem:[%s4879] sm:$0xf]
        %v4881 = vld [vmem:[%s4879 + $0x4] sm:$0xf]
        %v4882 = vld [vmem:[%s4879 + $0x8] sm:$0xf]
        %v4883 = vld [vmem:[%s4879 + $0xc] sm:$0xf]
        %v4884 = vld [vmem:[%s4879 + $0x10] sm:$0xf]
        %v4885 = vld [vmem:[%s4879 + $0x14] sm:$0xf]
        %v4886 = vld [vmem:[%s4879 + $0x18] sm:$0xf]
        %v4887 = vld [vmem:[%s4879 + $0x1c] sm:$0xf]
        %v4888 = vld [vmem:[%s4879 + $0x20] sm:$0xf]
        %v4889 = vld [vmem:[%s4879 + $0x24] sm:$0xf]
        %v4890 = vld [vmem:[%s4879 + $0x28] sm:$0xf]
        %v4891 = vld [vmem:[%s4879 + $0x2c] sm:$0xf]
        %v4892 = vld [vmem:[%s4879 + $0x30] sm:$0xf]
        %v4893 = vld [vmem:[%s4879 + $0x34] sm:$0xf]
        %v4894 = vld [vmem:[%s4879 + $0x38] sm:$0xf]
        %v4895 = vld [vmem:[%s4879 + $0x3c] sm:$0xf]
        %s4896 = scalar_lea.vmem %s15, 1
        %v4897 = vld [vmem:[%s4896] sm:$0x1]
        %v4899 = vlaneseq
        %v4900 = vshrl.u32 %v4899, 7
        %v4901 = vsub.s32 0, %v4900
        %v4902 = vrot.slane %v4897, %v4901
        %v4920 = vunpack.c.l.b16 %v4880
        %v4921 = vunpack.c.l.b16 %v4881
        %v4922 = vunpack.c.l.b16 %v4882
        %v4923 = vunpack.c.l.b16 %v4883
        %v4924 = vunpack.c.l.b16 %v4884
        %v4925 = vunpack.c.l.b16 %v4885
        %v4926 = vunpack.c.l.b16 %v4886
        %v4927 = vunpack.c.l.b16 %v4887
        %v4928 = vunpack.c.l.b16 %v4888
        %v4929 = vunpack.c.l.b16 %v4889
        %v4930 = vunpack.c.l.b16 %v4890
        %v4931 = vunpack.c.l.b16 %v4891
        %v4932 = vunpack.c.l.b16 %v4892
        %v4933 = vunpack.c.l.b16 %v4893
        %v4934 = vunpack.c.l.b16 %v4894
        %v4935 = vunpack.c.l.b16 %v4895
        %v4936 = vpack.c.b16 %v4921, %v4920
        %v4937 = vpack.c.b16 %v4923, %v4922
        %v4938 = vpack.c.b16 %v4925, %v4924
        %v4939 = vpack.c.b16 %v4927, %v4926
        %v4940 = vpack.c.b16 %v4929, %v4928
        %v4941 = vpack.c.b16 %v4931, %v4930
        %v4942 = vpack.c.b16 %v4933, %v4932
        %v4943 = vpack.c.b16 %v4935, %v4934
        %4952 = vmatprep.subr.bf16.mxu0 0
        %4953 = vmatpush1.bf16.msra.mxu0 %v4936
        %4954 = vmatprep.subr.bf16.mxu0 0
        %4955 = vmatpush1.bf16.msra.mxu0 %v4937
        %4956 = vmatprep.subr.bf16.mxu0 0
        %4957 = vmatpush1.bf16.msra.mxu0 %v4938
        %4958 = vmatprep.subr.bf16.mxu0 0
        %4959 = vmatpush1.bf16.msra.mxu0 %v4939
        %4960 = vmatprep.subr.bf16.mxu0 0
        %4961 = vmatpush1.bf16.msra.mxu0 %v4940
        %4962 = vmatprep.subr.bf16.mxu0 0
        %4963 = vmatpush1.bf16.msra.mxu0 %v4941
        %4964 = vmatprep.subr.bf16.mxu0 0
        %4965 = vmatpush1.bf16.msra.mxu0 %v4942
        %4966 = vmatprep.subr.bf16.mxu0 0
        %4967 = vmatpush1.bf16.msra.mxu0 %v4943
        %4968 = vmatprep.subr.bf16.mxu0 0
        %4969 = vmatpush1.bf16.msra.mxu0 0
        %4970 = vmatprep.subr.bf16.mxu0 0
        %4971 = vmatpush1.bf16.msra.mxu0 0
        %4972 = vmatprep.subr.bf16.mxu0 0
        %4973 = vmatpush1.bf16.msra.mxu0 0
        %4974 = vmatprep.subr.bf16.mxu0 0
        %4975 = vmatpush1.bf16.msra.mxu0 0
        %4976 = vmatprep.subr.bf16.mxu0 0
        %4977 = vmatpush1.bf16.msra.mxu0 0
        %4978 = vmatprep.subr.bf16.mxu0 0
        %4979 = vmatpush1.bf16.msra.mxu0 0
        %4980 = vmatprep.subr.bf16.mxu0 0
        %4981 = vmatpush1.bf16.msra.mxu0 0
        %4982 = vmatprep.subr.bf16.mxu0 0
        %4983 = vmatpush1.bf16.msra.mxu0 0
        %4984 = vmatprep.mubr.bf16.mxu0 0
        %4985 = vmatmul.mubr.bf16.gmra.mrb[0].mxu0 %v4878
        %v4986 = vpop.f32.mrb[0].mxu0
        %v4987 = vadd.f32 %v4902, %v4986
        %v4988 = vpop.f32.mrb[0].mxu0
        %v4989 = vpop.f32.mrb[0].mxu0
        %v4990 = vadd.f32 %v4902, %v4989
        %v4991 = vpop.f32.mrb[0].mxu0
        %4992 = vdwg.mxu0
        %v4993 = vadd.f32 %v4095, %v4987
        %v4994 = vadd.f32 %v4096, %v4990
        %s4995 = scalar_lea.vmem %s16, 1
        %v4996 = vld [vmem:[%s4995] sm:$0x1]
        %s4997 = scalar_lea.vmem %s17, 1
        %v4998 = vld [vmem:[%s4997] sm:$0x1]
        %4999 = vadd.xlane.f32.xlu0 %v4993
        %v5000 = vpop.xlane.xlu0 %4999
        %5001 = vadd.xlane.f32.xlu0 %v4994
        %v5002 = vpop.xlane.xlu0 %5001
        %v5003 = vmul.f32 %v5000, %v2562
        %v5004 = vmul.f32 %v5002, %v2562
        %v5005 = vsub.f32 %v4993, %v5003
        %v5006 = vsub.f32 %v4994, %v5004
        %v5007 = vmul.f32 %v5005, %v5005
        %v5008 = vmul.f32 %v5006, %v5006
        %5009 = vadd.xlane.f32.xlu0 %v5007
        %v5010 = vpop.xlane.xlu0 %5009
        %5011 = vadd.xlane.f32.xlu0 %v5008
        %v5012 = vpop.xlane.xlu0 %5011
        %v5013 = vmul.f32 %v5010, %v2562
        %v5014 = vmul.f32 %v5012, %v2562
        %v5015 = vadd.f32 %v5013, 1e-05
        %v5016 = vadd.f32 %v5014, 1e-05
        %v5017 = vrsqrt.pop %v5015
        %v5018 = vrsqrt.pop %v5016
        %v5019 = vmul.f32 %v5005, %v5017
        %v5020 = vmul.f32 %v5006, %v5018
        %v5022 = vlaneseq
        %v5023 = vshrl.u32 %v5022, 7
        %v5024 = vsub.s32 0, %v5023
        %v5025 = vrot.slane %v4996, %v5024
        %v5027 = vmul.f32 %v5019, %v5025
        %v5028 = vmul.f32 %v5020, %v5025
        %v5030 = vlaneseq
        %v5031 = vshrl.u32 %v5030, 7
        %v5032 = vsub.s32 0, %v5031
        %v5033 = vrot.slane %v4998, %v5032
        %v5035 = vadd.f32 %v5027, %v5033
        %v5036 = vadd.f32 %v5028, %v5033
        %v5037 = vpack.c.bf16 %v5036, %v5035
        %s5038 = scalar_lea.vmem [#allocation8], 128
        %v5039 = vld [vmem:[%s5038] sm:$0xff]
        %v5040 = vld [vmem:[%s5038 + $0x8] sm:$0xff]
        %v5041 = vld [vmem:[%s5038 + $0x10] sm:$0xff]
        %v5042 = vld [vmem:[%s5038 + $0x18] sm:$0xff]
        %v5043 = vld [vmem:[%s5038 + $0x20] sm:$0xff]
        %v5044 = vld [vmem:[%s5038 + $0x28] sm:$0xff]
        %v5045 = vld [vmem:[%s5038 + $0x30] sm:$0xff]
        %v5046 = vld [vmem:[%s5038 + $0x38] sm:$0xff]
        %v5047 = vld [vmem:[%s5038 + $0x40] sm:$0xff]
        %v5048 = vld [vmem:[%s5038 + $0x48] sm:$0xff]
        %v5049 = vld [vmem:[%s5038 + $0x50] sm:$0xff]
        %v5050 = vld [vmem:[%s5038 + $0x58] sm:$0xff]
        %v5051 = vld [vmem:[%s5038 + $0x60] sm:$0xff]
        %v5052 = vld [vmem:[%s5038 + $0x68] sm:$0xff]
        %v5053 = vld [vmem:[%s5038 + $0x70] sm:$0xff]
        %v5054 = vld [vmem:[%s5038 + $0x78] sm:$0xff]
        %s5055 = scalar_lea.vmem %s19, 2
        %v5056 = vld [vmem:[%s5055] sm:$0x3]
        %v5058 = vlaneseq
        %v5059 = vshrl.u32 %v5058, 7
        %v5060 = vsub.s32 0, %v5059
        %v5061 = vrot.slane %v5056, %v5060
        %v5062 = vlaneseq
        %v5063 = vshrl.u32 %v5062, 7
        %v5064 = vsub.s32 1, %v5063
        %v5065 = vrot.slane %v5056, %v5064
        %v5084 = vunpack.c.l.b16 %v5039
        %v5085 = vunpack.c.h.b16 %v5039
        %v5086 = vunpack.c.l.b16 %v5040
        %v5087 = vunpack.c.h.b16 %v5040
        %v5088 = vunpack.c.l.b16 %v5041
        %v5089 = vunpack.c.h.b16 %v5041
        %v5090 = vunpack.c.l.b16 %v5042
        %v5091 = vunpack.c.h.b16 %v5042
        %v5092 = vunpack.c.l.b16 %v5043
        %v5093 = vunpack.c.h.b16 %v5043
        %v5094 = vunpack.c.l.b16 %v5044
        %v5095 = vunpack.c.h.b16 %v5044
        %v5096 = vunpack.c.l.b16 %v5045
        %v5097 = vunpack.c.h.b16 %v5045
        %v5098 = vunpack.c.l.b16 %v5046
        %v5099 = vunpack.c.h.b16 %v5046
        %v5100 = vunpack.c.l.b16 %v5047
        %v5101 = vunpack.c.h.b16 %v5047
        %v5102 = vunpack.c.l.b16 %v5048
        %v5103 = vunpack.c.h.b16 %v5048
        %v5104 = vunpack.c.l.b16 %v5049
        %v5105 = vunpack.c.h.b16 %v5049
        %v5106 = vunpack.c.l.b16 %v5050
        %v5107 = vunpack.c.h.b16 %v5050
        %v5108 = vunpack.c.l.b16 %v5051
        %v5109 = vunpack.c.h.b16 %v5051
        %v5110 = vunpack.c.l.b16 %v5052
        %v5111 = vunpack.c.h.b16 %v5052
        %v5112 = vunpack.c.l.b16 %v5053
        %v5113 = vunpack.c.h.b16 %v5053
        %v5114 = vunpack.c.l.b16 %v5054
        %v5115 = vunpack.c.h.b16 %v5054
        %v5116 = vpack.c.b16 %v5086, %v5084
        %v5117 = vpack.c.b16 %v5087, %v5085
        %v5118 = vpack.c.b16 %v5090, %v5088
        %v5119 = vpack.c.b16 %v5091, %v5089
        %v5120 = vpack.c.b16 %v5094, %v5092
        %v5121 = vpack.c.b16 %v5095, %v5093
        %v5122 = vpack.c.b16 %v5098, %v5096
        %v5123 = vpack.c.b16 %v5099, %v5097
        %v5124 = vpack.c.b16 %v5102, %v5100
        %v5125 = vpack.c.b16 %v5103, %v5101
        %v5126 = vpack.c.b16 %v5106, %v5104
        %v5127 = vpack.c.b16 %v5107, %v5105
        %v5128 = vpack.c.b16 %v5110, %v5108
        %v5129 = vpack.c.b16 %v5111, %v5109
        %v5130 = vpack.c.b16 %v5114, %v5112
        %v5131 = vpack.c.b16 %v5115, %v5113
        %5148 = vmatprep.subr.bf16.mxu0 %v5117
        %5149 = vmatpush1.bf16.msra.mxu0 %v5116
        %5150 = vmatprep.subr.bf16.mxu0 %v5119
        %5151 = vmatpush1.bf16.msra.mxu0 %v5118
        %5152 = vmatprep.subr.bf16.mxu0 %v5121
        %5153 = vmatpush1.bf16.msra.mxu0 %v5120
        %5154 = vmatprep.subr.bf16.mxu0 %v5123
        %5155 = vmatpush1.bf16.msra.mxu0 %v5122
        %5156 = vmatprep.subr.bf16.mxu0 %v5125
        %5157 = vmatpush1.bf16.msra.mxu0 %v5124
        %5158 = vmatprep.subr.bf16.mxu0 %v5127
        %5159 = vmatpush1.bf16.msra.mxu0 %v5126
        %5160 = vmatprep.subr.bf16.mxu0 %v5129
        %5161 = vmatpush1.bf16.msra.mxu0 %v5128
        %5162 = vmatprep.subr.bf16.mxu0 %v5131
        %5163 = vmatpush1.bf16.msra.mxu0 %v5130
        %5164 = vmatprep.subr.bf16.mxu0 0
        %5165 = vmatpush1.bf16.msra.mxu0 0
        %5166 = vmatprep.subr.bf16.mxu0 0
        %5167 = vmatpush1.bf16.msra.mxu0 0
        %5168 = vmatprep.subr.bf16.mxu0 0
        %5169 = vmatpush1.bf16.msra.mxu0 0
        %5170 = vmatprep.subr.bf16.mxu0 0
        %5171 = vmatpush1.bf16.msra.mxu0 0
        %5172 = vmatprep.subr.bf16.mxu0 0
        %5173 = vmatpush1.bf16.msra.mxu0 0
        %5174 = vmatprep.subr.bf16.mxu0 0
        %5175 = vmatpush1.bf16.msra.mxu0 0
        %5176 = vmatprep.subr.bf16.mxu0 0
        %5177 = vmatpush1.bf16.msra.mxu0 0
        %5178 = vmatprep.subr.bf16.mxu0 0
        %5179 = vmatpush1.bf16.msra.mxu0 0
        %5180 = vmatprep.mubr.bf16.mxu0 0
        %5181 = vmatmul.mubr.bf16.gmra.mrb[0].mxu0 %v5037
        %v5182 = vpop.f32.mrb[0].mxu0
        %v5183 = vadd.f32 %v5061, %v5182
        %v5184 = vpop.f32.mrb[0].mxu0
        %v5185 = vadd.f32 %v5065, %v5184
        %v5186 = vpop.f32.mrb[0].mxu0
        %v5187 = vadd.f32 %v5061, %v5186
        %v5188 = vpop.f32.mrb[0].mxu0
        %v5189 = vadd.f32 %v5065, %v5188
        %5190 = vdwg.mxu0
        %v5191 = vmul.f32 %v5183, 0.5
        %v5192 = vmul.f32 %v5185, 0.5
        %v5193 = vmul.f32 %v5187, 0.5
        %v5194 = vmul.f32 %v5189, 0.5
        %v5195 = vmul.f32 %v5183, 0.044715
        %v5196 = vmul.f32 %v5185, 0.044715
        %v5197 = vmul.f32 %v5187, 0.044715
        %v5198 = vmul.f32 %v5189, 0.044715
        %v5199 = vmul.f32 %v5195, %v5183
        %v5200 = vmul.f32 %v5196, %v5185
        %v5201 = vmul.f32 %v5197, %v5187
        %v5202 = vmul.f32 %v5198, %v5189
        %v5203 = vmul.f32 %v5199, %v5183
        %v5204 = vmul.f32 %v5200, %v5185
        %v5205 = vmul.f32 %v5201, %v5187
        %v5206 = vmul.f32 %v5202, %v5189
        %v5207 = vadd.f32 %v5183, %v5203
        %v5208 = vadd.f32 %v5185, %v5204
        %v5209 = vadd.f32 %v5187, %v5205
        %v5210 = vadd.f32 %v5189, %v5206
        %v5211 = vmul.f32 %v5207, 0.7978846
        %v5212 = vmul.f32 %v5208, 0.7978846
        %v5213 = vmul.f32 %v5209, 0.7978846
        %v5214 = vmul.f32 %v5210, 0.7978846
        %v5215 = vtanh.pop %v5211
        %v5216 = vtanh.pop %v5212
        %v5217 = vtanh.pop %v5213
        %v5218 = vtanh.pop %v5214
        %v5219 = vadd.f32 %v5215, 1.0
        %v5220 = vadd.f32 %v5216, 1.0
        %v5221 = vadd.f32 %v5217, 1.0
        %v5222 = vadd.f32 %v5218, 1.0
        %v5223 = vmul.f32 %v5191, %v5219
        %v5224 = vmul.f32 %v5192, %v5220
        %v5225 = vmul.f32 %v5193, %v5221
        %v5226 = vmul.f32 %v5194, %v5222
        %v5227 = vpack.c.bf16 %v5225, %v5223
        %v5228 = vpack.c.bf16 %v5226, %v5224
        %s5229 = scalar_lea.vmem [#allocation10], 128
        %v5230 = vld [vmem:[%s5229] sm:$0xf]
        %v5231 = vld [vmem:[%s5229 + $0x4] sm:$0xf]
        %v5232 = vld [vmem:[%s5229 + $0x8] sm:$0xf]
        %v5233 = vld [vmem:[%s5229 + $0xc] sm:$0xf]
        %v5234 = vld [vmem:[%s5229 + $0x10] sm:$0xf]
        %v5235 = vld [vmem:[%s5229 + $0x14] sm:$0xf]
        %v5236 = vld [vmem:[%s5229 + $0x18] sm:$0xf]
        %v5237 = vld [vmem:[%s5229 + $0x1c] sm:$0xf]
        %v5238 = vld [vmem:[%s5229 + $0x20] sm:$0xf]
        %v5239 = vld [vmem:[%s5229 + $0x24] sm:$0xf]
        %v5240 = vld [vmem:[%s5229 + $0x28] sm:$0xf]
        %v5241 = vld [vmem:[%s5229 + $0x2c] sm:$0xf]
        %v5242 = vld [vmem:[%s5229 + $0x30] sm:$0xf]
        %v5243 = vld [vmem:[%s5229 + $0x34] sm:$0xf]
        %v5244 = vld [vmem:[%s5229 + $0x38] sm:$0xf]
        %v5245 = vld [vmem:[%s5229 + $0x3c] sm:$0xf]
        %v5246 = vld [vmem:[%s5229 + $0x40] sm:$0xf]
        %v5247 = vld [vmem:[%s5229 + $0x44] sm:$0xf]
        %v5248 = vld [vmem:[%s5229 + $0x48] sm:$0xf]
        %v5249 = vld [vmem:[%s5229 + $0x4c] sm:$0xf]
        %v5250 = vld [vmem:[%s5229 + $0x50] sm:$0xf]
        %v5251 = vld [vmem:[%s5229 + $0x54] sm:$0xf]
        %v5252 = vld [vmem:[%s5229 + $0x58] sm:$0xf]
        %v5253 = vld [vmem:[%s5229 + $0x5c] sm:$0xf]
        %v5254 = vld [vmem:[%s5229 + $0x60] sm:$0xf]
        %v5255 = vld [vmem:[%s5229 + $0x64] sm:$0xf]
        %v5256 = vld [vmem:[%s5229 + $0x68] sm:$0xf]
        %v5257 = vld [vmem:[%s5229 + $0x6c] sm:$0xf]
        %v5258 = vld [vmem:[%s5229 + $0x70] sm:$0xf]
        %v5259 = vld [vmem:[%s5229 + $0x74] sm:$0xf]
        %v5260 = vld [vmem:[%s5229 + $0x78] sm:$0xf]
        %v5261 = vld [vmem:[%s5229 + $0x7c] sm:$0xf]
        %s5262 = scalar_lea.vmem %s21, 1
        %v5263 = vld [vmem:[%s5262] sm:$0x1]
        %v5265 = vlaneseq
        %v5266 = vshrl.u32 %v5265, 7
        %v5267 = vsub.s32 0, %v5266
        %v5268 = vrot.slane %v5263, %v5267
        %v5302 = vunpack.c.l.b16 %v5230
        %v5303 = vunpack.c.l.b16 %v5231
        %v5304 = vunpack.c.l.b16 %v5232
        %v5305 = vunpack.c.l.b16 %v5233
        %v5306 = vunpack.c.l.b16 %v5234
        %v5307 = vunpack.c.l.b16 %v5235
        %v5308 = vunpack.c.l.b16 %v5236
        %v5309 = vunpack.c.l.b16 %v5237
        %v5310 = vunpack.c.l.b16 %v5238
        %v5311 = vunpack.c.l.b16 %v5239
        %v5312 = vunpack.c.l.b16 %v5240
        %v5313 = vunpack.c.l.b16 %v5241
        %v5314 = vunpack.c.l.b16 %v5242
        %v5315 = vunpack.c.l.b16 %v5243
        %v5316 = vunpack.c.l.b16 %v5244
        %v5317 = vunpack.c.l.b16 %v5245
        %v5318 = vunpack.c.l.b16 %v5246
        %v5319 = vunpack.c.l.b16 %v5247
        %v5320 = vunpack.c.l.b16 %v5248
        %v5321 = vunpack.c.l.b16 %v5249
        %v5322 = vunpack.c.l.b16 %v5250
        %v5323 = vunpack.c.l.b16 %v5251
        %v5324 = vunpack.c.l.b16 %v5252
        %v5325 = vunpack.c.l.b16 %v5253
        %v5326 = vunpack.c.l.b16 %v5254
        %v5327 = vunpack.c.l.b16 %v5255
        %v5328 = vunpack.c.l.b16 %v5256
        %v5329 = vunpack.c.l.b16 %v5257
        %v5330 = vunpack.c.l.b16 %v5258
        %v5331 = vunpack.c.l.b16 %v5259
        %v5332 = vunpack.c.l.b16 %v5260
        %v5333 = vunpack.c.l.b16 %v5261
        %v5334 = vpack.c.b16 %v5303, %v5302
        %v5335 = vpack.c.b16 %v5305, %v5304
        %v5336 = vpack.c.b16 %v5307, %v5306
        %v5337 = vpack.c.b16 %v5309, %v5308
        %v5338 = vpack.c.b16 %v5311, %v5310
        %v5339 = vpack.c.b16 %v5313, %v5312
        %v5340 = vpack.c.b16 %v5315, %v5314
        %v5341 = vpack.c.b16 %v5317, %v5316
        %v5342 = vpack.c.b16 %v5319, %v5318
        %v5343 = vpack.c.b16 %v5321, %v5320
        %v5344 = vpack.c.b16 %v5323, %v5322
        %v5345 = vpack.c.b16 %v5325, %v5324
        %v5346 = vpack.c.b16 %v5327, %v5326
        %v5347 = vpack.c.b16 %v5329, %v5328
        %v5348 = vpack.c.b16 %v5331, %v5330
        %v5349 = vpack.c.b16 %v5333, %v5332
        %5366 = vmatprep.subr.bf16.mxu0 0
        %5367 = vmatpush1.bf16.msra.mxu0 %v5334
        %5368 = vmatprep.subr.bf16.mxu0 0
        %5369 = vmatpush1.bf16.msra.mxu0 %v5335
        %5370 = vmatprep.subr.bf16.mxu0 0
        %5371 = vmatpush1.bf16.msra.mxu0 %v5336
        %5372 = vmatprep.subr.bf16.mxu0 0
        %5373 = vmatpush1.bf16.msra.mxu0 %v5337
        %5374 = vmatprep.subr.bf16.mxu0 0
        %5375 = vmatpush1.bf16.msra.mxu0 %v5338
        %5376 = vmatprep.subr.bf16.mxu0 0
        %5377 = vmatpush1.bf16.msra.mxu0 %v5339
        %5378 = vmatprep.subr.bf16.mxu0 0
        %5379 = vmatpush1.bf16.msra.mxu0 %v5340
        %5380 = vmatprep.subr.bf16.mxu0 0
        %5381 = vmatpush1.bf16.msra.mxu0 %v5341
        %5382 = vmatprep.subr.bf16.mxu0 0
        %5383 = vmatpush1.bf16.msra.mxu0 %v5342
        %5384 = vmatprep.subr.bf16.mxu0 0
        %5385 = vmatpush1.bf16.msra.mxu0 %v5343
        %5386 = vmatprep.subr.bf16.mxu0 0
        %5387 = vmatpush1.bf16.msra.mxu0 %v5344
        %5388 = vmatprep.subr.bf16.mxu0 0
        %5389 = vmatpush1.bf16.msra.mxu0 %v5345
        %5390 = vmatprep.subr.bf16.mxu0 0
        %5391 = vmatpush1.bf16.msra.mxu0 %v5346
        %5392 = vmatprep.subr.bf16.mxu0 0
        %5393 = vmatpush1.bf16.msra.mxu0 %v5347
        %5394 = vmatprep.subr.bf16.mxu0 0
        %5395 = vmatpush1.bf16.msra.mxu0 %v5348
        %5396 = vmatprep.subr.bf16.mxu0 0
        %5397 = vmatpush1.bf16.msra.mxu0 %v5349
        %5398 = vmatprep.mubr.bf16.mxu0 %v5228
        %5399 = vmatmul.mubr.bf16.gmra.mrb[0].mxu0 %v5227
        %v5400 = vpop.f32.mrb[0].mxu0
        %v5401 = vadd.f32 %v5268, %v5400
        %v5402 = vpop.f32.mrb[0].mxu0
        %v5403 = vpop.f32.mrb[0].mxu0
        %v5404 = vadd.f32 %v5268, %v5403
        %v5405 = vpop.f32.mrb[0].mxu0
        %5406 = vdwg.mxu0
        %v5407 = vadd.f32 %v5035, %v5401
        %v5408 = vadd.f32 %v5036, %v5404
        %s5409 = scalar_lea.vmem %s22, 1
        %v5410 = vld [vmem:[%s5409] sm:$0x1]
        %s5411 = scalar_lea.vmem %s23, 1
        %v5412 = vld [vmem:[%s5411] sm:$0x1]
        %5413 = vadd.xlane.f32.xlu0 %v5407
        %v5414 = vpop.xlane.xlu0 %5413
        %5415 = vadd.xlane.f32.xlu0 %v5408
        %v5416 = vpop.xlane.xlu0 %5415
        %v5417 = vmul.f32 %v5414, %v2562
        %v5418 = vmul.f32 %v5416, %v2562
        %v5419 = vsub.f32 %v5407, %v5417
        %v5420 = vsub.f32 %v5408, %v5418
        %v5421 = vmul.f32 %v5419, %v5419
        %v5422 = vmul.f32 %v5420, %v5420
        %5423 = vadd.xlane.f32.xlu0 %v5421
        %v5424 = vpop.xlane.xlu0 %5423
        %5425 = vadd.xlane.f32.xlu0 %v5422
        %v5426 = vpop.xlane.xlu0 %5425
        %v5427 = vmul.f32 %v5424, %v2562
        %v5428 = vmul.f32 %v5426, %v2562
        %v5429 = vadd.f32 %v5427, 1e-05
        %v5430 = vadd.f32 %v5428, 1e-05
        %v5431 = vrsqrt.pop %v5429
        %v5432 = vrsqrt.pop %v5430
        %v5433 = vmul.f32 %v5419, %v5431
        %v5434 = vmul.f32 %v5420, %v5432
        %v5436 = vlaneseq
        %v5437 = vshrl.u32 %v5436, 7
        %v5438 = vsub.s32 0, %v5437
        %v5439 = vrot.slane %v5410, %v5438
        %v5441 = vmul.f32 %v5433, %v5439
        %v5442 = vmul.f32 %v5434, %v5439
        %v5444 = vlaneseq
        %v5445 = vshrl.u32 %v5444, 7
        %v5446 = vsub.s32 0, %v5445
        %v5447 = vrot.slane %v5412, %v5446
        %v5449 = vadd.f32 %v5441, %v5447
        %v5450 = vadd.f32 %v5442, %v5447
        %v5451 = vpack.c.bf16 %v5450, %v5449
        %v5453 = vunpack.c.l.b16 %v5451
        %v5454 = vunpack.c.h.b16 %v5451
        %v5455 = vpack.c.b16 %v5453, %v5453
        %v5456 = vpack.c.b16 %v5454, %v5454
        %5459 = vst [vmem:[%s810] sm:$0xf] %v5455
        %5460 = vst [vmem:[%s810 + $0x4] sm:$0xf] %v5456
        %p5461 = scmp.lt.s32.totalorder %s38, 1
        %s5462 = scalar_select %p5461, %s38, 1
        %s5463 = smul.addr %s5462, 2
        %s5464 = smul.addr %s5463, 4
        %s5465 = scalar_lea.vmem %s24, %s5464
        // Predicated region
        $region137: #{hubert_encoder_forward.2} parent=115 // pred_check
          %p5466 = pneg %p565
        $region138: #{hubert_encoder_forward.2} parent=115 // pred_check_branch
          %5468 = sbr.rel (%p5466) target = $region140
        $region139: #{hubert_encoder_forward.2} parent=115 // pred_region
          _
        $region140: #{hubert_encoder_forward.2} parent=115 // pred_fallthru
          _
      $region116: #{hubert_encoder_forward.2} parent=5 // pred_fallthru
        _
      %p5469 = scmp.le.s32.totalorder 2, %s33
      // Predicated region
      $region141: #{hubert_encoder_forward.2} parent=5 // pred_check
        %p5470 = pneg %p5469
      $region142: #{hubert_encoder_forward.2} parent=5 // pred_check_branch
        %5472 = sbr.rel (%p5470) target = $region144
      $region143: #{hubert_encoder_forward.2} parent=5 // pred_region
        %s5473 = ssub.s32 %s33, 2
        // Predicated region
        $region145: #{hubert_encoder_forward.2} parent=143 // pred_check
          %p5474 = pneg %p571
        $region146: #{hubert_encoder_forward.2} parent=143 // pred_check_branch
          %5476 = sbr.rel (%p5474) target = $region148
        $region147: #{hubert_encoder_forward.2} parent=143 // pred_region
          %p5477 = scmp.lt.s32.totalorder %s39, 1
          %s5478 = scalar_select %p5477, %s39, 1
          %s5479 = smul.addr %s5478, 2
          %s5480 = smul.addr %s5479, 4
          %s5481 = scalar_lea.vmem %s24, %s5480
        $region148: #{hubert_encoder_forward.2} parent=143 // pred_fallthru
          _
      $region144: #{hubert_encoder_forward.2} parent=5 // pred_fallthru
        _
    $region6: #{hubert_encoder_forward.2} parent=1 // loop_footer
      %s37 = sadd.s32 1, %s33
    $region7: #{hubert_encoder_forward.2} parent=1 // loop_footer_branch
      %32 = sbr.rel target = $region3
    $region8: #{hubert_encoder_forward.2} parent=1 // loop_exit
      _
    %5482 = vsyncpa [#allocation4], 1
    %s5483 = scalar_lea.sflag [#allocation4], 1
    %5484 = vsyncpa %s5483, 1
    %5485 = vsyncpa [#allocation6], 1
    %5486 = vsyncpa [#allocation9], 1

</llo_original>
